<compile_context>
chip_gen: v7x
topology: tpu7x:2x2x1
jax: 0.10.0
libtpu: 0.0.40
codegen_flags: <defaults>
</compile_context>

<pallas_src>
import functools
import math

import jax
import jax.numpy as jnp
from jax.experimental import pallas as pl
from jax.experimental.pallas import tpu as pltpu


# ----------------------------- compiler params -----------------------------

def _vmem_limit_bytes():
    try:
        cap = pltpu.get_tpu_info().vmem_capacity_bytes
    except Exception:
        cap = 64 * 1024 * 1024
    return int(min(48 * 1024 * 1024, cap * 0.5))


_VMEM_LIMIT = _vmem_limit_bytes()


def _cp(dimension_semantics):
    return pltpu.CompilerParams(dimension_semantics=dimension_semantics,
                                vmem_limit_bytes=_VMEM_LIMIT)


def _row_tile(m, cap=256):
    for cand in (512, 256, 128, 64, 32, 16, 8):
        if cand <= cap and m % cand == 0:
            return cand
    return m


def _col_tile(n):
    for cand in (512, 256, 128):
        if n % cand == 0:
            return cand
    return n


# ----------------------------- kernels -----------------------------

def _bn_stats_kernel(x_ref, s_ref):
    """Accumulate per-channel [sum; sum_sq] into a sublane-padded (8, C) block."""
    @pl.when(pl.program_id(0) == 0)
    def _init():
        s_ref[...] = jnp.zeros_like(s_ref)

    x = x_ref[...]
    s = jnp.sum(x, axis=0, keepdims=True)
    ss = jnp.sum(x * x, axis=0, keepdims=True)
    rows = jax.lax.broadcasted_iota(jnp.int32, s_ref.shape, 0)
    s_ref[...] += jnp.where(rows == 0, s, jnp.where(rows == 1, ss, 0.0))


def _bn_scale_shift(s_ref, g_ref, b_ref, count, eps):
    inv = 1.0 / count
    mean = s_ref[0:1, :] * inv
    var = s_ref[1:2, :] * inv - mean * mean          # biased variance (training mode)
    scale = jax.lax.rsqrt(var + eps) * g_ref[...]
    shift = b_ref[...] - mean * scale
    return scale, shift


def _bn_relu_kernel(x_ref, s_ref, g_ref, b_ref, o_ref, *, count, eps):
    scale, shift = _bn_scale_shift(s_ref, g_ref, b_ref, count, eps)
    y = jnp.maximum(x_ref[...] * scale + shift, 0.0)
    o_ref[...] = y.astype(o_ref.dtype)


def _bnrelu_matmul_kernel(x_ref, s_ref, g_ref, b_ref, w_ref, o_ref, *, count, eps):
    scale, shift = _bn_scale_shift(s_ref, g_ref, b_ref, count, eps)
    a = jnp.maximum(x_ref[...] * scale + shift, 0.0).astype(jnp.bfloat16)
    o_ref[...] = jnp.dot(a, w_ref[...], preferred_element_type=jnp.float32)


def _bnrelu_matmul_add_kernel(x_ref, s_ref, g_ref, b_ref, w_ref, r_ref, o_ref,
                              *, count, eps):
    scale, shift = _bn_scale_shift(s_ref, g_ref, b_ref, count, eps)
    a = jnp.maximum(x_ref[...] * scale + shift, 0.0).astype(jnp.bfloat16)
    o_ref[...] = (jnp.dot(a, w_ref[...], preferred_element_type=jnp.float32)
                  + r_ref[...])


def _conv3x3_kernel(x_ref, w_ref, o_ref, acc_ref, *, taps, length):
    """Fused-im2col 3x3 conv: 9 shifted matmuls accumulated into VMEM scratch."""
    acc_ref[...] = jnp.zeros_like(acc_ref)
    for phase, start, tap in taps:                       # static, unrolled
        a = x_ref[phase, 0, pl.ds(start, length), :]
        acc_ref[...] += jnp.dot(a, w_ref[tap], preferred_element_type=jnp.float32)
    o_ref[0] = acc_ref[...]


# ----------------------------- wrappers -----------------------------

def _pallas_bn_stats(x2d):
    m, c = x2d.shape
    tm = _row_tile(m)
    return pl.pallas_call(
        _bn_stats_kernel,
        out_shape=jax.ShapeDtypeStruct((8, c), jnp.float32),
        grid=(m // tm,),
        in_specs=[pl.BlockSpec((tm, c), lambda i: (i, 0))],
        out_specs=pl.BlockSpec((8, c), lambda i: (0, 0)),
        compiler_params=_cp(("arbitrary",)),
    )(x2d)


def _pallas_bn_relu(x2d, stats, gamma, beta, count, out_dtype=jnp.bfloat16, eps=1e-5):
    m, c = x2d.shape
    tm = _row_tile(m)
    return pl.pallas_call(
        functools.partial(_bn_relu_kernel, count=float(count), eps=eps),
        out_shape=jax.ShapeDtypeStruct((m, c), out_dtype),
        grid=(m // tm,),
        in_specs=[
            pl.BlockSpec((tm, c), lambda i: (i, 0)),
            pl.BlockSpec((8, c), lambda i: (0, 0)),
            pl.BlockSpec((1, c), lambda i: (0, 0)),
            pl.BlockSpec((1, c), lambda i: (0, 0)),
        ],
        out_specs=pl.BlockSpec((tm, c), lambda i: (i, 0)),
        compiler_params=_cp(("parallel",)),
    )(x2d, stats, gamma.reshape(1, c), beta.reshape(1, c))


def _pallas_bnrelu_matmul(x2d, stats, gamma, beta, w_mat, count,
                          residual=None, eps=1e-5):
    """1x1 conv as a matmul with fused BN+ReLU prologue (and residual epilogue)."""
    m, k = x2d.shape
    k2, n = w_mat.shape
    assert k == k2
    tm = _row_tile(m)
    tn = _col_tile(n)
    in_specs = [
        pl.BlockSpec((tm, k), lambda i, j: (i, 0)),
        pl.BlockSpec((8, k), lambda i, j: (0, 0)),
        pl.BlockSpec((1, k), lambda i, j: (0, 0)),
        pl.BlockSpec((1, k), lambda i, j: (0, 0)),
        pl.BlockSpec((k, tn), lambda i, j: (0, j)),
    ]
    args = [x2d, stats, gamma.reshape(1, k), beta.reshape(1, k), w_mat]
    if residual is None:
        kern = functools.partial(_bnrelu_matmul_kernel, count=float(count), eps=eps)
    else:
        kern = functools.partial(_bnrelu_matmul_add_kernel, count=float(count), eps=eps)
        in_specs.append(pl.BlockSpec((tm, tn), lambda i, j: (i, j)))
        args.append(residual)
    return pl.pallas_call(
        kern,
        out_shape=jax.ShapeDtypeStruct((m, n), jnp.float32),
        grid=(m // tm, n // tn),
        in_specs=in_specs,
        out_specs=pl.BlockSpec((tm, tn), lambda i, j: (i, j)),
        compiler_params=_cp(("parallel", "parallel")),
    )(*args)


def _pallas_conv3x3(x_nhwc_bf16, w_oihw, stride):
    """3x3 conv, padding=1, arbitrary stride, without materializing im2col patches."""
    nb, h, w, cin = x_nhwc_bf16.shape
    cout = w_oihw.shape[0]
    s = stride
    hp, wp = h + 2, w + 2
    ph, pw = -(-hp // s), -(-wp // s)
    oh, ow = (hp - 3) // s + 1, (wp - 3) // s + 1
    length = (oh - 1) * pw + ow

    xp = jnp.pad(x_nhwc_bf16, ((0, 0), (1, 1), (1, 1), (0, 0)))
    xp = jnp.pad(xp, ((0, 0), (0, s * ph - hp), (0, s * pw - wp), (0, 0)))
    # phase split so that every kernel tap reads an *unstrided* window
    phases = jnp.stack([xp[:, a::s, b::s, :] for a in range(s) for b in range(s)],
                       axis=0).reshape(s * s, nb, ph * pw, cin)

    w9 = jnp.transpose(w_oihw, (2, 3, 1, 0)).reshape(9, cin, cout).astype(jnp.bfloat16)

    taps = tuple(((i % s) * s + (j % s), (i // s) * pw + (j // s), i * 3 + j)
                 for i in range(3) for j in range(3))

    out_flat = pl.pallas_call(
        functools.partial(_conv3x3_kernel, taps=taps, length=length),
        out_shape=jax.ShapeDtypeStruct((nb, length, cout), jnp.float32),
        grid=(nb,),
        in_specs=[
            pl.BlockSpec((s * s, 1, ph * pw, cin), lambda n: (0, n, 0, 0)),
            pl.BlockSpec((9, cin, cout), lambda n: (0, 0, 0)),
        ],
        out_specs=pl.BlockSpec((1, length, cout), lambda n: (n, 0, 0)),
        scratch_shapes=[pltpu.VMEM((length, cout), jnp.float32)],
        compiler_params=_cp(("parallel",)),
    )(phases, w9)

    pad_tail = oh * pw - length
    y = jnp.pad(out_flat, ((0, 0), (0, pad_tail), (0, 0)))
    return y.reshape(nb, oh, pw, cout)[:, :, :ow, :]


# ----------------------------- parameters -----------------------------

def init_params(key, in_planes, planes, stride, expansion=4):
    cout = expansion * planes
    ks = list(jax.random.split(key, 8))

    def conv_w(k, oc, ic, kh, kw):
        std = math.sqrt(2.0 / (ic * kh * kw))
        return std * jax.random.normal(k, (oc, ic, kh, kw), jnp.float32)

    def bn(k, c):
        k1, k2 = jax.random.split(k)
        return (1.0 + 0.1 * jax.random.normal(k1, (c,), jnp.float32),
                0.1 * jax.random.normal(k2, (c,), jnp.float32))

    params = {
        'stride': stride,
        'bn1': bn(ks[0], in_planes),
        'conv1': conv_w(ks[1], planes, in_planes, 1, 1),
        'bn2': bn(ks[2], planes),
        'conv2': conv_w(ks[3], planes, planes, 3, 3),
        'bn3': bn(ks[4], planes),
        'conv3': conv_w(ks[5], cout, planes, 1, 1),
    }
    if stride != 1 or in_planes != cout:
        params['shortcut'] = conv_w(ks[6], cout, in_planes, 1, 1)
    return params


# ----------------------------- forward -----------------------------

def preact_bottleneck_forward(params, x_nchw, eps=1e-5):
    stride = params['stride']
    x = jnp.transpose(x_nchw, (0, 2, 3, 1)).astype(jnp.float32)      # NCHW -> NHWC
    nb, h, w, cin = x.shape
    planes = params['conv1'].shape[0]
    cout = params['conv3'].shape[0]

    m = nb * h * w
    x2d = x.reshape(m, cin)

    # bn1 statistics over the full input
    stats1 = _pallas_bn_stats(x2d)
    g1, b1 = params['bn1']

    # conv1 (1x1, stride 1) with fused bn1+relu prologue
    w1 = params['conv1'].reshape(planes, cin).T.astype(jnp.bfloat16)
    out1 = _pallas_bnrelu_matmul(x2d, stats1, g1, b1, w1, count=m)   # (m, planes)

    # shortcut
    oh = (h - 1) // stride + 1
    ow = (w - 1) // stride + 1
    if 'shortcut' in params:
        x_sub = x[:, ::stride, ::stride, :].reshape(nb * oh * ow, cin)
        wsc = params['shortcut'].reshape(cout, cin).T.astype(jnp.bfloat16)
        shortcut = _pallas_bnrelu_matmul(x_sub, stats1, g1, b1, wsc, count=m)
    else:
        shortcut = x.reshape(m, cin)                  # identity (cin == cout, stride 1)

    # bn2 + relu (standalone: conv2 zero-pads AFTER the bn/relu), bf16 output
    stats2 = _pallas_bn_stats(out1)
    g2, b2 = params['bn2']
    a2 = _pallas_bn_relu(out1, stats2, g2, b2, count=m, out_dtype=jnp.bfloat16)
    a2 = a2.reshape(nb, h, w, planes)

    # conv2: 3x3, stride s, fused-im2col 9-tap accumulation
    out2 = _pallas_conv3x3(a2, params['conv2'], stride)              # (nb, oh, ow, planes)
    m2 = nb * oh * ow
    out2_2d = out2.reshape(m2, planes)

    # conv3 (1x1) with fused bn3+relu prologue and fused residual-add epilogue
    stats3 = _pallas_bn_stats(out2_2d)
    g3, b3 = params['bn3']
    w3 = params['conv3'].reshape(cout, planes).T.astype(jnp.bfloat16)
    out = _pallas_bnrelu_matmul(out2_2d, stats3, g3, b3, w3, count=m2,
                                residual=shortcut)                   # (m2, cout)

    out = out.reshape(nb, oh, ow, cout)
    return jnp.transpose(out, (0, 3, 1, 2))                          # NHWC -> NCHW


# ----------------------------- plain-JAX reference -----------------------------

def _ref_bn_relu(x_nhwc, gamma, beta, eps=1e-5):
    n, h, w, c = x_nhwc.shape
    x2 = x_nhwc.reshape(n * h * w, c)
    cnt = float(n * h * w)
    mean = jnp.sum(x2, axis=0) / cnt
    var = jnp.sum(x2 * x2, axis=0) / cnt - mean * mean
    scale = jax.lax.rsqrt(var + eps) * gamma
    shift = beta - mean * scale
    return jnp.maximum(x_nhwc * scale + shift, 0.0)


def _ref_conv(x_nhwc, w_oihw, stride, pad):
    w = jnp.transpose(w_oihw, (2, 3, 1, 0)).astype(jnp.bfloat16)
    return jax.lax.conv_general_dilated(
        x_nhwc.astype(jnp.bfloat16), w,
        window_strides=(stride, stride),
        padding=((pad, pad), (pad, pad)),
        dimension_numbers=('NHWC', 'HWIO', 'NHWC'),
        preferred_element_type=jnp.float32)


def reference_forward(params, x_nchw):
    s = params['stride']
    x = jnp.transpose(x_nchw, (0, 2, 3, 1)).astype(jnp.float32)
    a1 = _ref_bn_relu(x, *params['bn1'])
    shortcut = _ref_conv(a1, params['shortcut'], s, 0) if 'shortcut' in params else x
    o1 = _ref_conv(a1, params['conv1'], 1, 0)
    a2 = _ref_bn_relu(o1, *params['bn2'])
    o2 = _ref_conv(a2, params['conv2'], s, 1)
    a3 = _ref_bn_relu(o2, *params['bn3'])
    o3 = _ref_conv(a3, params['conv3'], 1, 0)
    return jnp.transpose(o3 + shortcut, (0, 3, 1, 2))


# ----------------------------- test -----------------------------

if __name__ == "__main__":
    key = jax.random.PRNGKey(0)
    batch, hw = 2, 16
    configs = [
        (32, 16, 1),   # projection shortcut (channel change), stride-1 fused 3x3
        (64, 16, 2),   # projection shortcut via stride, phase-decomposed 3x3
        (64, 16, 1),   # identity shortcut
    ]
    for cfg_idx, (cin, planes, stride) in enumerate(configs):
        kp, kx, key = jax.random.split(key, 3)
        params = init_params(kp, cin, planes, stride)
        x = jax.random.normal(kx, (batch, cin, hw, hw), jnp.float32)   # NCHW input

        fwd = jax.jit(functools.partial(preact_bottleneck_forward, params))
        out = jax.block_until_ready(fwd(x))

        ohw = (hw - 1) // stride + 1
        assert out.shape == (batch, 4 * planes, ohw, ohw), out.shape
        assert out.dtype == jnp.float32

        ref = jax.block_until_ready(
            jax.jit(functools.partial(reference_forward, params))(x))
        err = float(jnp.max(jnp.abs(out - ref)))
        scale = float(jnp.max(jnp.abs(ref)))
        assert err <= 0.05 * scale + 0.05, (cfg_idx, err, scale)

    print("KERNEL_OK")
</pallas_src>

<mosaic_0001>
module attributes {stable_mosaic.version = 11 : i64} {
  func.func @_bnrelu_matmul_kernel(%arg0: i32, %arg1: i32, %arg2: memref<256x32xf32, #tpu.memory_space<vmem>>, %arg3: memref<8x32xf32, #tpu.memory_space<vmem>>, %arg4: memref<1x32xf32, #tpu.memory_space<vmem>>, %arg5: memref<1x32xf32, #tpu.memory_space<vmem>>, %arg6: memref<32x16xbf16, #tpu.memory_space<vmem>>, %arg7: memref<256x16xf32, #tpu.memory_space<vmem>>) attributes {dimension_semantics = [#tpu.dimension_semantics<parallel>, #tpu.dimension_semantics<parallel>], iteration_bounds = array<i64: 2, 1>, scalar_prefetch = 0 : i64, scratch_operands = 0 : i64, tpu.core_type = #tpu.core_type<tc>, window_params = [{transform_indices = @transform_0, window_bounds = array<i64: 256, 32>}, {pipeline_mode = #tpu.pipeline_mode<synchronous>, transform_indices = @transform_1, window_bounds = array<i64: 8, 32>}, {pipeline_mode = #tpu.pipeline_mode<synchronous>, transform_indices = @transform_2, window_bounds = array<i64: 1, 32>}, {pipeline_mode = #tpu.pipeline_mode<synchronous>, transform_indices = @transform_3, window_bounds = array<i64: 1, 32>}, {transform_indices = @transform_4, window_bounds = array<i64: 32, 16>}, {transform_indices = @transform_5, window_bounds = array<i64: 256, 16>}]} {
    %c0 = arith.constant 0 : index
    %c0_0 = arith.constant 0 : index
    %0 = vector.load %arg3[%c0, %c0_0] : memref<8x32xf32, #tpu.memory_space<vmem>>, vector<1x32xf32>
    %cst = arith.constant 0.001953125 : f32
    %1 = vector.broadcast %cst : f32 to vector<1x32xf32>
    %2 = arith.mulf %0, %1 : vector<1x32xf32>
    %c1 = arith.constant 1 : index
    %c0_1 = arith.constant 0 : index
    %3 = vector.load %arg3[%c1, %c0_1] : memref<8x32xf32, #tpu.memory_space<vmem>>, vector<1x32xf32>
    %cst_2 = arith.constant 0.001953125 : f32
    %4 = vector.broadcast %cst_2 : f32 to vector<1x32xf32>
    %5 = arith.mulf %3, %4 : vector<1x32xf32>
    %6 = arith.mulf %2, %2 : vector<1x32xf32>
    %7 = arith.subf %5, %6 : vector<1x32xf32>
    %cst_3 = arith.constant 9.99999974E-6 : f32
    %8 = vector.broadcast %cst_3 : f32 to vector<1x32xf32>
    %9 = arith.addf %7, %8 : vector<1x32xf32>
    %10 = math.rsqrt %9 : vector<1x32xf32>
    %c0_4 = arith.constant 0 : index
    %c0_5 = arith.constant 0 : index
    %11 = vector.load %arg4[%c0_4, %c0_5] : memref<1x32xf32, #tpu.memory_space<vmem>>, vector<1x32xf32>
    %12 = arith.mulf %10, %11 : vector<1x32xf32>
    %c0_6 = arith.constant 0 : index
    %c0_7 = arith.constant 0 : index
    %13 = vector.load %arg5[%c0_6, %c0_7] : memref<1x32xf32, #tpu.memory_space<vmem>>, vector<1x32xf32>
    %14 = arith.mulf %2, %12 : vector<1x32xf32>
    %15 = arith.subf %13, %14 : vector<1x32xf32>
    %c0_8 = arith.constant 0 : index
    %c0_9 = arith.constant 0 : index
    %16 = vector.load %arg2[%c0_8, %c0_9] : memref<256x32xf32, #tpu.memory_space<vmem>>, vector<256x32xf32>
    %17 = vector.broadcast %12 : vector<1x32xf32> to vector<256x32xf32>
    %18 = arith.mulf %16, %17 : vector<256x32xf32>
    %19 = vector.broadcast %15 : vector<1x32xf32> to vector<256x32xf32>
    %20 = arith.addf %18, %19 : vector<256x32xf32>
    %cst_10 = arith.constant 0.000000e+00 : f32
    %21 = vector.broadcast %cst_10 : f32 to vector<256x32xf32>
    %22 = arith.maximumf %20, %21 : vector<256x32xf32>
    %23 = arith.truncf %22 : vector<256x32xf32> to vector<256x32xbf16>
    %c0_11 = arith.constant 0 : index
    %c0_12 = arith.constant 0 : index
    %24 = vector.load %arg6[%c0_11, %c0_12] : memref<32x16xbf16, #tpu.memory_space<vmem>>, vector<32x16xbf16>
    %cst_13 = arith.constant dense<0.000000e+00> : vector<256x16xf32>
    %25 = tpu.matmul %23, %24, %cst_13 {dimension_numbers = #tpu.dot_dimension_numbers<[1], [0], [0], [1], [0, 0, 1, 1], [], []>} : vector<256x32xbf16>, vector<32x16xbf16>, vector<256x16xf32> -> vector<256x16xf32>
    %c0_14 = arith.constant 0 : index
    %c0_15 = arith.constant 0 : index
    %26 = vector.load %arg7[%c0_14, %c0_15] : memref<256x16xf32, #tpu.memory_space<vmem>>, vector<256x16xf32>
    tpu.vector_store %arg7[%c0_14, %c0_15], %25 {strides = array<i32>} : memref<256x16xf32, #tpu.memory_space<vmem>>, vector<256x16xf32>,
    return
  }
  func.func @transform_0(%arg0: i32, %arg1: i32) -> (i32, i32) {
    %c0_i32 = arith.constant 0 : i32
    %c0_i32_0 = arith.constant 0 : i32
    return %arg0, %c0_i32 : i32, i32
  }
  func.func @transform_1(%arg0: i32, %arg1: i32) -> (i32, i32) {
    %c0_i32 = arith.constant 0 : i32
    %c0_i32_0 = arith.constant 0 : i32
    %c0_i32_1 = arith.constant 0 : i32
    return %c0_i32, %c0_i32_0 : i32, i32
  }
  func.func @transform_2(%arg0: i32, %arg1: i32) -> (i32, i32) {
    %c0_i32 = arith.constant 0 : i32
    %c0_i32_0 = arith.constant 0 : i32
    %c0_i32_1 = arith.constant 0 : i32
    return %c0_i32, %c0_i32_0 : i32, i32
  }
  func.func @transform_3(%arg0: i32, %arg1: i32) -> (i32, i32) {
    %c0_i32 = arith.constant 0 : i32
    %c0_i32_0 = arith.constant 0 : i32
    %c0_i32_1 = arith.constant 0 : i32
    return %c0_i32, %c0_i32_0 : i32, i32
  }
  func.func @transform_4(%arg0: i32, %arg1: i32) -> (i32, i32) {
    %c0_i32 = arith.constant 0 : i32
    %c0_i32_0 = arith.constant 0 : i32
    return %c0_i32, %arg1 : i32, i32
  }
  func.func @transform_5(%arg0: i32, %arg1: i32) -> (i32, i32) {
    %c0_i32 = arith.constant 0 : i32
    return %arg0, %arg1 : i32, i32
  }
}

module attributes {stable_mosaic.version = 11 : i64} {
  func.func @_bn_stats_kernel(%arg0: i32, %arg1: memref<256x16xf32, #tpu.memory_space<vmem>>, %arg2: memref<8x16xf32, #tpu.memory_space<vmem>>) attributes {dimension_semantics = [#tpu.dimension_semantics<arbitrary>], iteration_bounds = array<i64: 2>, scalar_prefetch = 0 : i64, scratch_operands = 0 : i64, tpu.core_type = #tpu.core_type<tc>, window_params = [{transform_indices = @transform_0, window_bounds = array<i64: 256, 16>}, {pipeline_mode = #tpu.pipeline_mode<synchronous>, transform_indices = @transform_1, window_bounds = array<i64: 8, 16>}]} {
    %c0_i32 = arith.constant 0 : i32
    %0 = arith.cmpi eq, %arg0, %c0_i32 : i32
    %1 = arith.extui %0 : i1 to i32
    %c0_i32_0 = arith.constant 0 : i32
    %2 = arith.cmpi ne, %1, %c0_i32_0 : i32
    scf.if %2 {
      %cst_9 = arith.constant 0.000000e+00 : f32
      %24 = vector.broadcast %cst_9 : f32 to vector<8x16xf32>
      %c0_10 = arith.constant 0 : index
      %c0_11 = arith.constant 0 : index
      %25 = vector.load %arg2[%c0_10, %c0_11] : memref<8x16xf32, #tpu.memory_space<vmem>>, vector<8x16xf32>
      tpu.vector_store %arg2[%c0_10, %c0_11], %24 {strides = array<i32>} : memref<8x16xf32, #tpu.memory_space<vmem>>, vector<8x16xf32>,
    } else {
    }
    %c0 = arith.constant 0 : index
    %c0_1 = arith.constant 0 : index
    %3 = vector.load %arg1[%c0, %c0_1] : memref<256x16xf32, #tpu.memory_space<vmem>>, vector<256x16xf32>
    %cst = arith.constant dense<0.000000e+00> : vector<16xf32>
    %4 = vector.multi_reduction <add>, %3, %cst [0] : vector<256x16xf32> to vector<16xf32>
    %5 = vector.shape_cast %4 : vector<16xf32> to vector<1x16xf32>
    %6 = arith.mulf %3, %3 : vector<256x16xf32>
    %cst_2 = arith.constant dense<0.000000e+00> : vector<16xf32>
    %7 = vector.multi_reduction <add>, %6, %cst_2 [0] : vector<256x16xf32> to vector<16xf32>
    %8 = vector.shape_cast %7 : vector<16xf32> to vector<1x16xf32>
    %9 = tpu.iota {dimensions = array<i32: 0>} : vector<8x16xi32>
    %c0_3 = arith.constant 0 : index
    %c0_4 = arith.constant 0 : index
    %10 = vector.load %arg2[%c0_3, %c0_4] : memref<8x16xf32, #tpu.memory_space<vmem>>, vector<8x16xf32>
    %c0_i32_5 = arith.constant 0 : i32
    %11 = vector.broadcast %c0_i32_5 : i32 to vector<8x16xi32>
    %12 = arith.cmpi eq, %9, %11 : vector<8x16xi32>
    %c1_i32 = arith.constant 1 : i32
    %13 = vector.broadcast %c1_i32 : i32 to vector<8x16xi32>
    %14 = arith.cmpi eq, %9, %13 : vector<8x16xi32>
    %cst_6 = arith.constant 0.000000e+00 : f32
    %15 = vector.shape_cast %8 : vector<1x16xf32> to vector<1x16xf32>
    %16 = vector.broadcast %15 : vector<1x16xf32> to vector<8x16xf32>
    %17 = vector.broadcast %cst_6 : f32 to vector<8x16xf32>
    %18 = arith.select %14, %16, %17 : vector<8x16xi1>, vector<8x16xf32>
    %19 = vector.shape_cast %5 : vector<1x16xf32> to vector<1x16xf32>
    %20 = vector.broadcast %19 : vector<1x16xf32> to vector<8x16xf32>
    %21 = arith.select %12, %20, %18 : vector<8x16xi1>, vector<8x16xf32>
    %22 = arith.addf %10, %21 : vector<8x16xf32>
    %c0_7 = arith.constant 0 : index
    %c0_8 = arith.constant 0 : index
    %23 = vector.load %arg2[%c0_7, %c0_8] : memref<8x16xf32, #tpu.memory_space<vmem>>, vector<8x16xf32>
    tpu.vector_store %arg2[%c0_7, %c0_8], %22 {strides = array<i32>} : memref<8x16xf32, #tpu.memory_space<vmem>>, vector<8x16xf32>,
    return
  }
  func.func @transform_0(%arg0: i32) -> (i32, i32) {
    %c0_i32 = arith.constant 0 : i32
    %c0_i32_0 = arith.constant 0 : i32
    return %arg0, %c0_i32 : i32, i32
  }
  func.func @transform_1(%arg0: i32) -> (i32, i32) {
    %c0_i32 = arith.constant 0 : i32
    %c0_i32_0 = arith.constant 0 : i32
    %c0_i32_1 = arith.constant 0 : i32
    return %c0_i32, %c0_i32_0 : i32, i32
  }
}

module attributes {stable_mosaic.version = 11 : i64} {
  func.func @_bn_stats_kernel(%arg0: i32, %arg1: memref<256x32xf32, #tpu.memory_space<vmem>>, %arg2: memref<8x32xf32, #tpu.memory_space<vmem>>) attributes {dimension_semantics = [#tpu.dimension_semantics<arbitrary>], iteration_bounds = array<i64: 2>, scalar_prefetch = 0 : i64, scratch_operands = 0 : i64, tpu.core_type = #tpu.core_type<tc>, window_params = [{transform_indices = @transform_0, window_bounds = array<i64: 256, 32>}, {pipeline_mode = #tpu.pipeline_mode<synchronous>, transform_indices = @transform_1, window_bounds = array<i64: 8, 32>}]} {
    %c0_i32 = arith.constant 0 : i32
    %0 = arith.cmpi eq, %arg0, %c0_i32 : i32
    %1 = arith.extui %0 : i1 to i32
    %c0_i32_0 = arith.constant 0 : i32
    %2 = arith.cmpi ne, %1, %c0_i32_0 : i32
    scf.if %2 {
      %cst_9 = arith.constant 0.000000e+00 : f32
      %24 = vector.broadcast %cst_9 : f32 to vector<8x32xf32>
      %c0_10 = arith.constant 0 : index
      %c0_11 = arith.constant 0 : index
      %25 = vector.load %arg2[%c0_10, %c0_11] : memref<8x32xf32, #tpu.memory_space<vmem>>, vector<8x32xf32>
      tpu.vector_store %arg2[%c0_10, %c0_11], %24 {strides = array<i32>} : memref<8x32xf32, #tpu.memory_space<vmem>>, vector<8x32xf32>,
    } else {
    }
    %c0 = arith.constant 0 : index
    %c0_1 = arith.constant 0 : index
    %3 = vector.load %arg1[%c0, %c0_1] : memref<256x32xf32, #tpu.memory_space<vmem>>, vector<256x32xf32>
    %cst = arith.constant dense<0.000000e+00> : vector<32xf32>
    %4 = vector.multi_reduction <add>, %3, %cst [0] : vector<256x32xf32> to vector<32xf32>
    %5 = vector.shape_cast %4 : vector<32xf32> to vector<1x32xf32>
    %6 = arith.mulf %3, %3 : vector<256x32xf32>
    %cst_2 = arith.constant dense<0.000000e+00> : vector<32xf32>
    %7 = vector.multi_reduction <add>, %6, %cst_2 [0] : vector<256x32xf32> to vector<32xf32>
    %8 = vector.shape_cast %7 : vector<32xf32> to vector<1x32xf32>
    %9 = tpu.iota {dimensions = array<i32: 0>} : vector<8x32xi32>
    %c0_3 = arith.constant 0 : index
    %c0_4 = arith.constant 0 : index
    %10 = vector.load %arg2[%c0_3, %c0_4] : memref<8x32xf32, #tpu.memory_space<vmem>>, vector<8x32xf32>
    %c0_i32_5 = arith.constant 0 : i32
    %11 = vector.broadcast %c0_i32_5 : i32 to vector<8x32xi32>
    %12 = arith.cmpi eq, %9, %11 : vector<8x32xi32>
    %c1_i32 = arith.constant 1 : i32
    %13 = vector.broadcast %c1_i32 : i32 to vector<8x32xi32>
    %14 = arith.cmpi eq, %9, %13 : vector<8x32xi32>
    %cst_6 = arith.constant 0.000000e+00 : f32
    %15 = vector.shape_cast %8 : vector<1x32xf32> to vector<1x32xf32>
    %16 = vector.broadcast %15 : vector<1x32xf32> to vector<8x32xf32>
    %17 = vector.broadcast %cst_6 : f32 to vector<8x32xf32>
    %18 = arith.select %14, %16, %17 : vector<8x32xi1>, vector<8x32xf32>
    %19 = vector.shape_cast %5 : vector<1x32xf32> to vector<1x32xf32>
    %20 = vector.broadcast %19 : vector<1x32xf32> to vector<8x32xf32>
    %21 = arith.select %12, %20, %18 : vector<8x32xi1>, vector<8x32xf32>
    %22 = arith.addf %10, %21 : vector<8x32xf32>
    %c0_7 = arith.constant 0 : index
    %c0_8 = arith.constant 0 : index
    %23 = vector.load %arg2[%c0_7, %c0_8] : memref<8x32xf32, #tpu.memory_space<vmem>>, vector<8x32xf32>
    tpu.vector_store %arg2[%c0_7, %c0_8], %22 {strides = array<i32>} : memref<8x32xf32, #tpu.memory_space<vmem>>, vector<8x32xf32>,
    return
  }
  func.func @transform_0(%arg0: i32) -> (i32, i32) {
    %c0_i32 = arith.constant 0 : i32
    %c0_i32_0 = arith.constant 0 : i32
    return %arg0, %c0_i32 : i32, i32
  }
  func.func @transform_1(%arg0: i32) -> (i32, i32) {
    %c0_i32 = arith.constant 0 : i32
    %c0_i32_0 = arith.constant 0 : i32
    %c0_i32_1 = arith.constant 0 : i32
    return %c0_i32, %c0_i32_0 : i32, i32
  }
}

module attributes {stable_mosaic.version = 11 : i64} {
  func.func @_bn_relu_kernel(%arg0: i32, %arg1: memref<256x16xf32, #tpu.memory_space<vmem>>, %arg2: memref<8x16xf32, #tpu.memory_space<vmem>>, %arg3: memref<1x16xf32, #tpu.memory_space<vmem>>, %arg4: memref<1x16xf32, #tpu.memory_space<vmem>>, %arg5: memref<256x16xbf16, #tpu.memory_space<vmem>>) attributes {dimension_semantics = [#tpu.dimension_semantics<parallel>], iteration_bounds = array<i64: 2>, scalar_prefetch = 0 : i64, scratch_operands = 0 : i64, tpu.core_type = #tpu.core_type<tc>, window_params = [{transform_indices = @transform_0, window_bounds = array<i64: 256, 16>}, {pipeline_mode = #tpu.pipeline_mode<synchronous>, transform_indices = @transform_1, window_bounds = array<i64: 8, 16>}, {pipeline_mode = #tpu.pipeline_mode<synchronous>, transform_indices = @transform_2, window_bounds = array<i64: 1, 16>}, {pipeline_mode = #tpu.pipeline_mode<synchronous>, transform_indices = @transform_3, window_bounds = array<i64: 1, 16>}, {transform_indices = @transform_4, window_bounds = array<i64: 256, 16>}]} {
    %c0 = arith.constant 0 : index
    %c0_0 = arith.constant 0 : index
    %0 = vector.load %arg2[%c0, %c0_0] : memref<8x16xf32, #tpu.memory_space<vmem>>, vector<1x16xf32>
    %cst = arith.constant 0.001953125 : f32
    %1 = vector.broadcast %cst : f32 to vector<1x16xf32>
    %2 = arith.mulf %0, %1 : vector<1x16xf32>
    %c1 = arith.constant 1 : index
    %c0_1 = arith.constant 0 : index
    %3 = vector.load %arg2[%c1, %c0_1] : memref<8x16xf32, #tpu.memory_space<vmem>>, vector<1x16xf32>
    %cst_2 = arith.constant 0.001953125 : f32
    %4 = vector.broadcast %cst_2 : f32 to vector<1x16xf32>
    %5 = arith.mulf %3, %4 : vector<1x16xf32>
    %6 = arith.mulf %2, %2 : vector<1x16xf32>
    %7 = arith.subf %5, %6 : vector<1x16xf32>
    %cst_3 = arith.constant 9.99999974E-6 : f32
    %8 = vector.broadcast %cst_3 : f32 to vector<1x16xf32>
    %9 = arith.addf %7, %8 : vector<1x16xf32>
    %10 = math.rsqrt %9 : vector<1x16xf32>
    %c0_4 = arith.constant 0 : index
    %c0_5 = arith.constant 0 : index
    %11 = vector.load %arg3[%c0_4, %c0_5] : memref<1x16xf32, #tpu.memory_space<vmem>>, vector<1x16xf32>
    %12 = arith.mulf %10, %11 : vector<1x16xf32>
    %c0_6 = arith.constant 0 : index
    %c0_7 = arith.constant 0 : index
    %13 = vector.load %arg4[%c0_6, %c0_7] : memref<1x16xf32, #tpu.memory_space<vmem>>, vector<1x16xf32>
    %14 = arith.mulf %2, %12 : vector<1x16xf32>
    %15 = arith.subf %13, %14 : vector<1x16xf32>
    %c0_8 = arith.constant 0 : index
    %c0_9 = arith.constant 0 : index
    %16 = vector.load %arg1[%c0_8, %c0_9] : memref<256x16xf32, #tpu.memory_space<vmem>>, vector<256x16xf32>
    %17 = vector.broadcast %12 : vector<1x16xf32> to vector<256x16xf32>
    %18 = arith.mulf %16, %17 : vector<256x16xf32>
    %19 = vector.broadcast %15 : vector<1x16xf32> to vector<256x16xf32>
    %20 = arith.addf %18, %19 : vector<256x16xf32>
    %cst_10 = arith.constant 0.000000e+00 : f32
    %21 = vector.broadcast %cst_10 : f32 to vector<256x16xf32>
    %22 = arith.maximumf %20, %21 : vector<256x16xf32>
    %23 = arith.truncf %22 : vector<256x16xf32> to vector<256x16xbf16>
    %c0_11 = arith.constant 0 : index
    %c0_12 = arith.constant 0 : index
    %24 = vector.load %arg5[%c0_11, %c0_12] : memref<256x16xbf16, #tpu.memory_space<vmem>>, vector<256x16xbf16>
    tpu.vector_store %arg5[%c0_11, %c0_12], %23 {strides = array<i32>} : memref<256x16xbf16, #tpu.memory_space<vmem>>, vector<256x16xbf16>,
    return
  }
  func.func @transform_0(%arg0: i32) -> (i32, i32) {
    %c0_i32 = arith.constant 0 : i32
    %c0_i32_0 = arith.constant 0 : i32
    return %arg0, %c0_i32 : i32, i32
  }
  func.func @transform_1(%arg0: i32) -> (i32, i32) {
    %c0_i32 = arith.constant 0 : i32
    %c0_i32_0 = arith.constant 0 : i32
    %c0_i32_1 = arith.constant 0 : i32
    return %c0_i32, %c0_i32_0 : i32, i32
  }
  func.func @transform_2(%arg0: i32) -> (i32, i32) {
    %c0_i32 = arith.constant 0 : i32
    %c0_i32_0 = arith.constant 0 : i32
    %c0_i32_1 = arith.constant 0 : i32
    return %c0_i32, %c0_i32_0 : i32, i32
  }
  func.func @transform_3(%arg0: i32) -> (i32, i32) {
    %c0_i32 = arith.constant 0 : i32
    %c0_i32_0 = arith.constant 0 : i32
    %c0_i32_1 = arith.constant 0 : i32
    return %c0_i32, %c0_i32_0 : i32, i32
  }
  func.func @transform_4(%arg0: i32) -> (i32, i32) {
    %c0_i32 = arith.constant 0 : i32
    %c0_i32_0 = arith.constant 0 : i32
    return %arg0, %c0_i32 : i32, i32
  }
}

module attributes {stable_mosaic.version = 11 : i64} {
  func.func @_conv3x3_kernel(%arg0: i32, %arg1: memref<1x1x324x16xbf16, #tpu.memory_space<vmem>>, %arg2: memref<9x16x16xbf16, #tpu.memory_space<vmem>>, %arg3: memref<1x286x16xf32, #tpu.memory_space<vmem>>, %arg4: memref<286x16xf32, #tpu.memory_space<vmem>>) attributes {dimension_semantics = [#tpu.dimension_semantics<parallel>], iteration_bounds = array<i64: 2>, scalar_prefetch = 0 : i64, scratch_operands = 1 : i64, tpu.core_type = #tpu.core_type<tc>, window_params = [{transform_indices = @transform_0, window_bounds = array<i64: 1, 1, 324, 16>}, {pipeline_mode = #tpu.pipeline_mode<synchronous>, transform_indices = @transform_1, window_bounds = array<i64: 9, 16, 16>}, {transform_indices = @transform_2, window_bounds = array<i64: 1, 286, 16>}]} {
    %cst = arith.constant 0.000000e+00 : f32
    %0 = vector.broadcast %cst : f32 to vector<286x16xf32>
    %c0 = arith.constant 0 : index
    %c0_0 = arith.constant 0 : index
    %1 = vector.load %arg4[%c0, %c0_0] : memref<286x16xf32, #tpu.memory_space<vmem>>, vector<286x16xf32>
    tpu.vector_store %arg4[%c0, %c0_0], %0 {strides = array<i32>} : memref<286x16xf32, #tpu.memory_space<vmem>>, vector<286x16xf32>,
    %c0_1 = arith.constant 0 : index
    %c0_2 = arith.constant 0 : index
    %c0_3 = arith.constant 0 : index
    %c0_4 = arith.constant 0 : index
    %2 = vector.load %arg1[%c0_1, %c0_2, %c0_3, %c0_4] : memref<1x1x324x16xbf16, #tpu.memory_space<vmem>>, vector<1x1x286x16xbf16>
    %3 = vector.shape_cast %2 : vector<1x1x286x16xbf16> to vector<286x16xbf16>
    %c0_5 = arith.constant 0 : index
    %c0_6 = arith.constant 0 : index
    %4 = vector.load %arg4[%c0_5, %c0_6] : memref<286x16xf32, #tpu.memory_space<vmem>>, vector<286x16xf32>
    %c0_7 = arith.constant 0 : index
    %c0_8 = arith.constant 0 : index
    %c0_9 = arith.constant 0 : index
    %5 = vector.load %arg2[%c0_7, %c0_8, %c0_9] : memref<9x16x16xbf16, #tpu.memory_space<vmem>>, vector<1x16x16xbf16>
    %6 = vector.shape_cast %5 : vector<1x16x16xbf16> to vector<16x16xbf16>
    %cst_10 = arith.constant dense<0.000000e+00> : vector<286x16xf32>
    %7 = tpu.matmul %3, %6, %cst_10 {dimension_numbers = #tpu.dot_dimension_numbers<[1], [0], [0], [1], [0, 0, 1, 1], [], []>} : vector<286x16xbf16>, vector<16x16xbf16>, vector<286x16xf32> -> vector<286x16xf32>
    %8 = arith.addf %4, %7 : vector<286x16xf32>
    %c0_11 = arith.constant 0 : index
    %c0_12 = arith.constant 0 : index
    %9 = vector.load %arg4[%c0_11, %c0_12] : memref<286x16xf32, #tpu.memory_space<vmem>>, vector<286x16xf32>
    tpu.vector_store %arg4[%c0_11, %c0_12], %8 {strides = array<i32>} : memref<286x16xf32, #tpu.memory_space<vmem>>, vector<286x16xf32>,
    %c0_13 = arith.constant 0 : index
    %c0_14 = arith.constant 0 : index
    %c1 = arith.constant 1 : index
    %c0_15 = arith.constant 0 : index
    %10 = vector.load %arg1[%c0_13, %c0_14, %c1, %c0_15] : memref<1x1x324x16xbf16, #tpu.memory_space<vmem>>, vector<1x1x286x16xbf16>
    %11 = vector.shape_cast %10 : vector<1x1x286x16xbf16> to vector<286x16xbf16>
    %c0_16 = arith.constant 0 : index
    %c0_17 = arith.constant 0 : index
    %12 = vector.load %arg4[%c0_16, %c0_17] : memref<286x16xf32, #tpu.memory_space<vmem>>, vector<286x16xf32>
    %c1_18 = arith.constant 1 : index
    %c0_19 = arith.constant 0 : index
    %c0_20 = arith.constant 0 : index
    %13 = vector.load %arg2[%c1_18, %c0_19, %c0_20] : memref<9x16x16xbf16, #tpu.memory_space<vmem>>, vector<1x16x16xbf16>
    %14 = vector.shape_cast %13 : vector<1x16x16xbf16> to vector<16x16xbf16>
    %cst_21 = arith.constant dense<0.000000e+00> : vector<286x16xf32>
    %15 = tpu.matmul %11, %14, %cst_21 {dimension_numbers = #tpu.dot_dimension_numbers<[1], [0], [0], [1], [0, 0, 1, 1], [], []>} : vector<286x16xbf16>, vector<16x16xbf16>, vector<286x16xf32> -> vector<286x16xf32>
    %16 = arith.addf %12, %15 : vector<286x16xf32>
    %c0_22 = arith.constant 0 : index
    %c0_23 = arith.constant 0 : index
    %17 = vector.load %arg4[%c0_22, %c0_23] : memref<286x16xf32, #tpu.memory_space<vmem>>, vector<286x16xf32>
    tpu.vector_store %arg4[%c0_22, %c0_23], %16 {strides = array<i32>} : memref<286x16xf32, #tpu.memory_space<vmem>>, vector<286x16xf32>,
    %c0_24 = arith.constant 0 : index
    %c0_25 = arith.constant 0 : index
    %c2 = arith.constant 2 : index
    %c0_26 = arith.constant 0 : index
    %18 = vector.load %arg1[%c0_24, %c0_25, %c2, %c0_26] : memref<1x1x324x16xbf16, #tpu.memory_space<vmem>>, vector<1x1x286x16xbf16>
    %19 = vector.shape_cast %18 : vector<1x1x286x16xbf16> to vector<286x16xbf16>
    %c0_27 = arith.constant 0 : index
    %c0_28 = arith.constant 0 : index
    %20 = vector.load %arg4[%c0_27, %c0_28] : memref<286x16xf32, #tpu.memory_space<vmem>>, vector<286x16xf32>
    %c2_29 = arith.constant 2 : index
    %c0_30 = arith.constant 0 : index
    %c0_31 = arith.constant 0 : index
    %21 = vector.load %arg2[%c2_29, %c0_30, %c0_31] : memref<9x16x16xbf16, #tpu.memory_space<vmem>>, vector<1x16x16xbf16>
    %22 = vector.shape_cast %21 : vector<1x16x16xbf16> to vector<16x16xbf16>
    %cst_32 = arith.constant dense<0.000000e+00> : vector<286x16xf32>
    %23 = tpu.matmul %19, %22, %cst_32 {dimension_numbers = #tpu.dot_dimension_numbers<[1], [0], [0], [1], [0, 0, 1, 1], [], []>} : vector<286x16xbf16>, vector<16x16xbf16>, vector<286x16xf32> -> vector<286x16xf32>
    %24 = arith.addf %20, %23 : vector<286x16xf32>
    %c0_33 = arith.constant 0 : index
    %c0_34 = arith.constant 0 : index
    %25 = vector.load %arg4[%c0_33, %c0_34] : memref<286x16xf32, #tpu.memory_space<vmem>>, vector<286x16xf32>
    tpu.vector_store %arg4[%c0_33, %c0_34], %24 {strides = array<i32>} : memref<286x16xf32, #tpu.memory_space<vmem>>, vector<286x16xf32>,
    %c0_35 = arith.constant 0 : index
    %c0_36 = arith.constant 0 : index
    %c18 = arith.constant 18 : index
    %c0_37 = arith.constant 0 : index
    %26 = vector.load %arg1[%c0_35, %c0_36, %c18, %c0_37] : memref<1x1x324x16xbf16, #tpu.memory_space<vmem>>, vector<1x1x286x16xbf16>
    %27 = vector.shape_cast %26 : vector<1x1x286x16xbf16> to vector<286x16xbf16>
    %c0_38 = arith.constant 0 : index
    %c0_39 = arith.constant 0 : index
    %28 = vector.load %arg4[%c0_38, %c0_39] : memref<286x16xf32, #tpu.memory_space<vmem>>, vector<286x16xf32>
    %c3 = arith.constant 3 : index
    %c0_40 = arith.constant 0 : index
    %c0_41 = arith.constant 0 : index
    %29 = vector.load %arg2[%c3, %c0_40, %c0_41] : memref<9x16x16xbf16, #tpu.memory_space<vmem>>, vector<1x16x16xbf16>
    %30 = vector.shape_cast %29 : vector<1x16x16xbf16> to vector<16x16xbf16>
    %cst_42 = arith.constant dense<0.000000e+00> : vector<286x16xf32>
    %31 = tpu.matmul %27, %30, %cst_42 {dimension_numbers = #tpu.dot_dimension_numbers<[1], [0], [0], [1], [0, 0, 1, 1], [], []>} : vector<286x16xbf16>, vector<16x16xbf16>, vector<286x16xf32> -> vector<286x16xf32>
    %32 = arith.addf %28, %31 : vector<286x16xf32>
    %c0_43 = arith.constant 0 : index
    %c0_44 = arith.constant 0 : index
    %33 = vector.load %arg4[%c0_43, %c0_44] : memref<286x16xf32, #tpu.memory_space<vmem>>, vector<286x16xf32>
    tpu.vector_store %arg4[%c0_43, %c0_44], %32 {strides = array<i32>} : memref<286x16xf32, #tpu.memory_space<vmem>>, vector<286x16xf32>,
    %c0_45 = arith.constant 0 : index
    %c0_46 = arith.constant 0 : index
    %c19 = arith.constant 19 : index
    %c0_47 = arith.constant 0 : index
    %34 = vector.load %arg1[%c0_45, %c0_46, %c19, %c0_47] : memref<1x1x324x16xbf16, #tpu.memory_space<vmem>>, vector<1x1x286x16xbf16>
    %35 = vector.shape_cast %34 : vector<1x1x286x16xbf16> to vector<286x16xbf16>
    %c0_48 = arith.constant 0 : index
    %c0_49 = arith.constant 0 : index
    %36 = vector.load %arg4[%c0_48, %c0_49] : memref<286x16xf32, #tpu.memory_space<vmem>>, vector<286x16xf32>
    %c4 = arith.constant 4 : index
    %c0_50 = arith.constant 0 : index
    %c0_51 = arith.constant 0 : index
    %37 = vector.load %arg2[%c4, %c0_50, %c0_51] : memref<9x16x16xbf16, #tpu.memory_space<vmem>>, vector<1x16x16xbf16>
    %38 = vector.shape_cast %37 : vector<1x16x16xbf16> to vector<16x16xbf16>
    %cst_52 = arith.constant dense<0.000000e+00> : vector<286x16xf32>
    %39 = tpu.matmul %35, %38, %cst_52 {dimension_numbers = #tpu.dot_dimension_numbers<[1], [0], [0], [1], [0, 0, 1, 1], [], []>} : vector<286x16xbf16>, vector<16x16xbf16>, vector<286x16xf32> -> vector<286x16xf32>
    %40 = arith.addf %36, %39 : vector<286x16xf32>
    %c0_53 = arith.constant 0 : index
    %c0_54 = arith.constant 0 : index
    %41 = vector.load %arg4[%c0_53, %c0_54] : memref<286x16xf32, #tpu.memory_space<vmem>>, vector<286x16xf32>
    tpu.vector_store %arg4[%c0_53, %c0_54], %40 {strides = array<i32>} : memref<286x16xf32, #tpu.memory_space<vmem>>, vector<286x16xf32>,
    %c0_55 = arith.constant 0 : index
    %c0_56 = arith.constant 0 : index
    %c20 = arith.constant 20 : index
    %c0_57 = arith.constant 0 : index
    %42 = vector.load %arg1[%c0_55, %c0_56, %c20, %c0_57] : memref<1x1x324x16xbf16, #tpu.memory_space<vmem>>, vector<1x1x286x16xbf16>
    %43 = vector.shape_cast %42 : vector<1x1x286x16xbf16> to vector<286x16xbf16>
    %c0_58 = arith.constant 0 : index
    %c0_59 = arith.constant 0 : index
    %44 = vector.load %arg4[%c0_58, %c0_59] : memref<286x16xf32, #tpu.memory_space<vmem>>, vector<286x16xf32>
    %c5 = arith.constant 5 : index
    %c0_60 = arith.constant 0 : index
    %c0_61 = arith.constant 0 : index
    %45 = vector.load %arg2[%c5, %c0_60, %c0_61] : memref<9x16x16xbf16, #tpu.memory_space<vmem>>, vector<1x16x16xbf16>
    %46 = vector.shape_cast %45 : vector<1x16x16xbf16> to vector<16x16xbf16>
    %cst_62 = arith.constant dense<0.000000e+00> : vector<286x16xf32>
    %47 = tpu.matmul %43, %46, %cst_62 {dimension_numbers = #tpu.dot_dimension_numbers<[1], [0], [0], [1], [0, 0, 1, 1], [], []>} : vector<286x16xbf16>, vector<16x16xbf16>, vector<286x16xf32> -> vector<286x16xf32>
    %48 = arith.addf %44, %47 : vector<286x16xf32>
    %c0_63 = arith.constant 0 : index
    %c0_64 = arith.constant 0 : index
    %49 = vector.load %arg4[%c0_63, %c0_64] : memref<286x16xf32, #tpu.memory_space<vmem>>, vector<286x16xf32>
    tpu.vector_store %arg4[%c0_63, %c0_64], %48 {strides = array<i32>} : memref<286x16xf32, #tpu.memory_space<vmem>>, vector<286x16xf32>,
    %c0_65 = arith.constant 0 : index
    %c0_66 = arith.constant 0 : index
    %c36 = arith.constant 36 : index
    %c0_67 = arith.constant 0 : index
    %50 = vector.load %arg1[%c0_65, %c0_66, %c36, %c0_67] : memref<1x1x324x16xbf16, #tpu.memory_space<vmem>>, vector<1x1x286x16xbf16>
    %51 = vector.shape_cast %50 : vector<1x1x286x16xbf16> to vector<286x16xbf16>
    %c0_68 = arith.constant 0 : index
    %c0_69 = arith.constant 0 : index
    %52 = vector.load %arg4[%c0_68, %c0_69] : memref<286x16xf32, #tpu.memory_space<vmem>>, vector<286x16xf32>
    %c6 = arith.constant 6 : index
    %c0_70 = arith.constant 0 : index
    %c0_71 = arith.constant 0 : index
    %53 = vector.load %arg2[%c6, %c0_70, %c0_71] : memref<9x16x16xbf16, #tpu.memory_space<vmem>>, vector<1x16x16xbf16>
    %54 = vector.shape_cast %53 : vector<1x16x16xbf16> to vector<16x16xbf16>
    %cst_72 = arith.constant dense<0.000000e+00> : vector<286x16xf32>
    %55 = tpu.matmul %51, %54, %cst_72 {dimension_numbers = #tpu.dot_dimension_numbers<[1], [0], [0], [1], [0, 0, 1, 1], [], []>} : vector<286x16xbf16>, vector<16x16xbf16>, vector<286x16xf32> -> vector<286x16xf32>
    %56 = arith.addf %52, %55 : vector<286x16xf32>
    %c0_73 = arith.constant 0 : index
    %c0_74 = arith.constant 0 : index
    %57 = vector.load %arg4[%c0_73, %c0_74] : memref<286x16xf32, #tpu.memory_space<vmem>>, vector<286x16xf32>
    tpu.vector_store %arg4[%c0_73, %c0_74], %56 {strides = array<i32>} : memref<286x16xf32, #tpu.memory_space<vmem>>, vector<286x16xf32>,
    %c0_75 = arith.constant 0 : index
    %c0_76 = arith.constant 0 : index
    %c37 = arith.constant 37 : index
    %c0_77 = arith.constant 0 : index
    %58 = vector.load %arg1[%c0_75, %c0_76, %c37, %c0_77] : memref<1x1x324x16xbf16, #tpu.memory_space<vmem>>, vector<1x1x286x16xbf16>
    %59 = vector.shape_cast %58 : vector<1x1x286x16xbf16> to vector<286x16xbf16>
    %c0_78 = arith.constant 0 : index
    %c0_79 = arith.constant 0 : index
    %60 = vector.load %arg4[%c0_78, %c0_79] : memref<286x16xf32, #tpu.memory_space<vmem>>, vector<286x16xf32>
    %c7 = arith.constant 7 : index
    %c0_80 = arith.constant 0 : index
    %c0_81 = arith.constant 0 : index
    %61 = vector.load %arg2[%c7, %c0_80, %c0_81] : memref<9x16x16xbf16, #tpu.memory_space<vmem>>, vector<1x16x16xbf16>
    %62 = vector.shape_cast %61 : vector<1x16x16xbf16> to vector<16x16xbf16>
    %cst_82 = arith.constant dense<0.000000e+00> : vector<286x16xf32>
    %63 = tpu.matmul %59, %62, %cst_82 {dimension_numbers = #tpu.dot_dimension_numbers<[1], [0], [0], [1], [0, 0, 1, 1], [], []>} : vector<286x16xbf16>, vector<16x16xbf16>, vector<286x16xf32> -> vector<286x16xf32>
    %64 = arith.addf %60, %63 : vector<286x16xf32>
    %c0_83 = arith.constant 0 : index
    %c0_84 = arith.constant 0 : index
    %65 = vector.load %arg4[%c0_83, %c0_84] : memref<286x16xf32, #tpu.memory_space<vmem>>, vector<286x16xf32>
    tpu.vector_store %arg4[%c0_83, %c0_84], %64 {strides = array<i32>} : memref<286x16xf32, #tpu.memory_space<vmem>>, vector<286x16xf32>,
    %c0_85 = arith.constant 0 : index
    %c0_86 = arith.constant 0 : index
    %c38 = arith.constant 38 : index
    %c0_87 = arith.constant 0 : index
    %66 = vector.load %arg1[%c0_85, %c0_86, %c38, %c0_87] : memref<1x1x324x16xbf16, #tpu.memory_space<vmem>>, vector<1x1x286x16xbf16>
    %67 = vector.shape_cast %66 : vector<1x1x286x16xbf16> to vector<286x16xbf16>
    %c0_88 = arith.constant 0 : index
    %c0_89 = arith.constant 0 : index
    %68 = vector.load %arg4[%c0_88, %c0_89] : memref<286x16xf32, #tpu.memory_space<vmem>>, vector<286x16xf32>
    %c8 = arith.constant 8 : index
    %c0_90 = arith.constant 0 : index
    %c0_91 = arith.constant 0 : index
    %69 = vector.load %arg2[%c8, %c0_90, %c0_91] : memref<9x16x16xbf16, #tpu.memory_space<vmem>>, vector<1x16x16xbf16>
    %70 = vector.shape_cast %69 : vector<1x16x16xbf16> to vector<16x16xbf16>
    %cst_92 = arith.constant dense<0.000000e+00> : vector<286x16xf32>
    %71 = tpu.matmul %67, %70, %cst_92 {dimension_numbers = #tpu.dot_dimension_numbers<[1], [0], [0], [1], [0, 0, 1, 1], [], []>} : vector<286x16xbf16>, vector<16x16xbf16>, vector<286x16xf32> -> vector<286x16xf32>
    %72 = arith.addf %68, %71 : vector<286x16xf32>
    %c0_93 = arith.constant 0 : index
    %c0_94 = arith.constant 0 : index
    %73 = vector.load %arg4[%c0_93, %c0_94] : memref<286x16xf32, #tpu.memory_space<vmem>>, vector<286x16xf32>
    tpu.vector_store %arg4[%c0_93, %c0_94], %72 {strides = array<i32>} : memref<286x16xf32, #tpu.memory_space<vmem>>, vector<286x16xf32>,
    %c0_95 = arith.constant 0 : index
    %c0_96 = arith.constant 0 : index
    %74 = vector.load %arg4[%c0_95, %c0_96] : memref<286x16xf32, #tpu.memory_space<vmem>>, vector<286x16xf32>
    %c0_97 = arith.constant 0 : index
    %c0_98 = arith.constant 0 : index
    %c0_99 = arith.constant 0 : index
    %75 = vector.load %arg3[%c0_97, %c0_98, %c0_99] : memref<1x286x16xf32, #tpu.memory_space<vmem>>, vector<1x286x16xf32>
    %76 = vector.shape_cast %75 : vector<1x286x16xf32> to vector<286x16xf32>
    %77 = vector.shape_cast %74 : vector<286x16xf32> to vector<1x286x16xf32>
    tpu.vector_store %arg3[%c0_97, %c0_98, %c0_99], %77 {strides = array<i32>} : memref<1x286x16xf32, #tpu.memory_space<vmem>>, vector<1x286x16xf32>,
    return
  }
  func.func @transform_0(%arg0: i32) -> (i32, i32, i32, i32) {
    %c0_i32 = arith.constant 0 : i32
    %c0_i32_0 = arith.constant 0 : i32
    %c0_i32_1 = arith.constant 0 : i32
    %c0_i32_2 = arith.constant 0 : i32
    return %c0_i32, %arg0, %c0_i32_0, %c0_i32_1 : i32, i32, i32, i32
  }
  func.func @transform_1(%arg0: i32) -> (i32, i32, i32) {
    %c0_i32 = arith.constant 0 : i32
    %c0_i32_0 = arith.constant 0 : i32
    %c0_i32_1 = arith.constant 0 : i32
    %c0_i32_2 = arith.constant 0 : i32
    return %c0_i32, %c0_i32_0, %c0_i32_1 : i32, i32, i32
  }
  func.func @transform_2(%arg0: i32) -> (i32, i32, i32) {
    %c0_i32 = arith.constant 0 : i32
    %c0_i32_0 = arith.constant 0 : i32
    %c0_i32_1 = arith.constant 0 : i32
    return %arg0, %c0_i32, %c0_i32_0 : i32, i32, i32
  }
}

module attributes {stable_mosaic.version = 11 : i64} {
  func.func @_bnrelu_matmul_kernel(%arg0: i32, %arg1: i32, %arg2: memref<256x32xf32, #tpu.memory_space<vmem>>, %arg3: memref<8x32xf32, #tpu.memory_space<vmem>>, %arg4: memref<1x32xf32, #tpu.memory_space<vmem>>, %arg5: memref<1x32xf32, #tpu.memory_space<vmem>>, %arg6: memref<32x64xbf16, #tpu.memory_space<vmem>>, %arg7: memref<256x64xf32, #tpu.memory_space<vmem>>) attributes {dimension_semantics = [#tpu.dimension_semantics<parallel>, #tpu.dimension_semantics<parallel>], iteration_bounds = array<i64: 2, 1>, scalar_prefetch = 0 : i64, scratch_operands = 0 : i64, tpu.core_type = #tpu.core_type<tc>, window_params = [{transform_indices = @transform_0, window_bounds = array<i64: 256, 32>}, {pipeline_mode = #tpu.pipeline_mode<synchronous>, transform_indices = @transform_1, window_bounds = array<i64: 8, 32>}, {pipeline_mode = #tpu.pipeline_mode<synchronous>, transform_indices = @transform_2, window_bounds = array<i64: 1, 32>}, {pipeline_mode = #tpu.pipeline_mode<synchronous>, transform_indices = @transform_3, window_bounds = array<i64: 1, 32>}, {transform_indices = @transform_4, window_bounds = array<i64: 32, 64>}, {transform_indices = @transform_5, window_bounds = array<i64: 256, 64>}]} {
    %c0 = arith.constant 0 : index
    %c0_0 = arith.constant 0 : index
    %0 = vector.load %arg3[%c0, %c0_0] : memref<8x32xf32, #tpu.memory_space<vmem>>, vector<1x32xf32>
    %cst = arith.constant 0.001953125 : f32
    %1 = vector.broadcast %cst : f32 to vector<1x32xf32>
    %2 = arith.mulf %0, %1 : vector<1x32xf32>
    %c1 = arith.constant 1 : index
    %c0_1 = arith.constant 0 : index
    %3 = vector.load %arg3[%c1, %c0_1] : memref<8x32xf32, #tpu.memory_space<vmem>>, vector<1x32xf32>
    %cst_2 = arith.constant 0.001953125 : f32
    %4 = vector.broadcast %cst_2 : f32 to vector<1x32xf32>
    %5 = arith.mulf %3, %4 : vector<1x32xf32>
    %6 = arith.mulf %2, %2 : vector<1x32xf32>
    %7 = arith.subf %5, %6 : vector<1x32xf32>
    %cst_3 = arith.constant 9.99999974E-6 : f32
    %8 = vector.broadcast %cst_3 : f32 to vector<1x32xf32>
    %9 = arith.addf %7, %8 : vector<1x32xf32>
    %10 = math.rsqrt %9 : vector<1x32xf32>
    %c0_4 = arith.constant 0 : index
    %c0_5 = arith.constant 0 : index
    %11 = vector.load %arg4[%c0_4, %c0_5] : memref<1x32xf32, #tpu.memory_space<vmem>>, vector<1x32xf32>
    %12 = arith.mulf %10, %11 : vector<1x32xf32>
    %c0_6 = arith.constant 0 : index
    %c0_7 = arith.constant 0 : index
    %13 = vector.load %arg5[%c0_6, %c0_7] : memref<1x32xf32, #tpu.memory_space<vmem>>, vector<1x32xf32>
    %14 = arith.mulf %2, %12 : vector<1x32xf32>
    %15 = arith.subf %13, %14 : vector<1x32xf32>
    %c0_8 = arith.constant 0 : index
    %c0_9 = arith.constant 0 : index
    %16 = vector.load %arg2[%c0_8, %c0_9] : memref<256x32xf32, #tpu.memory_space<vmem>>, vector<256x32xf32>
    %17 = vector.broadcast %12 : vector<1x32xf32> to vector<256x32xf32>
    %18 = arith.mulf %16, %17 : vector<256x32xf32>
    %19 = vector.broadcast %15 : vector<1x32xf32> to vector<256x32xf32>
    %20 = arith.addf %18, %19 : vector<256x32xf32>
    %cst_10 = arith.constant 0.000000e+00 : f32
    %21 = vector.broadcast %cst_10 : f32 to vector<256x32xf32>
    %22 = arith.maximumf %20, %21 : vector<256x32xf32>
    %23 = arith.truncf %22 : vector<256x32xf32> to vector<256x32xbf16>
    %c0_11 = arith.constant 0 : index
    %c0_12 = arith.constant 0 : index
    %24 = vector.load %arg6[%c0_11, %c0_12] : memref<32x64xbf16, #tpu.memory_space<vmem>>, vector<32x64xbf16>
    %cst_13 = arith.constant dense<0.000000e+00> : vector<256x64xf32>
    %25 = tpu.matmul %23, %24, %cst_13 {dimension_numbers = #tpu.dot_dimension_numbers<[1], [0], [0], [1], [0, 0, 1, 1], [], []>} : vector<256x32xbf16>, vector<32x64xbf16>, vector<256x64xf32> -> vector<256x64xf32>
    %c0_14 = arith.constant 0 : index
    %c0_15 = arith.constant 0 : index
    %26 = vector.load %arg7[%c0_14, %c0_15] : memref<256x64xf32, #tpu.memory_space<vmem>>, vector<256x64xf32>
    tpu.vector_store %arg7[%c0_14, %c0_15], %25 {strides = array<i32>} : memref<256x64xf32, #tpu.memory_space<vmem>>, vector<256x64xf32>,
    return
  }
  func.func @transform_0(%arg0: i32, %arg1: i32) -> (i32, i32) {
    %c0_i32 = arith.constant 0 : i32
    %c0_i32_0 = arith.constant 0 : i32
    return %arg0, %c0_i32 : i32, i32
  }
  func.func @transform_1(%arg0: i32, %arg1: i32) -> (i32, i32) {
    %c0_i32 = arith.constant 0 : i32
    %c0_i32_0 = arith.constant 0 : i32
    %c0_i32_1 = arith.constant 0 : i32
    return %c0_i32, %c0_i32_0 : i32, i32
  }
  func.func @transform_2(%arg0: i32, %arg1: i32) -> (i32, i32) {
    %c0_i32 = arith.constant 0 : i32
    %c0_i32_0 = arith.constant 0 : i32
    %c0_i32_1 = arith.constant 0 : i32
    return %c0_i32, %c0_i32_0 : i32, i32
  }
  func.func @transform_3(%arg0: i32, %arg1: i32) -> (i32, i32) {
    %c0_i32 = arith.constant 0 : i32
    %c0_i32_0 = arith.constant 0 : i32
    %c0_i32_1 = arith.constant 0 : i32
    return %c0_i32, %c0_i32_0 : i32, i32
  }
  func.func @transform_4(%arg0: i32, %arg1: i32) -> (i32, i32) {
    %c0_i32 = arith.constant 0 : i32
    %c0_i32_0 = arith.constant 0 : i32
    return %c0_i32, %arg1 : i32, i32
  }
  func.func @transform_5(%arg0: i32, %arg1: i32) -> (i32, i32) {
    %c0_i32 = arith.constant 0 : i32
    return %arg0, %arg1 : i32, i32
  }
}

module attributes {stable_mosaic.version = 11 : i64} {
  func.func @_bnrelu_matmul_add_kernel(%arg0: i32, %arg1: i32, %arg2: memref<256x16xf32, #tpu.memory_space<vmem>>, %arg3: memref<8x16xf32, #tpu.memory_space<vmem>>, %arg4: memref<1x16xf32, #tpu.memory_space<vmem>>, %arg5: memref<1x16xf32, #tpu.memory_space<vmem>>, %arg6: memref<16x64xbf16, #tpu.memory_space<vmem>>, %arg7: memref<256x64xf32, #tpu.memory_space<vmem>>, %arg8: memref<256x64xf32, #tpu.memory_space<vmem>>) attributes {dimension_semantics = [#tpu.dimension_semantics<parallel>, #tpu.dimension_semantics<parallel>], iteration_bounds = array<i64: 2, 1>, scalar_prefetch = 0 : i64, scratch_operands = 0 : i64, tpu.core_type = #tpu.core_type<tc>, window_params = [{transform_indices = @transform_0, window_bounds = array<i64: 256, 16>}, {pipeline_mode = #tpu.pipeline_mode<synchronous>, transform_indices = @transform_1, window_bounds = array<i64: 8, 16>}, {pipeline_mode = #tpu.pipeline_mode<synchronous>, transform_indices = @transform_2, window_bounds = array<i64: 1, 16>}, {pipeline_mode = #tpu.pipeline_mode<synchronous>, transform_indices = @transform_3, window_bounds = array<i64: 1, 16>}, {transform_indices = @transform_4, window_bounds = array<i64: 16, 64>}, {transform_indices = @transform_5, window_bounds = array<i64: 256, 64>}, {transform_indices = @transform_6, window_bounds = array<i64: 256, 64>}]} {
    %c0 = arith.constant 0 : index
    %c0_0 = arith.constant 0 : index
    %0 = vector.load %arg3[%c0, %c0_0] : memref<8x16xf32, #tpu.memory_space<vmem>>, vector<1x16xf32>
    %cst = arith.constant 0.001953125 : f32
    %1 = vector.broadcast %cst : f32 to vector<1x16xf32>
    %2 = arith.mulf %0, %1 : vector<1x16xf32>
    %c1 = arith.constant 1 : index
    %c0_1 = arith.constant 0 : index
    %3 = vector.load %arg3[%c1, %c0_1] : memref<8x16xf32, #tpu.memory_space<vmem>>, vector<1x16xf32>
    %cst_2 = arith.constant 0.001953125 : f32
    %4 = vector.broadcast %cst_2 : f32 to vector<1x16xf32>
    %5 = arith.mulf %3, %4 : vector<1x16xf32>
    %6 = arith.mulf %2, %2 : vector<1x16xf32>
    %7 = arith.subf %5, %6 : vector<1x16xf32>
    %cst_3 = arith.constant 9.99999974E-6 : f32
    %8 = vector.broadcast %cst_3 : f32 to vector<1x16xf32>
    %9 = arith.addf %7, %8 : vector<1x16xf32>
    %10 = math.rsqrt %9 : vector<1x16xf32>
    %c0_4 = arith.constant 0 : index
    %c0_5 = arith.constant 0 : index
    %11 = vector.load %arg4[%c0_4, %c0_5] : memref<1x16xf32, #tpu.memory_space<vmem>>, vector<1x16xf32>
    %12 = arith.mulf %10, %11 : vector<1x16xf32>
    %c0_6 = arith.constant 0 : index
    %c0_7 = arith.constant 0 : index
    %13 = vector.load %arg5[%c0_6, %c0_7] : memref<1x16xf32, #tpu.memory_space<vmem>>, vector<1x16xf32>
    %14 = arith.mulf %2, %12 : vector<1x16xf32>
    %15 = arith.subf %13, %14 : vector<1x16xf32>
    %c0_8 = arith.constant 0 : index
    %c0_9 = arith.constant 0 : index
    %16 = vector.load %arg2[%c0_8, %c0_9] : memref<256x16xf32, #tpu.memory_space<vmem>>, vector<256x16xf32>
    %17 = vector.broadcast %12 : vector<1x16xf32> to vector<256x16xf32>
    %18 = arith.mulf %16, %17 : vector<256x16xf32>
    %19 = vector.broadcast %15 : vector<1x16xf32> to vector<256x16xf32>
    %20 = arith.addf %18, %19 : vector<256x16xf32>
    %cst_10 = arith.constant 0.000000e+00 : f32
    %21 = vector.broadcast %cst_10 : f32 to vector<256x16xf32>
    %22 = arith.maximumf %20, %21 : vector<256x16xf32>
    %23 = arith.truncf %22 : vector<256x16xf32> to vector<256x16xbf16>
    %c0_11 = arith.constant 0 : index
    %c0_12 = arith.constant 0 : index
    %24 = vector.load %arg6[%c0_11, %c0_12] : memref<16x64xbf16, #tpu.memory_space<vmem>>, vector<16x64xbf16>
    %cst_13 = arith.constant dense<0.000000e+00> : vector<256x64xf32>
    %25 = tpu.matmul %23, %24, %cst_13 {dimension_numbers = #tpu.dot_dimension_numbers<[1], [0], [0], [1], [0, 0, 1, 1], [], []>} : vector<256x16xbf16>, vector<16x64xbf16>, vector<256x64xf32> -> vector<256x64xf32>
    %c0_14 = arith.constant 0 : index
    %c0_15 = arith.constant 0 : index
    %26 = vector.load %arg7[%c0_14, %c0_15] : memref<256x64xf32, #tpu.memory_space<vmem>>, vector<256x64xf32>
    %27 = arith.addf %25, %26 : vector<256x64xf32>
    %c0_16 = arith.constant 0 : index
    %c0_17 = arith.constant 0 : index
    %28 = vector.load %arg8[%c0_16, %c0_17] : memref<256x64xf32, #tpu.memory_space<vmem>>, vector<256x64xf32>
    tpu.vector_store %arg8[%c0_16, %c0_17], %27 {strides = array<i32>} : memref<256x64xf32, #tpu.memory_space<vmem>>, vector<256x64xf32>,
    return
  }
  func.func @transform_0(%arg0: i32, %arg1: i32) -> (i32, i32) {
    %c0_i32 = arith.constant 0 : i32
    %c0_i32_0 = arith.constant 0 : i32
    return %arg0, %c0_i32 : i32, i32
  }
  func.func @transform_1(%arg0: i32, %arg1: i32) -> (i32, i32) {
    %c0_i32 = arith.constant 0 : i32
    %c0_i32_0 = arith.constant 0 : i32
    %c0_i32_1 = arith.constant 0 : i32
    return %c0_i32, %c0_i32_0 : i32, i32
  }
  func.func @transform_2(%arg0: i32, %arg1: i32) -> (i32, i32) {
    %c0_i32 = arith.constant 0 : i32
    %c0_i32_0 = arith.constant 0 : i32
    %c0_i32_1 = arith.constant 0 : i32
    return %c0_i32, %c0_i32_0 : i32, i32
  }
  func.func @transform_3(%arg0: i32, %arg1: i32) -> (i32, i32) {
    %c0_i32 = arith.constant 0 : i32
    %c0_i32_0 = arith.constant 0 : i32
    %c0_i32_1 = arith.constant 0 : i32
    return %c0_i32, %c0_i32_0 : i32, i32
  }
  func.func @transform_4(%arg0: i32, %arg1: i32) -> (i32, i32) {
    %c0_i32 = arith.constant 0 : i32
    %c0_i32_0 = arith.constant 0 : i32
    return %c0_i32, %arg1 : i32, i32
  }
  func.func @transform_5(%arg0: i32, %arg1: i32) -> (i32, i32) {
    %c0_i32 = arith.constant 0 : i32
    return %arg0, %arg1 : i32, i32
  }
  func.func @transform_6(%arg0: i32, %arg1: i32) -> (i32, i32) {
    %c0_i32 = arith.constant 0 : i32
    return %arg0, %arg1 : i32, i32
  }
}

</mosaic_0001>

<llo_original>
// kernel: preact_bottleneck_forward.8
$region0: #{preact_bottleneck_forward.8}
  #allocation0 [shape = 'u32[]', space=smem, size = 0x4, offset = 0x4, fixed_abs, tag = 'smem constant byte address 0x4 - core index']
  #allocation1 [shape = 'u32[144,128]{1,0:T(1,128)}', space=vmem, size = 0x12000, scoped, tag = 'internal scratch']
  %s0 = inlined_call_operand.hbm [shape: f32[512,32], index: 0, kind: input, shape index: {}]
  %s1 = inlined_call_operand.vmem [shape: f32[8,32], index: 1, kind: output, shape index: {}]
  %s2 = sld [smem:[#allocation0]]
  $region45: #{preact_bottleneck_forward.8} parent=0
    _
  %s4 = ssub.s32 1, %s2
  %s5 = scalar_select 0, %s4, %s2
  $region1: #{preact_bottleneck_forward.8} parent=0
    #allocation2 [shape = 'u8[262144]{0}', space=vmem, size = 0x40000, scoped, tag = 'input window, operand 0']
    #allocation3 [shape = 's32[2]{0}', space=sflag, size = 0x8, scoped, tag = 'scoped memory for preact_bottleneck_forward.8']
    %6 = vsyncpa [#allocation3], 0
    %s7 = scalar_lea.sflag [#allocation3], 1
    %8 = vsyncpa %s7, 0
    loop: start=0, step=1, limit=4
    $region2: #{preact_bottleneck_forward.8} parent=1 // loop_pre_header
      _
    $region3: #{preact_bottleneck_forward.8} parent=1 // loop_header
      %s10 = sphi 0, %s14
      %p11 = scmp.ge.s32.totalorder %s10, 4
      %s20 = sphi 0, %s22
      %s23 = sphi 0, %s20
      %s24 = sphi 0, %s23
      %s40 = sphi 0, %s24
      %s44 = sphi 0, %s44
      %s46 = sphi 0, %s44
      %s47 = sphi 0, %s46
      %s61 = sphi 0, %s47
    $region4: #{preact_bottleneck_forward.8} parent=1 // loop_header_branch
      %13 = sbr.rel (%p11) target = $region8
    $region5: #{preact_bottleneck_forward.8} parent=1 // loop_body
      %s15 = ssub.s32 %s10, 1
      %s16 = ssub.s32 %s10, 2
      %s17 = sadd.s32 %s10, 1
      %s18 = ssub.s32 %s10, %s17
      %p19 = scmp.eq.s32.totalorder %s18, 0
      %s21 = sadd.s32 %s20, 1
      %s22 = scalar_select %p19, %s20, %s21
      %p25 = pneg %p19
      %p26 = scmp.eq.s32.totalorder %s10, 1
      %p27 = por %p25, %p26
      %p28 = scmp.ne.s32.totalorder %s20, %s23
      %p29 = scmp.eq.s32.totalorder %s10, 0
      %p30 = por %p28, %p29
      %p31 = scmp.ne.s32.totalorder %s20, %s23
      %p32 = scmp.eq.s32.totalorder %s15, 1
      %p33 = por %p31, %p32
      %p34 = scmp.ne.s32.totalorder %s23, %s24
      %p35 = scmp.eq.s32.totalorder %s15, 0
      %p36 = por %p34, %p35
      %p37 = scmp.ne.s32.totalorder %s23, %s24
      %p38 = scmp.eq.s32.totalorder %s16, 1
      %p39 = por %p37, %p38
      %p41 = scmp.ne.s32.totalorder %s24, %s40
      %p42 = scmp.eq.s32.totalorder %s16, 0
      %p43 = por %p41, %p42
      %s45 = sadd.s32 %s44, 1
      %p48 = scmp.eq.s32.totalorder %s10, 1
      %p49 = scmp.ne.s32.totalorder %s44, %s46
      %p50 = scmp.eq.s32.totalorder %s10, 0
      %p51 = por %p49, %p50
      %p52 = scmp.ne.s32.totalorder %s44, %s46
      %p53 = scmp.eq.s32.totalorder %s15, 1
      %p54 = por %p52, %p53
      %p55 = scmp.ne.s32.totalorder %s46, %s47
      %p56 = scmp.eq.s32.totalorder %s15, 0
      %p57 = por %p55, %p56
      %p58 = scmp.ne.s32.totalorder %s46, %s47
      %p59 = scmp.eq.s32.totalorder %s16, 1
      %p60 = por %p58, %p59
      %p62 = scmp.ne.s32.totalorder %s47, %s61
      %p63 = scmp.eq.s32.totalorder %s16, 0
      %p64 = por %p62, %p63
      %p65 = scmp.le.s32.totalorder 1, %s10
      %p66 = scmp.lt.s32.totalorder %s10, 3
      %p67 = pnand %p65, %p66
      %p68 = pneg %p67
      // Predicated region
      $region9: #{preact_bottleneck_forward.8} parent=5 // pred_check
        _
      $region10: #{preact_bottleneck_forward.8} parent=5 // pred_check_branch
        %70 = sbr.rel (%p67) target = $region12
      $region11: #{preact_bottleneck_forward.8} parent=5 // pred_region
        %s71 = ssub.s32 %s10, 1
      $region12: #{preact_bottleneck_forward.8} parent=5 // pred_fallthru
        _
      %p72 = scmp.lt.s32.totalorder %s10, 2
      // Predicated region
      $region13: #{preact_bottleneck_forward.8} parent=5 // pred_check
        %p73 = pneg %p72
      $region14: #{preact_bottleneck_forward.8} parent=5 // pred_check_branch
        %75 = sbr.rel (%p73) target = $region16
      $region15: #{preact_bottleneck_forward.8} parent=5 // pred_region
        // Predicated region
        $region17: #{preact_bottleneck_forward.8} parent=15 // pred_check
          %p76 = pneg %p30
        $region18: #{preact_bottleneck_forward.8} parent=15 // pred_check_branch
          %78 = sbr.rel (%p76) target = $region20
        $region19: #{preact_bottleneck_forward.8} parent=15 // pred_region
          %s79 = sand.u32 %s20, 1
          %s80 = scalar_lea.sflag [#allocation3], %s79
          %s81 = sand.u32 %s20, 1
          %s82 = smul.addr %s81, 256
          %s83 = scalar_lea.vmem [#allocation2], %s82
          %s84 = smul.u32 32, %s10
          %s86 = ssub.s32 4096, 4096
          %87 = vsyncadd %s80, %s86
          %s88 = smul.addr %s84, 128
          %s89 = scalar_lea.hbm %s0, %s88
          %s90 = sshll.u32 %s83, 4
          %s91 = int_to_ptr.vmem [resolvable:$true] %s90
          %96 = dma.hbm_to_vmem [thread:$0]  %s89, 4096, %s91, %s80, 128, 128, 8
        $region20: #{preact_bottleneck_forward.8} parent=15 // pred_fallthru
          _
      $region16: #{preact_bottleneck_forward.8} parent=5 // pred_fallthru
        _
      %p97 = scmp.le.s32.totalorder 1, %s10
      %p98 = scmp.lt.s32.totalorder %s10, 3
      %p99 = pnand %p97, %p98
      %p100 = pneg %p99
      // Predicated region
      $region21: #{preact_bottleneck_forward.8} parent=5 // pred_check
        _
      $region22: #{preact_bottleneck_forward.8} parent=5 // pred_check_branch
        %102 = sbr.rel (%p99) target = $region24
      $region23: #{preact_bottleneck_forward.8} parent=5 // pred_region
        %s103 = ssub.s32 %s10, 1
        %s104 = sand.u32 %s23, 1
        %s105 = scalar_lea.sflag [#allocation3], %s104
        %s106 = sand.u32 %s23, 1
        %s107 = smul.addr %s106, 256
        %s108 = scalar_lea.vmem [#allocation2], %s107
        // Predicated region
        $region25: #{preact_bottleneck_forward.8} parent=23 // pred_check
          %p109 = pneg %p36
        $region26: #{preact_bottleneck_forward.8} parent=23 // pred_check_branch
          %111 = sbr.rel (%p109) target = $region28
        $region27: #{preact_bottleneck_forward.8} parent=23 // pred_region
          %112 = dma.done %s105, 4096
        $region28: #{preact_bottleneck_forward.8} parent=23 // pred_fallthru
          _
        %s113 = sand.u32 %s23, 1
        %s114 = scalar_lea.sflag [#allocation3], %s113
        %s115 = sand.u32 %s23, 1
        %s116 = smul.addr %s115, 256
        %s117 = scalar_lea.vmem [#allocation2], %s116
        %p118 = pneg %p36
        %p119 = pneg %p33
        %p120 = pneg %p57
        %p121 = pneg %p54
        %s122 = smul.u32 32, %s15
        %p123 = scmp.eq.s32.totalorder %s15, 0
        // Predicated region
        $region29: #{preact_bottleneck_forward.8} parent=23 // pred_check
          %p124 = pneg %p123
        $region30: #{preact_bottleneck_forward.8} parent=23 // pred_check_branch
          %126 = sbr.rel (%p124) target = $region32
        $region31: #{preact_bottleneck_forward.8} parent=23 // pred_region
          %vm127 = vcmask 261120
          %128 = vst.msk [vmem:[%s1] sm:$0xff] %vm127, 0.0
        $region32: #{preact_bottleneck_forward.8} parent=23 // pred_fallthru
          _
        %v129 = vld [vmem:[%s108] sm:$0xff]
        %v130 = vld [vmem:[%s108 + $0x8] sm:$0xff]
        %v131 = vld [vmem:[%s108 + $0x10] sm:$0xff]
        %v132 = vld [vmem:[%s108 + $0x18] sm:$0xff]
        %v133 = vld [vmem:[%s108 + $0x20] sm:$0xff]
        %v134 = vld [vmem:[%s108 + $0x28] sm:$0xff]
        %v135 = vld [vmem:[%s108 + $0x30] sm:$0xff]
        %v136 = vld [vmem:[%s108 + $0x38] sm:$0xff]
        %v137 = vld [vmem:[%s108 + $0x40] sm:$0xff]
        %v138 = vld [vmem:[%s108 + $0x48] sm:$0xff]
        %v139 = vld [vmem:[%s108 + $0x50] sm:$0xff]
        %v140 = vld [vmem:[%s108 + $0x58] sm:$0xff]
        %v141 = vld [vmem:[%s108 + $0x60] sm:$0xff]
        %v142 = vld [vmem:[%s108 + $0x68] sm:$0xff]
        %v143 = vld [vmem:[%s108 + $0x70] sm:$0xff]
        %v144 = vld [vmem:[%s108 + $0x78] sm:$0xff]
        %v145 = vld [vmem:[%s108 + $0x80] sm:$0xff]
        %v146 = vld [vmem:[%s108 + $0x88] sm:$0xff]
        %v147 = vld [vmem:[%s108 + $0x90] sm:$0xff]
        %v148 = vld [vmem:[%s108 + $0x98] sm:$0xff]
        %v149 = vld [vmem:[%s108 + $0xa0] sm:$0xff]
        %v150 = vld [vmem:[%s108 + $0xa8] sm:$0xff]
        %v151 = vld [vmem:[%s108 + $0xb0] sm:$0xff]
        %v152 = vld [vmem:[%s108 + $0xb8] sm:$0xff]
        %v153 = vld [vmem:[%s108 + $0xc0] sm:$0xff]
        %v154 = vld [vmem:[%s108 + $0xc8] sm:$0xff]
        %v155 = vld [vmem:[%s108 + $0xd0] sm:$0xff]
        %v156 = vld [vmem:[%s108 + $0xd8] sm:$0xff]
        %v157 = vld [vmem:[%s108 + $0xe0] sm:$0xff]
        %v158 = vld [vmem:[%s108 + $0xe8] sm:$0xff]
        %v159 = vld [vmem:[%s108 + $0xf0] sm:$0xff]
        %v160 = vld [vmem:[%s108 + $0xf8] sm:$0xff]
        %vm161 = vcmask 261120
        %v162 = vsel %vm161, %v129, 0.0
        %v163 = vsel %vm161, %v130, 0.0
        %v164 = vadd.f32 %v162, %v163
        %v165 = vsel %vm161, %v131, 0.0
        %v166 = vadd.f32 %v164, %v165
        %v167 = vsel %vm161, %v132, 0.0
        %v168 = vadd.f32 %v166, %v167
        %v169 = vsel %vm161, %v133, 0.0
        %v170 = vadd.f32 %v168, %v169
        %v171 = vsel %vm161, %v134, 0.0
        %v172 = vadd.f32 %v170, %v171
        %v173 = vsel %vm161, %v135, 0.0
        %v174 = vadd.f32 %v172, %v173
        %v175 = vsel %vm161, %v136, 0.0
        %v176 = vadd.f32 %v174, %v175
        %v177 = vsel %vm161, %v137, 0.0
        %v178 = vadd.f32 %v176, %v177
        %v179 = vsel %vm161, %v138, 0.0
        %v180 = vadd.f32 %v178, %v179
        %v181 = vsel %vm161, %v139, 0.0
        %v182 = vadd.f32 %v180, %v181
        %v183 = vsel %vm161, %v140, 0.0
        %v184 = vadd.f32 %v182, %v183
        %v185 = vsel %vm161, %v141, 0.0
        %v186 = vadd.f32 %v184, %v185
        %v187 = vsel %vm161, %v142, 0.0
        %v188 = vadd.f32 %v186, %v187
        %v189 = vsel %vm161, %v143, 0.0
        %v190 = vadd.f32 %v188, %v189
        %v191 = vsel %vm161, %v144, 0.0
        %v192 = vadd.f32 %v190, %v191
        %v193 = vsel %vm161, %v145, 0.0
        %v194 = vadd.f32 %v192, %v193
        %v195 = vsel %vm161, %v146, 0.0
        %v196 = vadd.f32 %v194, %v195
        %v197 = vsel %vm161, %v147, 0.0
        %v198 = vadd.f32 %v196, %v197
        %v199 = vsel %vm161, %v148, 0.0
        %v200 = vadd.f32 %v198, %v199
        %v201 = vsel %vm161, %v149, 0.0
        %v202 = vadd.f32 %v200, %v201
        %v203 = vsel %vm161, %v150, 0.0
        %v204 = vadd.f32 %v202, %v203
        %v205 = vsel %vm161, %v151, 0.0
        %v206 = vadd.f32 %v204, %v205
        %v207 = vsel %vm161, %v152, 0.0
        %v208 = vadd.f32 %v206, %v207
        %v209 = vsel %vm161, %v153, 0.0
        %v210 = vadd.f32 %v208, %v209
        %v211 = vsel %vm161, %v154, 0.0
        %v212 = vadd.f32 %v210, %v211
        %v213 = vsel %vm161, %v155, 0.0
        %v214 = vadd.f32 %v212, %v213
        %v215 = vsel %vm161, %v156, 0.0
        %v216 = vadd.f32 %v214, %v215
        %v217 = vsel %vm161, %v157, 0.0
        %v218 = vadd.f32 %v216, %v217
        %v219 = vsel %vm161, %v158, 0.0
        %v220 = vadd.f32 %v218, %v219
        %v221 = vsel %vm161, %v159, 0.0
        %v222 = vadd.f32 %v220, %v221
        %v223 = vsel %vm161, %v160, 0.0
        %v224 = vadd.f32 %v222, %v223
        %v225 = vrot.slane %v224, 4
        %v226 = vadd.f32 %v224, %v225
        %v227 = vrot.slane %v226, 2
        %v228 = vadd.f32 %v226, %v227
        %v229 = vrot.slane %v228, 1
        %v230 = vadd.f32 %v228, %v229
        %v231 = vmul.f32 %v129, %v129
        %v232 = vmul.f32 %v130, %v130
        %v233 = vmul.f32 %v131, %v131
        %v234 = vmul.f32 %v132, %v132
        %v235 = vmul.f32 %v133, %v133
        %v236 = vmul.f32 %v134, %v134
        %v237 = vmul.f32 %v135, %v135
        %v238 = vmul.f32 %v136, %v136
        %v239 = vmul.f32 %v137, %v137
        %v240 = vmul.f32 %v138, %v138
        %v241 = vmul.f32 %v139, %v139
        %v242 = vmul.f32 %v140, %v140
        %v243 = vmul.f32 %v141, %v141
        %v244 = vmul.f32 %v142, %v142
        %v245 = vmul.f32 %v143, %v143
        %v246 = vmul.f32 %v144, %v144
        %v247 = vmul.f32 %v145, %v145
        %v248 = vmul.f32 %v146, %v146
        %v249 = vmul.f32 %v147, %v147
        %v250 = vmul.f32 %v148, %v148
        %v251 = vmul.f32 %v149, %v149
        %v252 = vmul.f32 %v150, %v150
        %v253 = vmul.f32 %v151, %v151
        %v254 = vmul.f32 %v152, %v152
        %v255 = vmul.f32 %v153, %v153
        %v256 = vmul.f32 %v154, %v154
        %v257 = vmul.f32 %v155, %v155
        %v258 = vmul.f32 %v156, %v156
        %v259 = vmul.f32 %v157, %v157
        %v260 = vmul.f32 %v158, %v158
        %v261 = vmul.f32 %v159, %v159
        %v262 = vmul.f32 %v160, %v160
        %v263 = vsel %vm161, %v231, 0.0
        %v264 = vsel %vm161, %v232, 0.0
        %v265 = vadd.f32 %v263, %v264
        %v266 = vsel %vm161, %v233, 0.0
        %v267 = vadd.f32 %v265, %v266
        %v268 = vsel %vm161, %v234, 0.0
        %v269 = vadd.f32 %v267, %v268
        %v270 = vsel %vm161, %v235, 0.0
        %v271 = vadd.f32 %v269, %v270
        %v272 = vsel %vm161, %v236, 0.0
        %v273 = vadd.f32 %v271, %v272
        %v274 = vsel %vm161, %v237, 0.0
        %v275 = vadd.f32 %v273, %v274
        %v276 = vsel %vm161, %v238, 0.0
        %v277 = vadd.f32 %v275, %v276
        %v278 = vsel %vm161, %v239, 0.0
        %v279 = vadd.f32 %v277, %v278
        %v280 = vsel %vm161, %v240, 0.0
        %v281 = vadd.f32 %v279, %v280
        %v282 = vsel %vm161, %v241, 0.0
        %v283 = vadd.f32 %v281, %v282
        %v284 = vsel %vm161, %v242, 0.0
        %v285 = vadd.f32 %v283, %v284
        %v286 = vsel %vm161, %v243, 0.0
        %v287 = vadd.f32 %v285, %v286
        %v288 = vsel %vm161, %v244, 0.0
        %v289 = vadd.f32 %v287, %v288
        %v290 = vsel %vm161, %v245, 0.0
        %v291 = vadd.f32 %v289, %v290
        %v292 = vsel %vm161, %v246, 0.0
        %v293 = vadd.f32 %v291, %v292
        %v294 = vsel %vm161, %v247, 0.0
        %v295 = vadd.f32 %v293, %v294
        %v296 = vsel %vm161, %v248, 0.0
        %v297 = vadd.f32 %v295, %v296
        %v298 = vsel %vm161, %v249, 0.0
        %v299 = vadd.f32 %v297, %v298
        %v300 = vsel %vm161, %v250, 0.0
        %v301 = vadd.f32 %v299, %v300
        %v302 = vsel %vm161, %v251, 0.0
        %v303 = vadd.f32 %v301, %v302
        %v304 = vsel %vm161, %v252, 0.0
        %v305 = vadd.f32 %v303, %v304
        %v306 = vsel %vm161, %v253, 0.0
        %v307 = vadd.f32 %v305, %v306
        %v308 = vsel %vm161, %v254, 0.0
        %v309 = vadd.f32 %v307, %v308
        %v310 = vsel %vm161, %v255, 0.0
        %v311 = vadd.f32 %v309, %v310
        %v312 = vsel %vm161, %v256, 0.0
        %v313 = vadd.f32 %v311, %v312
        %v314 = vsel %vm161, %v257, 0.0
        %v315 = vadd.f32 %v313, %v314
        %v316 = vsel %vm161, %v258, 0.0
        %v317 = vadd.f32 %v315, %v316
        %v318 = vsel %vm161, %v259, 0.0
        %v319 = vadd.f32 %v317, %v318
        %v320 = vsel %vm161, %v260, 0.0
        %v321 = vadd.f32 %v319, %v320
        %v322 = vsel %vm161, %v261, 0.0
        %v323 = vadd.f32 %v321, %v322
        %v324 = vsel %vm161, %v262, 0.0
        %v325 = vadd.f32 %v323, %v324
        %v326 = vrot.slane %v325, 4
        %v327 = vadd.f32 %v325, %v326
        %v328 = vrot.slane %v327, 2
        %v329 = vadd.f32 %v327, %v328
        %v330 = vrot.slane %v329, 1
        %v331 = vadd.f32 %v329, %v330
        %v332 = vlaneseq
        %v333 = vshrl.u32 %v332, 7
        %v334 = vld [vmem:[%s1] sm:$0xff]
        %vm335 = vcmp.eq.s32.totalorder %v333, 0
        %vm336 = vcmp.eq.s32.totalorder %v333, 1
        %v337 = vsel %vm336, %v331, 0.0
        %v338 = vsel %vm335, %v230, %v337
        %v339 = vadd.f32 %v334, %v338
        %340 = vst.msk [vmem:[%s1] sm:$0xff] %vm161, %v339
        // Predicated region
        $region33: #{preact_bottleneck_forward.8} parent=23 // pred_check
          %p341 = pneg %p54
        $region34: #{preact_bottleneck_forward.8} parent=23 // pred_check_branch
          %343 = sbr.rel (%p341) target = $region36
        $region35: #{preact_bottleneck_forward.8} parent=23 // pred_region
          _
        $region36: #{preact_bottleneck_forward.8} parent=23 // pred_fallthru
          _
        // Predicated region
        $region37: #{preact_bottleneck_forward.8} parent=23 // pred_check
          %p344 = pneg %p54
        $region38: #{preact_bottleneck_forward.8} parent=23 // pred_check_branch
          %346 = sbr.rel (%p344) target = $region40
        $region39: #{preact_bottleneck_forward.8} parent=23 // pred_region
          _
        $region40: #{preact_bottleneck_forward.8} parent=23 // pred_fallthru
          _
      $region24: #{preact_bottleneck_forward.8} parent=5 // pred_fallthru
        _
      %p347 = scmp.le.s32.totalorder 2, %s10
      // Predicated region
      $region41: #{preact_bottleneck_forward.8} parent=5 // pred_check
        %p348 = pneg %p347
      $region42: #{preact_bottleneck_forward.8} parent=5 // pred_check_branch
        %350 = sbr.rel (%p348) target = $region44
      $region43: #{preact_bottleneck_forward.8} parent=5 // pred_region
        %s351 = ssub.s32 %s10, 2
      $region44: #{preact_bottleneck_forward.8} parent=5 // pred_fallthru
        _
    $region6: #{preact_bottleneck_forward.8} parent=1 // loop_footer
      %s14 = sadd.s32 1, %s10
    $region7: #{preact_bottleneck_forward.8} parent=1 // loop_footer_branch
      %9 = sbr.rel target = $region3
    $region8: #{preact_bottleneck_forward.8} parent=1 // loop_exit
      _
    %352 = vsyncpa [#allocation3], 1
    %s353 = scalar_lea.sflag [#allocation3], 1
    %354 = vsyncpa %s353, 1

// kernel: preact_bottleneck_forward.11
$region0: #{preact_bottleneck_forward.11}
  #allocation0 [shape = 'u32[]', space=smem, size = 0x4, offset = 0x4, fixed_abs, tag = 'smem constant byte address 0x4 - core index']
  #allocation1 [shape = 'u32[144,128]{1,0:T(1,128)}', space=vmem, size = 0x12000, scoped, tag = 'internal scratch']
  %s0 = inlined_call_operand.vmem [shape: f32[512,16], index: 0, kind: input, shape index: {}]
  %s1 = inlined_call_operand.vmem [shape: f32[8,16], index: 1, kind: output, shape index: {}]
  %s2 = sld [smem:[#allocation0]]
  $region41: #{preact_bottleneck_forward.11} parent=0
    _
  %s4 = ssub.s32 1, %s2
  %s5 = scalar_select 0, %s4, %s2
  loop: start=0, step=1, limit=4
  $region2: #{preact_bottleneck_forward.11} parent=0 // loop_pre_header
    _
  $region3: #{preact_bottleneck_forward.11} parent=0 // loop_header
    %s7 = sphi 0, %s11
    %p8 = scmp.ge.s32.totalorder %s7, 4
    %s17 = sphi 0, %s19
    %s20 = sphi 0, %s17
    %s21 = sphi 0, %s20
    %s37 = sphi 0, %s21
    %s41 = sphi 0, %s41
    %s43 = sphi 0, %s41
    %s44 = sphi 0, %s43
    %s58 = sphi 0, %s44
  $region4: #{preact_bottleneck_forward.11} parent=0 // loop_header_branch
    %10 = sbr.rel (%p8) target = $region8
  $region5: #{preact_bottleneck_forward.11} parent=0 // loop_body
    %s12 = ssub.s32 %s7, 1
    %s13 = ssub.s32 %s7, 2
    %s14 = sadd.s32 %s7, 1
    %s15 = ssub.s32 %s7, %s14
    %p16 = scmp.eq.s32.totalorder %s15, 0
    %s18 = sadd.s32 %s17, 1
    %s19 = scalar_select %p16, %s17, %s18
    %p22 = pneg %p16
    %p23 = scmp.eq.s32.totalorder %s7, 1
    %p24 = por %p22, %p23
    %p25 = scmp.ne.s32.totalorder %s17, %s20
    %p26 = scmp.eq.s32.totalorder %s7, 0
    %p27 = por %p25, %p26
    %p28 = scmp.ne.s32.totalorder %s17, %s20
    %p29 = scmp.eq.s32.totalorder %s12, 1
    %p30 = por %p28, %p29
    %p31 = scmp.ne.s32.totalorder %s20, %s21
    %p32 = scmp.eq.s32.totalorder %s12, 0
    %p33 = por %p31, %p32
    %p34 = scmp.ne.s32.totalorder %s20, %s21
    %p35 = scmp.eq.s32.totalorder %s13, 1
    %p36 = por %p34, %p35
    %p38 = scmp.ne.s32.totalorder %s21, %s37
    %p39 = scmp.eq.s32.totalorder %s13, 0
    %p40 = por %p38, %p39
    %s42 = sadd.s32 %s41, 1
    %p45 = scmp.eq.s32.totalorder %s7, 1
    %p46 = scmp.ne.s32.totalorder %s41, %s43
    %p47 = scmp.eq.s32.totalorder %s7, 0
    %p48 = por %p46, %p47
    %p49 = scmp.ne.s32.totalorder %s41, %s43
    %p50 = scmp.eq.s32.totalorder %s12, 1
    %p51 = por %p49, %p50
    %p52 = scmp.ne.s32.totalorder %s43, %s44
    %p53 = scmp.eq.s32.totalorder %s12, 0
    %p54 = por %p52, %p53
    %p55 = scmp.ne.s32.totalorder %s43, %s44
    %p56 = scmp.eq.s32.totalorder %s13, 1
    %p57 = por %p55, %p56
    %p59 = scmp.ne.s32.totalorder %s44, %s58
    %p60 = scmp.eq.s32.totalorder %s13, 0
    %p61 = por %p59, %p60
    %p62 = scmp.le.s32.totalorder 1, %s7
    %p63 = scmp.lt.s32.totalorder %s7, 3
    %p64 = pnand %p62, %p63
    %p65 = pneg %p64
    // Predicated region
    $region9: #{preact_bottleneck_forward.11} parent=5 // pred_check
      _
    $region10: #{preact_bottleneck_forward.11} parent=5 // pred_check_branch
      %67 = sbr.rel (%p64) target = $region12
    $region11: #{preact_bottleneck_forward.11} parent=5 // pred_region
      %s68 = ssub.s32 %s7, 1
    $region12: #{preact_bottleneck_forward.11} parent=5 // pred_fallthru
      _
    %p69 = scmp.lt.s32.totalorder %s7, 2
    // Predicated region
    $region13: #{preact_bottleneck_forward.11} parent=5 // pred_check
      %p70 = pneg %p69
    $region14: #{preact_bottleneck_forward.11} parent=5 // pred_check_branch
      %72 = sbr.rel (%p70) target = $region16
    $region15: #{preact_bottleneck_forward.11} parent=5 // pred_region
      // Predicated region
      $region17: #{preact_bottleneck_forward.11} parent=15 // pred_check
        %p73 = pneg %p27
      $region18: #{preact_bottleneck_forward.11} parent=15 // pred_check_branch
        %75 = sbr.rel (%p73) target = $region20
      $region19: #{preact_bottleneck_forward.11} parent=15 // pred_region
        %s76 = smul.u32 32, %s7
        %p77 = scmp.lt.s32.totalorder %s76, 63
        %s78 = scalar_select %p77, %s76, 63
        %s79 = smul.addr %s78, 8
        %s80 = scalar_lea.vmem %s0, %s79
        %s81 = smul.u32 32, %s7
      $region20: #{preact_bottleneck_forward.11} parent=15 // pred_fallthru
        _
    $region16: #{preact_bottleneck_forward.11} parent=5 // pred_fallthru
      _
    %p82 = scmp.le.s32.totalorder 1, %s7
    %p83 = scmp.lt.s32.totalorder %s7, 3
    %p84 = pnand %p82, %p83
    %p85 = pneg %p84
    // Predicated region
    $region21: #{preact_bottleneck_forward.11} parent=5 // pred_check
      _
    $region22: #{preact_bottleneck_forward.11} parent=5 // pred_check_branch
      %87 = sbr.rel (%p84) target = $region24
    $region23: #{preact_bottleneck_forward.11} parent=5 // pred_region
      %s88 = ssub.s32 %s7, 1
      %s89 = smul.u32 32, %s12
      %p90 = scmp.lt.s32.totalorder %s89, 63
      %s91 = scalar_select %p90, %s89, 63
      %s92 = smul.addr %s91, 8
      %s93 = scalar_lea.vmem %s0, %s92
      %p94 = pneg %p33
      %p95 = pneg %p30
      %p96 = pneg %p54
      %p97 = pneg %p51
      %s98 = smul.u32 32, %s12
      %p99 = scmp.lt.s32.totalorder %s98, 63
      %s100 = scalar_select %p99, %s98, 63
      %s101 = smul.addr %s100, 8
      %s102 = scalar_lea.vmem %s0, %s101
      %s103 = smul.u32 32, %s12
      %p104 = scmp.eq.s32.totalorder %s12, 0
      // Predicated region
      $region25: #{preact_bottleneck_forward.11} parent=23 // pred_check
        %p105 = pneg %p104
      $region26: #{preact_bottleneck_forward.11} parent=23 // pred_check_branch
        %107 = sbr.rel (%p105) target = $region28
      $region27: #{preact_bottleneck_forward.11} parent=23 // pred_region
        %vm108 = vcmask 130048
        %109 = vst.msk [vmem:[%s1] sm:$0xff] %vm108, 0.0
      $region28: #{preact_bottleneck_forward.11} parent=23 // pred_fallthru
        _
      %v110 = vld [vmem:[%s102] sm:$0xff]
      %v111 = vld [vmem:[%s102 + $0x8] sm:$0xff]
      %v112 = vld [vmem:[%s102 + $0x10] sm:$0xff]
      %v113 = vld [vmem:[%s102 + $0x18] sm:$0xff]
      %v114 = vld [vmem:[%s102 + $0x20] sm:$0xff]
      %v115 = vld [vmem:[%s102 + $0x28] sm:$0xff]
      %v116 = vld [vmem:[%s102 + $0x30] sm:$0xff]
      %v117 = vld [vmem:[%s102 + $0x38] sm:$0xff]
      %v118 = vld [vmem:[%s102 + $0x40] sm:$0xff]
      %v119 = vld [vmem:[%s102 + $0x48] sm:$0xff]
      %v120 = vld [vmem:[%s102 + $0x50] sm:$0xff]
      %v121 = vld [vmem:[%s102 + $0x58] sm:$0xff]
      %v122 = vld [vmem:[%s102 + $0x60] sm:$0xff]
      %v123 = vld [vmem:[%s102 + $0x68] sm:$0xff]
      %v124 = vld [vmem:[%s102 + $0x70] sm:$0xff]
      %v125 = vld [vmem:[%s102 + $0x78] sm:$0xff]
      %v126 = vld [vmem:[%s102 + $0x80] sm:$0xff]
      %v127 = vld [vmem:[%s102 + $0x88] sm:$0xff]
      %v128 = vld [vmem:[%s102 + $0x90] sm:$0xff]
      %v129 = vld [vmem:[%s102 + $0x98] sm:$0xff]
      %v130 = vld [vmem:[%s102 + $0xa0] sm:$0xff]
      %v131 = vld [vmem:[%s102 + $0xa8] sm:$0xff]
      %v132 = vld [vmem:[%s102 + $0xb0] sm:$0xff]
      %v133 = vld [vmem:[%s102 + $0xb8] sm:$0xff]
      %v134 = vld [vmem:[%s102 + $0xc0] sm:$0xff]
      %v135 = vld [vmem:[%s102 + $0xc8] sm:$0xff]
      %v136 = vld [vmem:[%s102 + $0xd0] sm:$0xff]
      %v137 = vld [vmem:[%s102 + $0xd8] sm:$0xff]
      %v138 = vld [vmem:[%s102 + $0xe0] sm:$0xff]
      %v139 = vld [vmem:[%s102 + $0xe8] sm:$0xff]
      %v140 = vld [vmem:[%s102 + $0xf0] sm:$0xff]
      %v141 = vld [vmem:[%s102 + $0xf8] sm:$0xff]
      %vm142 = vcmask 130048
      %v143 = vsel %vm142, %v110, 0.0
      %v144 = vsel %vm142, %v111, 0.0
      %v145 = vadd.f32 %v143, %v144
      %v146 = vsel %vm142, %v112, 0.0
      %v147 = vadd.f32 %v145, %v146
      %v148 = vsel %vm142, %v113, 0.0
      %v149 = vadd.f32 %v147, %v148
      %v150 = vsel %vm142, %v114, 0.0
      %v151 = vadd.f32 %v149, %v150
      %v152 = vsel %vm142, %v115, 0.0
      %v153 = vadd.f32 %v151, %v152
      %v154 = vsel %vm142, %v116, 0.0
      %v155 = vadd.f32 %v153, %v154
      %v156 = vsel %vm142, %v117, 0.0
      %v157 = vadd.f32 %v155, %v156
      %v158 = vsel %vm142, %v118, 0.0
      %v159 = vadd.f32 %v157, %v158
      %v160 = vsel %vm142, %v119, 0.0
      %v161 = vadd.f32 %v159, %v160
      %v162 = vsel %vm142, %v120, 0.0
      %v163 = vadd.f32 %v161, %v162
      %v164 = vsel %vm142, %v121, 0.0
      %v165 = vadd.f32 %v163, %v164
      %v166 = vsel %vm142, %v122, 0.0
      %v167 = vadd.f32 %v165, %v166
      %v168 = vsel %vm142, %v123, 0.0
      %v169 = vadd.f32 %v167, %v168
      %v170 = vsel %vm142, %v124, 0.0
      %v171 = vadd.f32 %v169, %v170
      %v172 = vsel %vm142, %v125, 0.0
      %v173 = vadd.f32 %v171, %v172
      %v174 = vsel %vm142, %v126, 0.0
      %v175 = vadd.f32 %v173, %v174
      %v176 = vsel %vm142, %v127, 0.0
      %v177 = vadd.f32 %v175, %v176
      %v178 = vsel %vm142, %v128, 0.0
      %v179 = vadd.f32 %v177, %v178
      %v180 = vsel %vm142, %v129, 0.0
      %v181 = vadd.f32 %v179, %v180
      %v182 = vsel %vm142, %v130, 0.0
      %v183 = vadd.f32 %v181, %v182
      %v184 = vsel %vm142, %v131, 0.0
      %v185 = vadd.f32 %v183, %v184
      %v186 = vsel %vm142, %v132, 0.0
      %v187 = vadd.f32 %v185, %v186
      %v188 = vsel %vm142, %v133, 0.0
      %v189 = vadd.f32 %v187, %v188
      %v190 = vsel %vm142, %v134, 0.0
      %v191 = vadd.f32 %v189, %v190
      %v192 = vsel %vm142, %v135, 0.0
      %v193 = vadd.f32 %v191, %v192
      %v194 = vsel %vm142, %v136, 0.0
      %v195 = vadd.f32 %v193, %v194
      %v196 = vsel %vm142, %v137, 0.0
      %v197 = vadd.f32 %v195, %v196
      %v198 = vsel %vm142, %v138, 0.0
      %v199 = vadd.f32 %v197, %v198
      %v200 = vsel %vm142, %v139, 0.0
      %v201 = vadd.f32 %v199, %v200
      %v202 = vsel %vm142, %v140, 0.0
      %v203 = vadd.f32 %v201, %v202
      %v204 = vsel %vm142, %v141, 0.0
      %v205 = vadd.f32 %v203, %v204
      %v206 = vrot.slane %v205, 4
      %v207 = vadd.f32 %v205, %v206
      %v208 = vrot.slane %v207, 2
      %v209 = vadd.f32 %v207, %v208
      %v210 = vrot.slane %v209, 1
      %v211 = vadd.f32 %v209, %v210
      %v212 = vmul.f32 %v110, %v110
      %v213 = vmul.f32 %v111, %v111
      %v214 = vmul.f32 %v112, %v112
      %v215 = vmul.f32 %v113, %v113
      %v216 = vmul.f32 %v114, %v114
      %v217 = vmul.f32 %v115, %v115
      %v218 = vmul.f32 %v116, %v116
      %v219 = vmul.f32 %v117, %v117
      %v220 = vmul.f32 %v118, %v118
      %v221 = vmul.f32 %v119, %v119
      %v222 = vmul.f32 %v120, %v120
      %v223 = vmul.f32 %v121, %v121
      %v224 = vmul.f32 %v122, %v122
      %v225 = vmul.f32 %v123, %v123
      %v226 = vmul.f32 %v124, %v124
      %v227 = vmul.f32 %v125, %v125
      %v228 = vmul.f32 %v126, %v126
      %v229 = vmul.f32 %v127, %v127
      %v230 = vmul.f32 %v128, %v128
      %v231 = vmul.f32 %v129, %v129
      %v232 = vmul.f32 %v130, %v130
      %v233 = vmul.f32 %v131, %v131
      %v234 = vmul.f32 %v132, %v132
      %v235 = vmul.f32 %v133, %v133
      %v236 = vmul.f32 %v134, %v134
      %v237 = vmul.f32 %v135, %v135
      %v238 = vmul.f32 %v136, %v136
      %v239 = vmul.f32 %v137, %v137
      %v240 = vmul.f32 %v138, %v138
      %v241 = vmul.f32 %v139, %v139
      %v242 = vmul.f32 %v140, %v140
      %v243 = vmul.f32 %v141, %v141
      %v244 = vsel %vm142, %v212, 0.0
      %v245 = vsel %vm142, %v213, 0.0
      %v246 = vadd.f32 %v244, %v245
      %v247 = vsel %vm142, %v214, 0.0
      %v248 = vadd.f32 %v246, %v247
      %v249 = vsel %vm142, %v215, 0.0
      %v250 = vadd.f32 %v248, %v249
      %v251 = vsel %vm142, %v216, 0.0
      %v252 = vadd.f32 %v250, %v251
      %v253 = vsel %vm142, %v217, 0.0
      %v254 = vadd.f32 %v252, %v253
      %v255 = vsel %vm142, %v218, 0.0
      %v256 = vadd.f32 %v254, %v255
      %v257 = vsel %vm142, %v219, 0.0
      %v258 = vadd.f32 %v256, %v257
      %v259 = vsel %vm142, %v220, 0.0
      %v260 = vadd.f32 %v258, %v259
      %v261 = vsel %vm142, %v221, 0.0
      %v262 = vadd.f32 %v260, %v261
      %v263 = vsel %vm142, %v222, 0.0
      %v264 = vadd.f32 %v262, %v263
      %v265 = vsel %vm142, %v223, 0.0
      %v266 = vadd.f32 %v264, %v265
      %v267 = vsel %vm142, %v224, 0.0
      %v268 = vadd.f32 %v266, %v267
      %v269 = vsel %vm142, %v225, 0.0
      %v270 = vadd.f32 %v268, %v269
      %v271 = vsel %vm142, %v226, 0.0
      %v272 = vadd.f32 %v270, %v271
      %v273 = vsel %vm142, %v227, 0.0
      %v274 = vadd.f32 %v272, %v273
      %v275 = vsel %vm142, %v228, 0.0
      %v276 = vadd.f32 %v274, %v275
      %v277 = vsel %vm142, %v229, 0.0
      %v278 = vadd.f32 %v276, %v277
      %v279 = vsel %vm142, %v230, 0.0
      %v280 = vadd.f32 %v278, %v279
      %v281 = vsel %vm142, %v231, 0.0
      %v282 = vadd.f32 %v280, %v281
      %v283 = vsel %vm142, %v232, 0.0
      %v284 = vadd.f32 %v282, %v283
      %v285 = vsel %vm142, %v233, 0.0
      %v286 = vadd.f32 %v284, %v285
      %v287 = vsel %vm142, %v234, 0.0
      %v288 = vadd.f32 %v286, %v287
      %v289 = vsel %vm142, %v235, 0.0
      %v290 = vadd.f32 %v288, %v289
      %v291 = vsel %vm142, %v236, 0.0
      %v292 = vadd.f32 %v290, %v291
      %v293 = vsel %vm142, %v237, 0.0
      %v294 = vadd.f32 %v292, %v293
      %v295 = vsel %vm142, %v238, 0.0
      %v296 = vadd.f32 %v294, %v295
      %v297 = vsel %vm142, %v239, 0.0
      %v298 = vadd.f32 %v296, %v297
      %v299 = vsel %vm142, %v240, 0.0
      %v300 = vadd.f32 %v298, %v299
      %v301 = vsel %vm142, %v241, 0.0
      %v302 = vadd.f32 %v300, %v301
      %v303 = vsel %vm142, %v242, 0.0
      %v304 = vadd.f32 %v302, %v303
      %v305 = vsel %vm142, %v243, 0.0
      %v306 = vadd.f32 %v304, %v305
      %v307 = vrot.slane %v306, 4
      %v308 = vadd.f32 %v306, %v307
      %v309 = vrot.slane %v308, 2
      %v310 = vadd.f32 %v308, %v309
      %v311 = vrot.slane %v310, 1
      %v312 = vadd.f32 %v310, %v311
      %v313 = vlaneseq
      %v314 = vshrl.u32 %v313, 7
      %v315 = vld [vmem:[%s1] sm:$0xff]
      %vm316 = vcmp.eq.s32.totalorder %v314, 0
      %vm317 = vcmp.eq.s32.totalorder %v314, 1
      %v318 = vsel %vm317, %v312, 0.0
      %v319 = vsel %vm316, %v211, %v318
      %v320 = vadd.f32 %v315, %v319
      %321 = vst.msk [vmem:[%s1] sm:$0xff] %vm142, %v320
      // Predicated region
      $region29: #{preact_bottleneck_forward.11} parent=23 // pred_check
        %p322 = pneg %p51
      $region30: #{preact_bottleneck_forward.11} parent=23 // pred_check_branch
        %324 = sbr.rel (%p322) target = $region32
      $region31: #{preact_bottleneck_forward.11} parent=23 // pred_region
        _
      $region32: #{preact_bottleneck_forward.11} parent=23 // pred_fallthru
        _
      // Predicated region
      $region33: #{preact_bottleneck_forward.11} parent=23 // pred_check
        %p325 = pneg %p51
      $region34: #{preact_bottleneck_forward.11} parent=23 // pred_check_branch
        %327 = sbr.rel (%p325) target = $region36
      $region35: #{preact_bottleneck_forward.11} parent=23 // pred_region
        _
      $region36: #{preact_bottleneck_forward.11} parent=23 // pred_fallthru
        _
    $region24: #{preact_bottleneck_forward.11} parent=5 // pred_fallthru
      _
    %p328 = scmp.le.s32.totalorder 2, %s7
    // Predicated region
    $region37: #{preact_bottleneck_forward.11} parent=5 // pred_check
      %p329 = pneg %p328
    $region38: #{preact_bottleneck_forward.11} parent=5 // pred_check_branch
      %331 = sbr.rel (%p329) target = $region40
    $region39: #{preact_bottleneck_forward.11} parent=5 // pred_region
      %s332 = ssub.s32 %s7, 2
    $region40: #{preact_bottleneck_forward.11} parent=5 // pred_fallthru
      _
  $region6: #{preact_bottleneck_forward.11} parent=0 // loop_footer
    %s11 = sadd.s32 1, %s7
  $region7: #{preact_bottleneck_forward.11} parent=0 // loop_footer_branch
    %6 = sbr.rel target = $region3
  $region8: #{preact_bottleneck_forward.11} parent=0 // loop_exit
    _

// kernel: preact_bottleneck_forward.9
$region0: #{preact_bottleneck_forward.9}
  #allocation0 [shape = 'u32[]', space=smem, size = 0x4, offset = 0x4, fixed_abs, tag = 'smem constant byte address 0x4 - core index']
  #allocation1 [shape = 'u32[144,128]{1,0:T(1,128)}', space=vmem, size = 0x12000, scoped, tag = 'internal scratch']
  %s0 = inlined_call_operand.vmem [shape: f32[512,32], index: 0, kind: input, shape index: {}]
  %s1 = inlined_call_operand.vmem [shape: f32[8,32], index: 1, kind: input, shape index: {}]
  %s2 = inlined_call_operand.vmem [shape: f32[1,32], index: 2, kind: input, shape index: {}]
  %s3 = inlined_call_operand.vmem [shape: f32[1,32], index: 3, kind: input, shape index: {}]
  %s4 = inlined_call_operand.vmem [shape: bf16[32,16], index: 4, kind: input, shape index: {}]
  %s5 = inlined_call_operand.vmem [shape: f32[512,16], index: 5, kind: output, shape index: {}]
  %s6 = sld [smem:[#allocation0]]
  $region53: #{preact_bottleneck_forward.9} parent=0
    _
  %s8 = ssub.s32 1, %s6
  %s9 = scalar_select 0, %s8, %s6
  loop: start=0, step=1, limit=4
  $region2: #{preact_bottleneck_forward.9} parent=0 // loop_pre_header
    _
  $region3: #{preact_bottleneck_forward.9} parent=0 // loop_header
    %s11 = sphi 0, %s15
    %p12 = scmp.ge.s32.totalorder %s11, 4
    %s18 = sphi 0, %s30
    %s19 = sphi 0, %s26
    %s20 = sphi 0, %s18
    %s21 = sphi 0, %s19
    %s22 = sphi 0, %s20
    %s23 = sphi 0, %s21
    %s33 = sphi 0, %s35
    %s36 = sphi 0, %s33
    %s37 = sphi 0, %s36
    %s53 = sphi 0, %s37
    %s57 = sphi 0, %s57
    %s59 = sphi 0, %s57
    %s60 = sphi 0, %s59
    %s74 = sphi 0, %s60
    %s78 = sphi 0, %s78
    %s80 = sphi 0, %s78
    %s81 = sphi 0, %s80
    %s95 = sphi 0, %s81
    %s99 = sphi 0, %s99
    %s101 = sphi 0, %s99
    %s102 = sphi 0, %s101
    %s116 = sphi 0, %s102
    %s122 = sphi 0, %s124
    %s125 = sphi 0, %s122
    %s126 = sphi 0, %s125
    %s142 = sphi 0, %s126
    %s150 = sphi 0, %s152
    %s153 = sphi 0, %s150
    %s154 = sphi 0, %s153
    %s170 = sphi 0, %s154
  $region4: #{preact_bottleneck_forward.9} parent=0 // loop_header_branch
    %14 = sbr.rel (%p12) target = $region8
  $region5: #{preact_bottleneck_forward.9} parent=0 // loop_body
    %s16 = ssub.s32 %s11, 1
    %s17 = ssub.s32 %s11, 2
    %s24 = sadd.s32 1, %s19
    %p25 = scmp.ge.s32.totalorder %s24, 1
    %s26 = scalar_select %p25, 0, %s24
    %s27 = sadd.s32 1, %s18
    %s28 = scalar_select %p25, %s27, %s18
    %p29 = scmp.ge.s32.totalorder %s28, 2
    %s30 = scalar_select %p29, 0, %s28
    %s31 = ssub.s32 %s18, %s30
    %p32 = scmp.eq.s32.totalorder %s31, 0
    %s34 = sadd.s32 %s33, 1
    %s35 = scalar_select %p32, %s33, %s34
    %p38 = pneg %p32
    %p39 = scmp.eq.s32.totalorder %s11, 1
    %p40 = por %p38, %p39
    %p41 = scmp.ne.s32.totalorder %s33, %s36
    %p42 = scmp.eq.s32.totalorder %s11, 0
    %p43 = por %p41, %p42
    %p44 = scmp.ne.s32.totalorder %s33, %s36
    %p45 = scmp.eq.s32.totalorder %s16, 1
    %p46 = por %p44, %p45
    %p47 = scmp.ne.s32.totalorder %s36, %s37
    %p48 = scmp.eq.s32.totalorder %s16, 0
    %p49 = por %p47, %p48
    %p50 = scmp.ne.s32.totalorder %s36, %s37
    %p51 = scmp.eq.s32.totalorder %s17, 1
    %p52 = por %p50, %p51
    %p54 = scmp.ne.s32.totalorder %s37, %s53
    %p55 = scmp.eq.s32.totalorder %s17, 0
    %p56 = por %p54, %p55
    %s58 = sadd.s32 %s57, 1
    %p61 = scmp.eq.s32.totalorder %s11, 1
    %p62 = scmp.ne.s32.totalorder %s57, %s59
    %p63 = scmp.eq.s32.totalorder %s11, 0
    %p64 = por %p62, %p63
    %p65 = scmp.ne.s32.totalorder %s57, %s59
    %p66 = scmp.eq.s32.totalorder %s16, 1
    %p67 = por %p65, %p66
    %p68 = scmp.ne.s32.totalorder %s59, %s60
    %p69 = scmp.eq.s32.totalorder %s16, 0
    %p70 = por %p68, %p69
    %p71 = scmp.ne.s32.totalorder %s59, %s60
    %p72 = scmp.eq.s32.totalorder %s17, 1
    %p73 = por %p71, %p72
    %p75 = scmp.ne.s32.totalorder %s60, %s74
    %p76 = scmp.eq.s32.totalorder %s17, 0
    %p77 = por %p75, %p76
    %s79 = sadd.s32 %s78, 1
    %p82 = scmp.eq.s32.totalorder %s11, 1
    %p83 = scmp.ne.s32.totalorder %s78, %s80
    %p84 = scmp.eq.s32.totalorder %s11, 0
    %p85 = por %p83, %p84
    %p86 = scmp.ne.s32.totalorder %s78, %s80
    %p87 = scmp.eq.s32.totalorder %s16, 1
    %p88 = por %p86, %p87
    %p89 = scmp.ne.s32.totalorder %s80, %s81
    %p90 = scmp.eq.s32.totalorder %s16, 0
    %p91 = por %p89, %p90
    %p92 = scmp.ne.s32.totalorder %s80, %s81
    %p93 = scmp.eq.s32.totalorder %s17, 1
    %p94 = por %p92, %p93
    %p96 = scmp.ne.s32.totalorder %s81, %s95
    %p97 = scmp.eq.s32.totalorder %s17, 0
    %p98 = por %p96, %p97
    %s100 = sadd.s32 %s99, 1
    %p103 = scmp.eq.s32.totalorder %s11, 1
    %p104 = scmp.ne.s32.totalorder %s99, %s101
    %p105 = scmp.eq.s32.totalorder %s11, 0
    %p106 = por %p104, %p105
    %p107 = scmp.ne.s32.totalorder %s99, %s101
    %p108 = scmp.eq.s32.totalorder %s16, 1
    %p109 = por %p107, %p108
    %p110 = scmp.ne.s32.totalorder %s101, %s102
    %p111 = scmp.eq.s32.totalorder %s16, 0
    %p112 = por %p110, %p111
    %p113 = scmp.ne.s32.totalorder %s101, %s102
    %p114 = scmp.eq.s32.totalorder %s17, 1
    %p115 = por %p113, %p114
    %p117 = scmp.ne.s32.totalorder %s102, %s116
    %p118 = scmp.eq.s32.totalorder %s17, 0
    %p119 = por %p117, %p118
    %s120 = ssub.s32 %s19, %s26
    %p121 = scmp.eq.s32.totalorder %s120, 0
    %s123 = sadd.s32 %s122, 1
    %s124 = scalar_select %p121, %s122, %s123
    %p127 = pneg %p121
    %p128 = scmp.eq.s32.totalorder %s11, 1
    %p129 = por %p127, %p128
    %p130 = scmp.ne.s32.totalorder %s122, %s125
    %p131 = scmp.eq.s32.totalorder %s11, 0
    %p132 = por %p130, %p131
    %p133 = scmp.ne.s32.totalorder %s122, %s125
    %p134 = scmp.eq.s32.totalorder %s16, 1
    %p135 = por %p133, %p134
    %p136 = scmp.ne.s32.totalorder %s125, %s126
    %p137 = scmp.eq.s32.totalorder %s16, 0
    %p138 = por %p136, %p137
    %p139 = scmp.ne.s32.totalorder %s125, %s126
    %p140 = scmp.eq.s32.totalorder %s17, 1
    %p141 = por %p139, %p140
    %p143 = scmp.ne.s32.totalorder %s126, %s142
    %p144 = scmp.eq.s32.totalorder %s17, 0
    %p145 = por %p143, %p144
    %s146 = ssub.s32 %s18, %s30
    %s147 = ssub.s32 %s19, %s26
    %s148 = sor.u32 %s146, %s147
    %p149 = scmp.eq.s32.totalorder %s148, 0
    %s151 = sadd.s32 %s150, 1
    %s152 = scalar_select %p149, %s150, %s151
    %p155 = pneg %p149
    %p156 = scmp.eq.s32.totalorder %s11, 1
    %p157 = por %p155, %p156
    %p158 = scmp.ne.s32.totalorder %s150, %s153
    %p159 = scmp.eq.s32.totalorder %s11, 0
    %p160 = por %p158, %p159
    %p161 = scmp.ne.s32.totalorder %s150, %s153
    %p162 = scmp.eq.s32.totalorder %s16, 1
    %p163 = por %p161, %p162
    %p164 = scmp.ne.s32.totalorder %s153, %s154
    %p165 = scmp.eq.s32.totalorder %s16, 0
    %p166 = por %p164, %p165
    %p167 = scmp.ne.s32.totalorder %s153, %s154
    %p168 = scmp.eq.s32.totalorder %s17, 1
    %p169 = por %p167, %p168
    %p171 = scmp.ne.s32.totalorder %s154, %s170
    %p172 = scmp.eq.s32.totalorder %s17, 0
    %p173 = por %p171, %p172
    %p174 = scmp.le.s32.totalorder 1, %s11
    %p175 = scmp.lt.s32.totalorder %s11, 3
    %p176 = pnand %p174, %p175
    %p177 = pneg %p176
    // Predicated region
    $region9: #{preact_bottleneck_forward.9} parent=5 // pred_check
      _
    $region10: #{preact_bottleneck_forward.9} parent=5 // pred_check_branch
      %179 = sbr.rel (%p176) target = $region12
    $region11: #{preact_bottleneck_forward.9} parent=5 // pred_region
      %s180 = ssub.s32 %s11, 1
      // Predicated region
      $region13: #{preact_bottleneck_forward.9} parent=11 // pred_check
        %p181 = pneg %p70
      $region14: #{preact_bottleneck_forward.9} parent=11 // pred_check_branch
        %183 = sbr.rel (%p181) target = $region16
      $region15: #{preact_bottleneck_forward.9} parent=11 // pred_region
        _
      $region16: #{preact_bottleneck_forward.9} parent=11 // pred_fallthru
        _
      // Predicated region
      $region17: #{preact_bottleneck_forward.9} parent=11 // pred_check
        %p184 = pneg %p91
      $region18: #{preact_bottleneck_forward.9} parent=11 // pred_check_branch
        %186 = sbr.rel (%p184) target = $region20
      $region19: #{preact_bottleneck_forward.9} parent=11 // pred_region
        _
      $region20: #{preact_bottleneck_forward.9} parent=11 // pred_fallthru
        _
      // Predicated region
      $region21: #{preact_bottleneck_forward.9} parent=11 // pred_check
        %p187 = pneg %p112
      $region22: #{preact_bottleneck_forward.9} parent=11 // pred_check_branch
        %189 = sbr.rel (%p187) target = $region24
      $region23: #{preact_bottleneck_forward.9} parent=11 // pred_region
        _
      $region24: #{preact_bottleneck_forward.9} parent=11 // pred_fallthru
        _
      // Predicated region
      $region25: #{preact_bottleneck_forward.9} parent=11 // pred_check
        %p190 = pneg %p138
      $region26: #{preact_bottleneck_forward.9} parent=11 // pred_check_branch
        %192 = sbr.rel (%p190) target = $region28
      $region27: #{preact_bottleneck_forward.9} parent=11 // pred_region
        %p193 = scmp.lt.s32.totalorder %s21, 0
        %s194 = scalar_select %p193, %s21, 0
        %s195 = smul.addr %s194, 4
        %s196 = scalar_lea.vmem %s4, %s195
      $region28: #{preact_bottleneck_forward.9} parent=11 // pred_fallthru
        _
    $region12: #{preact_bottleneck_forward.9} parent=5 // pred_fallthru
      _
    %p197 = scmp.lt.s32.totalorder %s11, 2
    // Predicated region
    $region29: #{preact_bottleneck_forward.9} parent=5 // pred_check
      %p198 = pneg %p197
    $region30: #{preact_bottleneck_forward.9} parent=5 // pred_check_branch
      %200 = sbr.rel (%p198) target = $region32
    $region31: #{preact_bottleneck_forward.9} parent=5 // pred_region
      // Predicated region
      $region33: #{preact_bottleneck_forward.9} parent=31 // pred_check
        %p201 = pneg %p43
      $region34: #{preact_bottleneck_forward.9} parent=31 // pred_check_branch
        %203 = sbr.rel (%p201) target = $region36
      $region35: #{preact_bottleneck_forward.9} parent=31 // pred_region
        %s204 = smul.u32 32, %s18
        %p205 = scmp.lt.s32.totalorder %s204, 63
        %s206 = scalar_select %p205, %s204, 63
        %s207 = smul.addr %s206, 8
        %s208 = scalar_lea.vmem %s0, %s207
        %s209 = smul.u32 32, %s18
      $region36: #{preact_bottleneck_forward.9} parent=31 // pred_fallthru
        _
    $region32: #{preact_bottleneck_forward.9} parent=5 // pred_fallthru
      _
    %p210 = scmp.le.s32.totalorder 1, %s11
    %p211 = scmp.lt.s32.totalorder %s11, 3
    %p212 = pnand %p210, %p211
    %p213 = pneg %p212
    // Predicated region
    $region37: #{preact_bottleneck_forward.9} parent=5 // pred_check
      _
    $region38: #{preact_bottleneck_forward.9} parent=5 // pred_check_branch
      %215 = sbr.rel (%p212) target = $region40
    $region39: #{preact_bottleneck_forward.9} parent=5 // pred_region
      %s216 = ssub.s32 %s11, 1
      %s217 = smul.u32 32, %s20
      %p218 = scmp.lt.s32.totalorder %s217, 63
      %s219 = scalar_select %p218, %s217, 63
      %s220 = smul.addr %s219, 8
      %s221 = scalar_lea.vmem %s0, %s220
      %p222 = pneg %p49
      %p223 = pneg %p46
      %p224 = pneg %p70
      %p225 = pneg %p67
      %p226 = pneg %p91
      %p227 = pneg %p88
      %p228 = pneg %p112
      %p229 = pneg %p109
      %p230 = scmp.lt.s32.totalorder %s21, 0
      %s231 = scalar_select %p230, %s21, 0
      %s232 = smul.addr %s231, 4
      %s233 = scalar_lea.vmem %s4, %s232
      %p234 = pneg %p138
      %p235 = pneg %p135
      %p236 = pneg %p166
      %p237 = pneg %p163
      %s238 = smul.u32 32, %s20
      %p239 = scmp.lt.s32.totalorder %s238, 63
      %s240 = scalar_select %p239, %s238, 63
      %p241 = scmp.lt.s32.totalorder %s21, 0
      %s242 = scalar_select %p241, %s21, 0
      %s243 = sadd.s32 %s242, %s240
      %s244 = smul.addr %s243, 8
      %s245 = scalar_lea.vmem %s5, %s244
      %s246 = smul.u32 32, %s20
      %p247 = scmp.lt.s32.totalorder %s246, 63
      %s248 = scalar_select %p247, %s246, 63
      %s249 = smul.addr %s248, 8
      %s250 = scalar_lea.vmem %s0, %s249
      %s251 = smul.u32 32, %s20
      %p252 = scmp.lt.s32.totalorder %s21, 0
      %s253 = scalar_select %p252, %s21, 0
      %s254 = smul.addr %s253, 4
      %s255 = scalar_lea.vmem %s4, %s254
      %s256 = smul.u32 32, %s20
      %p257 = scmp.lt.s32.totalorder %s256, 63
      %s258 = scalar_select %p257, %s256, 63
      %p259 = scmp.lt.s32.totalorder %s21, 0
      %s260 = scalar_select %p259, %s21, 0
      %s261 = sadd.s32 %s260, %s258
      %s262 = smul.addr %s261, 8
      %s263 = scalar_lea.vmem %s5, %s262
      %s264 = smul.u32 32, %s20
      %v266 = vld [vmem:[%s1] sm:$0x1]
      %v267 = vmul.f32 %v266, 0.001953125
      %v268 = vld [vmem:[%s1 + $0x1] sm:$0x1]
      %v269 = vmul.f32 %v268, 0.001953125
      %v270 = vmul.f32 %v267, %v267
      %v271 = vsub.f32 %v269, %v270
      %v272 = vadd.f32 %v271, 1e-05
      %v273 = vrsqrt.pop %v272
      %v274 = vld [vmem:[%s2] sm:$0x1]
      %v275 = vmul.f32 %v273, %v274
      %v276 = vld [vmem:[%s3] sm:$0x1]
      %v277 = vmul.f32 %v267, %v275
      %v278 = vsub.f32 %v276, %v277
      %v279 = vld [vmem:[%s250] sm:$0xff]
      %v280 = vld [vmem:[%s250 + $0x8] sm:$0xff]
      %v281 = vld [vmem:[%s250 + $0x10] sm:$0xff]
      %v282 = vld [vmem:[%s250 + $0x18] sm:$0xff]
      %v283 = vld [vmem:[%s250 + $0x20] sm:$0xff]
      %v284 = vld [vmem:[%s250 + $0x28] sm:$0xff]
      %v285 = vld [vmem:[%s250 + $0x30] sm:$0xff]
      %v286 = vld [vmem:[%s250 + $0x38] sm:$0xff]
      %v287 = vld [vmem:[%s250 + $0x40] sm:$0xff]
      %v288 = vld [vmem:[%s250 + $0x48] sm:$0xff]
      %v289 = vld [vmem:[%s250 + $0x50] sm:$0xff]
      %v290 = vld [vmem:[%s250 + $0x58] sm:$0xff]
      %v291 = vld [vmem:[%s250 + $0x60] sm:$0xff]
      %v292 = vld [vmem:[%s250 + $0x68] sm:$0xff]
      %v293 = vld [vmem:[%s250 + $0x70] sm:$0xff]
      %v294 = vld [vmem:[%s250 + $0x78] sm:$0xff]
      %v295 = vld [vmem:[%s250 + $0x80] sm:$0xff]
      %v296 = vld [vmem:[%s250 + $0x88] sm:$0xff]
      %v297 = vld [vmem:[%s250 + $0x90] sm:$0xff]
      %v298 = vld [vmem:[%s250 + $0x98] sm:$0xff]
      %v299 = vld [vmem:[%s250 + $0xa0] sm:$0xff]
      %v300 = vld [vmem:[%s250 + $0xa8] sm:$0xff]
      %v301 = vld [vmem:[%s250 + $0xb0] sm:$0xff]
      %v302 = vld [vmem:[%s250 + $0xb8] sm:$0xff]
      %v303 = vld [vmem:[%s250 + $0xc0] sm:$0xff]
      %v304 = vld [vmem:[%s250 + $0xc8] sm:$0xff]
      %v305 = vld [vmem:[%s250 + $0xd0] sm:$0xff]
      %v306 = vld [vmem:[%s250 + $0xd8] sm:$0xff]
      %v307 = vld [vmem:[%s250 + $0xe0] sm:$0xff]
      %v308 = vld [vmem:[%s250 + $0xe8] sm:$0xff]
      %v309 = vld [vmem:[%s250 + $0xf0] sm:$0xff]
      %v310 = vld [vmem:[%s250 + $0xf8] sm:$0xff]
      %v311 = vlaneseq
      %v312 = vshrl.u32 %v311, 7
      %v313 = vsub.s32 0, %v312
      %v314 = vrot.slane %v275, %v313
      %v315 = vmul.f32 %v279, %v314
      %v316 = vmul.f32 %v280, %v314
      %v317 = vmul.f32 %v281, %v314
      %v318 = vmul.f32 %v282, %v314
      %v319 = vmul.f32 %v283, %v314
      %v320 = vmul.f32 %v284, %v314
      %v321 = vmul.f32 %v285, %v314
      %v322 = vmul.f32 %v286, %v314
      %v323 = vmul.f32 %v287, %v314
      %v324 = vmul.f32 %v288, %v314
      %v325 = vmul.f32 %v289, %v314
      %v326 = vmul.f32 %v290, %v314
      %v327 = vmul.f32 %v291, %v314
      %v328 = vmul.f32 %v292, %v314
      %v329 = vmul.f32 %v293, %v314
      %v330 = vmul.f32 %v294, %v314
      %v331 = vmul.f32 %v295, %v314
      %v332 = vmul.f32 %v296, %v314
      %v333 = vmul.f32 %v297, %v314
      %v334 = vmul.f32 %v298, %v314
      %v335 = vmul.f32 %v299, %v314
      %v336 = vmul.f32 %v300, %v314
      %v337 = vmul.f32 %v301, %v314
      %v338 = vmul.f32 %v302, %v314
      %v339 = vmul.f32 %v303, %v314
      %v340 = vmul.f32 %v304, %v314
      %v341 = vmul.f32 %v305, %v314
      %v342 = vmul.f32 %v306, %v314
      %v343 = vmul.f32 %v307, %v314
      %v344 = vmul.f32 %v308, %v314
      %v345 = vmul.f32 %v309, %v314
      %v346 = vmul.f32 %v310, %v314
      %v348 = vlaneseq
      %v349 = vshrl.u32 %v348, 7
      %v350 = vsub.s32 0, %v349
      %v351 = vrot.slane %v278, %v350
      %v353 = vadd.f32 %v315, %v351
      %v354 = vadd.f32 %v316, %v351
      %v355 = vadd.f32 %v317, %v351
      %v356 = vadd.f32 %v318, %v351
      %v357 = vadd.f32 %v319, %v351
      %v358 = vadd.f32 %v320, %v351
      %v359 = vadd.f32 %v321, %v351
      %v360 = vadd.f32 %v322, %v351
      %v361 = vadd.f32 %v323, %v351
      %v362 = vadd.f32 %v324, %v351
      %v363 = vadd.f32 %v325, %v351
      %v364 = vadd.f32 %v326, %v351
      %v365 = vadd.f32 %v327, %v351
      %v366 = vadd.f32 %v328, %v351
      %v367 = vadd.f32 %v329, %v351
      %v368 = vadd.f32 %v330, %v351
      %v369 = vadd.f32 %v331, %v351
      %v370 = vadd.f32 %v332, %v351
      %v371 = vadd.f32 %v333, %v351
      %v372 = vadd.f32 %v334, %v351
      %v373 = vadd.f32 %v335, %v351
      %v374 = vadd.f32 %v336, %v351
      %v375 = vadd.f32 %v337, %v351
      %v376 = vadd.f32 %v338, %v351
      %v377 = vadd.f32 %v339, %v351
      %v378 = vadd.f32 %v340, %v351
      %v379 = vadd.f32 %v341, %v351
      %v380 = vadd.f32 %v342, %v351
      %v381 = vadd.f32 %v343, %v351
      %v382 = vadd.f32 %v344, %v351
      %v383 = vadd.f32 %v345, %v351
      %v384 = vadd.f32 %v346, %v351
      %v385 = vmax.f32 %v353, 0.0
      %v386 = vmax.f32 %v354, 0.0
      %v387 = vmax.f32 %v355, 0.0
      %v388 = vmax.f32 %v356, 0.0
      %v389 = vmax.f32 %v357, 0.0
      %v390 = vmax.f32 %v358, 0.0
      %v391 = vmax.f32 %v359, 0.0
      %v392 = vmax.f32 %v360, 0.0
      %v393 = vmax.f32 %v361, 0.0
      %v394 = vmax.f32 %v362, 0.0
      %v395 = vmax.f32 %v363, 0.0
      %v396 = vmax.f32 %v364, 0.0
      %v397 = vmax.f32 %v365, 0.0
      %v398 = vmax.f32 %v366, 0.0
      %v399 = vmax.f32 %v367, 0.0
      %v400 = vmax.f32 %v368, 0.0
      %v401 = vmax.f32 %v369, 0.0
      %v402 = vmax.f32 %v370, 0.0
      %v403 = vmax.f32 %v371, 0.0
      %v404 = vmax.f32 %v372, 0.0
      %v405 = vmax.f32 %v373, 0.0
      %v406 = vmax.f32 %v374, 0.0
      %v407 = vmax.f32 %v375, 0.0
      %v408 = vmax.f32 %v376, 0.0
      %v409 = vmax.f32 %v377, 0.0
      %v410 = vmax.f32 %v378, 0.0
      %v411 = vmax.f32 %v379, 0.0
      %v412 = vmax.f32 %v380, 0.0
      %v413 = vmax.f32 %v381, 0.0
      %v414 = vmax.f32 %v382, 0.0
      %v415 = vmax.f32 %v383, 0.0
      %v416 = vmax.f32 %v384, 0.0
      %v417 = vpack.c.bf16 %v386, %v385
      %v418 = vpack.c.bf16 %v388, %v387
      %v419 = vpack.c.bf16 %v390, %v389
      %v420 = vpack.c.bf16 %v392, %v391
      %v421 = vpack.c.bf16 %v394, %v393
      %v422 = vpack.c.bf16 %v396, %v395
      %v423 = vpack.c.bf16 %v398, %v397
      %v424 = vpack.c.bf16 %v400, %v399
      %v425 = vpack.c.bf16 %v402, %v401
      %v426 = vpack.c.bf16 %v404, %v403
      %v427 = vpack.c.bf16 %v406, %v405
      %v428 = vpack.c.bf16 %v408, %v407
      %v429 = vpack.c.bf16 %v410, %v409
      %v430 = vpack.c.bf16 %v412, %v411
      %v431 = vpack.c.bf16 %v414, %v413
      %v432 = vpack.c.bf16 %v416, %v415
      %v433 = vld [vmem:[%s255] sm:$0xf]
      %v434 = vld [vmem:[%s255 + $0x4] sm:$0xf]
      %v435 = vld [vmem:[%s255 + $0x8] sm:$0xf]
      %v436 = vld [vmem:[%s255 + $0xc] sm:$0xf]
      %v441 = vunpack.c.l.b16 %v433
      %v442 = vunpack.c.l.b16 %v434
      %v443 = vunpack.c.l.b16 %v435
      %v444 = vunpack.c.l.b16 %v436
      %v445 = vpack.c.b16 %v442, %v441
      %v446 = vpack.c.b16 %v444, %v443
      %vm449 = vcmask 261120
      %v451 = vsel %vm449, %v417, 0
      %v454 = vsel %vm449, %v418, 0
      %v457 = vsel %vm449, %v419, 0
      %v460 = vsel %vm449, %v420, 0
      %v463 = vsel %vm449, %v421, 0
      %v466 = vsel %vm449, %v422, 0
      %v469 = vsel %vm449, %v423, 0
      %v472 = vsel %vm449, %v424, 0
      %v475 = vsel %vm449, %v425, 0
      %v478 = vsel %vm449, %v426, 0
      %v481 = vsel %vm449, %v427, 0
      %v484 = vsel %vm449, %v428, 0
      %v487 = vsel %vm449, %v429, 0
      %v490 = vsel %vm449, %v430, 0
      %v493 = vsel %vm449, %v431, 0
      %v496 = vsel %vm449, %v432, 0
      %498 = vmatprep.subr.bf16.mxu0 0
      %499 = vmatpush1.bf16.msra.mxu0 %v445
      %500 = vmatprep.subr.bf16.mxu0 0
      %501 = vmatpush1.bf16.msra.mxu0 %v446
      %502 = vmatprep.subr.bf16.mxu0 0
      %503 = vmatpush1.bf16.msra.mxu0 0
      %504 = vmatprep.subr.bf16.mxu0 0
      %505 = vmatpush1.bf16.msra.mxu0 0
      %506 = vmatprep.subr.bf16.mxu0 0
      %507 = vmatpush1.bf16.msra.mxu0 0
      %508 = vmatprep.subr.bf16.mxu0 0
      %509 = vmatpush1.bf16.msra.mxu0 0
      %510 = vmatprep.subr.bf16.mxu0 0
      %511 = vmatpush1.bf16.msra.mxu0 0
      %512 = vmatprep.subr.bf16.mxu0 0
      %513 = vmatpush1.bf16.msra.mxu0 0
      %514 = vmatprep.subr.bf16.mxu0 0
      %515 = vmatpush1.bf16.msra.mxu0 0
      %516 = vmatprep.subr.bf16.mxu0 0
      %517 = vmatpush1.bf16.msra.mxu0 0
      %518 = vmatprep.subr.bf16.mxu0 0
      %519 = vmatpush1.bf16.msra.mxu0 0
      %520 = vmatprep.subr.bf16.mxu0 0
      %521 = vmatpush1.bf16.msra.mxu0 0
      %522 = vmatprep.subr.bf16.mxu0 0
      %523 = vmatpush1.bf16.msra.mxu0 0
      %524 = vmatprep.subr.bf16.mxu0 0
      %525 = vmatpush1.bf16.msra.mxu0 0
      %526 = vmatprep.subr.bf16.mxu0 0
      %527 = vmatpush1.bf16.msra.mxu0 0
      %528 = vmatprep.subr.bf16.mxu0 0
      %529 = vmatpush1.bf16.msra.mxu0 0
      %530 = vmatprep.mubr.bf16.mxu0 0
      %531 = vmatmul.mubr.bf16.gmra.mrb[0].mxu0 %v451
      %v532 = vpop.f32.mrb[0].mxu0
      %v533 = vadd.f32 0.0, %v532
      %v534 = vpop.f32.mrb[0].mxu0
      %v535 = vpop.f32.mrb[0].mxu0
      %v536 = vadd.f32 0.0, %v535
      %v537 = vpop.f32.mrb[0].mxu0
      %538 = vmatprep.mubr.bf16.mxu0 0
      %539 = vmatmul.mubr.bf16.gmra.mrb[0].mxu0 %v454
      %v540 = vpop.f32.mrb[0].mxu0
      %v541 = vadd.f32 0.0, %v540
      %v542 = vpop.f32.mrb[0].mxu0
      %v543 = vpop.f32.mrb[0].mxu0
      %v544 = vadd.f32 0.0, %v543
      %v545 = vpop.f32.mrb[0].mxu0
      %546 = vmatprep.mubr.bf16.mxu0 0
      %547 = vmatmul.mubr.bf16.gmra.mrb[0].mxu0 %v457
      %v548 = vpop.f32.mrb[0].mxu0
      %v549 = vadd.f32 0.0, %v548
      %v550 = vpop.f32.mrb[0].mxu0
      %v551 = vpop.f32.mrb[0].mxu0
      %v552 = vadd.f32 0.0, %v551
      %v553 = vpop.f32.mrb[0].mxu0
      %554 = vmatprep.mubr.bf16.mxu0 0
      %555 = vmatmul.mubr.bf16.gmra.mrb[0].mxu0 %v460
      %v556 = vpop.f32.mrb[0].mxu0
      %v557 = vadd.f32 0.0, %v556
      %v558 = vpop.f32.mrb[0].mxu0
      %v559 = vpop.f32.mrb[0].mxu0
      %v560 = vadd.f32 0.0, %v559
      %v561 = vpop.f32.mrb[0].mxu0
      %562 = vmatprep.mubr.bf16.mxu0 0
      %563 = vmatmul.mubr.bf16.gmra.mrb[0].mxu0 %v463
      %v564 = vpop.f32.mrb[0].mxu0
      %v565 = vadd.f32 0.0, %v564
      %v566 = vpop.f32.mrb[0].mxu0
      %v567 = vpop.f32.mrb[0].mxu0
      %v568 = vadd.f32 0.0, %v567
      %v569 = vpop.f32.mrb[0].mxu0
      %570 = vmatprep.mubr.bf16.mxu0 0
      %571 = vmatmul.mubr.bf16.gmra.mrb[0].mxu0 %v466
      %v572 = vpop.f32.mrb[0].mxu0
      %v573 = vadd.f32 0.0, %v572
      %v574 = vpop.f32.mrb[0].mxu0
      %v575 = vpop.f32.mrb[0].mxu0
      %v576 = vadd.f32 0.0, %v575
      %v577 = vpop.f32.mrb[0].mxu0
      %578 = vmatprep.mubr.bf16.mxu0 0
      %579 = vmatmul.mubr.bf16.gmra.mrb[0].mxu0 %v469
      %v580 = vpop.f32.mrb[0].mxu0
      %v581 = vadd.f32 0.0, %v580
      %v582 = vpop.f32.mrb[0].mxu0
      %v583 = vpop.f32.mrb[0].mxu0
      %v584 = vadd.f32 0.0, %v583
      %v585 = vpop.f32.mrb[0].mxu0
      %586 = vmatprep.mubr.bf16.mxu0 0
      %587 = vmatmul.mubr.bf16.gmra.mrb[0].mxu0 %v472
      %v588 = vpop.f32.mrb[0].mxu0
      %v589 = vadd.f32 0.0, %v588
      %v590 = vpop.f32.mrb[0].mxu0
      %v591 = vpop.f32.mrb[0].mxu0
      %v592 = vadd.f32 0.0, %v591
      %v593 = vpop.f32.mrb[0].mxu0
      %594 = vmatprep.mubr.bf16.mxu0 0
      %595 = vmatmul.mubr.bf16.gmra.mrb[0].mxu0 %v475
      %v596 = vpop.f32.mrb[0].mxu0
      %v597 = vadd.f32 0.0, %v596
      %v598 = vpop.f32.mrb[0].mxu0
      %v599 = vpop.f32.mrb[0].mxu0
      %v600 = vadd.f32 0.0, %v599
      %v601 = vpop.f32.mrb[0].mxu0
      %602 = vmatprep.mubr.bf16.mxu0 0
      %603 = vmatmul.mubr.bf16.gmra.mrb[0].mxu0 %v478
      %v604 = vpop.f32.mrb[0].mxu0
      %v605 = vadd.f32 0.0, %v604
      %v606 = vpop.f32.mrb[0].mxu0
      %v607 = vpop.f32.mrb[0].mxu0
      %v608 = vadd.f32 0.0, %v607
      %v609 = vpop.f32.mrb[0].mxu0
      %610 = vmatprep.mubr.bf16.mxu0 0
      %611 = vmatmul.mubr.bf16.gmra.mrb[0].mxu0 %v481
      %v612 = vpop.f32.mrb[0].mxu0
      %v613 = vadd.f32 0.0, %v612
      %v614 = vpop.f32.mrb[0].mxu0
      %v615 = vpop.f32.mrb[0].mxu0
      %v616 = vadd.f32 0.0, %v615
      %v617 = vpop.f32.mrb[0].mxu0
      %618 = vmatprep.mubr.bf16.mxu0 0
      %619 = vmatmul.mubr.bf16.gmra.mrb[0].mxu0 %v484
      %v620 = vpop.f32.mrb[0].mxu0
      %v621 = vadd.f32 0.0, %v620
      %v622 = vpop.f32.mrb[0].mxu0
      %v623 = vpop.f32.mrb[0].mxu0
      %v624 = vadd.f32 0.0, %v623
      %v625 = vpop.f32.mrb[0].mxu0
      %626 = vmatprep.mubr.bf16.mxu0 0
      %627 = vmatmul.mubr.bf16.gmra.mrb[0].mxu0 %v487
      %v628 = vpop.f32.mrb[0].mxu0
      %v629 = vadd.f32 0.0, %v628
      %v630 = vpop.f32.mrb[0].mxu0
      %v631 = vpop.f32.mrb[0].mxu0
      %v632 = vadd.f32 0.0, %v631
      %v633 = vpop.f32.mrb[0].mxu0
      %634 = vmatprep.mubr.bf16.mxu0 0
      %635 = vmatmul.mubr.bf16.gmra.mrb[0].mxu0 %v490
      %v636 = vpop.f32.mrb[0].mxu0
      %v637 = vadd.f32 0.0, %v636
      %v638 = vpop.f32.mrb[0].mxu0
      %v639 = vpop.f32.mrb[0].mxu0
      %v640 = vadd.f32 0.0, %v639
      %v641 = vpop.f32.mrb[0].mxu0
      %642 = vmatprep.mubr.bf16.mxu0 0
      %643 = vmatmul.mubr.bf16.gmra.mrb[0].mxu0 %v493
      %v644 = vpop.f32.mrb[0].mxu0
      %v645 = vadd.f32 0.0, %v644
      %v646 = vpop.f32.mrb[0].mxu0
      %v647 = vpop.f32.mrb[0].mxu0
      %v648 = vadd.f32 0.0, %v647
      %v649 = vpop.f32.mrb[0].mxu0
      %650 = vmatprep.mubr.bf16.mxu0 0
      %651 = vmatmul.mubr.bf16.gmra.mrb[0].mxu0 %v496
      %v652 = vpop.f32.mrb[0].mxu0
      %v653 = vadd.f32 0.0, %v652
      %v654 = vpop.f32.mrb[0].mxu0
      %v655 = vpop.f32.mrb[0].mxu0
      %v656 = vadd.f32 0.0, %v655
      %v657 = vpop.f32.mrb[0].mxu0
      %658 = vdwg.mxu0
      %vm659 = vcmask 130048
      %660 = vst.msk [vmem:[%s263] sm:$0xff] %vm659, %v533
      %661 = vst.msk [vmem:[%s263 + $0x8] sm:$0xff] %vm659, %v536
      %662 = vst.msk [vmem:[%s263 + $0x10] sm:$0xff] %vm659, %v541
      %663 = vst.msk [vmem:[%s263 + $0x18] sm:$0xff] %vm659, %v544
      %664 = vst.msk [vmem:[%s263 + $0x20] sm:$0xff] %vm659, %v549
      %665 = vst.msk [vmem:[%s263 + $0x28] sm:$0xff] %vm659, %v552
      %666 = vst.msk [vmem:[%s263 + $0x30] sm:$0xff] %vm659, %v557
      %667 = vst.msk [vmem:[%s263 + $0x38] sm:$0xff] %vm659, %v560
      %668 = vst.msk [vmem:[%s263 + $0x40] sm:$0xff] %vm659, %v565
      %669 = vst.msk [vmem:[%s263 + $0x48] sm:$0xff] %vm659, %v568
      %670 = vst.msk [vmem:[%s263 + $0x50] sm:$0xff] %vm659, %v573
      %671 = vst.msk [vmem:[%s263 + $0x58] sm:$0xff] %vm659, %v576
      %672 = vst.msk [vmem:[%s263 + $0x60] sm:$0xff] %vm659, %v581
      %673 = vst.msk [vmem:[%s263 + $0x68] sm:$0xff] %vm659, %v584
      %674 = vst.msk [vmem:[%s263 + $0x70] sm:$0xff] %vm659, %v589
      %675 = vst.msk [vmem:[%s263 + $0x78] sm:$0xff] %vm659, %v592
      %676 = vst.msk [vmem:[%s263 + $0x80] sm:$0xff] %vm659, %v597
      %677 = vst.msk [vmem:[%s263 + $0x88] sm:$0xff] %vm659, %v600
      %678 = vst.msk [vmem:[%s263 + $0x90] sm:$0xff] %vm659, %v605
      %679 = vst.msk [vmem:[%s263 + $0x98] sm:$0xff] %vm659, %v608
      %680 = vst.msk [vmem:[%s263 + $0xa0] sm:$0xff] %vm659, %v613
      %681 = vst.msk [vmem:[%s263 + $0xa8] sm:$0xff] %vm659, %v616
      %682 = vst.msk [vmem:[%s263 + $0xb0] sm:$0xff] %vm659, %v621
      %683 = vst.msk [vmem:[%s263 + $0xb8] sm:$0xff] %vm659, %v624
      %684 = vst.msk [vmem:[%s263 + $0xc0] sm:$0xff] %vm659, %v629
      %685 = vst.msk [vmem:[%s263 + $0xc8] sm:$0xff] %vm659, %v632
      %686 = vst.msk [vmem:[%s263 + $0xd0] sm:$0xff] %vm659, %v637
      %687 = vst.msk [vmem:[%s263 + $0xd8] sm:$0xff] %vm659, %v640
      %688 = vst.msk [vmem:[%s263 + $0xe0] sm:$0xff] %vm659, %v645
      %689 = vst.msk [vmem:[%s263 + $0xe8] sm:$0xff] %vm659, %v648
      %690 = vst.msk [vmem:[%s263 + $0xf0] sm:$0xff] %vm659, %v653
      %691 = vst.msk [vmem:[%s263 + $0xf8] sm:$0xff] %vm659, %v656
      %s692 = smul.u32 32, %s20
      %p693 = scmp.lt.s32.totalorder %s692, 63
      %s694 = scalar_select %p693, %s692, 63
      %p695 = scmp.lt.s32.totalorder %s21, 0
      %s696 = scalar_select %p695, %s21, 0
      %s697 = sadd.s32 %s696, %s694
      %s698 = smul.addr %s697, 8
      %s699 = scalar_lea.vmem %s5, %s698
      // Predicated region
      $region41: #{preact_bottleneck_forward.9} parent=39 // pred_check
        %p700 = pneg %p163
      $region42: #{preact_bottleneck_forward.9} parent=39 // pred_check_branch
        %702 = sbr.rel (%p700) target = $region44
      $region43: #{preact_bottleneck_forward.9} parent=39 // pred_region
        %s703 = smul.u32 32, %s20
      $region44: #{preact_bottleneck_forward.9} parent=39 // pred_fallthru
        _
    $region40: #{preact_bottleneck_forward.9} parent=5 // pred_fallthru
      _
    %p704 = scmp.le.s32.totalorder 2, %s11
    // Predicated region
    $region45: #{preact_bottleneck_forward.9} parent=5 // pred_check
      %p705 = pneg %p704
    $region46: #{preact_bottleneck_forward.9} parent=5 // pred_check_branch
      %707 = sbr.rel (%p705) target = $region48
    $region47: #{preact_bottleneck_forward.9} parent=5 // pred_region
      %s708 = ssub.s32 %s11, 2
      // Predicated region
      $region49: #{preact_bottleneck_forward.9} parent=47 // pred_check
        %p709 = pneg %p169
      $region50: #{preact_bottleneck_forward.9} parent=47 // pred_check_branch
        %711 = sbr.rel (%p709) target = $region52
      $region51: #{preact_bottleneck_forward.9} parent=47 // pred_region
        %s712 = smul.u32 32, %s22
        %p713 = scmp.lt.s32.totalorder %s712, 63
        %s714 = scalar_select %p713, %s712, 63
        %p715 = scmp.lt.s32.totalorder %s23, 0
        %s716 = scalar_select %p715, %s23, 0
        %s717 = sadd.s32 %s716, %s714
        %s718 = smul.addr %s717, 8
        %s719 = scalar_lea.vmem %s5, %s718
      $region52: #{preact_bottleneck_forward.9} parent=47 // pred_fallthru
        _
    $region48: #{preact_bottleneck_forward.9} parent=5 // pred_fallthru
      _
  $region6: #{preact_bottleneck_forward.9} parent=0 // loop_footer
    %s15 = sadd.s32 1, %s11
  $region7: #{preact_bottleneck_forward.9} parent=0 // loop_footer_branch
    %10 = sbr.rel target = $region3
  $region8: #{preact_bottleneck_forward.9} parent=0 // loop_exit
    _

// kernel: preact_bottleneck_forward.12
$region0: #{preact_bottleneck_forward.12}
  #allocation0 [shape = 'u32[]', space=smem, size = 0x4, offset = 0x4, fixed_abs, tag = 'smem constant byte address 0x4 - core index']
  #allocation1 [shape = 'u32[144,128]{1,0:T(1,128)}', space=vmem, size = 0x12000, scoped, tag = 'internal scratch']
  %s0 = inlined_call_operand.vmem [shape: f32[512,16], index: 0, kind: input, shape index: {}]
  %s1 = inlined_call_operand.vmem [shape: f32[8,16], index: 1, kind: input, shape index: {}]
  %s2 = inlined_call_operand.vmem [shape: f32[1,16], index: 2, kind: input, shape index: {}]
  %s3 = inlined_call_operand.vmem [shape: f32[1,16], index: 3, kind: input, shape index: {}]
  %s4 = inlined_call_operand.vmem [shape: bf16[512,16], index: 4, kind: output, shape index: {}]
  %s5 = sld [smem:[#allocation0]]
  $region49: #{preact_bottleneck_forward.12} parent=0
    _
  %s7 = ssub.s32 1, %s5
  %s8 = scalar_select 0, %s7, %s5
  loop: start=0, step=1, limit=4
  $region2: #{preact_bottleneck_forward.12} parent=0 // loop_pre_header
    _
  $region3: #{preact_bottleneck_forward.12} parent=0 // loop_header
    %s10 = sphi 0, %s14
    %p11 = scmp.ge.s32.totalorder %s10, 4
    %s20 = sphi 0, %s22
    %s23 = sphi 0, %s20
    %s24 = sphi 0, %s23
    %s40 = sphi 0, %s24
    %s44 = sphi 0, %s44
    %s46 = sphi 0, %s44
    %s47 = sphi 0, %s46
    %s61 = sphi 0, %s47
    %s65 = sphi 0, %s65
    %s67 = sphi 0, %s65
    %s68 = sphi 0, %s67
    %s82 = sphi 0, %s68
    %s86 = sphi 0, %s86
    %s88 = sphi 0, %s86
    %s89 = sphi 0, %s88
    %s103 = sphi 0, %s89
    %s109 = sphi 0, %s111
    %s112 = sphi 0, %s109
    %s113 = sphi 0, %s112
    %s129 = sphi 0, %s113
  $region4: #{preact_bottleneck_forward.12} parent=0 // loop_header_branch
    %13 = sbr.rel (%p11) target = $region8
  $region5: #{preact_bottleneck_forward.12} parent=0 // loop_body
    %s15 = ssub.s32 %s10, 1
    %s16 = ssub.s32 %s10, 2
    %s17 = sadd.s32 %s10, 1
    %s18 = ssub.s32 %s10, %s17
    %p19 = scmp.eq.s32.totalorder %s18, 0
    %s21 = sadd.s32 %s20, 1
    %s22 = scalar_select %p19, %s20, %s21
    %p25 = pneg %p19
    %p26 = scmp.eq.s32.totalorder %s10, 1
    %p27 = por %p25, %p26
    %p28 = scmp.ne.s32.totalorder %s20, %s23
    %p29 = scmp.eq.s32.totalorder %s10, 0
    %p30 = por %p28, %p29
    %p31 = scmp.ne.s32.totalorder %s20, %s23
    %p32 = scmp.eq.s32.totalorder %s15, 1
    %p33 = por %p31, %p32
    %p34 = scmp.ne.s32.totalorder %s23, %s24
    %p35 = scmp.eq.s32.totalorder %s15, 0
    %p36 = por %p34, %p35
    %p37 = scmp.ne.s32.totalorder %s23, %s24
    %p38 = scmp.eq.s32.totalorder %s16, 1
    %p39 = por %p37, %p38
    %p41 = scmp.ne.s32.totalorder %s24, %s40
    %p42 = scmp.eq.s32.totalorder %s16, 0
    %p43 = por %p41, %p42
    %s45 = sadd.s32 %s44, 1
    %p48 = scmp.eq.s32.totalorder %s10, 1
    %p49 = scmp.ne.s32.totalorder %s44, %s46
    %p50 = scmp.eq.s32.totalorder %s10, 0
    %p51 = por %p49, %p50
    %p52 = scmp.ne.s32.totalorder %s44, %s46
    %p53 = scmp.eq.s32.totalorder %s15, 1
    %p54 = por %p52, %p53
    %p55 = scmp.ne.s32.totalorder %s46, %s47
    %p56 = scmp.eq.s32.totalorder %s15, 0
    %p57 = por %p55, %p56
    %p58 = scmp.ne.s32.totalorder %s46, %s47
    %p59 = scmp.eq.s32.totalorder %s16, 1
    %p60 = por %p58, %p59
    %p62 = scmp.ne.s32.totalorder %s47, %s61
    %p63 = scmp.eq.s32.totalorder %s16, 0
    %p64 = por %p62, %p63
    %s66 = sadd.s32 %s65, 1
    %p69 = scmp.eq.s32.totalorder %s10, 1
    %p70 = scmp.ne.s32.totalorder %s65, %s67
    %p71 = scmp.eq.s32.totalorder %s10, 0
    %p72 = por %p70, %p71
    %p73 = scmp.ne.s32.totalorder %s65, %s67
    %p74 = scmp.eq.s32.totalorder %s15, 1
    %p75 = por %p73, %p74
    %p76 = scmp.ne.s32.totalorder %s67, %s68
    %p77 = scmp.eq.s32.totalorder %s15, 0
    %p78 = por %p76, %p77
    %p79 = scmp.ne.s32.totalorder %s67, %s68
    %p80 = scmp.eq.s32.totalorder %s16, 1
    %p81 = por %p79, %p80
    %p83 = scmp.ne.s32.totalorder %s68, %s82
    %p84 = scmp.eq.s32.totalorder %s16, 0
    %p85 = por %p83, %p84
    %s87 = sadd.s32 %s86, 1
    %p90 = scmp.eq.s32.totalorder %s10, 1
    %p91 = scmp.ne.s32.totalorder %s86, %s88
    %p92 = scmp.eq.s32.totalorder %s10, 0
    %p93 = por %p91, %p92
    %p94 = scmp.ne.s32.totalorder %s86, %s88
    %p95 = scmp.eq.s32.totalorder %s15, 1
    %p96 = por %p94, %p95
    %p97 = scmp.ne.s32.totalorder %s88, %s89
    %p98 = scmp.eq.s32.totalorder %s15, 0
    %p99 = por %p97, %p98
    %p100 = scmp.ne.s32.totalorder %s88, %s89
    %p101 = scmp.eq.s32.totalorder %s16, 1
    %p102 = por %p100, %p101
    %p104 = scmp.ne.s32.totalorder %s89, %s103
    %p105 = scmp.eq.s32.totalorder %s16, 0
    %p106 = por %p104, %p105
    %s107 = ssub.s32 %s10, %s17
    %p108 = scmp.eq.s32.totalorder %s107, 0
    %s110 = sadd.s32 %s109, 1
    %s111 = scalar_select %p108, %s109, %s110
    %p114 = pneg %p108
    %p115 = scmp.eq.s32.totalorder %s10, 1
    %p116 = por %p114, %p115
    %p117 = scmp.ne.s32.totalorder %s109, %s112
    %p118 = scmp.eq.s32.totalorder %s10, 0
    %p119 = por %p117, %p118
    %p120 = scmp.ne.s32.totalorder %s109, %s112
    %p121 = scmp.eq.s32.totalorder %s15, 1
    %p122 = por %p120, %p121
    %p123 = scmp.ne.s32.totalorder %s112, %s113
    %p124 = scmp.eq.s32.totalorder %s15, 0
    %p125 = por %p123, %p124
    %p126 = scmp.ne.s32.totalorder %s112, %s113
    %p127 = scmp.eq.s32.totalorder %s16, 1
    %p128 = por %p126, %p127
    %p130 = scmp.ne.s32.totalorder %s113, %s129
    %p131 = scmp.eq.s32.totalorder %s16, 0
    %p132 = por %p130, %p131
    %p133 = scmp.le.s32.totalorder 1, %s10
    %p134 = scmp.lt.s32.totalorder %s10, 3
    %p135 = pnand %p133, %p134
    %p136 = pneg %p135
    // Predicated region
    $region9: #{preact_bottleneck_forward.12} parent=5 // pred_check
      _
    $region10: #{preact_bottleneck_forward.12} parent=5 // pred_check_branch
      %138 = sbr.rel (%p135) target = $region12
    $region11: #{preact_bottleneck_forward.12} parent=5 // pred_region
      %s139 = ssub.s32 %s10, 1
      // Predicated region
      $region13: #{preact_bottleneck_forward.12} parent=11 // pred_check
        %p140 = pneg %p57
      $region14: #{preact_bottleneck_forward.12} parent=11 // pred_check_branch
        %142 = sbr.rel (%p140) target = $region16
      $region15: #{preact_bottleneck_forward.12} parent=11 // pred_region
        _
      $region16: #{preact_bottleneck_forward.12} parent=11 // pred_fallthru
        _
      // Predicated region
      $region17: #{preact_bottleneck_forward.12} parent=11 // pred_check
        %p143 = pneg %p78
      $region18: #{preact_bottleneck_forward.12} parent=11 // pred_check_branch
        %145 = sbr.rel (%p143) target = $region20
      $region19: #{preact_bottleneck_forward.12} parent=11 // pred_region
        _
      $region20: #{preact_bottleneck_forward.12} parent=11 // pred_fallthru
        _
      // Predicated region
      $region21: #{preact_bottleneck_forward.12} parent=11 // pred_check
        %p146 = pneg %p99
      $region22: #{preact_bottleneck_forward.12} parent=11 // pred_check_branch
        %148 = sbr.rel (%p146) target = $region24
      $region23: #{preact_bottleneck_forward.12} parent=11 // pred_region
        _
      $region24: #{preact_bottleneck_forward.12} parent=11 // pred_fallthru
        _
    $region12: #{preact_bottleneck_forward.12} parent=5 // pred_fallthru
      _
    %p149 = scmp.lt.s32.totalorder %s10, 2
    // Predicated region
    $region25: #{preact_bottleneck_forward.12} parent=5 // pred_check
      %p150 = pneg %p149
    $region26: #{preact_bottleneck_forward.12} parent=5 // pred_check_branch
      %152 = sbr.rel (%p150) target = $region28
    $region27: #{preact_bottleneck_forward.12} parent=5 // pred_region
      // Predicated region
      $region29: #{preact_bottleneck_forward.12} parent=27 // pred_check
        %p153 = pneg %p30
      $region30: #{preact_bottleneck_forward.12} parent=27 // pred_check_branch
        %155 = sbr.rel (%p153) target = $region32
      $region31: #{preact_bottleneck_forward.12} parent=27 // pred_region
        %s156 = smul.u32 32, %s10
        %p157 = scmp.lt.s32.totalorder %s156, 63
        %s158 = scalar_select %p157, %s156, 63
        %s159 = smul.addr %s158, 8
        %s160 = scalar_lea.vmem %s0, %s159
        %s161 = smul.u32 32, %s10
      $region32: #{preact_bottleneck_forward.12} parent=27 // pred_fallthru
        _
    $region28: #{preact_bottleneck_forward.12} parent=5 // pred_fallthru
      _
    %p162 = scmp.le.s32.totalorder 1, %s10
    %p163 = scmp.lt.s32.totalorder %s10, 3
    %p164 = pnand %p162, %p163
    %p165 = pneg %p164
    // Predicated region
    $region33: #{preact_bottleneck_forward.12} parent=5 // pred_check
      _
    $region34: #{preact_bottleneck_forward.12} parent=5 // pred_check_branch
      %167 = sbr.rel (%p164) target = $region36
    $region35: #{preact_bottleneck_forward.12} parent=5 // pred_region
      %s168 = ssub.s32 %s10, 1
      %s169 = smul.u32 32, %s15
      %p170 = scmp.lt.s32.totalorder %s169, 63
      %s171 = scalar_select %p170, %s169, 63
      %s172 = smul.addr %s171, 8
      %s173 = scalar_lea.vmem %s0, %s172
      %p174 = pneg %p36
      %p175 = pneg %p33
      %p176 = pneg %p57
      %p177 = pneg %p54
      %p178 = pneg %p78
      %p179 = pneg %p75
      %p180 = pneg %p99
      %p181 = pneg %p96
      %p182 = pneg %p125
      %p183 = pneg %p122
      %s184 = smul.u32 32, %s15
      %p185 = scmp.lt.s32.totalorder %s184, 63
      %s186 = scalar_select %p185, %s184, 63
      %s187 = smul.addr %s186, 4
      %s188 = scalar_lea.vmem %s4, %s187
      %s189 = smul.u32 32, %s15
      %p190 = scmp.lt.s32.totalorder %s189, 63
      %s191 = scalar_select %p190, %s189, 63
      %s192 = smul.addr %s191, 8
      %s193 = scalar_lea.vmem %s0, %s192
      %s194 = smul.u32 32, %s15
      %s195 = smul.u32 32, %s15
      %p196 = scmp.lt.s32.totalorder %s195, 63
      %s197 = scalar_select %p196, %s195, 63
      %s198 = smul.addr %s197, 4
      %s199 = scalar_lea.vmem %s4, %s198
      %s200 = smul.u32 32, %s15
      %v201 = vld [vmem:[%s1] sm:$0x1]
      %v202 = vmul.f32 %v201, 0.001953125
      %v203 = vld [vmem:[%s1 + $0x1] sm:$0x1]
      %v204 = vmul.f32 %v203, 0.001953125
      %v205 = vmul.f32 %v202, %v202
      %v206 = vsub.f32 %v204, %v205
      %v207 = vadd.f32 %v206, 1e-05
      %v208 = vrsqrt.pop %v207
      %v209 = vld [vmem:[%s2] sm:$0x1]
      %v210 = vmul.f32 %v208, %v209
      %v211 = vld [vmem:[%s3] sm:$0x1]
      %v212 = vmul.f32 %v202, %v210
      %v213 = vsub.f32 %v211, %v212
      %v214 = vld [vmem:[%s193] sm:$0xff]
      %v215 = vld [vmem:[%s193 + $0x8] sm:$0xff]
      %v216 = vld [vmem:[%s193 + $0x10] sm:$0xff]
      %v217 = vld [vmem:[%s193 + $0x18] sm:$0xff]
      %v218 = vld [vmem:[%s193 + $0x20] sm:$0xff]
      %v219 = vld [vmem:[%s193 + $0x28] sm:$0xff]
      %v220 = vld [vmem:[%s193 + $0x30] sm:$0xff]
      %v221 = vld [vmem:[%s193 + $0x38] sm:$0xff]
      %v222 = vld [vmem:[%s193 + $0x40] sm:$0xff]
      %v223 = vld [vmem:[%s193 + $0x48] sm:$0xff]
      %v224 = vld [vmem:[%s193 + $0x50] sm:$0xff]
      %v225 = vld [vmem:[%s193 + $0x58] sm:$0xff]
      %v226 = vld [vmem:[%s193 + $0x60] sm:$0xff]
      %v227 = vld [vmem:[%s193 + $0x68] sm:$0xff]
      %v228 = vld [vmem:[%s193 + $0x70] sm:$0xff]
      %v229 = vld [vmem:[%s193 + $0x78] sm:$0xff]
      %v230 = vld [vmem:[%s193 + $0x80] sm:$0xff]
      %v231 = vld [vmem:[%s193 + $0x88] sm:$0xff]
      %v232 = vld [vmem:[%s193 + $0x90] sm:$0xff]
      %v233 = vld [vmem:[%s193 + $0x98] sm:$0xff]
      %v234 = vld [vmem:[%s193 + $0xa0] sm:$0xff]
      %v235 = vld [vmem:[%s193 + $0xa8] sm:$0xff]
      %v236 = vld [vmem:[%s193 + $0xb0] sm:$0xff]
      %v237 = vld [vmem:[%s193 + $0xb8] sm:$0xff]
      %v238 = vld [vmem:[%s193 + $0xc0] sm:$0xff]
      %v239 = vld [vmem:[%s193 + $0xc8] sm:$0xff]
      %v240 = vld [vmem:[%s193 + $0xd0] sm:$0xff]
      %v241 = vld [vmem:[%s193 + $0xd8] sm:$0xff]
      %v242 = vld [vmem:[%s193 + $0xe0] sm:$0xff]
      %v243 = vld [vmem:[%s193 + $0xe8] sm:$0xff]
      %v244 = vld [vmem:[%s193 + $0xf0] sm:$0xff]
      %v245 = vld [vmem:[%s193 + $0xf8] sm:$0xff]
      %v246 = vlaneseq
      %v247 = vshrl.u32 %v246, 7
      %v248 = vsub.s32 0, %v247
      %v249 = vrot.slane %v210, %v248
      %v250 = vmul.f32 %v214, %v249
      %v251 = vmul.f32 %v215, %v249
      %v252 = vmul.f32 %v216, %v249
      %v253 = vmul.f32 %v217, %v249
      %v254 = vmul.f32 %v218, %v249
      %v255 = vmul.f32 %v219, %v249
      %v256 = vmul.f32 %v220, %v249
      %v257 = vmul.f32 %v221, %v249
      %v258 = vmul.f32 %v222, %v249
      %v259 = vmul.f32 %v223, %v249
      %v260 = vmul.f32 %v224, %v249
      %v261 = vmul.f32 %v225, %v249
      %v262 = vmul.f32 %v226, %v249
      %v263 = vmul.f32 %v227, %v249
      %v264 = vmul.f32 %v228, %v249
      %v265 = vmul.f32 %v229, %v249
      %v266 = vmul.f32 %v230, %v249
      %v267 = vmul.f32 %v231, %v249
      %v268 = vmul.f32 %v232, %v249
      %v269 = vmul.f32 %v233, %v249
      %v270 = vmul.f32 %v234, %v249
      %v271 = vmul.f32 %v235, %v249
      %v272 = vmul.f32 %v236, %v249
      %v273 = vmul.f32 %v237, %v249
      %v274 = vmul.f32 %v238, %v249
      %v275 = vmul.f32 %v239, %v249
      %v276 = vmul.f32 %v240, %v249
      %v277 = vmul.f32 %v241, %v249
      %v278 = vmul.f32 %v242, %v249
      %v279 = vmul.f32 %v243, %v249
      %v280 = vmul.f32 %v244, %v249
      %v281 = vmul.f32 %v245, %v249
      %v283 = vlaneseq
      %v284 = vshrl.u32 %v283, 7
      %v285 = vsub.s32 0, %v284
      %v286 = vrot.slane %v213, %v285
      %v288 = vadd.f32 %v250, %v286
      %v289 = vadd.f32 %v251, %v286
      %v290 = vadd.f32 %v252, %v286
      %v291 = vadd.f32 %v253, %v286
      %v292 = vadd.f32 %v254, %v286
      %v293 = vadd.f32 %v255, %v286
      %v294 = vadd.f32 %v256, %v286
      %v295 = vadd.f32 %v257, %v286
      %v296 = vadd.f32 %v258, %v286
      %v297 = vadd.f32 %v259, %v286
      %v298 = vadd.f32 %v260, %v286
      %v299 = vadd.f32 %v261, %v286
      %v300 = vadd.f32 %v262, %v286
      %v301 = vadd.f32 %v263, %v286
      %v302 = vadd.f32 %v264, %v286
      %v303 = vadd.f32 %v265, %v286
      %v304 = vadd.f32 %v266, %v286
      %v305 = vadd.f32 %v267, %v286
      %v306 = vadd.f32 %v268, %v286
      %v307 = vadd.f32 %v269, %v286
      %v308 = vadd.f32 %v270, %v286
      %v309 = vadd.f32 %v271, %v286
      %v310 = vadd.f32 %v272, %v286
      %v311 = vadd.f32 %v273, %v286
      %v312 = vadd.f32 %v274, %v286
      %v313 = vadd.f32 %v275, %v286
      %v314 = vadd.f32 %v276, %v286
      %v315 = vadd.f32 %v277, %v286
      %v316 = vadd.f32 %v278, %v286
      %v317 = vadd.f32 %v279, %v286
      %v318 = vadd.f32 %v280, %v286
      %v319 = vadd.f32 %v281, %v286
      %v320 = vmax.f32 %v288, 0.0
      %v321 = vmax.f32 %v289, 0.0
      %v322 = vmax.f32 %v290, 0.0
      %v323 = vmax.f32 %v291, 0.0
      %v324 = vmax.f32 %v292, 0.0
      %v325 = vmax.f32 %v293, 0.0
      %v326 = vmax.f32 %v294, 0.0
      %v327 = vmax.f32 %v295, 0.0
      %v328 = vmax.f32 %v296, 0.0
      %v329 = vmax.f32 %v297, 0.0
      %v330 = vmax.f32 %v298, 0.0
      %v331 = vmax.f32 %v299, 0.0
      %v332 = vmax.f32 %v300, 0.0
      %v333 = vmax.f32 %v301, 0.0
      %v334 = vmax.f32 %v302, 0.0
      %v335 = vmax.f32 %v303, 0.0
      %v336 = vmax.f32 %v304, 0.0
      %v337 = vmax.f32 %v305, 0.0
      %v338 = vmax.f32 %v306, 0.0
      %v339 = vmax.f32 %v307, 0.0
      %v340 = vmax.f32 %v308, 0.0
      %v341 = vmax.f32 %v309, 0.0
      %v342 = vmax.f32 %v310, 0.0
      %v343 = vmax.f32 %v311, 0.0
      %v344 = vmax.f32 %v312, 0.0
      %v345 = vmax.f32 %v313, 0.0
      %v346 = vmax.f32 %v314, 0.0
      %v347 = vmax.f32 %v315, 0.0
      %v348 = vmax.f32 %v316, 0.0
      %v349 = vmax.f32 %v317, 0.0
      %v350 = vmax.f32 %v318, 0.0
      %v351 = vmax.f32 %v319, 0.0
      %v352 = vpack.c.bf16 %v321, %v320
      %v353 = vpack.c.bf16 %v323, %v322
      %v354 = vpack.c.bf16 %v325, %v324
      %v355 = vpack.c.bf16 %v327, %v326
      %v356 = vpack.c.bf16 %v329, %v328
      %v357 = vpack.c.bf16 %v331, %v330
      %v358 = vpack.c.bf16 %v333, %v332
      %v359 = vpack.c.bf16 %v335, %v334
      %v360 = vpack.c.bf16 %v337, %v336
      %v361 = vpack.c.bf16 %v339, %v338
      %v362 = vpack.c.bf16 %v341, %v340
      %v363 = vpack.c.bf16 %v343, %v342
      %v364 = vpack.c.bf16 %v345, %v344
      %v365 = vpack.c.bf16 %v347, %v346
      %v366 = vpack.c.bf16 %v349, %v348
      %v367 = vpack.c.bf16 %v351, %v350
      %v384 = vunpack.c.l.b16 %v352
      %v385 = vunpack.c.h.b16 %v352
      %v386 = vunpack.c.l.b16 %v353
      %v387 = vunpack.c.h.b16 %v353
      %v388 = vunpack.c.l.b16 %v354
      %v389 = vunpack.c.h.b16 %v354
      %v390 = vunpack.c.l.b16 %v355
      %v391 = vunpack.c.h.b16 %v355
      %v392 = vunpack.c.l.b16 %v356
      %v393 = vunpack.c.h.b16 %v356
      %v394 = vunpack.c.l.b16 %v357
      %v395 = vunpack.c.h.b16 %v357
      %v396 = vunpack.c.l.b16 %v358
      %v397 = vunpack.c.h.b16 %v358
      %v398 = vunpack.c.l.b16 %v359
      %v399 = vunpack.c.h.b16 %v359
      %v400 = vunpack.c.l.b16 %v360
      %v401 = vunpack.c.h.b16 %v360
      %v402 = vunpack.c.l.b16 %v361
      %v403 = vunpack.c.h.b16 %v361
      %v404 = vunpack.c.l.b16 %v362
      %v405 = vunpack.c.h.b16 %v362
      %v406 = vunpack.c.l.b16 %v363
      %v407 = vunpack.c.h.b16 %v363
      %v408 = vunpack.c.l.b16 %v364
      %v409 = vunpack.c.h.b16 %v364
      %v410 = vunpack.c.l.b16 %v365
      %v411 = vunpack.c.h.b16 %v365
      %v412 = vunpack.c.l.b16 %v366
      %v413 = vunpack.c.h.b16 %v366
      %v414 = vunpack.c.l.b16 %v367
      %v415 = vunpack.c.h.b16 %v367
      %v416 = vpack.c.b16 %v384, %v384
      %v417 = vpack.c.b16 %v385, %v385
      %v418 = vpack.c.b16 %v386, %v386
      %v419 = vpack.c.b16 %v387, %v387
      %v420 = vpack.c.b16 %v388, %v388
      %v421 = vpack.c.b16 %v389, %v389
      %v422 = vpack.c.b16 %v390, %v390
      %v423 = vpack.c.b16 %v391, %v391
      %v424 = vpack.c.b16 %v392, %v392
      %v425 = vpack.c.b16 %v393, %v393
      %v426 = vpack.c.b16 %v394, %v394
      %v427 = vpack.c.b16 %v395, %v395
      %v428 = vpack.c.b16 %v396, %v396
      %v429 = vpack.c.b16 %v397, %v397
      %v430 = vpack.c.b16 %v398, %v398
      %v431 = vpack.c.b16 %v399, %v399
      %v432 = vpack.c.b16 %v400, %v400
      %v433 = vpack.c.b16 %v401, %v401
      %v434 = vpack.c.b16 %v402, %v402
      %v435 = vpack.c.b16 %v403, %v403
      %v436 = vpack.c.b16 %v404, %v404
      %v437 = vpack.c.b16 %v405, %v405
      %v438 = vpack.c.b16 %v406, %v406
      %v439 = vpack.c.b16 %v407, %v407
      %v440 = vpack.c.b16 %v408, %v408
      %v441 = vpack.c.b16 %v409, %v409
      %v442 = vpack.c.b16 %v410, %v410
      %v443 = vpack.c.b16 %v411, %v411
      %v444 = vpack.c.b16 %v412, %v412
      %v445 = vpack.c.b16 %v413, %v413
      %v446 = vpack.c.b16 %v414, %v414
      %v447 = vpack.c.b16 %v415, %v415
      %vm480 = vcmask 125952
      %481 = vst.msk [vmem:[%s199] sm:$0xf] %vm480, %v416
      %482 = vst.msk [vmem:[%s199 + $0x4] sm:$0xf] %vm480, %v417
      %483 = vst.msk [vmem:[%s199 + $0x8] sm:$0xf] %vm480, %v418
      %484 = vst.msk [vmem:[%s199 + $0xc] sm:$0xf] %vm480, %v419
      %485 = vst.msk [vmem:[%s199 + $0x10] sm:$0xf] %vm480, %v420
      %486 = vst.msk [vmem:[%s199 + $0x14] sm:$0xf] %vm480, %v421
      %487 = vst.msk [vmem:[%s199 + $0x18] sm:$0xf] %vm480, %v422
      %488 = vst.msk [vmem:[%s199 + $0x1c] sm:$0xf] %vm480, %v423
      %489 = vst.msk [vmem:[%s199 + $0x20] sm:$0xf] %vm480, %v424
      %490 = vst.msk [vmem:[%s199 + $0x24] sm:$0xf] %vm480, %v425
      %491 = vst.msk [vmem:[%s199 + $0x28] sm:$0xf] %vm480, %v426
      %492 = vst.msk [vmem:[%s199 + $0x2c] sm:$0xf] %vm480, %v427
      %493 = vst.msk [vmem:[%s199 + $0x30] sm:$0xf] %vm480, %v428
      %494 = vst.msk [vmem:[%s199 + $0x34] sm:$0xf] %vm480, %v429
      %495 = vst.msk [vmem:[%s199 + $0x38] sm:$0xf] %vm480, %v430
      %496 = vst.msk [vmem:[%s199 + $0x3c] sm:$0xf] %vm480, %v431
      %497 = vst.msk [vmem:[%s199 + $0x40] sm:$0xf] %vm480, %v432
      %498 = vst.msk [vmem:[%s199 + $0x44] sm:$0xf] %vm480, %v433
      %499 = vst.msk [vmem:[%s199 + $0x48] sm:$0xf] %vm480, %v434
      %500 = vst.msk [vmem:[%s199 + $0x4c] sm:$0xf] %vm480, %v435
      %501 = vst.msk [vmem:[%s199 + $0x50] sm:$0xf] %vm480, %v436
      %502 = vst.msk [vmem:[%s199 + $0x54] sm:$0xf] %vm480, %v437
      %503 = vst.msk [vmem:[%s199 + $0x58] sm:$0xf] %vm480, %v438
      %504 = vst.msk [vmem:[%s199 + $0x5c] sm:$0xf] %vm480, %v439
      %505 = vst.msk [vmem:[%s199 + $0x60] sm:$0xf] %vm480, %v440
      %506 = vst.msk [vmem:[%s199 + $0x64] sm:$0xf] %vm480, %v441
      %507 = vst.msk [vmem:[%s199 + $0x68] sm:$0xf] %vm480, %v442
      %508 = vst.msk [vmem:[%s199 + $0x6c] sm:$0xf] %vm480, %v443
      %509 = vst.msk [vmem:[%s199 + $0x70] sm:$0xf] %vm480, %v444
      %510 = vst.msk [vmem:[%s199 + $0x74] sm:$0xf] %vm480, %v445
      %511 = vst.msk [vmem:[%s199 + $0x78] sm:$0xf] %vm480, %v446
      %512 = vst.msk [vmem:[%s199 + $0x7c] sm:$0xf] %vm480, %v447
      %s513 = smul.u32 32, %s15
      %p514 = scmp.lt.s32.totalorder %s513, 63
      %s515 = scalar_select %p514, %s513, 63
      %s516 = smul.addr %s515, 4
      %s517 = scalar_lea.vmem %s4, %s516
      // Predicated region
      $region37: #{preact_bottleneck_forward.12} parent=35 // pred_check
        %p518 = pneg %p122
      $region38: #{preact_bottleneck_forward.12} parent=35 // pred_check_branch
        %520 = sbr.rel (%p518) target = $region40
      $region39: #{preact_bottleneck_forward.12} parent=35 // pred_region
        %s521 = smul.u32 32, %s15
      $region40: #{preact_bottleneck_forward.12} parent=35 // pred_fallthru
        _
    $region36: #{preact_bottleneck_forward.12} parent=5 // pred_fallthru
      _
    %p522 = scmp.le.s32.totalorder 2, %s10
    // Predicated region
    $region41: #{preact_bottleneck_forward.12} parent=5 // pred_check
      %p523 = pneg %p522
    $region42: #{preact_bottleneck_forward.12} parent=5 // pred_check_branch
      %525 = sbr.rel (%p523) target = $region44
    $region43: #{preact_bottleneck_forward.12} parent=5 // pred_region
      %s526 = ssub.s32 %s10, 2
      // Predicated region
      $region45: #{preact_bottleneck_forward.12} parent=43 // pred_check
        %p527 = pneg %p128
      $region46: #{preact_bottleneck_forward.12} parent=43 // pred_check_branch
        %529 = sbr.rel (%p527) target = $region48
      $region47: #{preact_bottleneck_forward.12} parent=43 // pred_region
        %s530 = smul.u32 32, %s16
        %p531 = scmp.lt.s32.totalorder %s530, 63
        %s532 = scalar_select %p531, %s530, 63
        %s533 = smul.addr %s532, 4
        %s534 = scalar_lea.vmem %s4, %s533
      $region48: #{preact_bottleneck_forward.12} parent=43 // pred_fallthru
        _
    $region44: #{preact_bottleneck_forward.12} parent=5 // pred_fallthru
      _
  $region6: #{preact_bottleneck_forward.12} parent=0 // loop_footer
    %s14 = sadd.s32 1, %s10
  $region7: #{preact_bottleneck_forward.12} parent=0 // loop_footer_branch
    %9 = sbr.rel target = $region3
  $region8: #{preact_bottleneck_forward.12} parent=0 // loop_exit
    _

// kernel: preact_bottleneck_forward.10
$region0: #{preact_bottleneck_forward.10}
  #allocation0 [shape = 'u32[]', space=smem, size = 0x4, offset = 0x4, fixed_abs, tag = 'smem constant byte address 0x4 - core index']
  #allocation1 [shape = 'u32[144,128]{1,0:T(1,128)}', space=vmem, size = 0x12000, scoped, tag = 'internal scratch']
  %s0 = inlined_call_operand.vmem [shape: f32[512,32], index: 0, kind: input, shape index: {}]
  %s1 = inlined_call_operand.vmem [shape: f32[8,32], index: 1, kind: input, shape index: {}]
  %s2 = inlined_call_operand.vmem [shape: f32[1,32], index: 2, kind: input, shape index: {}]
  %s3 = inlined_call_operand.vmem [shape: f32[1,32], index: 3, kind: input, shape index: {}]
  %s4 = inlined_call_operand.vmem [shape: bf16[32,64], index: 4, kind: input, shape index: {}]
  %s5 = inlined_call_operand.vmem [shape: f32[512,64], index: 5, kind: output, shape index: {}]
  %s6 = sld [smem:[#allocation0]]
  $region53: #{preact_bottleneck_forward.10} parent=0
    _
  %s8 = ssub.s32 1, %s6
  %s9 = scalar_select 0, %s8, %s6
  loop: start=0, step=1, limit=4
  $region2: #{preact_bottleneck_forward.10} parent=0 // loop_pre_header
    _
  $region3: #{preact_bottleneck_forward.10} parent=0 // loop_header
    %s11 = sphi 0, %s15
    %p12 = scmp.ge.s32.totalorder %s11, 4
    %s18 = sphi 0, %s30
    %s19 = sphi 0, %s26
    %s20 = sphi 0, %s18
    %s21 = sphi 0, %s19
    %s22 = sphi 0, %s20
    %s23 = sphi 0, %s21
    %s33 = sphi 0, %s35
    %s36 = sphi 0, %s33
    %s37 = sphi 0, %s36
    %s53 = sphi 0, %s37
    %s57 = sphi 0, %s57
    %s59 = sphi 0, %s57
    %s60 = sphi 0, %s59
    %s74 = sphi 0, %s60
    %s78 = sphi 0, %s78
    %s80 = sphi 0, %s78
    %s81 = sphi 0, %s80
    %s95 = sphi 0, %s81
    %s99 = sphi 0, %s99
    %s101 = sphi 0, %s99
    %s102 = sphi 0, %s101
    %s116 = sphi 0, %s102
    %s122 = sphi 0, %s124
    %s125 = sphi 0, %s122
    %s126 = sphi 0, %s125
    %s142 = sphi 0, %s126
    %s150 = sphi 0, %s152
    %s153 = sphi 0, %s150
    %s154 = sphi 0, %s153
    %s170 = sphi 0, %s154
  $region4: #{preact_bottleneck_forward.10} parent=0 // loop_header_branch
    %14 = sbr.rel (%p12) target = $region8
  $region5: #{preact_bottleneck_forward.10} parent=0 // loop_body
    %s16 = ssub.s32 %s11, 1
    %s17 = ssub.s32 %s11, 2
    %s24 = sadd.s32 1, %s19
    %p25 = scmp.ge.s32.totalorder %s24, 1
    %s26 = scalar_select %p25, 0, %s24
    %s27 = sadd.s32 1, %s18
    %s28 = scalar_select %p25, %s27, %s18
    %p29 = scmp.ge.s32.totalorder %s28, 2
    %s30 = scalar_select %p29, 0, %s28
    %s31 = ssub.s32 %s18, %s30
    %p32 = scmp.eq.s32.totalorder %s31, 0
    %s34 = sadd.s32 %s33, 1
    %s35 = scalar_select %p32, %s33, %s34
    %p38 = pneg %p32
    %p39 = scmp.eq.s32.totalorder %s11, 1
    %p40 = por %p38, %p39
    %p41 = scmp.ne.s32.totalorder %s33, %s36
    %p42 = scmp.eq.s32.totalorder %s11, 0
    %p43 = por %p41, %p42
    %p44 = scmp.ne.s32.totalorder %s33, %s36
    %p45 = scmp.eq.s32.totalorder %s16, 1
    %p46 = por %p44, %p45
    %p47 = scmp.ne.s32.totalorder %s36, %s37
    %p48 = scmp.eq.s32.totalorder %s16, 0
    %p49 = por %p47, %p48
    %p50 = scmp.ne.s32.totalorder %s36, %s37
    %p51 = scmp.eq.s32.totalorder %s17, 1
    %p52 = por %p50, %p51
    %p54 = scmp.ne.s32.totalorder %s37, %s53
    %p55 = scmp.eq.s32.totalorder %s17, 0
    %p56 = por %p54, %p55
    %s58 = sadd.s32 %s57, 1
    %p61 = scmp.eq.s32.totalorder %s11, 1
    %p62 = scmp.ne.s32.totalorder %s57, %s59
    %p63 = scmp.eq.s32.totalorder %s11, 0
    %p64 = por %p62, %p63
    %p65 = scmp.ne.s32.totalorder %s57, %s59
    %p66 = scmp.eq.s32.totalorder %s16, 1
    %p67 = por %p65, %p66
    %p68 = scmp.ne.s32.totalorder %s59, %s60
    %p69 = scmp.eq.s32.totalorder %s16, 0
    %p70 = por %p68, %p69
    %p71 = scmp.ne.s32.totalorder %s59, %s60
    %p72 = scmp.eq.s32.totalorder %s17, 1
    %p73 = por %p71, %p72
    %p75 = scmp.ne.s32.totalorder %s60, %s74
    %p76 = scmp.eq.s32.totalorder %s17, 0
    %p77 = por %p75, %p76
    %s79 = sadd.s32 %s78, 1
    %p82 = scmp.eq.s32.totalorder %s11, 1
    %p83 = scmp.ne.s32.totalorder %s78, %s80
    %p84 = scmp.eq.s32.totalorder %s11, 0
    %p85 = por %p83, %p84
    %p86 = scmp.ne.s32.totalorder %s78, %s80
    %p87 = scmp.eq.s32.totalorder %s16, 1
    %p88 = por %p86, %p87
    %p89 = scmp.ne.s32.totalorder %s80, %s81
    %p90 = scmp.eq.s32.totalorder %s16, 0
    %p91 = por %p89, %p90
    %p92 = scmp.ne.s32.totalorder %s80, %s81
    %p93 = scmp.eq.s32.totalorder %s17, 1
    %p94 = por %p92, %p93
    %p96 = scmp.ne.s32.totalorder %s81, %s95
    %p97 = scmp.eq.s32.totalorder %s17, 0
    %p98 = por %p96, %p97
    %s100 = sadd.s32 %s99, 1
    %p103 = scmp.eq.s32.totalorder %s11, 1
    %p104 = scmp.ne.s32.totalorder %s99, %s101
    %p105 = scmp.eq.s32.totalorder %s11, 0
    %p106 = por %p104, %p105
    %p107 = scmp.ne.s32.totalorder %s99, %s101
    %p108 = scmp.eq.s32.totalorder %s16, 1
    %p109 = por %p107, %p108
    %p110 = scmp.ne.s32.totalorder %s101, %s102
    %p111 = scmp.eq.s32.totalorder %s16, 0
    %p112 = por %p110, %p111
    %p113 = scmp.ne.s32.totalorder %s101, %s102
    %p114 = scmp.eq.s32.totalorder %s17, 1
    %p115 = por %p113, %p114
    %p117 = scmp.ne.s32.totalorder %s102, %s116
    %p118 = scmp.eq.s32.totalorder %s17, 0
    %p119 = por %p117, %p118
    %s120 = ssub.s32 %s19, %s26
    %p121 = scmp.eq.s32.totalorder %s120, 0
    %s123 = sadd.s32 %s122, 1
    %s124 = scalar_select %p121, %s122, %s123
    %p127 = pneg %p121
    %p128 = scmp.eq.s32.totalorder %s11, 1
    %p129 = por %p127, %p128
    %p130 = scmp.ne.s32.totalorder %s122, %s125
    %p131 = scmp.eq.s32.totalorder %s11, 0
    %p132 = por %p130, %p131
    %p133 = scmp.ne.s32.totalorder %s122, %s125
    %p134 = scmp.eq.s32.totalorder %s16, 1
    %p135 = por %p133, %p134
    %p136 = scmp.ne.s32.totalorder %s125, %s126
    %p137 = scmp.eq.s32.totalorder %s16, 0
    %p138 = por %p136, %p137
    %p139 = scmp.ne.s32.totalorder %s125, %s126
    %p140 = scmp.eq.s32.totalorder %s17, 1
    %p141 = por %p139, %p140
    %p143 = scmp.ne.s32.totalorder %s126, %s142
    %p144 = scmp.eq.s32.totalorder %s17, 0
    %p145 = por %p143, %p144
    %s146 = ssub.s32 %s18, %s30
    %s147 = ssub.s32 %s19, %s26
    %s148 = sor.u32 %s146, %s147
    %p149 = scmp.eq.s32.totalorder %s148, 0
    %s151 = sadd.s32 %s150, 1
    %s152 = scalar_select %p149, %s150, %s151
    %p155 = pneg %p149
    %p156 = scmp.eq.s32.totalorder %s11, 1
    %p157 = por %p155, %p156
    %p158 = scmp.ne.s32.totalorder %s150, %s153
    %p159 = scmp.eq.s32.totalorder %s11, 0
    %p160 = por %p158, %p159
    %p161 = scmp.ne.s32.totalorder %s150, %s153
    %p162 = scmp.eq.s32.totalorder %s16, 1
    %p163 = por %p161, %p162
    %p164 = scmp.ne.s32.totalorder %s153, %s154
    %p165 = scmp.eq.s32.totalorder %s16, 0
    %p166 = por %p164, %p165
    %p167 = scmp.ne.s32.totalorder %s153, %s154
    %p168 = scmp.eq.s32.totalorder %s17, 1
    %p169 = por %p167, %p168
    %p171 = scmp.ne.s32.totalorder %s154, %s170
    %p172 = scmp.eq.s32.totalorder %s17, 0
    %p173 = por %p171, %p172
    %p174 = scmp.le.s32.totalorder 1, %s11
    %p175 = scmp.lt.s32.totalorder %s11, 3
    %p176 = pnand %p174, %p175
    %p177 = pneg %p176
    // Predicated region
    $region9: #{preact_bottleneck_forward.10} parent=5 // pred_check
      _
    $region10: #{preact_bottleneck_forward.10} parent=5 // pred_check_branch
      %179 = sbr.rel (%p176) target = $region12
    $region11: #{preact_bottleneck_forward.10} parent=5 // pred_region
      %s180 = ssub.s32 %s11, 1
      // Predicated region
      $region13: #{preact_bottleneck_forward.10} parent=11 // pred_check
        %p181 = pneg %p70
      $region14: #{preact_bottleneck_forward.10} parent=11 // pred_check_branch
        %183 = sbr.rel (%p181) target = $region16
      $region15: #{preact_bottleneck_forward.10} parent=11 // pred_region
        _
      $region16: #{preact_bottleneck_forward.10} parent=11 // pred_fallthru
        _
      // Predicated region
      $region17: #{preact_bottleneck_forward.10} parent=11 // pred_check
        %p184 = pneg %p91
      $region18: #{preact_bottleneck_forward.10} parent=11 // pred_check_branch
        %186 = sbr.rel (%p184) target = $region20
      $region19: #{preact_bottleneck_forward.10} parent=11 // pred_region
        _
      $region20: #{preact_bottleneck_forward.10} parent=11 // pred_fallthru
        _
      // Predicated region
      $region21: #{preact_bottleneck_forward.10} parent=11 // pred_check
        %p187 = pneg %p112
      $region22: #{preact_bottleneck_forward.10} parent=11 // pred_check_branch
        %189 = sbr.rel (%p187) target = $region24
      $region23: #{preact_bottleneck_forward.10} parent=11 // pred_region
        _
      $region24: #{preact_bottleneck_forward.10} parent=11 // pred_fallthru
        _
      // Predicated region
      $region25: #{preact_bottleneck_forward.10} parent=11 // pred_check
        %p190 = pneg %p138
      $region26: #{preact_bottleneck_forward.10} parent=11 // pred_check_branch
        %192 = sbr.rel (%p190) target = $region28
      $region27: #{preact_bottleneck_forward.10} parent=11 // pred_region
        %p193 = scmp.lt.s32.totalorder %s21, 0
        %s194 = scalar_select %p193, %s21, 0
        %s195 = smul.addr %s194, 4
        %s196 = scalar_lea.vmem %s4, %s195
      $region28: #{preact_bottleneck_forward.10} parent=11 // pred_fallthru
        _
    $region12: #{preact_bottleneck_forward.10} parent=5 // pred_fallthru
      _
    %p197 = scmp.lt.s32.totalorder %s11, 2
    // Predicated region
    $region29: #{preact_bottleneck_forward.10} parent=5 // pred_check
      %p198 = pneg %p197
    $region30: #{preact_bottleneck_forward.10} parent=5 // pred_check_branch
      %200 = sbr.rel (%p198) target = $region32
    $region31: #{preact_bottleneck_forward.10} parent=5 // pred_region
      // Predicated region
      $region33: #{preact_bottleneck_forward.10} parent=31 // pred_check
        %p201 = pneg %p43
      $region34: #{preact_bottleneck_forward.10} parent=31 // pred_check_branch
        %203 = sbr.rel (%p201) target = $region36
      $region35: #{preact_bottleneck_forward.10} parent=31 // pred_region
        %s204 = smul.u32 32, %s18
        %p205 = scmp.lt.s32.totalorder %s204, 63
        %s206 = scalar_select %p205, %s204, 63
        %s207 = smul.addr %s206, 8
        %s208 = scalar_lea.vmem %s0, %s207
        %s209 = smul.u32 32, %s18
      $region36: #{preact_bottleneck_forward.10} parent=31 // pred_fallthru
        _
    $region32: #{preact_bottleneck_forward.10} parent=5 // pred_fallthru
      _
    %p210 = scmp.le.s32.totalorder 1, %s11
    %p211 = scmp.lt.s32.totalorder %s11, 3
    %p212 = pnand %p210, %p211
    %p213 = pneg %p212
    // Predicated region
    $region37: #{preact_bottleneck_forward.10} parent=5 // pred_check
      _
    $region38: #{preact_bottleneck_forward.10} parent=5 // pred_check_branch
      %215 = sbr.rel (%p212) target = $region40
    $region39: #{preact_bottleneck_forward.10} parent=5 // pred_region
      %s216 = ssub.s32 %s11, 1
      %s217 = smul.u32 32, %s20
      %p218 = scmp.lt.s32.totalorder %s217, 63
      %s219 = scalar_select %p218, %s217, 63
      %s220 = smul.addr %s219, 8
      %s221 = scalar_lea.vmem %s0, %s220
      %p222 = pneg %p49
      %p223 = pneg %p46
      %p224 = pneg %p70
      %p225 = pneg %p67
      %p226 = pneg %p91
      %p227 = pneg %p88
      %p228 = pneg %p112
      %p229 = pneg %p109
      %p230 = scmp.lt.s32.totalorder %s21, 0
      %s231 = scalar_select %p230, %s21, 0
      %s232 = smul.addr %s231, 4
      %s233 = scalar_lea.vmem %s4, %s232
      %p234 = pneg %p138
      %p235 = pneg %p135
      %p236 = pneg %p166
      %p237 = pneg %p163
      %s238 = smul.u32 32, %s20
      %p239 = scmp.lt.s32.totalorder %s238, 63
      %s240 = scalar_select %p239, %s238, 63
      %p241 = scmp.lt.s32.totalorder %s21, 0
      %s242 = scalar_select %p241, %s21, 0
      %s243 = sadd.s32 %s242, %s240
      %s244 = smul.addr %s243, 8
      %s245 = scalar_lea.vmem %s5, %s244
      %s246 = smul.u32 32, %s20
      %p247 = scmp.lt.s32.totalorder %s246, 63
      %s248 = scalar_select %p247, %s246, 63
      %s249 = smul.addr %s248, 8
      %s250 = scalar_lea.vmem %s0, %s249
      %s251 = smul.u32 32, %s20
      %p252 = scmp.lt.s32.totalorder %s21, 0
      %s253 = scalar_select %p252, %s21, 0
      %s254 = smul.addr %s253, 4
      %s255 = scalar_lea.vmem %s4, %s254
      %s256 = smul.u32 32, %s20
      %p257 = scmp.lt.s32.totalorder %s256, 63
      %s258 = scalar_select %p257, %s256, 63
      %p259 = scmp.lt.s32.totalorder %s21, 0
      %s260 = scalar_select %p259, %s21, 0
      %s261 = sadd.s32 %s260, %s258
      %s262 = smul.addr %s261, 8
      %s263 = scalar_lea.vmem %s5, %s262
      %s264 = smul.u32 32, %s20
      %v266 = vld [vmem:[%s1] sm:$0x1]
      %v267 = vmul.f32 %v266, 0.001953125
      %v268 = vld [vmem:[%s1 + $0x1] sm:$0x1]
      %v269 = vmul.f32 %v268, 0.001953125
      %v270 = vmul.f32 %v267, %v267
      %v271 = vsub.f32 %v269, %v270
      %v272 = vadd.f32 %v271, 1e-05
      %v273 = vrsqrt.pop %v272
      %v274 = vld [vmem:[%s2] sm:$0x1]
      %v275 = vmul.f32 %v273, %v274
      %v276 = vld [vmem:[%s3] sm:$0x1]
      %v277 = vmul.f32 %v267, %v275
      %v278 = vsub.f32 %v276, %v277
      %v279 = vld [vmem:[%s250] sm:$0xff]
      %v280 = vld [vmem:[%s250 + $0x8] sm:$0xff]
      %v281 = vld [vmem:[%s250 + $0x10] sm:$0xff]
      %v282 = vld [vmem:[%s250 + $0x18] sm:$0xff]
      %v283 = vld [vmem:[%s250 + $0x20] sm:$0xff]
      %v284 = vld [vmem:[%s250 + $0x28] sm:$0xff]
      %v285 = vld [vmem:[%s250 + $0x30] sm:$0xff]
      %v286 = vld [vmem:[%s250 + $0x38] sm:$0xff]
      %v287 = vld [vmem:[%s250 + $0x40] sm:$0xff]
      %v288 = vld [vmem:[%s250 + $0x48] sm:$0xff]
      %v289 = vld [vmem:[%s250 + $0x50] sm:$0xff]
      %v290 = vld [vmem:[%s250 + $0x58] sm:$0xff]
      %v291 = vld [vmem:[%s250 + $0x60] sm:$0xff]
      %v292 = vld [vmem:[%s250 + $0x68] sm:$0xff]
      %v293 = vld [vmem:[%s250 + $0x70] sm:$0xff]
      %v294 = vld [vmem:[%s250 + $0x78] sm:$0xff]
      %v295 = vld [vmem:[%s250 + $0x80] sm:$0xff]
      %v296 = vld [vmem:[%s250 + $0x88] sm:$0xff]
      %v297 = vld [vmem:[%s250 + $0x90] sm:$0xff]
      %v298 = vld [vmem:[%s250 + $0x98] sm:$0xff]
      %v299 = vld [vmem:[%s250 + $0xa0] sm:$0xff]
      %v300 = vld [vmem:[%s250 + $0xa8] sm:$0xff]
      %v301 = vld [vmem:[%s250 + $0xb0] sm:$0xff]
      %v302 = vld [vmem:[%s250 + $0xb8] sm:$0xff]
      %v303 = vld [vmem:[%s250 + $0xc0] sm:$0xff]
      %v304 = vld [vmem:[%s250 + $0xc8] sm:$0xff]
      %v305 = vld [vmem:[%s250 + $0xd0] sm:$0xff]
      %v306 = vld [vmem:[%s250 + $0xd8] sm:$0xff]
      %v307 = vld [vmem:[%s250 + $0xe0] sm:$0xff]
      %v308 = vld [vmem:[%s250 + $0xe8] sm:$0xff]
      %v309 = vld [vmem:[%s250 + $0xf0] sm:$0xff]
      %v310 = vld [vmem:[%s250 + $0xf8] sm:$0xff]
      %v311 = vlaneseq
      %v312 = vshrl.u32 %v311, 7
      %v313 = vsub.s32 0, %v312
      %v314 = vrot.slane %v275, %v313
      %v315 = vmul.f32 %v279, %v314
      %v316 = vmul.f32 %v280, %v314
      %v317 = vmul.f32 %v281, %v314
      %v318 = vmul.f32 %v282, %v314
      %v319 = vmul.f32 %v283, %v314
      %v320 = vmul.f32 %v284, %v314
      %v321 = vmul.f32 %v285, %v314
      %v322 = vmul.f32 %v286, %v314
      %v323 = vmul.f32 %v287, %v314
      %v324 = vmul.f32 %v288, %v314
      %v325 = vmul.f32 %v289, %v314
      %v326 = vmul.f32 %v290, %v314
      %v327 = vmul.f32 %v291, %v314
      %v328 = vmul.f32 %v292, %v314
      %v329 = vmul.f32 %v293, %v314
      %v330 = vmul.f32 %v294, %v314
      %v331 = vmul.f32 %v295, %v314
      %v332 = vmul.f32 %v296, %v314
      %v333 = vmul.f32 %v297, %v314
      %v334 = vmul.f32 %v298, %v314
      %v335 = vmul.f32 %v299, %v314
      %v336 = vmul.f32 %v300, %v314
      %v337 = vmul.f32 %v301, %v314
      %v338 = vmul.f32 %v302, %v314
      %v339 = vmul.f32 %v303, %v314
      %v340 = vmul.f32 %v304, %v314
      %v341 = vmul.f32 %v305, %v314
      %v342 = vmul.f32 %v306, %v314
      %v343 = vmul.f32 %v307, %v314
      %v344 = vmul.f32 %v308, %v314
      %v345 = vmul.f32 %v309, %v314
      %v346 = vmul.f32 %v310, %v314
      %v348 = vlaneseq
      %v349 = vshrl.u32 %v348, 7
      %v350 = vsub.s32 0, %v349
      %v351 = vrot.slane %v278, %v350
      %v353 = vadd.f32 %v315, %v351
      %v354 = vadd.f32 %v316, %v351
      %v355 = vadd.f32 %v317, %v351
      %v356 = vadd.f32 %v318, %v351
      %v357 = vadd.f32 %v319, %v351
      %v358 = vadd.f32 %v320, %v351
      %v359 = vadd.f32 %v321, %v351
      %v360 = vadd.f32 %v322, %v351
      %v361 = vadd.f32 %v323, %v351
      %v362 = vadd.f32 %v324, %v351
      %v363 = vadd.f32 %v325, %v351
      %v364 = vadd.f32 %v326, %v351
      %v365 = vadd.f32 %v327, %v351
      %v366 = vadd.f32 %v328, %v351
      %v367 = vadd.f32 %v329, %v351
      %v368 = vadd.f32 %v330, %v351
      %v369 = vadd.f32 %v331, %v351
      %v370 = vadd.f32 %v332, %v351
      %v371 = vadd.f32 %v333, %v351
      %v372 = vadd.f32 %v334, %v351
      %v373 = vadd.f32 %v335, %v351
      %v374 = vadd.f32 %v336, %v351
      %v375 = vadd.f32 %v337, %v351
      %v376 = vadd.f32 %v338, %v351
      %v377 = vadd.f32 %v339, %v351
      %v378 = vadd.f32 %v340, %v351
      %v379 = vadd.f32 %v341, %v351
      %v380 = vadd.f32 %v342, %v351
      %v381 = vadd.f32 %v343, %v351
      %v382 = vadd.f32 %v344, %v351
      %v383 = vadd.f32 %v345, %v351
      %v384 = vadd.f32 %v346, %v351
      %v385 = vmax.f32 %v353, 0.0
      %v386 = vmax.f32 %v354, 0.0
      %v387 = vmax.f32 %v355, 0.0
      %v388 = vmax.f32 %v356, 0.0
      %v389 = vmax.f32 %v357, 0.0
      %v390 = vmax.f32 %v358, 0.0
      %v391 = vmax.f32 %v359, 0.0
      %v392 = vmax.f32 %v360, 0.0
      %v393 = vmax.f32 %v361, 0.0
      %v394 = vmax.f32 %v362, 0.0
      %v395 = vmax.f32 %v363, 0.0
      %v396 = vmax.f32 %v364, 0.0
      %v397 = vmax.f32 %v365, 0.0
      %v398 = vmax.f32 %v366, 0.0
      %v399 = vmax.f32 %v367, 0.0
      %v400 = vmax.f32 %v368, 0.0
      %v401 = vmax.f32 %v369, 0.0
      %v402 = vmax.f32 %v370, 0.0
      %v403 = vmax.f32 %v371, 0.0
      %v404 = vmax.f32 %v372, 0.0
      %v405 = vmax.f32 %v373, 0.0
      %v406 = vmax.f32 %v374, 0.0
      %v407 = vmax.f32 %v375, 0.0
      %v408 = vmax.f32 %v376, 0.0
      %v409 = vmax.f32 %v377, 0.0
      %v410 = vmax.f32 %v378, 0.0
      %v411 = vmax.f32 %v379, 0.0
      %v412 = vmax.f32 %v380, 0.0
      %v413 = vmax.f32 %v381, 0.0
      %v414 = vmax.f32 %v382, 0.0
      %v415 = vmax.f32 %v383, 0.0
      %v416 = vmax.f32 %v384, 0.0
      %v417 = vpack.c.bf16 %v386, %v385
      %v418 = vpack.c.bf16 %v388, %v387
      %v419 = vpack.c.bf16 %v390, %v389
      %v420 = vpack.c.bf16 %v392, %v391
      %v421 = vpack.c.bf16 %v394, %v393
      %v422 = vpack.c.bf16 %v396, %v395
      %v423 = vpack.c.bf16 %v398, %v397
      %v424 = vpack.c.bf16 %v400, %v399
      %v425 = vpack.c.bf16 %v402, %v401
      %v426 = vpack.c.bf16 %v404, %v403
      %v427 = vpack.c.bf16 %v406, %v405
      %v428 = vpack.c.bf16 %v408, %v407
      %v429 = vpack.c.bf16 %v410, %v409
      %v430 = vpack.c.bf16 %v412, %v411
      %v431 = vpack.c.bf16 %v414, %v413
      %v432 = vpack.c.bf16 %v416, %v415
      %v433 = vld [vmem:[%s255] sm:$0xf]
      %v434 = vld [vmem:[%s255 + $0x4] sm:$0xf]
      %v435 = vld [vmem:[%s255 + $0x8] sm:$0xf]
      %v436 = vld [vmem:[%s255 + $0xc] sm:$0xf]
      %v441 = vunpack.c.l.b16 %v433
      %v442 = vunpack.c.l.b16 %v434
      %v443 = vunpack.c.l.b16 %v435
      %v444 = vunpack.c.l.b16 %v436
      %v445 = vpack.c.b16 %v442, %v441
      %v446 = vpack.c.b16 %v444, %v443
      %vm449 = vcmask 261120
      %v451 = vsel %vm449, %v417, 0
      %v454 = vsel %vm449, %v418, 0
      %v457 = vsel %vm449, %v419, 0
      %v460 = vsel %vm449, %v420, 0
      %v463 = vsel %vm449, %v421, 0
      %v466 = vsel %vm449, %v422, 0
      %v469 = vsel %vm449, %v423, 0
      %v472 = vsel %vm449, %v424, 0
      %v475 = vsel %vm449, %v425, 0
      %v478 = vsel %vm449, %v426, 0
      %v481 = vsel %vm449, %v427, 0
      %v484 = vsel %vm449, %v428, 0
      %v487 = vsel %vm449, %v429, 0
      %v490 = vsel %vm449, %v430, 0
      %v493 = vsel %vm449, %v431, 0
      %v496 = vsel %vm449, %v432, 0
      %498 = vmatprep.subr.bf16.mxu0 0
      %499 = vmatpush1.bf16.msra.mxu0 %v445
      %500 = vmatprep.subr.bf16.mxu0 0
      %501 = vmatpush1.bf16.msra.mxu0 %v446
      %502 = vmatprep.subr.bf16.mxu0 0
      %503 = vmatpush1.bf16.msra.mxu0 0
      %504 = vmatprep.subr.bf16.mxu0 0
      %505 = vmatpush1.bf16.msra.mxu0 0
      %506 = vmatprep.subr.bf16.mxu0 0
      %507 = vmatpush1.bf16.msra.mxu0 0
      %508 = vmatprep.subr.bf16.mxu0 0
      %509 = vmatpush1.bf16.msra.mxu0 0
      %510 = vmatprep.subr.bf16.mxu0 0
      %511 = vmatpush1.bf16.msra.mxu0 0
      %512 = vmatprep.subr.bf16.mxu0 0
      %513 = vmatpush1.bf16.msra.mxu0 0
      %514 = vmatprep.subr.bf16.mxu0 0
      %515 = vmatpush1.bf16.msra.mxu0 0
      %516 = vmatprep.subr.bf16.mxu0 0
      %517 = vmatpush1.bf16.msra.mxu0 0
      %518 = vmatprep.subr.bf16.mxu0 0
      %519 = vmatpush1.bf16.msra.mxu0 0
      %520 = vmatprep.subr.bf16.mxu0 0
      %521 = vmatpush1.bf16.msra.mxu0 0
      %522 = vmatprep.subr.bf16.mxu0 0
      %523 = vmatpush1.bf16.msra.mxu0 0
      %524 = vmatprep.subr.bf16.mxu0 0
      %525 = vmatpush1.bf16.msra.mxu0 0
      %526 = vmatprep.subr.bf16.mxu0 0
      %527 = vmatpush1.bf16.msra.mxu0 0
      %528 = vmatprep.subr.bf16.mxu0 0
      %529 = vmatpush1.bf16.msra.mxu0 0
      %530 = vmatprep.mubr.bf16.mxu0 0
      %531 = vmatmul.mubr.bf16.gmra.mrb[0].mxu0 %v451
      %v532 = vpop.f32.mrb[0].mxu0
      %v533 = vadd.f32 0.0, %v532
      %v534 = vpop.f32.mrb[0].mxu0
      %v535 = vpop.f32.mrb[0].mxu0
      %v536 = vadd.f32 0.0, %v535
      %v537 = vpop.f32.mrb[0].mxu0
      %538 = vmatprep.mubr.bf16.mxu0 0
      %539 = vmatmul.mubr.bf16.gmra.mrb[0].mxu0 %v454
      %v540 = vpop.f32.mrb[0].mxu0
      %v541 = vadd.f32 0.0, %v540
      %v542 = vpop.f32.mrb[0].mxu0
      %v543 = vpop.f32.mrb[0].mxu0
      %v544 = vadd.f32 0.0, %v543
      %v545 = vpop.f32.mrb[0].mxu0
      %546 = vmatprep.mubr.bf16.mxu0 0
      %547 = vmatmul.mubr.bf16.gmra.mrb[0].mxu0 %v457
      %v548 = vpop.f32.mrb[0].mxu0
      %v549 = vadd.f32 0.0, %v548
      %v550 = vpop.f32.mrb[0].mxu0
      %v551 = vpop.f32.mrb[0].mxu0
      %v552 = vadd.f32 0.0, %v551
      %v553 = vpop.f32.mrb[0].mxu0
      %554 = vmatprep.mubr.bf16.mxu0 0
      %555 = vmatmul.mubr.bf16.gmra.mrb[0].mxu0 %v460
      %v556 = vpop.f32.mrb[0].mxu0
      %v557 = vadd.f32 0.0, %v556
      %v558 = vpop.f32.mrb[0].mxu0
      %v559 = vpop.f32.mrb[0].mxu0
      %v560 = vadd.f32 0.0, %v559
      %v561 = vpop.f32.mrb[0].mxu0
      %562 = vmatprep.mubr.bf16.mxu0 0
      %563 = vmatmul.mubr.bf16.gmra.mrb[0].mxu0 %v463
      %v564 = vpop.f32.mrb[0].mxu0
      %v565 = vadd.f32 0.0, %v564
      %v566 = vpop.f32.mrb[0].mxu0
      %v567 = vpop.f32.mrb[0].mxu0
      %v568 = vadd.f32 0.0, %v567
      %v569 = vpop.f32.mrb[0].mxu0
      %570 = vmatprep.mubr.bf16.mxu0 0
      %571 = vmatmul.mubr.bf16.gmra.mrb[0].mxu0 %v466
      %v572 = vpop.f32.mrb[0].mxu0
      %v573 = vadd.f32 0.0, %v572
      %v574 = vpop.f32.mrb[0].mxu0
      %v575 = vpop.f32.mrb[0].mxu0
      %v576 = vadd.f32 0.0, %v575
      %v577 = vpop.f32.mrb[0].mxu0
      %578 = vmatprep.mubr.bf16.mxu0 0
      %579 = vmatmul.mubr.bf16.gmra.mrb[0].mxu0 %v469
      %v580 = vpop.f32.mrb[0].mxu0
      %v581 = vadd.f32 0.0, %v580
      %v582 = vpop.f32.mrb[0].mxu0
      %v583 = vpop.f32.mrb[0].mxu0
      %v584 = vadd.f32 0.0, %v583
      %v585 = vpop.f32.mrb[0].mxu0
      %586 = vmatprep.mubr.bf16.mxu0 0
      %587 = vmatmul.mubr.bf16.gmra.mrb[0].mxu0 %v472
      %v588 = vpop.f32.mrb[0].mxu0
      %v589 = vadd.f32 0.0, %v588
      %v590 = vpop.f32.mrb[0].mxu0
      %v591 = vpop.f32.mrb[0].mxu0
      %v592 = vadd.f32 0.0, %v591
      %v593 = vpop.f32.mrb[0].mxu0
      %594 = vmatprep.mubr.bf16.mxu0 0
      %595 = vmatmul.mubr.bf16.gmra.mrb[0].mxu0 %v475
      %v596 = vpop.f32.mrb[0].mxu0
      %v597 = vadd.f32 0.0, %v596
      %v598 = vpop.f32.mrb[0].mxu0
      %v599 = vpop.f32.mrb[0].mxu0
      %v600 = vadd.f32 0.0, %v599
      %v601 = vpop.f32.mrb[0].mxu0
      %602 = vmatprep.mubr.bf16.mxu0 0
      %603 = vmatmul.mubr.bf16.gmra.mrb[0].mxu0 %v478
      %v604 = vpop.f32.mrb[0].mxu0
      %v605 = vadd.f32 0.0, %v604
      %v606 = vpop.f32.mrb[0].mxu0
      %v607 = vpop.f32.mrb[0].mxu0
      %v608 = vadd.f32 0.0, %v607
      %v609 = vpop.f32.mrb[0].mxu0
      %610 = vmatprep.mubr.bf16.mxu0 0
      %611 = vmatmul.mubr.bf16.gmra.mrb[0].mxu0 %v481
      %v612 = vpop.f32.mrb[0].mxu0
      %v613 = vadd.f32 0.0, %v612
      %v614 = vpop.f32.mrb[0].mxu0
      %v615 = vpop.f32.mrb[0].mxu0
      %v616 = vadd.f32 0.0, %v615
      %v617 = vpop.f32.mrb[0].mxu0
      %618 = vmatprep.mubr.bf16.mxu0 0
      %619 = vmatmul.mubr.bf16.gmra.mrb[0].mxu0 %v484
      %v620 = vpop.f32.mrb[0].mxu0
      %v621 = vadd.f32 0.0, %v620
      %v622 = vpop.f32.mrb[0].mxu0
      %v623 = vpop.f32.mrb[0].mxu0
      %v624 = vadd.f32 0.0, %v623
      %v625 = vpop.f32.mrb[0].mxu0
      %626 = vmatprep.mubr.bf16.mxu0 0
      %627 = vmatmul.mubr.bf16.gmra.mrb[0].mxu0 %v487
      %v628 = vpop.f32.mrb[0].mxu0
      %v629 = vadd.f32 0.0, %v628
      %v630 = vpop.f32.mrb[0].mxu0
      %v631 = vpop.f32.mrb[0].mxu0
      %v632 = vadd.f32 0.0, %v631
      %v633 = vpop.f32.mrb[0].mxu0
      %634 = vmatprep.mubr.bf16.mxu0 0
      %635 = vmatmul.mubr.bf16.gmra.mrb[0].mxu0 %v490
      %v636 = vpop.f32.mrb[0].mxu0
      %v637 = vadd.f32 0.0, %v636
      %v638 = vpop.f32.mrb[0].mxu0
      %v639 = vpop.f32.mrb[0].mxu0
      %v640 = vadd.f32 0.0, %v639
      %v641 = vpop.f32.mrb[0].mxu0
      %642 = vmatprep.mubr.bf16.mxu0 0
      %643 = vmatmul.mubr.bf16.gmra.mrb[0].mxu0 %v493
      %v644 = vpop.f32.mrb[0].mxu0
      %v645 = vadd.f32 0.0, %v644
      %v646 = vpop.f32.mrb[0].mxu0
      %v647 = vpop.f32.mrb[0].mxu0
      %v648 = vadd.f32 0.0, %v647
      %v649 = vpop.f32.mrb[0].mxu0
      %650 = vmatprep.mubr.bf16.mxu0 0
      %651 = vmatmul.mubr.bf16.gmra.mrb[0].mxu0 %v496
      %v652 = vpop.f32.mrb[0].mxu0
      %v653 = vadd.f32 0.0, %v652
      %v654 = vpop.f32.mrb[0].mxu0
      %v655 = vpop.f32.mrb[0].mxu0
      %v656 = vadd.f32 0.0, %v655
      %v657 = vpop.f32.mrb[0].mxu0
      %658 = vdwg.mxu0
      %vm659 = vcmask 523264
      %660 = vst.msk [vmem:[%s263] sm:$0xff] %vm659, %v533
      %661 = vst.msk [vmem:[%s263 + $0x8] sm:$0xff] %vm659, %v536
      %662 = vst.msk [vmem:[%s263 + $0x10] sm:$0xff] %vm659, %v541
      %663 = vst.msk [vmem:[%s263 + $0x18] sm:$0xff] %vm659, %v544
      %664 = vst.msk [vmem:[%s263 + $0x20] sm:$0xff] %vm659, %v549
      %665 = vst.msk [vmem:[%s263 + $0x28] sm:$0xff] %vm659, %v552
      %666 = vst.msk [vmem:[%s263 + $0x30] sm:$0xff] %vm659, %v557
      %667 = vst.msk [vmem:[%s263 + $0x38] sm:$0xff] %vm659, %v560
      %668 = vst.msk [vmem:[%s263 + $0x40] sm:$0xff] %vm659, %v565
      %669 = vst.msk [vmem:[%s263 + $0x48] sm:$0xff] %vm659, %v568
      %670 = vst.msk [vmem:[%s263 + $0x50] sm:$0xff] %vm659, %v573
      %671 = vst.msk [vmem:[%s263 + $0x58] sm:$0xff] %vm659, %v576
      %672 = vst.msk [vmem:[%s263 + $0x60] sm:$0xff] %vm659, %v581
      %673 = vst.msk [vmem:[%s263 + $0x68] sm:$0xff] %vm659, %v584
      %674 = vst.msk [vmem:[%s263 + $0x70] sm:$0xff] %vm659, %v589
      %675 = vst.msk [vmem:[%s263 + $0x78] sm:$0xff] %vm659, %v592
      %676 = vst.msk [vmem:[%s263 + $0x80] sm:$0xff] %vm659, %v597
      %677 = vst.msk [vmem:[%s263 + $0x88] sm:$0xff] %vm659, %v600
      %678 = vst.msk [vmem:[%s263 + $0x90] sm:$0xff] %vm659, %v605
      %679 = vst.msk [vmem:[%s263 + $0x98] sm:$0xff] %vm659, %v608
      %680 = vst.msk [vmem:[%s263 + $0xa0] sm:$0xff] %vm659, %v613
      %681 = vst.msk [vmem:[%s263 + $0xa8] sm:$0xff] %vm659, %v616
      %682 = vst.msk [vmem:[%s263 + $0xb0] sm:$0xff] %vm659, %v621
      %683 = vst.msk [vmem:[%s263 + $0xb8] sm:$0xff] %vm659, %v624
      %684 = vst.msk [vmem:[%s263 + $0xc0] sm:$0xff] %vm659, %v629
      %685 = vst.msk [vmem:[%s263 + $0xc8] sm:$0xff] %vm659, %v632
      %686 = vst.msk [vmem:[%s263 + $0xd0] sm:$0xff] %vm659, %v637
      %687 = vst.msk [vmem:[%s263 + $0xd8] sm:$0xff] %vm659, %v640
      %688 = vst.msk [vmem:[%s263 + $0xe0] sm:$0xff] %vm659, %v645
      %689 = vst.msk [vmem:[%s263 + $0xe8] sm:$0xff] %vm659, %v648
      %690 = vst.msk [vmem:[%s263 + $0xf0] sm:$0xff] %vm659, %v653
      %691 = vst.msk [vmem:[%s263 + $0xf8] sm:$0xff] %vm659, %v656
      %s692 = smul.u32 32, %s20
      %p693 = scmp.lt.s32.totalorder %s692, 63
      %s694 = scalar_select %p693, %s692, 63
      %p695 = scmp.lt.s32.totalorder %s21, 0
      %s696 = scalar_select %p695, %s21, 0
      %s697 = sadd.s32 %s696, %s694
      %s698 = smul.addr %s697, 8
      %s699 = scalar_lea.vmem %s5, %s698
      // Predicated region
      $region41: #{preact_bottleneck_forward.10} parent=39 // pred_check
        %p700 = pneg %p163
      $region42: #{preact_bottleneck_forward.10} parent=39 // pred_check_branch
        %702 = sbr.rel (%p700) target = $region44
      $region43: #{preact_bottleneck_forward.10} parent=39 // pred_region
        %s703 = smul.u32 32, %s20
      $region44: #{preact_bottleneck_forward.10} parent=39 // pred_fallthru
        _
    $region40: #{preact_bottleneck_forward.10} parent=5 // pred_fallthru
      _
    %p704 = scmp.le.s32.totalorder 2, %s11
    // Predicated region
    $region45: #{preact_bottleneck_forward.10} parent=5 // pred_check
      %p705 = pneg %p704
    $region46: #{preact_bottleneck_forward.10} parent=5 // pred_check_branch
      %707 = sbr.rel (%p705) target = $region48
    $region47: #{preact_bottleneck_forward.10} parent=5 // pred_region
      %s708 = ssub.s32 %s11, 2
      // Predicated region
      $region49: #{preact_bottleneck_forward.10} parent=47 // pred_check
        %p709 = pneg %p169
      $region50: #{preact_bottleneck_forward.10} parent=47 // pred_check_branch
        %711 = sbr.rel (%p709) target = $region52
      $region51: #{preact_bottleneck_forward.10} parent=47 // pred_region
        %s712 = smul.u32 32, %s22
        %p713 = scmp.lt.s32.totalorder %s712, 63
        %s714 = scalar_select %p713, %s712, 63
        %p715 = scmp.lt.s32.totalorder %s23, 0
        %s716 = scalar_select %p715, %s23, 0
        %s717 = sadd.s32 %s716, %s714
        %s718 = smul.addr %s717, 8
        %s719 = scalar_lea.vmem %s5, %s718
      $region52: #{preact_bottleneck_forward.10} parent=47 // pred_fallthru
        _
    $region48: #{preact_bottleneck_forward.10} parent=5 // pred_fallthru
      _
  $region6: #{preact_bottleneck_forward.10} parent=0 // loop_footer
    %s15 = sadd.s32 1, %s11
  $region7: #{preact_bottleneck_forward.10} parent=0 // loop_footer_branch
    %10 = sbr.rel target = $region3
  $region8: #{preact_bottleneck_forward.10} parent=0 // loop_exit
    _

// kernel: preact_bottleneck_forward.15
$region0: #{preact_bottleneck_forward.15}
  #allocation0 [shape = 'u32[]', space=smem, size = 0x4, offset = 0x4, fixed_abs, tag = 'smem constant byte address 0x4 - core index']
  #allocation1 [shape = 'u32[144,128]{1,0:T(1,128)}', space=vmem, size = 0x12000, scoped, tag = 'internal scratch']
  %s0 = inlined_call_operand.vmem [shape: f32[512,16], index: 0, kind: input, shape index: {}]
  %s1 = inlined_call_operand.vmem [shape: f32[8,16], index: 1, kind: input, shape index: {}]
  %s2 = inlined_call_operand.vmem [shape: f32[1,16], index: 2, kind: input, shape index: {}]
  %s3 = inlined_call_operand.vmem [shape: f32[1,16], index: 3, kind: input, shape index: {}]
  %s4 = inlined_call_operand.vmem [shape: bf16[16,64], index: 4, kind: input, shape index: {}]
  %s5 = inlined_call_operand.vmem [shape: f32[512,64], index: 5, kind: input, shape index: {}]
  %s6 = inlined_call_operand.hbm [shape: f32[512,64], index: 6, kind: output, shape index: {}]
  %s7 = sld [smem:[#allocation0]]
  $region57: #{preact_bottleneck_forward.15} parent=0
    _
  %s9 = ssub.s32 1, %s7
  %s10 = scalar_select 0, %s9, %s7
  $region1: #{preact_bottleneck_forward.15} parent=0
    #allocation2 [shape = 'u8[262144]{0}', space=vmem, size = 0x40000, scoped, tag = 'output window, operand 0']
    #allocation3 [shape = 's32[2]{0}', space=sflag, size = 0x8, scoped, tag = 'scoped memory for preact_bottleneck_forward.15']
    %11 = vsyncpa [#allocation3], 0
    %s12 = scalar_lea.sflag [#allocation3], 1
    %13 = vsyncpa %s12, 0
    loop: start=0, step=1, limit=4
    $region2: #{preact_bottleneck_forward.15} parent=1 // loop_pre_header
      _
    $region3: #{preact_bottleneck_forward.15} parent=1 // loop_header
      %s15 = sphi 0, %s19
      %p16 = scmp.ge.s32.totalorder %s15, 4
      %s22 = sphi 0, %s34
      %s23 = sphi 0, %s30
      %s24 = sphi 0, %s22
      %s25 = sphi 0, %s23
      %s26 = sphi 0, %s24
      %s27 = sphi 0, %s25
      %s37 = sphi 0, %s39
      %s40 = sphi 0, %s37
      %s41 = sphi 0, %s40
      %s57 = sphi 0, %s41
      %s61 = sphi 0, %s61
      %s63 = sphi 0, %s61
      %s64 = sphi 0, %s63
      %s78 = sphi 0, %s64
      %s82 = sphi 0, %s82
      %s84 = sphi 0, %s82
      %s85 = sphi 0, %s84
      %s99 = sphi 0, %s85
      %s103 = sphi 0, %s103
      %s105 = sphi 0, %s103
      %s106 = sphi 0, %s105
      %s120 = sphi 0, %s106
      %s126 = sphi 0, %s128
      %s129 = sphi 0, %s126
      %s130 = sphi 0, %s129
      %s146 = sphi 0, %s130
      %s154 = sphi 0, %s156
      %s157 = sphi 0, %s154
      %s158 = sphi 0, %s157
      %s174 = sphi 0, %s158
      %s182 = sphi 0, %s184
      %s185 = sphi 0, %s182
      %s186 = sphi 0, %s185
      %s202 = sphi 0, %s186
    $region4: #{preact_bottleneck_forward.15} parent=1 // loop_header_branch
      %18 = sbr.rel (%p16) target = $region8
    $region5: #{preact_bottleneck_forward.15} parent=1 // loop_body
      %s20 = ssub.s32 %s15, 1
      %s21 = ssub.s32 %s15, 2
      %s28 = sadd.s32 1, %s23
      %p29 = scmp.ge.s32.totalorder %s28, 1
      %s30 = scalar_select %p29, 0, %s28
      %s31 = sadd.s32 1, %s22
      %s32 = scalar_select %p29, %s31, %s22
      %p33 = scmp.ge.s32.totalorder %s32, 2
      %s34 = scalar_select %p33, 0, %s32
      %s35 = ssub.s32 %s22, %s34
      %p36 = scmp.eq.s32.totalorder %s35, 0
      %s38 = sadd.s32 %s37, 1
      %s39 = scalar_select %p36, %s37, %s38
      %p42 = pneg %p36
      %p43 = scmp.eq.s32.totalorder %s15, 1
      %p44 = por %p42, %p43
      %p45 = scmp.ne.s32.totalorder %s37, %s40
      %p46 = scmp.eq.s32.totalorder %s15, 0
      %p47 = por %p45, %p46
      %p48 = scmp.ne.s32.totalorder %s37, %s40
      %p49 = scmp.eq.s32.totalorder %s20, 1
      %p50 = por %p48, %p49
      %p51 = scmp.ne.s32.totalorder %s40, %s41
      %p52 = scmp.eq.s32.totalorder %s20, 0
      %p53 = por %p51, %p52
      %p54 = scmp.ne.s32.totalorder %s40, %s41
      %p55 = scmp.eq.s32.totalorder %s21, 1
      %p56 = por %p54, %p55
      %p58 = scmp.ne.s32.totalorder %s41, %s57
      %p59 = scmp.eq.s32.totalorder %s21, 0
      %p60 = por %p58, %p59
      %s62 = sadd.s32 %s61, 1
      %p65 = scmp.eq.s32.totalorder %s15, 1
      %p66 = scmp.ne.s32.totalorder %s61, %s63
      %p67 = scmp.eq.s32.totalorder %s15, 0
      %p68 = por %p66, %p67
      %p69 = scmp.ne.s32.totalorder %s61, %s63
      %p70 = scmp.eq.s32.totalorder %s20, 1
      %p71 = por %p69, %p70
      %p72 = scmp.ne.s32.totalorder %s63, %s64
      %p73 = scmp.eq.s32.totalorder %s20, 0
      %p74 = por %p72, %p73
      %p75 = scmp.ne.s32.totalorder %s63, %s64
      %p76 = scmp.eq.s32.totalorder %s21, 1
      %p77 = por %p75, %p76
      %p79 = scmp.ne.s32.totalorder %s64, %s78
      %p80 = scmp.eq.s32.totalorder %s21, 0
      %p81 = por %p79, %p80
      %s83 = sadd.s32 %s82, 1
      %p86 = scmp.eq.s32.totalorder %s15, 1
      %p87 = scmp.ne.s32.totalorder %s82, %s84
      %p88 = scmp.eq.s32.totalorder %s15, 0
      %p89 = por %p87, %p88
      %p90 = scmp.ne.s32.totalorder %s82, %s84
      %p91 = scmp.eq.s32.totalorder %s20, 1
      %p92 = por %p90, %p91
      %p93 = scmp.ne.s32.totalorder %s84, %s85
      %p94 = scmp.eq.s32.totalorder %s20, 0
      %p95 = por %p93, %p94
      %p96 = scmp.ne.s32.totalorder %s84, %s85
      %p97 = scmp.eq.s32.totalorder %s21, 1
      %p98 = por %p96, %p97
      %p100 = scmp.ne.s32.totalorder %s85, %s99
      %p101 = scmp.eq.s32.totalorder %s21, 0
      %p102 = por %p100, %p101
      %s104 = sadd.s32 %s103, 1
      %p107 = scmp.eq.s32.totalorder %s15, 1
      %p108 = scmp.ne.s32.totalorder %s103, %s105
      %p109 = scmp.eq.s32.totalorder %s15, 0
      %p110 = por %p108, %p109
      %p111 = scmp.ne.s32.totalorder %s103, %s105
      %p112 = scmp.eq.s32.totalorder %s20, 1
      %p113 = por %p111, %p112
      %p114 = scmp.ne.s32.totalorder %s105, %s106
      %p115 = scmp.eq.s32.totalorder %s20, 0
      %p116 = por %p114, %p115
      %p117 = scmp.ne.s32.totalorder %s105, %s106
      %p118 = scmp.eq.s32.totalorder %s21, 1
      %p119 = por %p117, %p118
      %p121 = scmp.ne.s32.totalorder %s106, %s120
      %p122 = scmp.eq.s32.totalorder %s21, 0
      %p123 = por %p121, %p122
      %s124 = ssub.s32 %s23, %s30
      %p125 = scmp.eq.s32.totalorder %s124, 0
      %s127 = sadd.s32 %s126, 1
      %s128 = scalar_select %p125, %s126, %s127
      %p131 = pneg %p125
      %p132 = scmp.eq.s32.totalorder %s15, 1
      %p133 = por %p131, %p132
      %p134 = scmp.ne.s32.totalorder %s126, %s129
      %p135 = scmp.eq.s32.totalorder %s15, 0
      %p136 = por %p134, %p135
      %p137 = scmp.ne.s32.totalorder %s126, %s129
      %p138 = scmp.eq.s32.totalorder %s20, 1
      %p139 = por %p137, %p138
      %p140 = scmp.ne.s32.totalorder %s129, %s130
      %p141 = scmp.eq.s32.totalorder %s20, 0
      %p142 = por %p140, %p141
      %p143 = scmp.ne.s32.totalorder %s129, %s130
      %p144 = scmp.eq.s32.totalorder %s21, 1
      %p145 = por %p143, %p144
      %p147 = scmp.ne.s32.totalorder %s130, %s146
      %p148 = scmp.eq.s32.totalorder %s21, 0
      %p149 = por %p147, %p148
      %s150 = ssub.s32 %s22, %s34
      %s151 = ssub.s32 %s23, %s30
      %s152 = sor.u32 %s150, %s151
      %p153 = scmp.eq.s32.totalorder %s152, 0
      %s155 = sadd.s32 %s154, 1
      %s156 = scalar_select %p153, %s154, %s155
      %p159 = pneg %p153
      %p160 = scmp.eq.s32.totalorder %s15, 1
      %p161 = por %p159, %p160
      %p162 = scmp.ne.s32.totalorder %s154, %s157
      %p163 = scmp.eq.s32.totalorder %s15, 0
      %p164 = por %p162, %p163
      %p165 = scmp.ne.s32.totalorder %s154, %s157
      %p166 = scmp.eq.s32.totalorder %s20, 1
      %p167 = por %p165, %p166
      %p168 = scmp.ne.s32.totalorder %s157, %s158
      %p169 = scmp.eq.s32.totalorder %s20, 0
      %p170 = por %p168, %p169
      %p171 = scmp.ne.s32.totalorder %s157, %s158
      %p172 = scmp.eq.s32.totalorder %s21, 1
      %p173 = por %p171, %p172
      %p175 = scmp.ne.s32.totalorder %s158, %s174
      %p176 = scmp.eq.s32.totalorder %s21, 0
      %p177 = por %p175, %p176
      %s178 = ssub.s32 %s22, %s34
      %s179 = ssub.s32 %s23, %s30
      %s180 = sor.u32 %s178, %s179
      %p181 = scmp.eq.s32.totalorder %s180, 0
      %s183 = sadd.s32 %s182, 1
      %s184 = scalar_select %p181, %s182, %s183
      %p187 = pneg %p181
      %p188 = scmp.eq.s32.totalorder %s15, 1
      %p189 = por %p187, %p188
      %p190 = scmp.ne.s32.totalorder %s182, %s185
      %p191 = scmp.eq.s32.totalorder %s15, 0
      %p192 = por %p190, %p191
      %p193 = scmp.ne.s32.totalorder %s182, %s185
      %p194 = scmp.eq.s32.totalorder %s20, 1
      %p195 = por %p193, %p194
      %p196 = scmp.ne.s32.totalorder %s185, %s186
      %p197 = scmp.eq.s32.totalorder %s20, 0
      %p198 = por %p196, %p197
      %p199 = scmp.ne.s32.totalorder %s185, %s186
      %p200 = scmp.eq.s32.totalorder %s21, 1
      %p201 = por %p199, %p200
      %p203 = scmp.ne.s32.totalorder %s186, %s202
      %p204 = scmp.eq.s32.totalorder %s21, 0
      %p205 = por %p203, %p204
      %p206 = scmp.le.s32.totalorder 1, %s15
      %p207 = scmp.lt.s32.totalorder %s15, 3
      %p208 = pnand %p206, %p207
      %p209 = pneg %p208
      // Predicated region
      $region9: #{preact_bottleneck_forward.15} parent=5 // pred_check
        _
      $region10: #{preact_bottleneck_forward.15} parent=5 // pred_check_branch
        %211 = sbr.rel (%p208) target = $region12
      $region11: #{preact_bottleneck_forward.15} parent=5 // pred_region
        %s212 = ssub.s32 %s15, 1
        // Predicated region
        $region13: #{preact_bottleneck_forward.15} parent=11 // pred_check
          %p213 = pneg %p74
        $region14: #{preact_bottleneck_forward.15} parent=11 // pred_check_branch
          %215 = sbr.rel (%p213) target = $region16
        $region15: #{preact_bottleneck_forward.15} parent=11 // pred_region
          _
        $region16: #{preact_bottleneck_forward.15} parent=11 // pred_fallthru
          _
        // Predicated region
        $region17: #{preact_bottleneck_forward.15} parent=11 // pred_check
          %p216 = pneg %p95
        $region18: #{preact_bottleneck_forward.15} parent=11 // pred_check_branch
          %218 = sbr.rel (%p216) target = $region20
        $region19: #{preact_bottleneck_forward.15} parent=11 // pred_region
          _
        $region20: #{preact_bottleneck_forward.15} parent=11 // pred_fallthru
          _
        // Predicated region
        $region21: #{preact_bottleneck_forward.15} parent=11 // pred_check
          %p219 = pneg %p116
        $region22: #{preact_bottleneck_forward.15} parent=11 // pred_check_branch
          %221 = sbr.rel (%p219) target = $region24
        $region23: #{preact_bottleneck_forward.15} parent=11 // pred_region
          _
        $region24: #{preact_bottleneck_forward.15} parent=11 // pred_fallthru
          _
        // Predicated region
        $region25: #{preact_bottleneck_forward.15} parent=11 // pred_check
          %p222 = pneg %p142
        $region26: #{preact_bottleneck_forward.15} parent=11 // pred_check_branch
          %224 = sbr.rel (%p222) target = $region28
        $region27: #{preact_bottleneck_forward.15} parent=11 // pred_region
          %p225 = scmp.lt.s32.totalorder %s25, 0
          %s226 = scalar_select %p225, %s25, 0
          %s227 = smul.addr %s226, 4
          %s228 = scalar_lea.vmem %s4, %s227
        $region28: #{preact_bottleneck_forward.15} parent=11 // pred_fallthru
          _
      $region12: #{preact_bottleneck_forward.15} parent=5 // pred_fallthru
        _
      %p229 = scmp.lt.s32.totalorder %s15, 2
      // Predicated region
      $region29: #{preact_bottleneck_forward.15} parent=5 // pred_check
        %p230 = pneg %p229
      $region30: #{preact_bottleneck_forward.15} parent=5 // pred_check_branch
        %232 = sbr.rel (%p230) target = $region32
      $region31: #{preact_bottleneck_forward.15} parent=5 // pred_region
        // Predicated region
        $region33: #{preact_bottleneck_forward.15} parent=31 // pred_check
          %p233 = pneg %p47
        $region34: #{preact_bottleneck_forward.15} parent=31 // pred_check_branch
          %235 = sbr.rel (%p233) target = $region36
        $region35: #{preact_bottleneck_forward.15} parent=31 // pred_region
          %s236 = smul.u32 32, %s22
          %p237 = scmp.lt.s32.totalorder %s236, 63
          %s238 = scalar_select %p237, %s236, 63
          %s239 = smul.addr %s238, 8
          %s240 = scalar_lea.vmem %s0, %s239
          %s241 = smul.u32 32, %s22
        $region36: #{preact_bottleneck_forward.15} parent=31 // pred_fallthru
          _
        // Predicated region
        $region37: #{preact_bottleneck_forward.15} parent=31 // pred_check
          %p242 = pneg %p164
        $region38: #{preact_bottleneck_forward.15} parent=31 // pred_check_branch
          %244 = sbr.rel (%p242) target = $region40
        $region39: #{preact_bottleneck_forward.15} parent=31 // pred_region
          %s245 = smul.u32 32, %s22
          %p246 = scmp.lt.s32.totalorder %s245, 63
          %s247 = scalar_select %p246, %s245, 63
          %p248 = scmp.lt.s32.totalorder %s23, 0
          %s249 = scalar_select %p248, %s23, 0
          %s250 = sadd.s32 %s249, %s247
          %s251 = smul.addr %s250, 8
          %s252 = scalar_lea.vmem %s5, %s251
          %s253 = smul.u32 32, %s22
        $region40: #{preact_bottleneck_forward.15} parent=31 // pred_fallthru
          _
      $region32: #{preact_bottleneck_forward.15} parent=5 // pred_fallthru
        _
      %p254 = scmp.le.s32.totalorder 1, %s15
      %p255 = scmp.lt.s32.totalorder %s15, 3
      %p256 = pnand %p254, %p255
      %p257 = pneg %p256
      // Predicated region
      $region41: #{preact_bottleneck_forward.15} parent=5 // pred_check
        _
      $region42: #{preact_bottleneck_forward.15} parent=5 // pred_check_branch
        %259 = sbr.rel (%p256) target = $region44
      $region43: #{preact_bottleneck_forward.15} parent=5 // pred_region
        %s260 = ssub.s32 %s15, 1
        %s261 = smul.u32 32, %s24
        %p262 = scmp.lt.s32.totalorder %s261, 63
        %s263 = scalar_select %p262, %s261, 63
        %s264 = smul.addr %s263, 8
        %s265 = scalar_lea.vmem %s0, %s264
        %p266 = pneg %p53
        %p267 = pneg %p50
        %p268 = pneg %p74
        %p269 = pneg %p71
        %p270 = pneg %p95
        %p271 = pneg %p92
        %p272 = pneg %p116
        %p273 = pneg %p113
        %p274 = scmp.lt.s32.totalorder %s25, 0
        %s275 = scalar_select %p274, %s25, 0
        %s276 = smul.addr %s275, 4
        %s277 = scalar_lea.vmem %s4, %s276
        %p278 = pneg %p142
        %p279 = pneg %p139
        %s280 = smul.u32 32, %s24
        %p281 = scmp.lt.s32.totalorder %s280, 63
        %s282 = scalar_select %p281, %s280, 63
        %p283 = scmp.lt.s32.totalorder %s25, 0
        %s284 = scalar_select %p283, %s25, 0
        %s285 = sadd.s32 %s284, %s282
        %s286 = smul.addr %s285, 8
        %s287 = scalar_lea.vmem %s5, %s286
        %p288 = pneg %p170
        %p289 = pneg %p167
        %p290 = pneg %p198
        %p291 = pneg %p195
        %s292 = sand.u32 %s185, 1
        %s293 = scalar_lea.sflag [#allocation3], %s292
        %s294 = sand.u32 %s185, 1
        %s295 = smul.addr %s294, 256
        %s296 = scalar_lea.vmem [#allocation2], %s295
        %s297 = smul.u32 32, %s24
        %p298 = scmp.lt.s32.totalorder %s297, 63
        %s299 = scalar_select %p298, %s297, 63
        %s300 = smul.addr %s299, 8
        %s301 = scalar_lea.vmem %s0, %s300
        %s302 = smul.u32 32, %s24
        %p303 = scmp.lt.s32.totalorder %s25, 0
        %s304 = scalar_select %p303, %s25, 0
        %s305 = smul.addr %s304, 4
        %s306 = scalar_lea.vmem %s4, %s305
        %s307 = smul.u32 32, %s24
        %p308 = scmp.lt.s32.totalorder %s307, 63
        %s309 = scalar_select %p308, %s307, 63
        %p310 = scmp.lt.s32.totalorder %s25, 0
        %s311 = scalar_select %p310, %s25, 0
        %s312 = sadd.s32 %s311, %s309
        %s313 = smul.addr %s312, 8
        %s314 = scalar_lea.vmem %s5, %s313
        %s315 = smul.u32 32, %s24
        %s316 = smul.u32 32, %s24
        %v318 = vld [vmem:[%s1] sm:$0x1]
        %v319 = vmul.f32 %v318, 0.001953125
        %v320 = vld [vmem:[%s1 + $0x1] sm:$0x1]
        %v321 = vmul.f32 %v320, 0.001953125
        %v322 = vmul.f32 %v319, %v319
        %v323 = vsub.f32 %v321, %v322
        %v324 = vadd.f32 %v323, 1e-05
        %v325 = vrsqrt.pop %v324
        %v326 = vld [vmem:[%s2] sm:$0x1]
        %v327 = vmul.f32 %v325, %v326
        %v328 = vld [vmem:[%s3] sm:$0x1]
        %v329 = vmul.f32 %v319, %v327
        %v330 = vsub.f32 %v328, %v329
        %v331 = vld [vmem:[%s301] sm:$0xff]
        %v332 = vld [vmem:[%s301 + $0x8] sm:$0xff]
        %v333 = vld [vmem:[%s301 + $0x10] sm:$0xff]
        %v334 = vld [vmem:[%s301 + $0x18] sm:$0xff]
        %v335 = vld [vmem:[%s301 + $0x20] sm:$0xff]
        %v336 = vld [vmem:[%s301 + $0x28] sm:$0xff]
        %v337 = vld [vmem:[%s301 + $0x30] sm:$0xff]
        %v338 = vld [vmem:[%s301 + $0x38] sm:$0xff]
        %v339 = vld [vmem:[%s301 + $0x40] sm:$0xff]
        %v340 = vld [vmem:[%s301 + $0x48] sm:$0xff]
        %v341 = vld [vmem:[%s301 + $0x50] sm:$0xff]
        %v342 = vld [vmem:[%s301 + $0x58] sm:$0xff]
        %v343 = vld [vmem:[%s301 + $0x60] sm:$0xff]
        %v344 = vld [vmem:[%s301 + $0x68] sm:$0xff]
        %v345 = vld [vmem:[%s301 + $0x70] sm:$0xff]
        %v346 = vld [vmem:[%s301 + $0x78] sm:$0xff]
        %v347 = vld [vmem:[%s301 + $0x80] sm:$0xff]
        %v348 = vld [vmem:[%s301 + $0x88] sm:$0xff]
        %v349 = vld [vmem:[%s301 + $0x90] sm:$0xff]
        %v350 = vld [vmem:[%s301 + $0x98] sm:$0xff]
        %v351 = vld [vmem:[%s301 + $0xa0] sm:$0xff]
        %v352 = vld [vmem:[%s301 + $0xa8] sm:$0xff]
        %v353 = vld [vmem:[%s301 + $0xb0] sm:$0xff]
        %v354 = vld [vmem:[%s301 + $0xb8] sm:$0xff]
        %v355 = vld [vmem:[%s301 + $0xc0] sm:$0xff]
        %v356 = vld [vmem:[%s301 + $0xc8] sm:$0xff]
        %v357 = vld [vmem:[%s301 + $0xd0] sm:$0xff]
        %v358 = vld [vmem:[%s301 + $0xd8] sm:$0xff]
        %v359 = vld [vmem:[%s301 + $0xe0] sm:$0xff]
        %v360 = vld [vmem:[%s301 + $0xe8] sm:$0xff]
        %v361 = vld [vmem:[%s301 + $0xf0] sm:$0xff]
        %v362 = vld [vmem:[%s301 + $0xf8] sm:$0xff]
        %v363 = vlaneseq
        %v364 = vshrl.u32 %v363, 7
        %v365 = vsub.s32 0, %v364
        %v366 = vrot.slane %v327, %v365
        %v367 = vmul.f32 %v331, %v366
        %v368 = vmul.f32 %v332, %v366
        %v369 = vmul.f32 %v333, %v366
        %v370 = vmul.f32 %v334, %v366
        %v371 = vmul.f32 %v335, %v366
        %v372 = vmul.f32 %v336, %v366
        %v373 = vmul.f32 %v337, %v366
        %v374 = vmul.f32 %v338, %v366
        %v375 = vmul.f32 %v339, %v366
        %v376 = vmul.f32 %v340, %v366
        %v377 = vmul.f32 %v341, %v366
        %v378 = vmul.f32 %v342, %v366
        %v379 = vmul.f32 %v343, %v366
        %v380 = vmul.f32 %v344, %v366
        %v381 = vmul.f32 %v345, %v366
        %v382 = vmul.f32 %v346, %v366
        %v383 = vmul.f32 %v347, %v366
        %v384 = vmul.f32 %v348, %v366
        %v385 = vmul.f32 %v349, %v366
        %v386 = vmul.f32 %v350, %v366
        %v387 = vmul.f32 %v351, %v366
        %v388 = vmul.f32 %v352, %v366
        %v389 = vmul.f32 %v353, %v366
        %v390 = vmul.f32 %v354, %v366
        %v391 = vmul.f32 %v355, %v366
        %v392 = vmul.f32 %v356, %v366
        %v393 = vmul.f32 %v357, %v366
        %v394 = vmul.f32 %v358, %v366
        %v395 = vmul.f32 %v359, %v366
        %v396 = vmul.f32 %v360, %v366
        %v397 = vmul.f32 %v361, %v366
        %v398 = vmul.f32 %v362, %v366
        %v400 = vlaneseq
        %v401 = vshrl.u32 %v400, 7
        %v402 = vsub.s32 0, %v401
        %v403 = vrot.slane %v330, %v402
        %v405 = vadd.f32 %v367, %v403
        %v406 = vadd.f32 %v368, %v403
        %v407 = vadd.f32 %v369, %v403
        %v408 = vadd.f32 %v370, %v403
        %v409 = vadd.f32 %v371, %v403
        %v410 = vadd.f32 %v372, %v403
        %v411 = vadd.f32 %v373, %v403
        %v412 = vadd.f32 %v374, %v403
        %v413 = vadd.f32 %v375, %v403
        %v414 = vadd.f32 %v376, %v403
        %v415 = vadd.f32 %v377, %v403
        %v416 = vadd.f32 %v378, %v403
        %v417 = vadd.f32 %v379, %v403
        %v418 = vadd.f32 %v380, %v403
        %v419 = vadd.f32 %v381, %v403
        %v420 = vadd.f32 %v382, %v403
        %v421 = vadd.f32 %v383, %v403
        %v422 = vadd.f32 %v384, %v403
        %v423 = vadd.f32 %v385, %v403
        %v424 = vadd.f32 %v386, %v403
        %v425 = vadd.f32 %v387, %v403
        %v426 = vadd.f32 %v388, %v403
        %v427 = vadd.f32 %v389, %v403
        %v428 = vadd.f32 %v390, %v403
        %v429 = vadd.f32 %v391, %v403
        %v430 = vadd.f32 %v392, %v403
        %v431 = vadd.f32 %v393, %v403
        %v432 = vadd.f32 %v394, %v403
        %v433 = vadd.f32 %v395, %v403
        %v434 = vadd.f32 %v396, %v403
        %v435 = vadd.f32 %v397, %v403
        %v436 = vadd.f32 %v398, %v403
        %v437 = vmax.f32 %v405, 0.0
        %v438 = vmax.f32 %v406, 0.0
        %v439 = vmax.f32 %v407, 0.0
        %v440 = vmax.f32 %v408, 0.0
        %v441 = vmax.f32 %v409, 0.0
        %v442 = vmax.f32 %v410, 0.0
        %v443 = vmax.f32 %v411, 0.0
        %v444 = vmax.f32 %v412, 0.0
        %v445 = vmax.f32 %v413, 0.0
        %v446 = vmax.f32 %v414, 0.0
        %v447 = vmax.f32 %v415, 0.0
        %v448 = vmax.f32 %v416, 0.0
        %v449 = vmax.f32 %v417, 0.0
        %v450 = vmax.f32 %v418, 0.0
        %v451 = vmax.f32 %v419, 0.0
        %v452 = vmax.f32 %v420, 0.0
        %v453 = vmax.f32 %v421, 0.0
        %v454 = vmax.f32 %v422, 0.0
        %v455 = vmax.f32 %v423, 0.0
        %v456 = vmax.f32 %v424, 0.0
        %v457 = vmax.f32 %v425, 0.0
        %v458 = vmax.f32 %v426, 0.0
        %v459 = vmax.f32 %v427, 0.0
        %v460 = vmax.f32 %v428, 0.0
        %v461 = vmax.f32 %v429, 0.0
        %v462 = vmax.f32 %v430, 0.0
        %v463 = vmax.f32 %v431, 0.0
        %v464 = vmax.f32 %v432, 0.0
        %v465 = vmax.f32 %v433, 0.0
        %v466 = vmax.f32 %v434, 0.0
        %v467 = vmax.f32 %v435, 0.0
        %v468 = vmax.f32 %v436, 0.0
        %v469 = vpack.c.bf16 %v438, %v437
        %v470 = vpack.c.bf16 %v440, %v439
        %v471 = vpack.c.bf16 %v442, %v441
        %v472 = vpack.c.bf16 %v444, %v443
        %v473 = vpack.c.bf16 %v446, %v445
        %v474 = vpack.c.bf16 %v448, %v447
        %v475 = vpack.c.bf16 %v450, %v449
        %v476 = vpack.c.bf16 %v452, %v451
        %v477 = vpack.c.bf16 %v454, %v453
        %v478 = vpack.c.bf16 %v456, %v455
        %v479 = vpack.c.bf16 %v458, %v457
        %v480 = vpack.c.bf16 %v460, %v459
        %v481 = vpack.c.bf16 %v462, %v461
        %v482 = vpack.c.bf16 %v464, %v463
        %v483 = vpack.c.bf16 %v466, %v465
        %v484 = vpack.c.bf16 %v468, %v467
        %v485 = vld [vmem:[%s306] sm:$0xf]
        %v486 = vld [vmem:[%s306 + $0x4] sm:$0xf]
        %v487 = vld [vmem:[%s314] sm:$0xff]
        %v488 = vld [vmem:[%s314 + $0x8] sm:$0xff]
        %v489 = vld [vmem:[%s314 + $0x10] sm:$0xff]
        %v490 = vld [vmem:[%s314 + $0x18] sm:$0xff]
        %v491 = vld [vmem:[%s314 + $0x20] sm:$0xff]
        %v492 = vld [vmem:[%s314 + $0x28] sm:$0xff]
        %v493 = vld [vmem:[%s314 + $0x30] sm:$0xff]
        %v494 = vld [vmem:[%s314 + $0x38] sm:$0xff]
        %v495 = vld [vmem:[%s314 + $0x40] sm:$0xff]
        %v496 = vld [vmem:[%s314 + $0x48] sm:$0xff]
        %v497 = vld [vmem:[%s314 + $0x50] sm:$0xff]
        %v498 = vld [vmem:[%s314 + $0x58] sm:$0xff]
        %v499 = vld [vmem:[%s314 + $0x60] sm:$0xff]
        %v500 = vld [vmem:[%s314 + $0x68] sm:$0xff]
        %v501 = vld [vmem:[%s314 + $0x70] sm:$0xff]
        %v502 = vld [vmem:[%s314 + $0x78] sm:$0xff]
        %v503 = vld [vmem:[%s314 + $0x80] sm:$0xff]
        %v504 = vld [vmem:[%s314 + $0x88] sm:$0xff]
        %v505 = vld [vmem:[%s314 + $0x90] sm:$0xff]
        %v506 = vld [vmem:[%s314 + $0x98] sm:$0xff]
        %v507 = vld [vmem:[%s314 + $0xa0] sm:$0xff]
        %v508 = vld [vmem:[%s314 + $0xa8] sm:$0xff]
        %v509 = vld [vmem:[%s314 + $0xb0] sm:$0xff]
        %v510 = vld [vmem:[%s314 + $0xb8] sm:$0xff]
        %v511 = vld [vmem:[%s314 + $0xc0] sm:$0xff]
        %v512 = vld [vmem:[%s314 + $0xc8] sm:$0xff]
        %v513 = vld [vmem:[%s314 + $0xd0] sm:$0xff]
        %v514 = vld [vmem:[%s314 + $0xd8] sm:$0xff]
        %v515 = vld [vmem:[%s314 + $0xe0] sm:$0xff]
        %v516 = vld [vmem:[%s314 + $0xe8] sm:$0xff]
        %v517 = vld [vmem:[%s314 + $0xf0] sm:$0xff]
        %v518 = vld [vmem:[%s314 + $0xf8] sm:$0xff]
        %v521 = vunpack.c.l.b16 %v485
        %v522 = vunpack.c.l.b16 %v486
        %v523 = vpack.c.b16 %v522, %v521
        %vm525 = vcmask 130048
        %v527 = vsel %vm525, %v469, 0
        %v530 = vsel %vm525, %v470, 0
        %v533 = vsel %vm525, %v471, 0
        %v536 = vsel %vm525, %v472, 0
        %v539 = vsel %vm525, %v473, 0
        %v542 = vsel %vm525, %v474, 0
        %v545 = vsel %vm525, %v475, 0
        %v548 = vsel %vm525, %v476, 0
        %v551 = vsel %vm525, %v477, 0
        %v554 = vsel %vm525, %v478, 0
        %v557 = vsel %vm525, %v479, 0
        %v560 = vsel %vm525, %v480, 0
        %v563 = vsel %vm525, %v481, 0
        %v566 = vsel %vm525, %v482, 0
        %v569 = vsel %vm525, %v483, 0
        %v572 = vsel %vm525, %v484, 0
        %574 = vmatprep.subr.bf16.mxu0 0
        %575 = vmatpush1.bf16.msra.mxu0 %v523
        %576 = vmatprep.subr.bf16.mxu0 0
        %577 = vmatpush1.bf16.msra.mxu0 0
        %578 = vmatprep.subr.bf16.mxu0 0
        %579 = vmatpush1.bf16.msra.mxu0 0
        %580 = vmatprep.subr.bf16.mxu0 0
        %581 = vmatpush1.bf16.msra.mxu0 0
        %582 = vmatprep.subr.bf16.mxu0 0
        %583 = vmatpush1.bf16.msra.mxu0 0
        %584 = vmatprep.subr.bf16.mxu0 0
        %585 = vmatpush1.bf16.msra.mxu0 0
        %586 = vmatprep.subr.bf16.mxu0 0
        %587 = vmatpush1.bf16.msra.mxu0 0
        %588 = vmatprep.subr.bf16.mxu0 0
        %589 = vmatpush1.bf16.msra.mxu0 0
        %590 = vmatprep.subr.bf16.mxu0 0
        %591 = vmatpush1.bf16.msra.mxu0 0
        %592 = vmatprep.subr.bf16.mxu0 0
        %593 = vmatpush1.bf16.msra.mxu0 0
        %594 = vmatprep.subr.bf16.mxu0 0
        %595 = vmatpush1.bf16.msra.mxu0 0
        %596 = vmatprep.subr.bf16.mxu0 0
        %597 = vmatpush1.bf16.msra.mxu0 0
        %598 = vmatprep.subr.bf16.mxu0 0
        %599 = vmatpush1.bf16.msra.mxu0 0
        %600 = vmatprep.subr.bf16.mxu0 0
        %601 = vmatpush1.bf16.msra.mxu0 0
        %602 = vmatprep.subr.bf16.mxu0 0
        %603 = vmatpush1.bf16.msra.mxu0 0
        %604 = vmatprep.subr.bf16.mxu0 0
        %605 = vmatpush1.bf16.msra.mxu0 0
        %606 = vmatprep.mubr.bf16.mxu0 0
        %607 = vmatmul.mubr.bf16.gmra.mrb[0].mxu0 %v527
        %v608 = vpop.f32.mrb[0].mxu0
        %v609 = vadd.f32 %v487, %v608
        %v610 = vpop.f32.mrb[0].mxu0
        %v611 = vpop.f32.mrb[0].mxu0
        %v612 = vadd.f32 %v488, %v611
        %v613 = vpop.f32.mrb[0].mxu0
        %614 = vmatprep.mubr.bf16.mxu0 0
        %615 = vmatmul.mubr.bf16.gmra.mrb[0].mxu0 %v530
        %v616 = vpop.f32.mrb[0].mxu0
        %v617 = vadd.f32 %v489, %v616
        %v618 = vpop.f32.mrb[0].mxu0
        %v619 = vpop.f32.mrb[0].mxu0
        %v620 = vadd.f32 %v490, %v619
        %v621 = vpop.f32.mrb[0].mxu0
        %622 = vmatprep.mubr.bf16.mxu0 0
        %623 = vmatmul.mubr.bf16.gmra.mrb[0].mxu0 %v533
        %v624 = vpop.f32.mrb[0].mxu0
        %v625 = vadd.f32 %v491, %v624
        %v626 = vpop.f32.mrb[0].mxu0
        %v627 = vpop.f32.mrb[0].mxu0
        %v628 = vadd.f32 %v492, %v627
        %v629 = vpop.f32.mrb[0].mxu0
        %630 = vmatprep.mubr.bf16.mxu0 0
        %631 = vmatmul.mubr.bf16.gmra.mrb[0].mxu0 %v536
        %v632 = vpop.f32.mrb[0].mxu0
        %v633 = vadd.f32 %v493, %v632
        %v634 = vpop.f32.mrb[0].mxu0
        %v635 = vpop.f32.mrb[0].mxu0
        %v636 = vadd.f32 %v494, %v635
        %v637 = vpop.f32.mrb[0].mxu0
        %638 = vmatprep.mubr.bf16.mxu0 0
        %639 = vmatmul.mubr.bf16.gmra.mrb[0].mxu0 %v539
        %v640 = vpop.f32.mrb[0].mxu0
        %v641 = vadd.f32 %v495, %v640
        %v642 = vpop.f32.mrb[0].mxu0
        %v643 = vpop.f32.mrb[0].mxu0
        %v644 = vadd.f32 %v496, %v643
        %v645 = vpop.f32.mrb[0].mxu0
        %646 = vmatprep.mubr.bf16.mxu0 0
        %647 = vmatmul.mubr.bf16.gmra.mrb[0].mxu0 %v542
        %v648 = vpop.f32.mrb[0].mxu0
        %v649 = vadd.f32 %v497, %v648
        %v650 = vpop.f32.mrb[0].mxu0
        %v651 = vpop.f32.mrb[0].mxu0
        %v652 = vadd.f32 %v498, %v651
        %v653 = vpop.f32.mrb[0].mxu0
        %654 = vmatprep.mubr.bf16.mxu0 0
        %655 = vmatmul.mubr.bf16.gmra.mrb[0].mxu0 %v545
        %v656 = vpop.f32.mrb[0].mxu0
        %v657 = vadd.f32 %v499, %v656
        %v658 = vpop.f32.mrb[0].mxu0
        %v659 = vpop.f32.mrb[0].mxu0
        %v660 = vadd.f32 %v500, %v659
        %v661 = vpop.f32.mrb[0].mxu0
        %662 = vmatprep.mubr.bf16.mxu0 0
        %663 = vmatmul.mubr.bf16.gmra.mrb[0].mxu0 %v548
        %v664 = vpop.f32.mrb[0].mxu0
        %v665 = vadd.f32 %v501, %v664
        %v666 = vpop.f32.mrb[0].mxu0
        %v667 = vpop.f32.mrb[0].mxu0
        %v668 = vadd.f32 %v502, %v667
        %v669 = vpop.f32.mrb[0].mxu0
        %670 = vmatprep.mubr.bf16.mxu0 0
        %671 = vmatmul.mubr.bf16.gmra.mrb[0].mxu0 %v551
        %v672 = vpop.f32.mrb[0].mxu0
        %v673 = vadd.f32 %v503, %v672
        %v674 = vpop.f32.mrb[0].mxu0
        %v675 = vpop.f32.mrb[0].mxu0
        %v676 = vadd.f32 %v504, %v675
        %v677 = vpop.f32.mrb[0].mxu0
        %678 = vmatprep.mubr.bf16.mxu0 0
        %679 = vmatmul.mubr.bf16.gmra.mrb[0].mxu0 %v554
        %v680 = vpop.f32.mrb[0].mxu0
        %v681 = vadd.f32 %v505, %v680
        %v682 = vpop.f32.mrb[0].mxu0
        %v683 = vpop.f32.mrb[0].mxu0
        %v684 = vadd.f32 %v506, %v683
        %v685 = vpop.f32.mrb[0].mxu0
        %686 = vmatprep.mubr.bf16.mxu0 0
        %687 = vmatmul.mubr.bf16.gmra.mrb[0].mxu0 %v557
        %v688 = vpop.f32.mrb[0].mxu0
        %v689 = vadd.f32 %v507, %v688
        %v690 = vpop.f32.mrb[0].mxu0
        %v691 = vpop.f32.mrb[0].mxu0
        %v692 = vadd.f32 %v508, %v691
        %v693 = vpop.f32.mrb[0].mxu0
        %694 = vmatprep.mubr.bf16.mxu0 0
        %695 = vmatmul.mubr.bf16.gmra.mrb[0].mxu0 %v560
        %v696 = vpop.f32.mrb[0].mxu0
        %v697 = vadd.f32 %v509, %v696
        %v698 = vpop.f32.mrb[0].mxu0
        %v699 = vpop.f32.mrb[0].mxu0
        %v700 = vadd.f32 %v510, %v699
        %v701 = vpop.f32.mrb[0].mxu0
        %702 = vmatprep.mubr.bf16.mxu0 0
        %703 = vmatmul.mubr.bf16.gmra.mrb[0].mxu0 %v563
        %v704 = vpop.f32.mrb[0].mxu0
        %v705 = vadd.f32 %v511, %v704
        %v706 = vpop.f32.mrb[0].mxu0
        %v707 = vpop.f32.mrb[0].mxu0
        %v708 = vadd.f32 %v512, %v707
        %v709 = vpop.f32.mrb[0].mxu0
        %710 = vmatprep.mubr.bf16.mxu0 0
        %711 = vmatmul.mubr.bf16.gmra.mrb[0].mxu0 %v566
        %v712 = vpop.f32.mrb[0].mxu0
        %v713 = vadd.f32 %v513, %v712
        %v714 = vpop.f32.mrb[0].mxu0
        %v715 = vpop.f32.mrb[0].mxu0
        %v716 = vadd.f32 %v514, %v715
        %v717 = vpop.f32.mrb[0].mxu0
        %718 = vmatprep.mubr.bf16.mxu0 0
        %719 = vmatmul.mubr.bf16.gmra.mrb[0].mxu0 %v569
        %v720 = vpop.f32.mrb[0].mxu0
        %v721 = vadd.f32 %v515, %v720
        %v722 = vpop.f32.mrb[0].mxu0
        %v723 = vpop.f32.mrb[0].mxu0
        %v724 = vadd.f32 %v516, %v723
        %v725 = vpop.f32.mrb[0].mxu0
        %726 = vmatprep.mubr.bf16.mxu0 0
        %727 = vmatmul.mubr.bf16.gmra.mrb[0].mxu0 %v572
        %v728 = vpop.f32.mrb[0].mxu0
        %v729 = vadd.f32 %v517, %v728
        %v730 = vpop.f32.mrb[0].mxu0
        %v731 = vpop.f32.mrb[0].mxu0
        %v732 = vadd.f32 %v518, %v731
        %v733 = vpop.f32.mrb[0].mxu0
        %734 = vdwg.mxu0
        %vm735 = vcmask 523264
        %736 = vst.msk [vmem:[%s296] sm:$0xff] %vm735, %v609
        %737 = vst.msk [vmem:[%s296 + $0x8] sm:$0xff] %vm735, %v612
        %738 = vst.msk [vmem:[%s296 + $0x10] sm:$0xff] %vm735, %v617
        %739 = vst.msk [vmem:[%s296 + $0x18] sm:$0xff] %vm735, %v620
        %740 = vst.msk [vmem:[%s296 + $0x20] sm:$0xff] %vm735, %v625
        %741 = vst.msk [vmem:[%s296 + $0x28] sm:$0xff] %vm735, %v628
        %742 = vst.msk [vmem:[%s296 + $0x30] sm:$0xff] %vm735, %v633
        %743 = vst.msk [vmem:[%s296 + $0x38] sm:$0xff] %vm735, %v636
        %744 = vst.msk [vmem:[%s296 + $0x40] sm:$0xff] %vm735, %v641
        %745 = vst.msk [vmem:[%s296 + $0x48] sm:$0xff] %vm735, %v644
        %746 = vst.msk [vmem:[%s296 + $0x50] sm:$0xff] %vm735, %v649
        %747 = vst.msk [vmem:[%s296 + $0x58] sm:$0xff] %vm735, %v652
        %748 = vst.msk [vmem:[%s296 + $0x60] sm:$0xff] %vm735, %v657
        %749 = vst.msk [vmem:[%s296 + $0x68] sm:$0xff] %vm735, %v660
        %750 = vst.msk [vmem:[%s296 + $0x70] sm:$0xff] %vm735, %v665
        %751 = vst.msk [vmem:[%s296 + $0x78] sm:$0xff] %vm735, %v668
        %752 = vst.msk [vmem:[%s296 + $0x80] sm:$0xff] %vm735, %v673
        %753 = vst.msk [vmem:[%s296 + $0x88] sm:$0xff] %vm735, %v676
        %754 = vst.msk [vmem:[%s296 + $0x90] sm:$0xff] %vm735, %v681
        %755 = vst.msk [vmem:[%s296 + $0x98] sm:$0xff] %vm735, %v684
        %756 = vst.msk [vmem:[%s296 + $0xa0] sm:$0xff] %vm735, %v689
        %757 = vst.msk [vmem:[%s296 + $0xa8] sm:$0xff] %vm735, %v692
        %758 = vst.msk [vmem:[%s296 + $0xb0] sm:$0xff] %vm735, %v697
        %759 = vst.msk [vmem:[%s296 + $0xb8] sm:$0xff] %vm735, %v700
        %760 = vst.msk [vmem:[%s296 + $0xc0] sm:$0xff] %vm735, %v705
        %761 = vst.msk [vmem:[%s296 + $0xc8] sm:$0xff] %vm735, %v708
        %762 = vst.msk [vmem:[%s296 + $0xd0] sm:$0xff] %vm735, %v713
        %763 = vst.msk [vmem:[%s296 + $0xd8] sm:$0xff] %vm735, %v716
        %764 = vst.msk [vmem:[%s296 + $0xe0] sm:$0xff] %vm735, %v721
        %765 = vst.msk [vmem:[%s296 + $0xe8] sm:$0xff] %vm735, %v724
        %766 = vst.msk [vmem:[%s296 + $0xf0] sm:$0xff] %vm735, %v729
        %767 = vst.msk [vmem:[%s296 + $0xf8] sm:$0xff] %vm735, %v732
        %s768 = sand.u32 %s185, 1
        %s769 = scalar_lea.sflag [#allocation3], %s768
        %s770 = sand.u32 %s185, 1
        %s771 = smul.addr %s770, 256
        %s772 = scalar_lea.vmem [#allocation2], %s771
        // Predicated region
        $region45: #{preact_bottleneck_forward.15} parent=43 // pred_check
          %p773 = pneg %p195
        $region46: #{preact_bottleneck_forward.15} parent=43 // pred_check_branch
          %775 = sbr.rel (%p773) target = $region48
        $region47: #{preact_bottleneck_forward.15} parent=43 // pred_region
          %s776 = smul.u32 32, %s24
          %s778 = ssub.s32 4096, 4096
          %779 = vsyncadd %s769, %s778
          %s780 = sadd.s32 %s25, %s776
          %s781 = smul.addr %s780, 128
          %s782 = scalar_lea.hbm %s6, %s781
          %s783 = sshll.u32 %s772, 4
          %s784 = int_to_ptr.vmem [resolvable:$true] %s783
          %789 = dma.vmem_to_hbm [thread:$0]  %s784, 4096, %s782, %s769, 128, 128, 8
        $region48: #{preact_bottleneck_forward.15} parent=43 // pred_fallthru
          _
      $region44: #{preact_bottleneck_forward.15} parent=5 // pred_fallthru
        _
      %p790 = scmp.le.s32.totalorder 2, %s15
      // Predicated region
      $region49: #{preact_bottleneck_forward.15} parent=5 // pred_check
        %p791 = pneg %p790
      $region50: #{preact_bottleneck_forward.15} parent=5 // pred_check_branch
        %793 = sbr.rel (%p791) target = $region52
      $region51: #{preact_bottleneck_forward.15} parent=5 // pred_region
        %s794 = ssub.s32 %s15, 2
        // Predicated region
        $region53: #{preact_bottleneck_forward.15} parent=51 // pred_check
          %p795 = pneg %p201
        $region54: #{preact_bottleneck_forward.15} parent=51 // pred_check_branch
          %797 = sbr.rel (%p795) target = $region56
        $region55: #{preact_bottleneck_forward.15} parent=51 // pred_region
          %s798 = sand.u32 %s186, 1
          %s799 = scalar_lea.sflag [#allocation3], %s798
          %s800 = sand.u32 %s186, 1
          %s801 = smul.addr %s800, 256
          %s802 = scalar_lea.vmem [#allocation2], %s801
          %803 = dma.done %s799, 4096
        $region56: #{preact_bottleneck_forward.15} parent=51 // pred_fallthru
          _
      $region52: #{preact_bottleneck_forward.15} parent=5 // pred_fallthru
        _
    $region6: #{preact_bottleneck_forward.15} parent=1 // loop_footer
      %s19 = sadd.s32 1, %s15
    $region7: #{preact_bottleneck_forward.15} parent=1 // loop_footer_branch
      %14 = sbr.rel target = $region3
    $region8: #{preact_bottleneck_forward.15} parent=1 // loop_exit
      _
    %804 = vsyncpa [#allocation3], 1
    %s805 = scalar_lea.sflag [#allocation3], 1
    %806 = vsyncpa %s805, 1

// kernel: preact_bottleneck_forward.13
$region0: #{preact_bottleneck_forward.13}
  #allocation0 [shape = 'u32[]', space=smem, size = 0x4, offset = 0x4, fixed_abs, tag = 'smem constant byte address 0x4 - core index']
  #allocation1 [shape = 'u32[144,128]{1,0:T(1,128)}', space=vmem, size = 0x12000, scoped, tag = 'internal scratch']
  #allocation2 [shape = 'f32[286,16]{1,0:T(8,128)}', space=vmem, size = 0x24000, scoped, tag = 'scratch operand']
  %s0 = inlined_call_operand.vmem [shape: bf16[1,2,324,16], index: 0, kind: input, shape index: {}]
  %s1 = inlined_call_operand.vmem [shape: bf16[9,16,16], index: 1, kind: input, shape index: {}]
  %s2 = inlined_call_operand.vmem [shape: f32[2,286,16], index: 2, kind: output, shape index: {}]
  %s3 = sld [smem:[#allocation0]]
  $region41: #{preact_bottleneck_forward.13} parent=0
    _
  %s5 = ssub.s32 1, %s3
  %s6 = scalar_select 0, %s5, %s3
  loop: start=0, step=1, limit=4
  $region2: #{preact_bottleneck_forward.13} parent=0 // loop_pre_header
    _
  $region3: #{preact_bottleneck_forward.13} parent=0 // loop_header
    %s8 = sphi 0, %s12
    %p9 = scmp.ge.s32.totalorder %s8, 4
    %s18 = sphi 0, %s20
    %s21 = sphi 0, %s18
    %s22 = sphi 0, %s21
    %s38 = sphi 0, %s22
    %s42 = sphi 0, %s42
    %s44 = sphi 0, %s42
    %s45 = sphi 0, %s44
    %s59 = sphi 0, %s45
    %s65 = sphi 0, %s67
    %s68 = sphi 0, %s65
    %s69 = sphi 0, %s68
    %s85 = sphi 0, %s69
  $region4: #{preact_bottleneck_forward.13} parent=0 // loop_header_branch
    %11 = sbr.rel (%p9) target = $region8
  $region5: #{preact_bottleneck_forward.13} parent=0 // loop_body
    %s13 = ssub.s32 %s8, 1
    %s14 = ssub.s32 %s8, 2
    %s15 = sadd.s32 %s8, 1
    %s16 = ssub.s32 %s8, %s15
    %p17 = scmp.eq.s32.totalorder %s16, 0
    %s19 = sadd.s32 %s18, 1
    %s20 = scalar_select %p17, %s18, %s19
    %p23 = pneg %p17
    %p24 = scmp.eq.s32.totalorder %s8, 1
    %p25 = por %p23, %p24
    %p26 = scmp.ne.s32.totalorder %s18, %s21
    %p27 = scmp.eq.s32.totalorder %s8, 0
    %p28 = por %p26, %p27
    %p29 = scmp.ne.s32.totalorder %s18, %s21
    %p30 = scmp.eq.s32.totalorder %s13, 1
    %p31 = por %p29, %p30
    %p32 = scmp.ne.s32.totalorder %s21, %s22
    %p33 = scmp.eq.s32.totalorder %s13, 0
    %p34 = por %p32, %p33
    %p35 = scmp.ne.s32.totalorder %s21, %s22
    %p36 = scmp.eq.s32.totalorder %s14, 1
    %p37 = por %p35, %p36
    %p39 = scmp.ne.s32.totalorder %s22, %s38
    %p40 = scmp.eq.s32.totalorder %s14, 0
    %p41 = por %p39, %p40
    %s43 = sadd.s32 %s42, 1
    %p46 = scmp.eq.s32.totalorder %s8, 1
    %p47 = scmp.ne.s32.totalorder %s42, %s44
    %p48 = scmp.eq.s32.totalorder %s8, 0
    %p49 = por %p47, %p48
    %p50 = scmp.ne.s32.totalorder %s42, %s44
    %p51 = scmp.eq.s32.totalorder %s13, 1
    %p52 = por %p50, %p51
    %p53 = scmp.ne.s32.totalorder %s44, %s45
    %p54 = scmp.eq.s32.totalorder %s13, 0
    %p55 = por %p53, %p54
    %p56 = scmp.ne.s32.totalorder %s44, %s45
    %p57 = scmp.eq.s32.totalorder %s14, 1
    %p58 = por %p56, %p57
    %p60 = scmp.ne.s32.totalorder %s45, %s59
    %p61 = scmp.eq.s32.totalorder %s14, 0
    %p62 = por %p60, %p61
    %s63 = ssub.s32 %s8, %s15
    %p64 = scmp.eq.s32.totalorder %s63, 0
    %s66 = sadd.s32 %s65, 1
    %s67 = scalar_select %p64, %s65, %s66
    %p70 = pneg %p64
    %p71 = scmp.eq.s32.totalorder %s8, 1
    %p72 = por %p70, %p71
    %p73 = scmp.ne.s32.totalorder %s65, %s68
    %p74 = scmp.eq.s32.totalorder %s8, 0
    %p75 = por %p73, %p74
    %p76 = scmp.ne.s32.totalorder %s65, %s68
    %p77 = scmp.eq.s32.totalorder %s13, 1
    %p78 = por %p76, %p77
    %p79 = scmp.ne.s32.totalorder %s68, %s69
    %p80 = scmp.eq.s32.totalorder %s13, 0
    %p81 = por %p79, %p80
    %p82 = scmp.ne.s32.totalorder %s68, %s69
    %p83 = scmp.eq.s32.totalorder %s14, 1
    %p84 = por %p82, %p83
    %p86 = scmp.ne.s32.totalorder %s69, %s85
    %p87 = scmp.eq.s32.totalorder %s14, 0
    %p88 = por %p86, %p87
    %p89 = scmp.le.s32.totalorder 1, %s8
    %p90 = scmp.lt.s32.totalorder %s8, 3
    %p91 = pnand %p89, %p90
    %p92 = pneg %p91
    // Predicated region
    $region9: #{preact_bottleneck_forward.13} parent=5 // pred_check
      _
    $region10: #{preact_bottleneck_forward.13} parent=5 // pred_check_branch
      %94 = sbr.rel (%p91) target = $region12
    $region11: #{preact_bottleneck_forward.13} parent=5 // pred_region
      %s95 = ssub.s32 %s8, 1
      // Predicated region
      $region13: #{preact_bottleneck_forward.13} parent=11 // pred_check
        %p96 = pneg %p55
      $region14: #{preact_bottleneck_forward.13} parent=11 // pred_check_branch
        %98 = sbr.rel (%p96) target = $region16
      $region15: #{preact_bottleneck_forward.13} parent=11 // pred_region
        _
      $region16: #{preact_bottleneck_forward.13} parent=11 // pred_fallthru
        _
    $region12: #{preact_bottleneck_forward.13} parent=5 // pred_fallthru
      _
    %p99 = scmp.lt.s32.totalorder %s8, 2
    // Predicated region
    $region17: #{preact_bottleneck_forward.13} parent=5 // pred_check
      %p100 = pneg %p99
    $region18: #{preact_bottleneck_forward.13} parent=5 // pred_check_branch
      %102 = sbr.rel (%p100) target = $region20
    $region19: #{preact_bottleneck_forward.13} parent=5 // pred_region
      // Predicated region
      $region21: #{preact_bottleneck_forward.13} parent=19 // pred_check
        %p103 = pneg %p28
      $region22: #{preact_bottleneck_forward.13} parent=19 // pred_check_branch
        %105 = sbr.rel (%p103) target = $region24
      $region23: #{preact_bottleneck_forward.13} parent=19 // pred_region
        %p106 = scmp.lt.s32.totalorder %s8, 1
        %s107 = scalar_select %p106, %s8, 1
        %s108 = smul.addr %s107, 41
        %s109 = smul.addr %s108, 4
        %s110 = scalar_lea.vmem %s0, %s109
      $region24: #{preact_bottleneck_forward.13} parent=19 // pred_fallthru
        _
    $region20: #{preact_bottleneck_forward.13} parent=5 // pred_fallthru
      _
    %p111 = scmp.le.s32.totalorder 1, %s8
    %p112 = scmp.lt.s32.totalorder %s8, 3
    %p113 = pnand %p111, %p112
    %p114 = pneg %p113
    // Predicated region
    $region25: #{preact_bottleneck_forward.13} parent=5 // pred_check
      _
    $region26: #{preact_bottleneck_forward.13} parent=5 // pred_check_branch
      %116 = sbr.rel (%p113) target = $region28
    $region27: #{preact_bottleneck_forward.13} parent=5 // pred_region
      %s117 = ssub.s32 %s8, 1
      %p118 = scmp.lt.s32.totalorder %s13, 1
      %s119 = scalar_select %p118, %s13, 1
      %s120 = smul.addr %s119, 41
      %s121 = smul.addr %s120, 4
      %s122 = scalar_lea.vmem %s0, %s121
      %p123 = pneg %p34
      %p124 = pneg %p31
      %p125 = pneg %p55
      %p126 = pneg %p52
      %p127 = pneg %p81
      %p128 = pneg %p78
      %p129 = scmp.lt.s32.totalorder %s13, 1
      %s130 = scalar_select %p129, %s13, 1
      %s131 = smul.addr %s130, 36
      %s132 = smul.addr %s131, 8
      %s133 = scalar_lea.vmem %s2, %s132
      %p134 = scmp.lt.s32.totalorder %s13, 1
      %s135 = scalar_select %p134, %s13, 1
      %s136 = smul.addr %s135, 41
      %s137 = smul.addr %s136, 4
      %s138 = scalar_lea.vmem %s0, %s137
      %p139 = scmp.lt.s32.totalorder %s13, 1
      %s140 = scalar_select %p139, %s13, 1
      %s141 = smul.addr %s140, 36
      %s142 = smul.addr %s141, 8
      %s143 = scalar_lea.vmem %s2, %s142
      %vm145 = vcmask 130048
      %146 = vst.msk [vmem:[#allocation2] sm:$0xff] %vm145, 0.0
      %147 = vst.msk [vmem:[#allocation2 + $0x8] sm:$0xff] %vm145, 0.0
      %148 = vst.msk [vmem:[#allocation2 + $0x10] sm:$0xff] %vm145, 0.0
      %149 = vst.msk [vmem:[#allocation2 + $0x18] sm:$0xff] %vm145, 0.0
      %150 = vst.msk [vmem:[#allocation2 + $0x20] sm:$0xff] %vm145, 0.0
      %151 = vst.msk [vmem:[#allocation2 + $0x28] sm:$0xff] %vm145, 0.0
      %152 = vst.msk [vmem:[#allocation2 + $0x30] sm:$0xff] %vm145, 0.0
      %153 = vst.msk [vmem:[#allocation2 + $0x38] sm:$0xff] %vm145, 0.0
      %154 = vst.msk [vmem:[#allocation2 + $0x40] sm:$0xff] %vm145, 0.0
      %155 = vst.msk [vmem:[#allocation2 + $0x48] sm:$0xff] %vm145, 0.0
      %156 = vst.msk [vmem:[#allocation2 + $0x50] sm:$0xff] %vm145, 0.0
      %157 = vst.msk [vmem:[#allocation2 + $0x58] sm:$0xff] %vm145, 0.0
      %158 = vst.msk [vmem:[#allocation2 + $0x60] sm:$0xff] %vm145, 0.0
      %159 = vst.msk [vmem:[#allocation2 + $0x68] sm:$0xff] %vm145, 0.0
      %160 = vst.msk [vmem:[#allocation2 + $0x70] sm:$0xff] %vm145, 0.0
      %161 = vst.msk [vmem:[#allocation2 + $0x78] sm:$0xff] %vm145, 0.0
      %162 = vst.msk [vmem:[#allocation2 + $0x80] sm:$0xff] %vm145, 0.0
      %163 = vst.msk [vmem:[#allocation2 + $0x88] sm:$0xff] %vm145, 0.0
      %164 = vst.msk [vmem:[#allocation2 + $0x90] sm:$0xff] %vm145, 0.0
      %165 = vst.msk [vmem:[#allocation2 + $0x98] sm:$0xff] %vm145, 0.0
      %166 = vst.msk [vmem:[#allocation2 + $0xa0] sm:$0xff] %vm145, 0.0
      %167 = vst.msk [vmem:[#allocation2 + $0xa8] sm:$0xff] %vm145, 0.0
      %168 = vst.msk [vmem:[#allocation2 + $0xb0] sm:$0xff] %vm145, 0.0
      %169 = vst.msk [vmem:[#allocation2 + $0xb8] sm:$0xff] %vm145, 0.0
      %170 = vst.msk [vmem:[#allocation2 + $0xc0] sm:$0xff] %vm145, 0.0
      %171 = vst.msk [vmem:[#allocation2 + $0xc8] sm:$0xff] %vm145, 0.0
      %172 = vst.msk [vmem:[#allocation2 + $0xd0] sm:$0xff] %vm145, 0.0
      %173 = vst.msk [vmem:[#allocation2 + $0xd8] sm:$0xff] %vm145, 0.0
      %174 = vst.msk [vmem:[#allocation2 + $0xe0] sm:$0xff] %vm145, 0.0
      %175 = vst.msk [vmem:[#allocation2 + $0xe8] sm:$0xff] %vm145, 0.0
      %176 = vst.msk [vmem:[#allocation2 + $0xf0] sm:$0xff] %vm145, 0.0
      %177 = vst.msk [vmem:[#allocation2 + $0xf8] sm:$0xff] %vm145, 0.0
      %178 = vst.msk [vmem:[#allocation2 + $0x100] sm:$0xff] %vm145, 0.0
      %179 = vst.msk [vmem:[#allocation2 + $0x108] sm:$0xff] %vm145, 0.0
      %180 = vst.msk [vmem:[#allocation2 + $0x110] sm:$0xff] %vm145, 0.0
      %vm181 = vcmask 128000
      %182 = vst.msk [vmem:[#allocation2 + $0x118] sm:$0x3f] %vm181, 0.0
      %v183 = vld [vmem:[%s138] sm:$0xf]
      %v184 = vld [vmem:[%s138 + $0x4] sm:$0xf]
      %v185 = vld [vmem:[%s138 + $0x8] sm:$0xf]
      %v186 = vld [vmem:[%s138 + $0xc] sm:$0xf]
      %v187 = vld [vmem:[%s138 + $0x10] sm:$0xf]
      %v188 = vld [vmem:[%s138 + $0x14] sm:$0xf]
      %v189 = vld [vmem:[%s138 + $0x18] sm:$0xf]
      %v190 = vld [vmem:[%s138 + $0x1c] sm:$0xf]
      %v191 = vld [vmem:[%s138 + $0x20] sm:$0xf]
      %v192 = vld [vmem:[%s138 + $0x24] sm:$0xf]
      %v193 = vld [vmem:[%s138 + $0x28] sm:$0xf]
      %v194 = vld [vmem:[%s138 + $0x2c] sm:$0xf]
      %v195 = vld [vmem:[%s138 + $0x30] sm:$0xf]
      %v196 = vld [vmem:[%s138 + $0x34] sm:$0xf]
      %v197 = vld [vmem:[%s138 + $0x38] sm:$0xf]
      %v198 = vld [vmem:[%s138 + $0x3c] sm:$0xf]
      %v199 = vld [vmem:[%s138 + $0x40] sm:$0xf]
      %v200 = vld [vmem:[%s138 + $0x44] sm:$0xf]
      %v201 = vld [vmem:[%s138 + $0x48] sm:$0xf]
      %v202 = vld [vmem:[%s138 + $0x4c] sm:$0xf]
      %v203 = vld [vmem:[%s138 + $0x50] sm:$0xf]
      %v204 = vld [vmem:[%s138 + $0x54] sm:$0xf]
      %v205 = vld [vmem:[%s138 + $0x58] sm:$0xf]
      %v206 = vld [vmem:[%s138 + $0x5c] sm:$0xf]
      %v207 = vld [vmem:[%s138 + $0x60] sm:$0xf]
      %v208 = vld [vmem:[%s138 + $0x64] sm:$0xf]
      %v209 = vld [vmem:[%s138 + $0x68] sm:$0xf]
      %v210 = vld [vmem:[%s138 + $0x6c] sm:$0xf]
      %v211 = vld [vmem:[%s138 + $0x70] sm:$0xf]
      %v212 = vld [vmem:[%s138 + $0x74] sm:$0xf]
      %v213 = vld [vmem:[%s138 + $0x78] sm:$0xf]
      %v214 = vld [vmem:[%s138 + $0x7c] sm:$0xf]
      %v215 = vld [vmem:[%s138 + $0x80] sm:$0xf]
      %v216 = vld [vmem:[%s138 + $0x84] sm:$0xf]
      %v217 = vld [vmem:[%s138 + $0x88] sm:$0xf]
      %v218 = vld [vmem:[%s138 + $0x8c] sm:$0x7]
      %v219 = vld [vmem:[#allocation2] sm:$0xff]
      %v220 = vld [vmem:[#allocation2 + $0x8] sm:$0xff]
      %v221 = vld [vmem:[#allocation2 + $0x10] sm:$0xff]
      %v222 = vld [vmem:[#allocation2 + $0x18] sm:$0xff]
      %v223 = vld [vmem:[#allocation2 + $0x20] sm:$0xff]
      %v224 = vld [vmem:[#allocation2 + $0x28] sm:$0xff]
      %v225 = vld [vmem:[#allocation2 + $0x30] sm:$0xff]
      %v226 = vld [vmem:[#allocation2 + $0x38] sm:$0xff]
      %v227 = vld [vmem:[#allocation2 + $0x40] sm:$0xff]
      %v228 = vld [vmem:[#allocation2 + $0x48] sm:$0xff]
      %v229 = vld [vmem:[#allocation2 + $0x50] sm:$0xff]
      %v230 = vld [vmem:[#allocation2 + $0x58] sm:$0xff]
      %v231 = vld [vmem:[#allocation2 + $0x60] sm:$0xff]
      %v232 = vld [vmem:[#allocation2 + $0x68] sm:$0xff]
      %v233 = vld [vmem:[#allocation2 + $0x70] sm:$0xff]
      %v234 = vld [vmem:[#allocation2 + $0x78] sm:$0xff]
      %v235 = vld [vmem:[#allocation2 + $0x80] sm:$0xff]
      %v236 = vld [vmem:[#allocation2 + $0x88] sm:$0xff]
      %v237 = vld [vmem:[#allocation2 + $0x90] sm:$0xff]
      %v238 = vld [vmem:[#allocation2 + $0x98] sm:$0xff]
      %v239 = vld [vmem:[#allocation2 + $0xa0] sm:$0xff]
      %v240 = vld [vmem:[#allocation2 + $0xa8] sm:$0xff]
      %v241 = vld [vmem:[#allocation2 + $0xb0] sm:$0xff]
      %v242 = vld [vmem:[#allocation2 + $0xb8] sm:$0xff]
      %v243 = vld [vmem:[#allocation2 + $0xc0] sm:$0xff]
      %v244 = vld [vmem:[#allocation2 + $0xc8] sm:$0xff]
      %v245 = vld [vmem:[#allocation2 + $0xd0] sm:$0xff]
      %v246 = vld [vmem:[#allocation2 + $0xd8] sm:$0xff]
      %v247 = vld [vmem:[#allocation2 + $0xe0] sm:$0xff]
      %v248 = vld [vmem:[#allocation2 + $0xe8] sm:$0xff]
      %v249 = vld [vmem:[#allocation2 + $0xf0] sm:$0xff]
      %v250 = vld [vmem:[#allocation2 + $0xf8] sm:$0xff]
      %v251 = vld [vmem:[#allocation2 + $0x100] sm:$0xff]
      %v252 = vld [vmem:[#allocation2 + $0x108] sm:$0xff]
      %v253 = vld [vmem:[#allocation2 + $0x110] sm:$0xff]
      %v254 = vld [vmem:[#allocation2 + $0x118] sm:$0x3f]
      %v255 = vld [vmem:[%s1] sm:$0xf]
      %v256 = vld [vmem:[%s1 + $0x4] sm:$0xf]
      %v293 = vunpack.c.l.b16 %v183
      %v294 = vunpack.c.l.b16 %v184
      %v295 = vunpack.c.l.b16 %v185
      %v296 = vunpack.c.l.b16 %v186
      %v297 = vunpack.c.l.b16 %v187
      %v298 = vunpack.c.l.b16 %v188
      %v299 = vunpack.c.l.b16 %v189
      %v300 = vunpack.c.l.b16 %v190
      %v301 = vunpack.c.l.b16 %v191
      %v302 = vunpack.c.l.b16 %v192
      %v303 = vunpack.c.l.b16 %v193
      %v304 = vunpack.c.l.b16 %v194
      %v305 = vunpack.c.l.b16 %v195
      %v306 = vunpack.c.l.b16 %v196
      %v307 = vunpack.c.l.b16 %v197
      %v308 = vunpack.c.l.b16 %v198
      %v309 = vunpack.c.l.b16 %v199
      %v310 = vunpack.c.l.b16 %v200
      %v311 = vunpack.c.l.b16 %v201
      %v312 = vunpack.c.l.b16 %v202
      %v313 = vunpack.c.l.b16 %v203
      %v314 = vunpack.c.l.b16 %v204
      %v315 = vunpack.c.l.b16 %v205
      %v316 = vunpack.c.l.b16 %v206
      %v317 = vunpack.c.l.b16 %v207
      %v318 = vunpack.c.l.b16 %v208
      %v319 = vunpack.c.l.b16 %v209
      %v320 = vunpack.c.l.b16 %v210
      %v321 = vunpack.c.l.b16 %v211
      %v322 = vunpack.c.l.b16 %v212
      %v323 = vunpack.c.l.b16 %v213
      %v324 = vunpack.c.l.b16 %v214
      %v325 = vunpack.c.l.b16 %v215
      %v326 = vunpack.c.l.b16 %v216
      %v327 = vunpack.c.l.b16 %v217
      %v328 = vunpack.c.l.b16 %v218
      %v329 = vpack.c.b16 %v294, %v293
      %v330 = vpack.c.b16 %v296, %v295
      %v331 = vpack.c.b16 %v298, %v297
      %v332 = vpack.c.b16 %v300, %v299
      %v333 = vpack.c.b16 %v302, %v301
      %v334 = vpack.c.b16 %v304, %v303
      %v335 = vpack.c.b16 %v306, %v305
      %v336 = vpack.c.b16 %v308, %v307
      %v337 = vpack.c.b16 %v310, %v309
      %v338 = vpack.c.b16 %v312, %v311
      %v339 = vpack.c.b16 %v314, %v313
      %v340 = vpack.c.b16 %v316, %v315
      %v341 = vpack.c.b16 %v318, %v317
      %v342 = vpack.c.b16 %v320, %v319
      %v343 = vpack.c.b16 %v322, %v321
      %v344 = vpack.c.b16 %v324, %v323
      %v345 = vpack.c.b16 %v326, %v325
      %v346 = vpack.c.b16 %v328, %v327
      %v349 = vunpack.c.l.b16 %v255
      %v350 = vunpack.c.l.b16 %v256
      %v351 = vpack.c.b16 %v350, %v349
      %v354 = vsel %vm145, %v329, 0
      %v357 = vsel %vm145, %v330, 0
      %v360 = vsel %vm145, %v331, 0
      %v363 = vsel %vm145, %v332, 0
      %v366 = vsel %vm145, %v333, 0
      %v369 = vsel %vm145, %v334, 0
      %v372 = vsel %vm145, %v335, 0
      %v375 = vsel %vm145, %v336, 0
      %v378 = vsel %vm145, %v337, 0
      %v381 = vsel %vm145, %v338, 0
      %v384 = vsel %vm145, %v339, 0
      %v387 = vsel %vm145, %v340, 0
      %v390 = vsel %vm145, %v341, 0
      %v393 = vsel %vm145, %v342, 0
      %v396 = vsel %vm145, %v343, 0
      %v399 = vsel %vm145, %v344, 0
      %v402 = vsel %vm145, %v345, 0
      %v405 = vsel %vm145, %v346, 0
      %407 = vmatprep.subr.bf16.mxu0 0
      %408 = vmatpush1.bf16.msra.mxu0 %v351
      %409 = vmatprep.subr.bf16.mxu0 0
      %410 = vmatpush1.bf16.msra.mxu0 0
      %411 = vmatprep.subr.bf16.mxu0 0
      %412 = vmatpush1.bf16.msra.mxu0 0
      %413 = vmatprep.subr.bf16.mxu0 0
      %414 = vmatpush1.bf16.msra.mxu0 0
      %415 = vmatprep.subr.bf16.mxu0 0
      %416 = vmatpush1.bf16.msra.mxu0 0
      %417 = vmatprep.subr.bf16.mxu0 0
      %418 = vmatpush1.bf16.msra.mxu0 0
      %419 = vmatprep.subr.bf16.mxu0 0
      %420 = vmatpush1.bf16.msra.mxu0 0
      %421 = vmatprep.subr.bf16.mxu0 0
      %422 = vmatpush1.bf16.msra.mxu0 0
      %423 = vmatprep.subr.bf16.mxu0 0
      %424 = vmatpush1.bf16.msra.mxu0 0
      %425 = vmatprep.subr.bf16.mxu0 0
      %426 = vmatpush1.bf16.msra.mxu0 0
      %427 = vmatprep.subr.bf16.mxu0 0
      %428 = vmatpush1.bf16.msra.mxu0 0
      %429 = vmatprep.subr.bf16.mxu0 0
      %430 = vmatpush1.bf16.msra.mxu0 0
      %431 = vmatprep.subr.bf16.mxu0 0
      %432 = vmatpush1.bf16.msra.mxu0 0
      %433 = vmatprep.subr.bf16.mxu0 0
      %434 = vmatpush1.bf16.msra.mxu0 0
      %435 = vmatprep.subr.bf16.mxu0 0
      %436 = vmatpush1.bf16.msra.mxu0 0
      %437 = vmatprep.subr.bf16.mxu0 0
      %438 = vmatpush1.bf16.msra.mxu0 0
      %439 = vmatprep.mubr.bf16.mxu0 0
      %440 = vmatmul.mubr.bf16.gmra.mrb[0].mxu0 %v354
      %v441 = vpop.f32.mrb[0].mxu0
      %v442 = vadd.f32 0.0, %v441
      %v443 = vpop.f32.mrb[0].mxu0
      %v444 = vpop.f32.mrb[0].mxu0
      %v445 = vadd.f32 0.0, %v444
      %v446 = vpop.f32.mrb[0].mxu0
      %447 = vmatprep.mubr.bf16.mxu0 0
      %448 = vmatmul.mubr.bf16.gmra.mrb[0].mxu0 %v357
      %v449 = vpop.f32.mrb[0].mxu0
      %v450 = vadd.f32 0.0, %v449
      %v451 = vpop.f32.mrb[0].mxu0
      %v452 = vpop.f32.mrb[0].mxu0
      %v453 = vadd.f32 0.0, %v452
      %v454 = vpop.f32.mrb[0].mxu0
      %455 = vmatprep.mubr.bf16.mxu0 0
      %456 = vmatmul.mubr.bf16.gmra.mrb[0].mxu0 %v360
      %v457 = vpop.f32.mrb[0].mxu0
      %v458 = vadd.f32 0.0, %v457
      %v459 = vpop.f32.mrb[0].mxu0
      %v460 = vpop.f32.mrb[0].mxu0
      %v461 = vadd.f32 0.0, %v460
      %v462 = vpop.f32.mrb[0].mxu0
      %463 = vmatprep.mubr.bf16.mxu0 0
      %464 = vmatmul.mubr.bf16.gmra.mrb[0].mxu0 %v363
      %v465 = vpop.f32.mrb[0].mxu0
      %v466 = vadd.f32 0.0, %v465
      %v467 = vpop.f32.mrb[0].mxu0
      %v468 = vpop.f32.mrb[0].mxu0
      %v469 = vadd.f32 0.0, %v468
      %v470 = vpop.f32.mrb[0].mxu0
      %471 = vmatprep.mubr.bf16.mxu0 0
      %472 = vmatmul.mubr.bf16.gmra.mrb[0].mxu0 %v366
      %v473 = vpop.f32.mrb[0].mxu0
      %v474 = vadd.f32 0.0, %v473
      %v475 = vpop.f32.mrb[0].mxu0
      %v476 = vpop.f32.mrb[0].mxu0
      %v477 = vadd.f32 0.0, %v476
      %v478 = vpop.f32.mrb[0].mxu0
      %479 = vmatprep.mubr.bf16.mxu0 0
      %480 = vmatmul.mubr.bf16.gmra.mrb[0].mxu0 %v369
      %v481 = vpop.f32.mrb[0].mxu0
      %v482 = vadd.f32 0.0, %v481
      %v483 = vpop.f32.mrb[0].mxu0
      %v484 = vpop.f32.mrb[0].mxu0
      %v485 = vadd.f32 0.0, %v484
      %v486 = vpop.f32.mrb[0].mxu0
      %487 = vmatprep.mubr.bf16.mxu0 0
      %488 = vmatmul.mubr.bf16.gmra.mrb[0].mxu0 %v372
      %v489 = vpop.f32.mrb[0].mxu0
      %v490 = vadd.f32 0.0, %v489
      %v491 = vpop.f32.mrb[0].mxu0
      %v492 = vpop.f32.mrb[0].mxu0
      %v493 = vadd.f32 0.0, %v492
      %v494 = vpop.f32.mrb[0].mxu0
      %495 = vmatprep.mubr.bf16.mxu0 0
      %496 = vmatmul.mubr.bf16.gmra.mrb[0].mxu0 %v375
      %v497 = vpop.f32.mrb[0].mxu0
      %v498 = vadd.f32 0.0, %v497
      %v499 = vpop.f32.mrb[0].mxu0
      %v500 = vpop.f32.mrb[0].mxu0
      %v501 = vadd.f32 0.0, %v500
      %v502 = vpop.f32.mrb[0].mxu0
      %503 = vmatprep.mubr.bf16.mxu0 0
      %504 = vmatmul.mubr.bf16.gmra.mrb[0].mxu0 %v378
      %v505 = vpop.f32.mrb[0].mxu0
      %v506 = vadd.f32 0.0, %v505
      %v507 = vpop.f32.mrb[0].mxu0
      %v508 = vpop.f32.mrb[0].mxu0
      %v509 = vadd.f32 0.0, %v508
      %v510 = vpop.f32.mrb[0].mxu0
      %511 = vmatprep.mubr.bf16.mxu0 0
      %512 = vmatmul.mubr.bf16.gmra.mrb[0].mxu0 %v381
      %v513 = vpop.f32.mrb[0].mxu0
      %v514 = vadd.f32 0.0, %v513
      %v515 = vpop.f32.mrb[0].mxu0
      %v516 = vpop.f32.mrb[0].mxu0
      %v517 = vadd.f32 0.0, %v516
      %v518 = vpop.f32.mrb[0].mxu0
      %519 = vmatprep.mubr.bf16.mxu0 0
      %520 = vmatmul.mubr.bf16.gmra.mrb[0].mxu0 %v384
      %v521 = vpop.f32.mrb[0].mxu0
      %v522 = vadd.f32 0.0, %v521
      %v523 = vpop.f32.mrb[0].mxu0
      %v524 = vpop.f32.mrb[0].mxu0
      %v525 = vadd.f32 0.0, %v524
      %v526 = vpop.f32.mrb[0].mxu0
      %527 = vmatprep.mubr.bf16.mxu0 0
      %528 = vmatmul.mubr.bf16.gmra.mrb[0].mxu0 %v387
      %v529 = vpop.f32.mrb[0].mxu0
      %v530 = vadd.f32 0.0, %v529
      %v531 = vpop.f32.mrb[0].mxu0
      %v532 = vpop.f32.mrb[0].mxu0
      %v533 = vadd.f32 0.0, %v532
      %v534 = vpop.f32.mrb[0].mxu0
      %535 = vmatprep.mubr.bf16.mxu0 0
      %536 = vmatmul.mubr.bf16.gmra.mrb[0].mxu0 %v390
      %v537 = vpop.f32.mrb[0].mxu0
      %v538 = vadd.f32 0.0, %v537
      %v539 = vpop.f32.mrb[0].mxu0
      %v540 = vpop.f32.mrb[0].mxu0
      %v541 = vadd.f32 0.0, %v540
      %v542 = vpop.f32.mrb[0].mxu0
      %543 = vmatprep.mubr.bf16.mxu0 0
      %544 = vmatmul.mubr.bf16.gmra.mrb[0].mxu0 %v393
      %v545 = vpop.f32.mrb[0].mxu0
      %v546 = vadd.f32 0.0, %v545
      %v547 = vpop.f32.mrb[0].mxu0
      %v548 = vpop.f32.mrb[0].mxu0
      %v549 = vadd.f32 0.0, %v548
      %v550 = vpop.f32.mrb[0].mxu0
      %551 = vmatprep.mubr.bf16.mxu0 0
      %552 = vmatmul.mubr.bf16.gmra.mrb[0].mxu0 %v396
      %v553 = vpop.f32.mrb[0].mxu0
      %v554 = vadd.f32 0.0, %v553
      %v555 = vpop.f32.mrb[0].mxu0
      %v556 = vpop.f32.mrb[0].mxu0
      %v557 = vadd.f32 0.0, %v556
      %v558 = vpop.f32.mrb[0].mxu0
      %559 = vmatprep.mubr.bf16.mxu0 0
      %560 = vmatmul.mubr.bf16.gmra.mrb[0].mxu0 %v399
      %v561 = vpop.f32.mrb[0].mxu0
      %v562 = vadd.f32 0.0, %v561
      %v563 = vpop.f32.mrb[0].mxu0
      %v564 = vpop.f32.mrb[0].mxu0
      %v565 = vadd.f32 0.0, %v564
      %v566 = vpop.f32.mrb[0].mxu0
      %567 = vmatprep.mubr.bf16.mxu0 0
      %568 = vmatmul.mubr.bf16.gmra.mrb[0].mxu0 %v402
      %v569 = vpop.f32.mrb[0].mxu0
      %v570 = vadd.f32 0.0, %v569
      %v571 = vpop.f32.mrb[0].mxu0
      %v572 = vpop.f32.mrb[0].mxu0
      %v573 = vadd.f32 0.0, %v572
      %v574 = vpop.f32.mrb[0].mxu0
      %575 = vmatprep.mubr.bf16.mxu0 0
      %576 = vmatmul.mubr.bf16.gmra.mrb[0].mxu0 %v405
      %v577 = vpop.f32.mrb[0].mxu0
      %v578 = vadd.f32 0.0, %v577
      %v579 = vpop.f32.mrb[0].mxu0
      %v580 = vpop.f32.mrb[0].mxu0
      %v581 = vadd.f32 0.0, %v580
      %v582 = vpop.f32.mrb[0].mxu0
      %583 = vdwg.mxu0
      %v584 = vadd.f32 %v219, %v442
      %v585 = vadd.f32 %v220, %v445
      %v586 = vadd.f32 %v221, %v450
      %v587 = vadd.f32 %v222, %v453
      %v588 = vadd.f32 %v223, %v458
      %v589 = vadd.f32 %v224, %v461
      %v590 = vadd.f32 %v225, %v466
      %v591 = vadd.f32 %v226, %v469
      %v592 = vadd.f32 %v227, %v474
      %v593 = vadd.f32 %v228, %v477
      %v594 = vadd.f32 %v229, %v482
      %v595 = vadd.f32 %v230, %v485
      %v596 = vadd.f32 %v231, %v490
      %v597 = vadd.f32 %v232, %v493
      %v598 = vadd.f32 %v233, %v498
      %v599 = vadd.f32 %v234, %v501
      %v600 = vadd.f32 %v235, %v506
      %v601 = vadd.f32 %v236, %v509
      %v602 = vadd.f32 %v237, %v514
      %v603 = vadd.f32 %v238, %v517
      %v604 = vadd.f32 %v239, %v522
      %v605 = vadd.f32 %v240, %v525
      %v606 = vadd.f32 %v241, %v530
      %v607 = vadd.f32 %v242, %v533
      %v608 = vadd.f32 %v243, %v538
      %v609 = vadd.f32 %v244, %v541
      %v610 = vadd.f32 %v245, %v546
      %v611 = vadd.f32 %v246, %v549
      %v612 = vadd.f32 %v247, %v554
      %v613 = vadd.f32 %v248, %v557
      %v614 = vadd.f32 %v249, %v562
      %v615 = vadd.f32 %v250, %v565
      %v616 = vadd.f32 %v251, %v570
      %v617 = vadd.f32 %v252, %v573
      %v618 = vadd.f32 %v253, %v578
      %v619 = vadd.f32 %v254, %v581
      %620 = vst.msk [vmem:[#allocation2] sm:$0xff] %vm145, %v584
      %621 = vst.msk [vmem:[#allocation2 + $0x8] sm:$0xff] %vm145, %v585
      %622 = vst.msk [vmem:[#allocation2 + $0x10] sm:$0xff] %vm145, %v586
      %623 = vst.msk [vmem:[#allocation2 + $0x18] sm:$0xff] %vm145, %v587
      %624 = vst.msk [vmem:[#allocation2 + $0x20] sm:$0xff] %vm145, %v588
      %625 = vst.msk [vmem:[#allocation2 + $0x28] sm:$0xff] %vm145, %v589
      %626 = vst.msk [vmem:[#allocation2 + $0x30] sm:$0xff] %vm145, %v590
      %627 = vst.msk [vmem:[#allocation2 + $0x38] sm:$0xff] %vm145, %v591
      %628 = vst.msk [vmem:[#allocation2 + $0x40] sm:$0xff] %vm145, %v592
      %629 = vst.msk [vmem:[#allocation2 + $0x48] sm:$0xff] %vm145, %v593
      %630 = vst.msk [vmem:[#allocation2 + $0x50] sm:$0xff] %vm145, %v594
      %631 = vst.msk [vmem:[#allocation2 + $0x58] sm:$0xff] %vm145, %v595
      %632 = vst.msk [vmem:[#allocation2 + $0x60] sm:$0xff] %vm145, %v596
      %633 = vst.msk [vmem:[#allocation2 + $0x68] sm:$0xff] %vm145, %v597
      %634 = vst.msk [vmem:[#allocation2 + $0x70] sm:$0xff] %vm145, %v598
      %635 = vst.msk [vmem:[#allocation2 + $0x78] sm:$0xff] %vm145, %v599
      %636 = vst.msk [vmem:[#allocation2 + $0x80] sm:$0xff] %vm145, %v600
      %637 = vst.msk [vmem:[#allocation2 + $0x88] sm:$0xff] %vm145, %v601
      %638 = vst.msk [vmem:[#allocation2 + $0x90] sm:$0xff] %vm145, %v602
      %639 = vst.msk [vmem:[#allocation2 + $0x98] sm:$0xff] %vm145, %v603
      %640 = vst.msk [vmem:[#allocation2 + $0xa0] sm:$0xff] %vm145, %v604
      %641 = vst.msk [vmem:[#allocation2 + $0xa8] sm:$0xff] %vm145, %v605
      %642 = vst.msk [vmem:[#allocation2 + $0xb0] sm:$0xff] %vm145, %v606
      %643 = vst.msk [vmem:[#allocation2 + $0xb8] sm:$0xff] %vm145, %v607
      %644 = vst.msk [vmem:[#allocation2 + $0xc0] sm:$0xff] %vm145, %v608
      %645 = vst.msk [vmem:[#allocation2 + $0xc8] sm:$0xff] %vm145, %v609
      %646 = vst.msk [vmem:[#allocation2 + $0xd0] sm:$0xff] %vm145, %v610
      %647 = vst.msk [vmem:[#allocation2 + $0xd8] sm:$0xff] %vm145, %v611
      %648 = vst.msk [vmem:[#allocation2 + $0xe0] sm:$0xff] %vm145, %v612
      %649 = vst.msk [vmem:[#allocation2 + $0xe8] sm:$0xff] %vm145, %v613
      %650 = vst.msk [vmem:[#allocation2 + $0xf0] sm:$0xff] %vm145, %v614
      %651 = vst.msk [vmem:[#allocation2 + $0xf8] sm:$0xff] %vm145, %v615
      %652 = vst.msk [vmem:[#allocation2 + $0x100] sm:$0xff] %vm145, %v616
      %653 = vst.msk [vmem:[#allocation2 + $0x108] sm:$0xff] %vm145, %v617
      %654 = vst.msk [vmem:[#allocation2 + $0x110] sm:$0xff] %vm145, %v618
      %655 = vst.msk [vmem:[#allocation2 + $0x118] sm:$0x3f] %vm181, %v619
      %v656 = vld [vmem:[%s138] sm:$0xf]
      %v657 = vld [vmem:[%s138 + $0x4] sm:$0xf]
      %v658 = vld [vmem:[%s138 + $0x8] sm:$0xf]
      %v659 = vld [vmem:[%s138 + $0xc] sm:$0xf]
      %v660 = vld [vmem:[%s138 + $0x10] sm:$0xf]
      %v661 = vld [vmem:[%s138 + $0x14] sm:$0xf]
      %v662 = vld [vmem:[%s138 + $0x18] sm:$0xf]
      %v663 = vld [vmem:[%s138 + $0x1c] sm:$0xf]
      %v664 = vld [vmem:[%s138 + $0x20] sm:$0xf]
      %v665 = vld [vmem:[%s138 + $0x24] sm:$0xf]
      %v666 = vld [vmem:[%s138 + $0x28] sm:$0xf]
      %v667 = vld [vmem:[%s138 + $0x2c] sm:$0xf]
      %v668 = vld [vmem:[%s138 + $0x30] sm:$0xf]
      %v669 = vld [vmem:[%s138 + $0x34] sm:$0xf]
      %v670 = vld [vmem:[%s138 + $0x38] sm:$0xf]
      %v671 = vld [vmem:[%s138 + $0x3c] sm:$0xf]
      %v672 = vld [vmem:[%s138 + $0x40] sm:$0xf]
      %v673 = vld [vmem:[%s138 + $0x44] sm:$0xf]
      %v674 = vld [vmem:[%s138 + $0x48] sm:$0xf]
      %v675 = vld [vmem:[%s138 + $0x4c] sm:$0xf]
      %v676 = vld [vmem:[%s138 + $0x50] sm:$0xf]
      %v677 = vld [vmem:[%s138 + $0x54] sm:$0xf]
      %v678 = vld [vmem:[%s138 + $0x58] sm:$0xf]
      %v679 = vld [vmem:[%s138 + $0x5c] sm:$0xf]
      %v680 = vld [vmem:[%s138 + $0x60] sm:$0xf]
      %v681 = vld [vmem:[%s138 + $0x64] sm:$0xf]
      %v682 = vld [vmem:[%s138 + $0x68] sm:$0xf]
      %v683 = vld [vmem:[%s138 + $0x6c] sm:$0xf]
      %v684 = vld [vmem:[%s138 + $0x70] sm:$0xf]
      %v685 = vld [vmem:[%s138 + $0x74] sm:$0xf]
      %v686 = vld [vmem:[%s138 + $0x78] sm:$0xf]
      %v687 = vld [vmem:[%s138 + $0x7c] sm:$0xf]
      %v688 = vld [vmem:[%s138 + $0x80] sm:$0xf]
      %v689 = vld [vmem:[%s138 + $0x84] sm:$0xf]
      %v690 = vld [vmem:[%s138 + $0x88] sm:$0xf]
      %v691 = vld [vmem:[%s138 + $0x8c] sm:$0xf]
      %v692 = vld [vmem:[#allocation2] sm:$0xff]
      %v693 = vld [vmem:[#allocation2 + $0x8] sm:$0xff]
      %v694 = vld [vmem:[#allocation2 + $0x10] sm:$0xff]
      %v695 = vld [vmem:[#allocation2 + $0x18] sm:$0xff]
      %v696 = vld [vmem:[#allocation2 + $0x20] sm:$0xff]
      %v697 = vld [vmem:[#allocation2 + $0x28] sm:$0xff]
      %v698 = vld [vmem:[#allocation2 + $0x30] sm:$0xff]
      %v699 = vld [vmem:[#allocation2 + $0x38] sm:$0xff]
      %v700 = vld [vmem:[#allocation2 + $0x40] sm:$0xff]
      %v701 = vld [vmem:[#allocation2 + $0x48] sm:$0xff]
      %v702 = vld [vmem:[#allocation2 + $0x50] sm:$0xff]
      %v703 = vld [vmem:[#allocation2 + $0x58] sm:$0xff]
      %v704 = vld [vmem:[#allocation2 + $0x60] sm:$0xff]
      %v705 = vld [vmem:[#allocation2 + $0x68] sm:$0xff]
      %v706 = vld [vmem:[#allocation2 + $0x70] sm:$0xff]
      %v707 = vld [vmem:[#allocation2 + $0x78] sm:$0xff]
      %v708 = vld [vmem:[#allocation2 + $0x80] sm:$0xff]
      %v709 = vld [vmem:[#allocation2 + $0x88] sm:$0xff]
      %v710 = vld [vmem:[#allocation2 + $0x90] sm:$0xff]
      %v711 = vld [vmem:[#allocation2 + $0x98] sm:$0xff]
      %v712 = vld [vmem:[#allocation2 + $0xa0] sm:$0xff]
      %v713 = vld [vmem:[#allocation2 + $0xa8] sm:$0xff]
      %v714 = vld [vmem:[#allocation2 + $0xb0] sm:$0xff]
      %v715 = vld [vmem:[#allocation2 + $0xb8] sm:$0xff]
      %v716 = vld [vmem:[#allocation2 + $0xc0] sm:$0xff]
      %v717 = vld [vmem:[#allocation2 + $0xc8] sm:$0xff]
      %v718 = vld [vmem:[#allocation2 + $0xd0] sm:$0xff]
      %v719 = vld [vmem:[#allocation2 + $0xd8] sm:$0xff]
      %v720 = vld [vmem:[#allocation2 + $0xe0] sm:$0xff]
      %v721 = vld [vmem:[#allocation2 + $0xe8] sm:$0xff]
      %v722 = vld [vmem:[#allocation2 + $0xf0] sm:$0xff]
      %v723 = vld [vmem:[#allocation2 + $0xf8] sm:$0xff]
      %v724 = vld [vmem:[#allocation2 + $0x100] sm:$0xff]
      %v725 = vld [vmem:[#allocation2 + $0x108] sm:$0xff]
      %v726 = vld [vmem:[#allocation2 + $0x110] sm:$0xff]
      %v727 = vld [vmem:[#allocation2 + $0x118] sm:$0x3f]
      %s728 = scalar_lea.vmem %s1, 8
      %v729 = vld [vmem:[%s728] sm:$0xf]
      %v730 = vld [vmem:[%s728 + $0x4] sm:$0xf]
      %v767 = vunpack.c.l.b16 %v656
      %v768 = vunpack.c.l.b16 %v657
      %v769 = vunpack.c.l.b16 %v658
      %v770 = vunpack.c.l.b16 %v659
      %v771 = vunpack.c.l.b16 %v660
      %v772 = vunpack.c.l.b16 %v661
      %v773 = vunpack.c.l.b16 %v662
      %v774 = vunpack.c.l.b16 %v663
      %v775 = vunpack.c.l.b16 %v664
      %v776 = vunpack.c.l.b16 %v665
      %v777 = vunpack.c.l.b16 %v666
      %v778 = vunpack.c.l.b16 %v667
      %v779 = vunpack.c.l.b16 %v668
      %v780 = vunpack.c.l.b16 %v669
      %v781 = vunpack.c.l.b16 %v670
      %v782 = vunpack.c.l.b16 %v671
      %v783 = vunpack.c.l.b16 %v672
      %v784 = vunpack.c.l.b16 %v673
      %v785 = vunpack.c.l.b16 %v674
      %v786 = vunpack.c.l.b16 %v675
      %v787 = vunpack.c.l.b16 %v676
      %v788 = vunpack.c.l.b16 %v677
      %v789 = vunpack.c.l.b16 %v678
      %v790 = vunpack.c.l.b16 %v679
      %v791 = vunpack.c.l.b16 %v680
      %v792 = vunpack.c.l.b16 %v681
      %v793 = vunpack.c.l.b16 %v682
      %v794 = vunpack.c.l.b16 %v683
      %v795 = vunpack.c.l.b16 %v684
      %v796 = vunpack.c.l.b16 %v685
      %v797 = vunpack.c.l.b16 %v686
      %v798 = vunpack.c.l.b16 %v687
      %v799 = vunpack.c.l.b16 %v688
      %v800 = vunpack.c.l.b16 %v689
      %v801 = vunpack.c.l.b16 %v690
      %v802 = vunpack.c.l.b16 %v691
      %v803 = vpack.c.b16 %v768, %v767
      %v804 = vpack.c.b16 %v770, %v769
      %v805 = vpack.c.b16 %v772, %v771
      %v806 = vpack.c.b16 %v774, %v773
      %v807 = vpack.c.b16 %v776, %v775
      %v808 = vpack.c.b16 %v778, %v777
      %v809 = vpack.c.b16 %v780, %v779
      %v810 = vpack.c.b16 %v782, %v781
      %v811 = vpack.c.b16 %v784, %v783
      %v812 = vpack.c.b16 %v786, %v785
      %v813 = vpack.c.b16 %v788, %v787
      %v814 = vpack.c.b16 %v790, %v789
      %v815 = vpack.c.b16 %v792, %v791
      %v816 = vpack.c.b16 %v794, %v793
      %v817 = vpack.c.b16 %v796, %v795
      %v818 = vpack.c.b16 %v798, %v797
      %v819 = vpack.c.b16 %v800, %v799
      %v820 = vpack.c.b16 %v802, %v801
      %vm821 = vsmask.f32 7424
      %v823 = vshrl.u32 %v803, 16
      %v825 = vshll.u32 %v803, 16
      %v827 = vrot.slane %v825, 1
      %v828 = vor.u32 %v823, %v827
      %v830 = vshll.u32 %v804, 16
      %v832 = vrot.slane %v830, 1
      %v833 = vsel %vm821, %v828, %v832
      %v834 = vshrl.u32 %v804, 16
      %v836 = vor.u32 %v834, %v832
      %v838 = vshll.u32 %v805, 16
      %v840 = vrot.slane %v838, 1
      %v841 = vsel %vm821, %v836, %v840
      %v842 = vshrl.u32 %v805, 16
      %v844 = vor.u32 %v842, %v840
      %v846 = vshll.u32 %v806, 16
      %v848 = vrot.slane %v846, 1
      %v849 = vsel %vm821, %v844, %v848
      %v850 = vshrl.u32 %v806, 16
      %v852 = vor.u32 %v850, %v848
      %v854 = vshll.u32 %v807, 16
      %v856 = vrot.slane %v854, 1
      %v857 = vsel %vm821, %v852, %v856
      %v858 = vshrl.u32 %v807, 16
      %v860 = vor.u32 %v858, %v856
      %v862 = vshll.u32 %v808, 16
      %v864 = vrot.slane %v862, 1
      %v865 = vsel %vm821, %v860, %v864
      %v866 = vshrl.u32 %v808, 16
      %v868 = vor.u32 %v866, %v864
      %v870 = vshll.u32 %v809, 16
      %v872 = vrot.slane %v870, 1
      %v873 = vsel %vm821, %v868, %v872
      %v874 = vshrl.u32 %v809, 16
      %v876 = vor.u32 %v874, %v872
      %v878 = vshll.u32 %v810, 16
      %v880 = vrot.slane %v878, 1
      %v881 = vsel %vm821, %v876, %v880
      %v882 = vshrl.u32 %v810, 16
      %v884 = vor.u32 %v882, %v880
      %v886 = vshll.u32 %v811, 16
      %v888 = vrot.slane %v886, 1
      %v889 = vsel %vm821, %v884, %v888
      %v890 = vshrl.u32 %v811, 16
      %v892 = vor.u32 %v890, %v888
      %v894 = vshll.u32 %v812, 16
      %v896 = vrot.slane %v894, 1
      %v897 = vsel %vm821, %v892, %v896
      %v898 = vshrl.u32 %v812, 16
      %v900 = vor.u32 %v898, %v896
      %v902 = vshll.u32 %v813, 16
      %v904 = vrot.slane %v902, 1
      %v905 = vsel %vm821, %v900, %v904
      %v906 = vshrl.u32 %v813, 16
      %v908 = vor.u32 %v906, %v904
      %v910 = vshll.u32 %v814, 16
      %v912 = vrot.slane %v910, 1
      %v913 = vsel %vm821, %v908, %v912
      %v914 = vshrl.u32 %v814, 16
      %v916 = vor.u32 %v914, %v912
      %v918 = vshll.u32 %v815, 16
      %v920 = vrot.slane %v918, 1
      %v921 = vsel %vm821, %v916, %v920
      %v922 = vshrl.u32 %v815, 16
      %v924 = vor.u32 %v922, %v920
      %v926 = vshll.u32 %v816, 16
      %v928 = vrot.slane %v926, 1
      %v929 = vsel %vm821, %v924, %v928
      %v930 = vshrl.u32 %v816, 16
      %v932 = vor.u32 %v930, %v928
      %v934 = vshll.u32 %v817, 16
      %v936 = vrot.slane %v934, 1
      %v937 = vsel %vm821, %v932, %v936
      %v938 = vshrl.u32 %v817, 16
      %v940 = vor.u32 %v938, %v936
      %v942 = vshll.u32 %v818, 16
      %v944 = vrot.slane %v942, 1
      %v945 = vsel %vm821, %v940, %v944
      %v946 = vshrl.u32 %v818, 16
      %v948 = vor.u32 %v946, %v944
      %v950 = vshll.u32 %v819, 16
      %v952 = vrot.slane %v950, 1
      %v953 = vsel %vm821, %v948, %v952
      %v954 = vshrl.u32 %v819, 16
      %v956 = vor.u32 %v954, %v952
      %v958 = vshll.u32 %v820, 16
      %v960 = vrot.slane %v958, 1
      %v961 = vsel %vm821, %v956, %v960
      %v962 = vshrl.u32 %v820, 16
      %v964 = vor.u32 %v962, %v960
      %v967 = vunpack.c.l.b16 %v729
      %v968 = vunpack.c.l.b16 %v730
      %v969 = vpack.c.b16 %v968, %v967
      %v972 = vsel %vm145, %v833, 0
      %v975 = vsel %vm145, %v841, 0
      %v978 = vsel %vm145, %v849, 0
      %v981 = vsel %vm145, %v857, 0
      %v984 = vsel %vm145, %v865, 0
      %v987 = vsel %vm145, %v873, 0
      %v990 = vsel %vm145, %v881, 0
      %v993 = vsel %vm145, %v889, 0
      %v996 = vsel %vm145, %v897, 0
      %v999 = vsel %vm145, %v905, 0
      %v1002 = vsel %vm145, %v913, 0
      %v1005 = vsel %vm145, %v921, 0
      %v1008 = vsel %vm145, %v929, 0
      %v1011 = vsel %vm145, %v937, 0
      %v1014 = vsel %vm145, %v945, 0
      %v1017 = vsel %vm145, %v953, 0
      %v1020 = vsel %vm145, %v961, 0
      %v1023 = vsel %vm145, %v964, 0
      %1025 = vmatprep.subr.bf16.mxu0 0
      %1026 = vmatpush1.bf16.msra.mxu0 %v969
      %1027 = vmatprep.subr.bf16.mxu0 0
      %1028 = vmatpush1.bf16.msra.mxu0 0
      %1029 = vmatprep.subr.bf16.mxu0 0
      %1030 = vmatpush1.bf16.msra.mxu0 0
      %1031 = vmatprep.subr.bf16.mxu0 0
      %1032 = vmatpush1.bf16.msra.mxu0 0
      %1033 = vmatprep.subr.bf16.mxu0 0
      %1034 = vmatpush1.bf16.msra.mxu0 0
      %1035 = vmatprep.subr.bf16.mxu0 0
      %1036 = vmatpush1.bf16.msra.mxu0 0
      %1037 = vmatprep.subr.bf16.mxu0 0
      %1038 = vmatpush1.bf16.msra.mxu0 0
      %1039 = vmatprep.subr.bf16.mxu0 0
      %1040 = vmatpush1.bf16.msra.mxu0 0
      %1041 = vmatprep.subr.bf16.mxu0 0
      %1042 = vmatpush1.bf16.msra.mxu0 0
      %1043 = vmatprep.subr.bf16.mxu0 0
      %1044 = vmatpush1.bf16.msra.mxu0 0
      %1045 = vmatprep.subr.bf16.mxu0 0
      %1046 = vmatpush1.bf16.msra.mxu0 0
      %1047 = vmatprep.subr.bf16.mxu0 0
      %1048 = vmatpush1.bf16.msra.mxu0 0
      %1049 = vmatprep.subr.bf16.mxu0 0
      %1050 = vmatpush1.bf16.msra.mxu0 0
      %1051 = vmatprep.subr.bf16.mxu0 0
      %1052 = vmatpush1.bf16.msra.mxu0 0
      %1053 = vmatprep.subr.bf16.mxu0 0
      %1054 = vmatpush1.bf16.msra.mxu0 0
      %1055 = vmatprep.subr.bf16.mxu0 0
      %1056 = vmatpush1.bf16.msra.mxu0 0
      %1057 = vmatprep.mubr.bf16.mxu0 0
      %1058 = vmatmul.mubr.bf16.gmra.mrb[0].mxu0 %v972
      %v1059 = vpop.f32.mrb[0].mxu0
      %v1060 = vadd.f32 0.0, %v1059
      %v1061 = vpop.f32.mrb[0].mxu0
      %v1062 = vpop.f32.mrb[0].mxu0
      %v1063 = vadd.f32 0.0, %v1062
      %v1064 = vpop.f32.mrb[0].mxu0
      %1065 = vmatprep.mubr.bf16.mxu0 0
      %1066 = vmatmul.mubr.bf16.gmra.mrb[0].mxu0 %v975
      %v1067 = vpop.f32.mrb[0].mxu0
      %v1068 = vadd.f32 0.0, %v1067
      %v1069 = vpop.f32.mrb[0].mxu0
      %v1070 = vpop.f32.mrb[0].mxu0
      %v1071 = vadd.f32 0.0, %v1070
      %v1072 = vpop.f32.mrb[0].mxu0
      %1073 = vmatprep.mubr.bf16.mxu0 0
      %1074 = vmatmul.mubr.bf16.gmra.mrb[0].mxu0 %v978
      %v1075 = vpop.f32.mrb[0].mxu0
      %v1076 = vadd.f32 0.0, %v1075
      %v1077 = vpop.f32.mrb[0].mxu0
      %v1078 = vpop.f32.mrb[0].mxu0
      %v1079 = vadd.f32 0.0, %v1078
      %v1080 = vpop.f32.mrb[0].mxu0
      %1081 = vmatprep.mubr.bf16.mxu0 0
      %1082 = vmatmul.mubr.bf16.gmra.mrb[0].mxu0 %v981
      %v1083 = vpop.f32.mrb[0].mxu0
      %v1084 = vadd.f32 0.0, %v1083
      %v1085 = vpop.f32.mrb[0].mxu0
      %v1086 = vpop.f32.mrb[0].mxu0
      %v1087 = vadd.f32 0.0, %v1086
      %v1088 = vpop.f32.mrb[0].mxu0
      %1089 = vmatprep.mubr.bf16.mxu0 0
      %1090 = vmatmul.mubr.bf16.gmra.mrb[0].mxu0 %v984
      %v1091 = vpop.f32.mrb[0].mxu0
      %v1092 = vadd.f32 0.0, %v1091
      %v1093 = vpop.f32.mrb[0].mxu0
      %v1094 = vpop.f32.mrb[0].mxu0
      %v1095 = vadd.f32 0.0, %v1094
      %v1096 = vpop.f32.mrb[0].mxu0
      %1097 = vmatprep.mubr.bf16.mxu0 0
      %1098 = vmatmul.mubr.bf16.gmra.mrb[0].mxu0 %v987
      %v1099 = vpop.f32.mrb[0].mxu0
      %v1100 = vadd.f32 0.0, %v1099
      %v1101 = vpop.f32.mrb[0].mxu0
      %v1102 = vpop.f32.mrb[0].mxu0
      %v1103 = vadd.f32 0.0, %v1102
      %v1104 = vpop.f32.mrb[0].mxu0
      %1105 = vmatprep.mubr.bf16.mxu0 0
      %1106 = vmatmul.mubr.bf16.gmra.mrb[0].mxu0 %v990
      %v1107 = vpop.f32.mrb[0].mxu0
      %v1108 = vadd.f32 0.0, %v1107
      %v1109 = vpop.f32.mrb[0].mxu0
      %v1110 = vpop.f32.mrb[0].mxu0
      %v1111 = vadd.f32 0.0, %v1110
      %v1112 = vpop.f32.mrb[0].mxu0
      %1113 = vmatprep.mubr.bf16.mxu0 0
      %1114 = vmatmul.mubr.bf16.gmra.mrb[0].mxu0 %v993
      %v1115 = vpop.f32.mrb[0].mxu0
      %v1116 = vadd.f32 0.0, %v1115
      %v1117 = vpop.f32.mrb[0].mxu0
      %v1118 = vpop.f32.mrb[0].mxu0
      %v1119 = vadd.f32 0.0, %v1118
      %v1120 = vpop.f32.mrb[0].mxu0
      %1121 = vmatprep.mubr.bf16.mxu0 0
      %1122 = vmatmul.mubr.bf16.gmra.mrb[0].mxu0 %v996
      %v1123 = vpop.f32.mrb[0].mxu0
      %v1124 = vadd.f32 0.0, %v1123
      %v1125 = vpop.f32.mrb[0].mxu0
      %v1126 = vpop.f32.mrb[0].mxu0
      %v1127 = vadd.f32 0.0, %v1126
      %v1128 = vpop.f32.mrb[0].mxu0
      %1129 = vmatprep.mubr.bf16.mxu0 0
      %1130 = vmatmul.mubr.bf16.gmra.mrb[0].mxu0 %v999
      %v1131 = vpop.f32.mrb[0].mxu0
      %v1132 = vadd.f32 0.0, %v1131
      %v1133 = vpop.f32.mrb[0].mxu0
      %v1134 = vpop.f32.mrb[0].mxu0
      %v1135 = vadd.f32 0.0, %v1134
      %v1136 = vpop.f32.mrb[0].mxu0
      %1137 = vmatprep.mubr.bf16.mxu0 0
      %1138 = vmatmul.mubr.bf16.gmra.mrb[0].mxu0 %v1002
      %v1139 = vpop.f32.mrb[0].mxu0
      %v1140 = vadd.f32 0.0, %v1139
      %v1141 = vpop.f32.mrb[0].mxu0
      %v1142 = vpop.f32.mrb[0].mxu0
      %v1143 = vadd.f32 0.0, %v1142
      %v1144 = vpop.f32.mrb[0].mxu0
      %1145 = vmatprep.mubr.bf16.mxu0 0
      %1146 = vmatmul.mubr.bf16.gmra.mrb[0].mxu0 %v1005
      %v1147 = vpop.f32.mrb[0].mxu0
      %v1148 = vadd.f32 0.0, %v1147
      %v1149 = vpop.f32.mrb[0].mxu0
      %v1150 = vpop.f32.mrb[0].mxu0
      %v1151 = vadd.f32 0.0, %v1150
      %v1152 = vpop.f32.mrb[0].mxu0
      %1153 = vmatprep.mubr.bf16.mxu0 0
      %1154 = vmatmul.mubr.bf16.gmra.mrb[0].mxu0 %v1008
      %v1155 = vpop.f32.mrb[0].mxu0
      %v1156 = vadd.f32 0.0, %v1155
      %v1157 = vpop.f32.mrb[0].mxu0
      %v1158 = vpop.f32.mrb[0].mxu0
      %v1159 = vadd.f32 0.0, %v1158
      %v1160 = vpop.f32.mrb[0].mxu0
      %1161 = vmatprep.mubr.bf16.mxu0 0
      %1162 = vmatmul.mubr.bf16.gmra.mrb[0].mxu0 %v1011
      %v1163 = vpop.f32.mrb[0].mxu0
      %v1164 = vadd.f32 0.0, %v1163
      %v1165 = vpop.f32.mrb[0].mxu0
      %v1166 = vpop.f32.mrb[0].mxu0
      %v1167 = vadd.f32 0.0, %v1166
      %v1168 = vpop.f32.mrb[0].mxu0
      %1169 = vmatprep.mubr.bf16.mxu0 0
      %1170 = vmatmul.mubr.bf16.gmra.mrb[0].mxu0 %v1014
      %v1171 = vpop.f32.mrb[0].mxu0
      %v1172 = vadd.f32 0.0, %v1171
      %v1173 = vpop.f32.mrb[0].mxu0
      %v1174 = vpop.f32.mrb[0].mxu0
      %v1175 = vadd.f32 0.0, %v1174
      %v1176 = vpop.f32.mrb[0].mxu0
      %1177 = vmatprep.mubr.bf16.mxu0 0
      %1178 = vmatmul.mubr.bf16.gmra.mrb[0].mxu0 %v1017
      %v1179 = vpop.f32.mrb[0].mxu0
      %v1180 = vadd.f32 0.0, %v1179
      %v1181 = vpop.f32.mrb[0].mxu0
      %v1182 = vpop.f32.mrb[0].mxu0
      %v1183 = vadd.f32 0.0, %v1182
      %v1184 = vpop.f32.mrb[0].mxu0
      %1185 = vmatprep.mubr.bf16.mxu0 0
      %1186 = vmatmul.mubr.bf16.gmra.mrb[0].mxu0 %v1020
      %v1187 = vpop.f32.mrb[0].mxu0
      %v1188 = vadd.f32 0.0, %v1187
      %v1189 = vpop.f32.mrb[0].mxu0
      %v1190 = vpop.f32.mrb[0].mxu0
      %v1191 = vadd.f32 0.0, %v1190
      %v1192 = vpop.f32.mrb[0].mxu0
      %1193 = vmatprep.mubr.bf16.mxu0 0
      %1194 = vmatmul.mubr.bf16.gmra.mrb[0].mxu0 %v1023
      %v1195 = vpop.f32.mrb[0].mxu0
      %v1196 = vadd.f32 0.0, %v1195
      %v1197 = vpop.f32.mrb[0].mxu0
      %v1198 = vpop.f32.mrb[0].mxu0
      %v1199 = vadd.f32 0.0, %v1198
      %v1200 = vpop.f32.mrb[0].mxu0
      %1201 = vdwg.mxu0
      %v1202 = vadd.f32 %v692, %v1060
      %v1203 = vadd.f32 %v693, %v1063
      %v1204 = vadd.f32 %v694, %v1068
      %v1205 = vadd.f32 %v695, %v1071
      %v1206 = vadd.f32 %v696, %v1076
      %v1207 = vadd.f32 %v697, %v1079
      %v1208 = vadd.f32 %v698, %v1084
      %v1209 = vadd.f32 %v699, %v1087
      %v1210 = vadd.f32 %v700, %v1092
      %v1211 = vadd.f32 %v701, %v1095
      %v1212 = vadd.f32 %v702, %v1100
      %v1213 = vadd.f32 %v703, %v1103
      %v1214 = vadd.f32 %v704, %v1108
      %v1215 = vadd.f32 %v705, %v1111
      %v1216 = vadd.f32 %v706, %v1116
      %v1217 = vadd.f32 %v707, %v1119
      %v1218 = vadd.f32 %v708, %v1124
      %v1219 = vadd.f32 %v709, %v1127
      %v1220 = vadd.f32 %v710, %v1132
      %v1221 = vadd.f32 %v711, %v1135
      %v1222 = vadd.f32 %v712, %v1140
      %v1223 = vadd.f32 %v713, %v1143
      %v1224 = vadd.f32 %v714, %v1148
      %v1225 = vadd.f32 %v715, %v1151
      %v1226 = vadd.f32 %v716, %v1156
      %v1227 = vadd.f32 %v717, %v1159
      %v1228 = vadd.f32 %v718, %v1164
      %v1229 = vadd.f32 %v719, %v1167
      %v1230 = vadd.f32 %v720, %v1172
      %v1231 = vadd.f32 %v721, %v1175
      %v1232 = vadd.f32 %v722, %v1180
      %v1233 = vadd.f32 %v723, %v1183
      %v1234 = vadd.f32 %v724, %v1188
      %v1235 = vadd.f32 %v725, %v1191
      %v1236 = vadd.f32 %v726, %v1196
      %v1237 = vadd.f32 %v727, %v1199
      %1238 = vst.msk [vmem:[#allocation2] sm:$0xff] %vm145, %v1202
      %1239 = vst.msk [vmem:[#allocation2 + $0x8] sm:$0xff] %vm145, %v1203
      %1240 = vst.msk [vmem:[#allocation2 + $0x10] sm:$0xff] %vm145, %v1204
      %1241 = vst.msk [vmem:[#allocation2 + $0x18] sm:$0xff] %vm145, %v1205
      %1242 = vst.msk [vmem:[#allocation2 + $0x20] sm:$0xff] %vm145, %v1206
      %1243 = vst.msk [vmem:[#allocation2 + $0x28] sm:$0xff] %vm145, %v1207
      %1244 = vst.msk [vmem:[#allocation2 + $0x30] sm:$0xff] %vm145, %v1208
      %1245 = vst.msk [vmem:[#allocation2 + $0x38] sm:$0xff] %vm145, %v1209
      %1246 = vst.msk [vmem:[#allocation2 + $0x40] sm:$0xff] %vm145, %v1210
      %1247 = vst.msk [vmem:[#allocation2 + $0x48] sm:$0xff] %vm145, %v1211
      %1248 = vst.msk [vmem:[#allocation2 + $0x50] sm:$0xff] %vm145, %v1212
      %1249 = vst.msk [vmem:[#allocation2 + $0x58] sm:$0xff] %vm145, %v1213
      %1250 = vst.msk [vmem:[#allocation2 + $0x60] sm:$0xff] %vm145, %v1214
      %1251 = vst.msk [vmem:[#allocation2 + $0x68] sm:$0xff] %vm145, %v1215
      %1252 = vst.msk [vmem:[#allocation2 + $0x70] sm:$0xff] %vm145, %v1216
      %1253 = vst.msk [vmem:[#allocation2 + $0x78] sm:$0xff] %vm145, %v1217
      %1254 = vst.msk [vmem:[#allocation2 + $0x80] sm:$0xff] %vm145, %v1218
      %1255 = vst.msk [vmem:[#allocation2 + $0x88] sm:$0xff] %vm145, %v1219
      %1256 = vst.msk [vmem:[#allocation2 + $0x90] sm:$0xff] %vm145, %v1220
      %1257 = vst.msk [vmem:[#allocation2 + $0x98] sm:$0xff] %vm145, %v1221
      %1258 = vst.msk [vmem:[#allocation2 + $0xa0] sm:$0xff] %vm145, %v1222
      %1259 = vst.msk [vmem:[#allocation2 + $0xa8] sm:$0xff] %vm145, %v1223
      %1260 = vst.msk [vmem:[#allocation2 + $0xb0] sm:$0xff] %vm145, %v1224
      %1261 = vst.msk [vmem:[#allocation2 + $0xb8] sm:$0xff] %vm145, %v1225
      %1262 = vst.msk [vmem:[#allocation2 + $0xc0] sm:$0xff] %vm145, %v1226
      %1263 = vst.msk [vmem:[#allocation2 + $0xc8] sm:$0xff] %vm145, %v1227
      %1264 = vst.msk [vmem:[#allocation2 + $0xd0] sm:$0xff] %vm145, %v1228
      %1265 = vst.msk [vmem:[#allocation2 + $0xd8] sm:$0xff] %vm145, %v1229
      %1266 = vst.msk [vmem:[#allocation2 + $0xe0] sm:$0xff] %vm145, %v1230
      %1267 = vst.msk [vmem:[#allocation2 + $0xe8] sm:$0xff] %vm145, %v1231
      %1268 = vst.msk [vmem:[#allocation2 + $0xf0] sm:$0xff] %vm145, %v1232
      %1269 = vst.msk [vmem:[#allocation2 + $0xf8] sm:$0xff] %vm145, %v1233
      %1270 = vst.msk [vmem:[#allocation2 + $0x100] sm:$0xff] %vm145, %v1234
      %1271 = vst.msk [vmem:[#allocation2 + $0x108] sm:$0xff] %vm145, %v1235
      %1272 = vst.msk [vmem:[#allocation2 + $0x110] sm:$0xff] %vm145, %v1236
      %1273 = vst.msk [vmem:[#allocation2 + $0x118] sm:$0x3f] %vm181, %v1237
      %v1274 = vld [vmem:[%s138] sm:$0xe]
      %v1275 = vld [vmem:[%s138 + $0x4] sm:$0xf]
      %v1276 = vld [vmem:[%s138 + $0x8] sm:$0xf]
      %v1277 = vld [vmem:[%s138 + $0xc] sm:$0xf]
      %v1278 = vld [vmem:[%s138 + $0x10] sm:$0xf]
      %v1279 = vld [vmem:[%s138 + $0x14] sm:$0xf]
      %v1280 = vld [vmem:[%s138 + $0x18] sm:$0xf]
      %v1281 = vld [vmem:[%s138 + $0x1c] sm:$0xf]
      %v1282 = vld [vmem:[%s138 + $0x20] sm:$0xf]
      %v1283 = vld [vmem:[%s138 + $0x24] sm:$0xf]
      %v1284 = vld [vmem:[%s138 + $0x28] sm:$0xf]
      %v1285 = vld [vmem:[%s138 + $0x2c] sm:$0xf]
      %v1286 = vld [vmem:[%s138 + $0x30] sm:$0xf]
      %v1287 = vld [vmem:[%s138 + $0x34] sm:$0xf]
      %v1288 = vld [vmem:[%s138 + $0x38] sm:$0xf]
      %v1289 = vld [vmem:[%s138 + $0x3c] sm:$0xf]
      %v1290 = vld [vmem:[%s138 + $0x40] sm:$0xf]
      %v1291 = vld [vmem:[%s138 + $0x44] sm:$0xf]
      %v1292 = vld [vmem:[%s138 + $0x48] sm:$0xf]
      %v1293 = vld [vmem:[%s138 + $0x4c] sm:$0xf]
      %v1294 = vld [vmem:[%s138 + $0x50] sm:$0xf]
      %v1295 = vld [vmem:[%s138 + $0x54] sm:$0xf]
      %v1296 = vld [vmem:[%s138 + $0x58] sm:$0xf]
      %v1297 = vld [vmem:[%s138 + $0x5c] sm:$0xf]
      %v1298 = vld [vmem:[%s138 + $0x60] sm:$0xf]
      %v1299 = vld [vmem:[%s138 + $0x64] sm:$0xf]
      %v1300 = vld [vmem:[%s138 + $0x68] sm:$0xf]
      %v1301 = vld [vmem:[%s138 + $0x6c] sm:$0xf]
      %v1302 = vld [vmem:[%s138 + $0x70] sm:$0xf]
      %v1303 = vld [vmem:[%s138 + $0x74] sm:$0xf]
      %v1304 = vld [vmem:[%s138 + $0x78] sm:$0xf]
      %v1305 = vld [vmem:[%s138 + $0x7c] sm:$0xf]
      %v1306 = vld [vmem:[%s138 + $0x80] sm:$0xf]
      %v1307 = vld [vmem:[%s138 + $0x84] sm:$0xf]
      %v1308 = vld [vmem:[%s138 + $0x88] sm:$0xf]
      %v1309 = vld [vmem:[%s138 + $0x8c] sm:$0xf]
      %v1310 = vld [vmem:[#allocation2] sm:$0xff]
      %v1311 = vld [vmem:[#allocation2 + $0x8] sm:$0xff]
      %v1312 = vld [vmem:[#allocation2 + $0x10] sm:$0xff]
      %v1313 = vld [vmem:[#allocation2 + $0x18] sm:$0xff]
      %v1314 = vld [vmem:[#allocation2 + $0x20] sm:$0xff]
      %v1315 = vld [vmem:[#allocation2 + $0x28] sm:$0xff]
      %v1316 = vld [vmem:[#allocation2 + $0x30] sm:$0xff]
      %v1317 = vld [vmem:[#allocation2 + $0x38] sm:$0xff]
      %v1318 = vld [vmem:[#allocation2 + $0x40] sm:$0xff]
      %v1319 = vld [vmem:[#allocation2 + $0x48] sm:$0xff]
      %v1320 = vld [vmem:[#allocation2 + $0x50] sm:$0xff]
      %v1321 = vld [vmem:[#allocation2 + $0x58] sm:$0xff]
      %v1322 = vld [vmem:[#allocation2 + $0x60] sm:$0xff]
      %v1323 = vld [vmem:[#allocation2 + $0x68] sm:$0xff]
      %v1324 = vld [vmem:[#allocation2 + $0x70] sm:$0xff]
      %v1325 = vld [vmem:[#allocation2 + $0x78] sm:$0xff]
      %v1326 = vld [vmem:[#allocation2 + $0x80] sm:$0xff]
      %v1327 = vld [vmem:[#allocation2 + $0x88] sm:$0xff]
      %v1328 = vld [vmem:[#allocation2 + $0x90] sm:$0xff]
      %v1329 = vld [vmem:[#allocation2 + $0x98] sm:$0xff]
      %v1330 = vld [vmem:[#allocation2 + $0xa0] sm:$0xff]
      %v1331 = vld [vmem:[#allocation2 + $0xa8] sm:$0xff]
      %v1332 = vld [vmem:[#allocation2 + $0xb0] sm:$0xff]
      %v1333 = vld [vmem:[#allocation2 + $0xb8] sm:$0xff]
      %v1334 = vld [vmem:[#allocation2 + $0xc0] sm:$0xff]
      %v1335 = vld [vmem:[#allocation2 + $0xc8] sm:$0xff]
      %v1336 = vld [vmem:[#allocation2 + $0xd0] sm:$0xff]
      %v1337 = vld [vmem:[#allocation2 + $0xd8] sm:$0xff]
      %v1338 = vld [vmem:[#allocation2 + $0xe0] sm:$0xff]
      %v1339 = vld [vmem:[#allocation2 + $0xe8] sm:$0xff]
      %v1340 = vld [vmem:[#allocation2 + $0xf0] sm:$0xff]
      %v1341 = vld [vmem:[#allocation2 + $0xf8] sm:$0xff]
      %v1342 = vld [vmem:[#allocation2 + $0x100] sm:$0xff]
      %v1343 = vld [vmem:[#allocation2 + $0x108] sm:$0xff]
      %v1344 = vld [vmem:[#allocation2 + $0x110] sm:$0xff]
      %v1345 = vld [vmem:[#allocation2 + $0x118] sm:$0x3f]
      %s1346 = scalar_lea.vmem %s1, 16
      %v1347 = vld [vmem:[%s1346] sm:$0xf]
      %v1348 = vld [vmem:[%s1346 + $0x4] sm:$0xf]
      %v1385 = vunpack.c.l.b16 %v1274
      %v1386 = vunpack.c.l.b16 %v1275
      %v1387 = vunpack.c.l.b16 %v1276
      %v1388 = vunpack.c.l.b16 %v1277
      %v1389 = vunpack.c.l.b16 %v1278
      %v1390 = vunpack.c.l.b16 %v1279
      %v1391 = vunpack.c.l.b16 %v1280
      %v1392 = vunpack.c.l.b16 %v1281
      %v1393 = vunpack.c.l.b16 %v1282
      %v1394 = vunpack.c.l.b16 %v1283
      %v1395 = vunpack.c.l.b16 %v1284
      %v1396 = vunpack.c.l.b16 %v1285
      %v1397 = vunpack.c.l.b16 %v1286
      %v1398 = vunpack.c.l.b16 %v1287
      %v1399 = vunpack.c.l.b16 %v1288
      %v1400 = vunpack.c.l.b16 %v1289
      %v1401 = vunpack.c.l.b16 %v1290
      %v1402 = vunpack.c.l.b16 %v1291
      %v1403 = vunpack.c.l.b16 %v1292
      %v1404 = vunpack.c.l.b16 %v1293
      %v1405 = vunpack.c.l.b16 %v1294
      %v1406 = vunpack.c.l.b16 %v1295
      %v1407 = vunpack.c.l.b16 %v1296
      %v1408 = vunpack.c.l.b16 %v1297
      %v1409 = vunpack.c.l.b16 %v1298
      %v1410 = vunpack.c.l.b16 %v1299
      %v1411 = vunpack.c.l.b16 %v1300
      %v1412 = vunpack.c.l.b16 %v1301
      %v1413 = vunpack.c.l.b16 %v1302
      %v1414 = vunpack.c.l.b16 %v1303
      %v1415 = vunpack.c.l.b16 %v1304
      %v1416 = vunpack.c.l.b16 %v1305
      %v1417 = vunpack.c.l.b16 %v1306
      %v1418 = vunpack.c.l.b16 %v1307
      %v1419 = vunpack.c.l.b16 %v1308
      %v1420 = vunpack.c.l.b16 %v1309
      %v1421 = vpack.c.b16 %v1386, %v1385
      %v1422 = vpack.c.b16 %v1388, %v1387
      %v1423 = vpack.c.b16 %v1390, %v1389
      %v1424 = vpack.c.b16 %v1392, %v1391
      %v1425 = vpack.c.b16 %v1394, %v1393
      %v1426 = vpack.c.b16 %v1396, %v1395
      %v1427 = vpack.c.b16 %v1398, %v1397
      %v1428 = vpack.c.b16 %v1400, %v1399
      %v1429 = vpack.c.b16 %v1402, %v1401
      %v1430 = vpack.c.b16 %v1404, %v1403
      %v1431 = vpack.c.b16 %v1406, %v1405
      %v1432 = vpack.c.b16 %v1408, %v1407
      %v1433 = vpack.c.b16 %v1410, %v1409
      %v1434 = vpack.c.b16 %v1412, %v1411
      %v1435 = vpack.c.b16 %v1414, %v1413
      %v1436 = vpack.c.b16 %v1416, %v1415
      %v1437 = vpack.c.b16 %v1418, %v1417
      %v1438 = vpack.c.b16 %v1420, %v1419
      %vm1439 = vcmask 1046528
      %v1440 = vrot.slane %v1421, 1
      %v1441 = vrot.slane %v1422, 1
      %v1442 = vsel %vm1439, %v1440, %v1441
      %v1443 = vrot.slane %v1423, 1
      %v1444 = vsel %vm1439, %v1441, %v1443
      %v1445 = vrot.slane %v1424, 1
      %v1446 = vsel %vm1439, %v1443, %v1445
      %v1447 = vrot.slane %v1425, 1
      %v1448 = vsel %vm1439, %v1445, %v1447
      %v1449 = vrot.slane %v1426, 1
      %v1450 = vsel %vm1439, %v1447, %v1449
      %v1451 = vrot.slane %v1427, 1
      %v1452 = vsel %vm1439, %v1449, %v1451
      %v1453 = vrot.slane %v1428, 1
      %v1454 = vsel %vm1439, %v1451, %v1453
      %v1455 = vrot.slane %v1429, 1
      %v1456 = vsel %vm1439, %v1453, %v1455
      %v1457 = vrot.slane %v1430, 1
      %v1458 = vsel %vm1439, %v1455, %v1457
      %v1459 = vrot.slane %v1431, 1
      %v1460 = vsel %vm1439, %v1457, %v1459
      %v1461 = vrot.slane %v1432, 1
      %v1462 = vsel %vm1439, %v1459, %v1461
      %v1463 = vrot.slane %v1433, 1
      %v1464 = vsel %vm1439, %v1461, %v1463
      %v1465 = vrot.slane %v1434, 1
      %v1466 = vsel %vm1439, %v1463, %v1465
      %v1467 = vrot.slane %v1435, 1
      %v1468 = vsel %vm1439, %v1465, %v1467
      %v1469 = vrot.slane %v1436, 1
      %v1470 = vsel %vm1439, %v1467, %v1469
      %v1471 = vrot.slane %v1437, 1
      %v1472 = vsel %vm1439, %v1469, %v1471
      %v1473 = vrot.slane %v1438, 1
      %v1474 = vsel %vm1439, %v1471, %v1473
      %v1477 = vunpack.c.l.b16 %v1347
      %v1478 = vunpack.c.l.b16 %v1348
      %v1479 = vpack.c.b16 %v1478, %v1477
      %v1482 = vsel %vm145, %v1442, 0
      %v1485 = vsel %vm145, %v1444, 0
      %v1488 = vsel %vm145, %v1446, 0
      %v1491 = vsel %vm145, %v1448, 0
      %v1494 = vsel %vm145, %v1450, 0
      %v1497 = vsel %vm145, %v1452, 0
      %v1500 = vsel %vm145, %v1454, 0
      %v1503 = vsel %vm145, %v1456, 0
      %v1506 = vsel %vm145, %v1458, 0
      %v1509 = vsel %vm145, %v1460, 0
      %v1512 = vsel %vm145, %v1462, 0
      %v1515 = vsel %vm145, %v1464, 0
      %v1518 = vsel %vm145, %v1466, 0
      %v1521 = vsel %vm145, %v1468, 0
      %v1524 = vsel %vm145, %v1470, 0
      %v1527 = vsel %vm145, %v1472, 0
      %v1530 = vsel %vm145, %v1474, 0
      %v1533 = vsel %vm145, %v1473, 0
      %1535 = vmatprep.subr.bf16.mxu0 0
      %1536 = vmatpush1.bf16.msra.mxu0 %v1479
      %1537 = vmatprep.subr.bf16.mxu0 0
      %1538 = vmatpush1.bf16.msra.mxu0 0
      %1539 = vmatprep.subr.bf16.mxu0 0
      %1540 = vmatpush1.bf16.msra.mxu0 0
      %1541 = vmatprep.subr.bf16.mxu0 0
      %1542 = vmatpush1.bf16.msra.mxu0 0
      %1543 = vmatprep.subr.bf16.mxu0 0
      %1544 = vmatpush1.bf16.msra.mxu0 0
      %1545 = vmatprep.subr.bf16.mxu0 0
      %1546 = vmatpush1.bf16.msra.mxu0 0
      %1547 = vmatprep.subr.bf16.mxu0 0
      %1548 = vmatpush1.bf16.msra.mxu0 0
      %1549 = vmatprep.subr.bf16.mxu0 0
      %1550 = vmatpush1.bf16.msra.mxu0 0
      %1551 = vmatprep.subr.bf16.mxu0 0
      %1552 = vmatpush1.bf16.msra.mxu0 0
      %1553 = vmatprep.subr.bf16.mxu0 0
      %1554 = vmatpush1.bf16.msra.mxu0 0
      %1555 = vmatprep.subr.bf16.mxu0 0
      %1556 = vmatpush1.bf16.msra.mxu0 0
      %1557 = vmatprep.subr.bf16.mxu0 0
      %1558 = vmatpush1.bf16.msra.mxu0 0
      %1559 = vmatprep.subr.bf16.mxu0 0
      %1560 = vmatpush1.bf16.msra.mxu0 0
      %1561 = vmatprep.subr.bf16.mxu0 0
      %1562 = vmatpush1.bf16.msra.mxu0 0
      %1563 = vmatprep.subr.bf16.mxu0 0
      %1564 = vmatpush1.bf16.msra.mxu0 0
      %1565 = vmatprep.subr.bf16.mxu0 0
      %1566 = vmatpush1.bf16.msra.mxu0 0
      %1567 = vmatprep.mubr.bf16.mxu0 0
      %1568 = vmatmul.mubr.bf16.gmra.mrb[0].mxu0 %v1482
      %v1569 = vpop.f32.mrb[0].mxu0
      %v1570 = vadd.f32 0.0, %v1569
      %v1571 = vpop.f32.mrb[0].mxu0
      %v1572 = vpop.f32.mrb[0].mxu0
      %v1573 = vadd.f32 0.0, %v1572
      %v1574 = vpop.f32.mrb[0].mxu0
      %1575 = vmatprep.mubr.bf16.mxu0 0
      %1576 = vmatmul.mubr.bf16.gmra.mrb[0].mxu0 %v1485
      %v1577 = vpop.f32.mrb[0].mxu0
      %v1578 = vadd.f32 0.0, %v1577
      %v1579 = vpop.f32.mrb[0].mxu0
      %v1580 = vpop.f32.mrb[0].mxu0
      %v1581 = vadd.f32 0.0, %v1580
      %v1582 = vpop.f32.mrb[0].mxu0
      %1583 = vmatprep.mubr.bf16.mxu0 0
      %1584 = vmatmul.mubr.bf16.gmra.mrb[0].mxu0 %v1488
      %v1585 = vpop.f32.mrb[0].mxu0
      %v1586 = vadd.f32 0.0, %v1585
      %v1587 = vpop.f32.mrb[0].mxu0
      %v1588 = vpop.f32.mrb[0].mxu0
      %v1589 = vadd.f32 0.0, %v1588
      %v1590 = vpop.f32.mrb[0].mxu0
      %1591 = vmatprep.mubr.bf16.mxu0 0
      %1592 = vmatmul.mubr.bf16.gmra.mrb[0].mxu0 %v1491
      %v1593 = vpop.f32.mrb[0].mxu0
      %v1594 = vadd.f32 0.0, %v1593
      %v1595 = vpop.f32.mrb[0].mxu0
      %v1596 = vpop.f32.mrb[0].mxu0
      %v1597 = vadd.f32 0.0, %v1596
      %v1598 = vpop.f32.mrb[0].mxu0
      %1599 = vmatprep.mubr.bf16.mxu0 0
      %1600 = vmatmul.mubr.bf16.gmra.mrb[0].mxu0 %v1494
      %v1601 = vpop.f32.mrb[0].mxu0
      %v1602 = vadd.f32 0.0, %v1601
      %v1603 = vpop.f32.mrb[0].mxu0
      %v1604 = vpop.f32.mrb[0].mxu0
      %v1605 = vadd.f32 0.0, %v1604
      %v1606 = vpop.f32.mrb[0].mxu0
      %1607 = vmatprep.mubr.bf16.mxu0 0
      %1608 = vmatmul.mubr.bf16.gmra.mrb[0].mxu0 %v1497
      %v1609 = vpop.f32.mrb[0].mxu0
      %v1610 = vadd.f32 0.0, %v1609
      %v1611 = vpop.f32.mrb[0].mxu0
      %v1612 = vpop.f32.mrb[0].mxu0
      %v1613 = vadd.f32 0.0, %v1612
      %v1614 = vpop.f32.mrb[0].mxu0
      %1615 = vmatprep.mubr.bf16.mxu0 0
      %1616 = vmatmul.mubr.bf16.gmra.mrb[0].mxu0 %v1500
      %v1617 = vpop.f32.mrb[0].mxu0
      %v1618 = vadd.f32 0.0, %v1617
      %v1619 = vpop.f32.mrb[0].mxu0
      %v1620 = vpop.f32.mrb[0].mxu0
      %v1621 = vadd.f32 0.0, %v1620
      %v1622 = vpop.f32.mrb[0].mxu0
      %1623 = vmatprep.mubr.bf16.mxu0 0
      %1624 = vmatmul.mubr.bf16.gmra.mrb[0].mxu0 %v1503
      %v1625 = vpop.f32.mrb[0].mxu0
      %v1626 = vadd.f32 0.0, %v1625
      %v1627 = vpop.f32.mrb[0].mxu0
      %v1628 = vpop.f32.mrb[0].mxu0
      %v1629 = vadd.f32 0.0, %v1628
      %v1630 = vpop.f32.mrb[0].mxu0
      %1631 = vmatprep.mubr.bf16.mxu0 0
      %1632 = vmatmul.mubr.bf16.gmra.mrb[0].mxu0 %v1506
      %v1633 = vpop.f32.mrb[0].mxu0
      %v1634 = vadd.f32 0.0, %v1633
      %v1635 = vpop.f32.mrb[0].mxu0
      %v1636 = vpop.f32.mrb[0].mxu0
      %v1637 = vadd.f32 0.0, %v1636
      %v1638 = vpop.f32.mrb[0].mxu0
      %1639 = vmatprep.mubr.bf16.mxu0 0
      %1640 = vmatmul.mubr.bf16.gmra.mrb[0].mxu0 %v1509
      %v1641 = vpop.f32.mrb[0].mxu0
      %v1642 = vadd.f32 0.0, %v1641
      %v1643 = vpop.f32.mrb[0].mxu0
      %v1644 = vpop.f32.mrb[0].mxu0
      %v1645 = vadd.f32 0.0, %v1644
      %v1646 = vpop.f32.mrb[0].mxu0
      %1647 = vmatprep.mubr.bf16.mxu0 0
      %1648 = vmatmul.mubr.bf16.gmra.mrb[0].mxu0 %v1512
      %v1649 = vpop.f32.mrb[0].mxu0
      %v1650 = vadd.f32 0.0, %v1649
      %v1651 = vpop.f32.mrb[0].mxu0
      %v1652 = vpop.f32.mrb[0].mxu0
      %v1653 = vadd.f32 0.0, %v1652
      %v1654 = vpop.f32.mrb[0].mxu0
      %1655 = vmatprep.mubr.bf16.mxu0 0
      %1656 = vmatmul.mubr.bf16.gmra.mrb[0].mxu0 %v1515
      %v1657 = vpop.f32.mrb[0].mxu0
      %v1658 = vadd.f32 0.0, %v1657
      %v1659 = vpop.f32.mrb[0].mxu0
      %v1660 = vpop.f32.mrb[0].mxu0
      %v1661 = vadd.f32 0.0, %v1660
      %v1662 = vpop.f32.mrb[0].mxu0
      %1663 = vmatprep.mubr.bf16.mxu0 0
      %1664 = vmatmul.mubr.bf16.gmra.mrb[0].mxu0 %v1518
      %v1665 = vpop.f32.mrb[0].mxu0
      %v1666 = vadd.f32 0.0, %v1665
      %v1667 = vpop.f32.mrb[0].mxu0
      %v1668 = vpop.f32.mrb[0].mxu0
      %v1669 = vadd.f32 0.0, %v1668
      %v1670 = vpop.f32.mrb[0].mxu0
      %1671 = vmatprep.mubr.bf16.mxu0 0
      %1672 = vmatmul.mubr.bf16.gmra.mrb[0].mxu0 %v1521
      %v1673 = vpop.f32.mrb[0].mxu0
      %v1674 = vadd.f32 0.0, %v1673
      %v1675 = vpop.f32.mrb[0].mxu0
      %v1676 = vpop.f32.mrb[0].mxu0
      %v1677 = vadd.f32 0.0, %v1676
      %v1678 = vpop.f32.mrb[0].mxu0
      %1679 = vmatprep.mubr.bf16.mxu0 0
      %1680 = vmatmul.mubr.bf16.gmra.mrb[0].mxu0 %v1524
      %v1681 = vpop.f32.mrb[0].mxu0
      %v1682 = vadd.f32 0.0, %v1681
      %v1683 = vpop.f32.mrb[0].mxu0
      %v1684 = vpop.f32.mrb[0].mxu0
      %v1685 = vadd.f32 0.0, %v1684
      %v1686 = vpop.f32.mrb[0].mxu0
      %1687 = vmatprep.mubr.bf16.mxu0 0
      %1688 = vmatmul.mubr.bf16.gmra.mrb[0].mxu0 %v1527
      %v1689 = vpop.f32.mrb[0].mxu0
      %v1690 = vadd.f32 0.0, %v1689
      %v1691 = vpop.f32.mrb[0].mxu0
      %v1692 = vpop.f32.mrb[0].mxu0
      %v1693 = vadd.f32 0.0, %v1692
      %v1694 = vpop.f32.mrb[0].mxu0
      %1695 = vmatprep.mubr.bf16.mxu0 0
      %1696 = vmatmul.mubr.bf16.gmra.mrb[0].mxu0 %v1530
      %v1697 = vpop.f32.mrb[0].mxu0
      %v1698 = vadd.f32 0.0, %v1697
      %v1699 = vpop.f32.mrb[0].mxu0
      %v1700 = vpop.f32.mrb[0].mxu0
      %v1701 = vadd.f32 0.0, %v1700
      %v1702 = vpop.f32.mrb[0].mxu0
      %1703 = vmatprep.mubr.bf16.mxu0 0
      %1704 = vmatmul.mubr.bf16.gmra.mrb[0].mxu0 %v1533
      %v1705 = vpop.f32.mrb[0].mxu0
      %v1706 = vadd.f32 0.0, %v1705
      %v1707 = vpop.f32.mrb[0].mxu0
      %v1708 = vpop.f32.mrb[0].mxu0
      %v1709 = vadd.f32 0.0, %v1708
      %v1710 = vpop.f32.mrb[0].mxu0
      %1711 = vdwg.mxu0
      %v1712 = vadd.f32 %v1310, %v1570
      %v1713 = vadd.f32 %v1311, %v1573
      %v1714 = vadd.f32 %v1312, %v1578
      %v1715 = vadd.f32 %v1313, %v1581
      %v1716 = vadd.f32 %v1314, %v1586
      %v1717 = vadd.f32 %v1315, %v1589
      %v1718 = vadd.f32 %v1316, %v1594
      %v1719 = vadd.f32 %v1317, %v1597
      %v1720 = vadd.f32 %v1318, %v1602
      %v1721 = vadd.f32 %v1319, %v1605
      %v1722 = vadd.f32 %v1320, %v1610
      %v1723 = vadd.f32 %v1321, %v1613
      %v1724 = vadd.f32 %v1322, %v1618
      %v1725 = vadd.f32 %v1323, %v1621
      %v1726 = vadd.f32 %v1324, %v1626
      %v1727 = vadd.f32 %v1325, %v1629
      %v1728 = vadd.f32 %v1326, %v1634
      %v1729 = vadd.f32 %v1327, %v1637
      %v1730 = vadd.f32 %v1328, %v1642
      %v1731 = vadd.f32 %v1329, %v1645
      %v1732 = vadd.f32 %v1330, %v1650
      %v1733 = vadd.f32 %v1331, %v1653
      %v1734 = vadd.f32 %v1332, %v1658
      %v1735 = vadd.f32 %v1333, %v1661
      %v1736 = vadd.f32 %v1334, %v1666
      %v1737 = vadd.f32 %v1335, %v1669
      %v1738 = vadd.f32 %v1336, %v1674
      %v1739 = vadd.f32 %v1337, %v1677
      %v1740 = vadd.f32 %v1338, %v1682
      %v1741 = vadd.f32 %v1339, %v1685
      %v1742 = vadd.f32 %v1340, %v1690
      %v1743 = vadd.f32 %v1341, %v1693
      %v1744 = vadd.f32 %v1342, %v1698
      %v1745 = vadd.f32 %v1343, %v1701
      %v1746 = vadd.f32 %v1344, %v1706
      %v1747 = vadd.f32 %v1345, %v1709
      %1748 = vst.msk [vmem:[#allocation2] sm:$0xff] %vm145, %v1712
      %1749 = vst.msk [vmem:[#allocation2 + $0x8] sm:$0xff] %vm145, %v1713
      %1750 = vst.msk [vmem:[#allocation2 + $0x10] sm:$0xff] %vm145, %v1714
      %1751 = vst.msk [vmem:[#allocation2 + $0x18] sm:$0xff] %vm145, %v1715
      %1752 = vst.msk [vmem:[#allocation2 + $0x20] sm:$0xff] %vm145, %v1716
      %1753 = vst.msk [vmem:[#allocation2 + $0x28] sm:$0xff] %vm145, %v1717
      %1754 = vst.msk [vmem:[#allocation2 + $0x30] sm:$0xff] %vm145, %v1718
      %1755 = vst.msk [vmem:[#allocation2 + $0x38] sm:$0xff] %vm145, %v1719
      %1756 = vst.msk [vmem:[#allocation2 + $0x40] sm:$0xff] %vm145, %v1720
      %1757 = vst.msk [vmem:[#allocation2 + $0x48] sm:$0xff] %vm145, %v1721
      %1758 = vst.msk [vmem:[#allocation2 + $0x50] sm:$0xff] %vm145, %v1722
      %1759 = vst.msk [vmem:[#allocation2 + $0x58] sm:$0xff] %vm145, %v1723
      %1760 = vst.msk [vmem:[#allocation2 + $0x60] sm:$0xff] %vm145, %v1724
      %1761 = vst.msk [vmem:[#allocation2 + $0x68] sm:$0xff] %vm145, %v1725
      %1762 = vst.msk [vmem:[#allocation2 + $0x70] sm:$0xff] %vm145, %v1726
      %1763 = vst.msk [vmem:[#allocation2 + $0x78] sm:$0xff] %vm145, %v1727
      %1764 = vst.msk [vmem:[#allocation2 + $0x80] sm:$0xff] %vm145, %v1728
      %1765 = vst.msk [vmem:[#allocation2 + $0x88] sm:$0xff] %vm145, %v1729
      %1766 = vst.msk [vmem:[#allocation2 + $0x90] sm:$0xff] %vm145, %v1730
      %1767 = vst.msk [vmem:[#allocation2 + $0x98] sm:$0xff] %vm145, %v1731
      %1768 = vst.msk [vmem:[#allocation2 + $0xa0] sm:$0xff] %vm145, %v1732
      %1769 = vst.msk [vmem:[#allocation2 + $0xa8] sm:$0xff] %vm145, %v1733
      %1770 = vst.msk [vmem:[#allocation2 + $0xb0] sm:$0xff] %vm145, %v1734
      %1771 = vst.msk [vmem:[#allocation2 + $0xb8] sm:$0xff] %vm145, %v1735
      %1772 = vst.msk [vmem:[#allocation2 + $0xc0] sm:$0xff] %vm145, %v1736
      %1773 = vst.msk [vmem:[#allocation2 + $0xc8] sm:$0xff] %vm145, %v1737
      %1774 = vst.msk [vmem:[#allocation2 + $0xd0] sm:$0xff] %vm145, %v1738
      %1775 = vst.msk [vmem:[#allocation2 + $0xd8] sm:$0xff] %vm145, %v1739
      %1776 = vst.msk [vmem:[#allocation2 + $0xe0] sm:$0xff] %vm145, %v1740
      %1777 = vst.msk [vmem:[#allocation2 + $0xe8] sm:$0xff] %vm145, %v1741
      %1778 = vst.msk [vmem:[#allocation2 + $0xf0] sm:$0xff] %vm145, %v1742
      %1779 = vst.msk [vmem:[#allocation2 + $0xf8] sm:$0xff] %vm145, %v1743
      %1780 = vst.msk [vmem:[#allocation2 + $0x100] sm:$0xff] %vm145, %v1744
      %1781 = vst.msk [vmem:[#allocation2 + $0x108] sm:$0xff] %vm145, %v1745
      %1782 = vst.msk [vmem:[#allocation2 + $0x110] sm:$0xff] %vm145, %v1746
      %1783 = vst.msk [vmem:[#allocation2 + $0x118] sm:$0x3f] %vm181, %v1747
      %v1784 = vld [vmem:[%s138 + $0x8] sm:$0xe]
      %v1785 = vld [vmem:[%s138 + $0xc] sm:$0xf]
      %v1786 = vld [vmem:[%s138 + $0x10] sm:$0xf]
      %v1787 = vld [vmem:[%s138 + $0x14] sm:$0xf]
      %v1788 = vld [vmem:[%s138 + $0x18] sm:$0xf]
      %v1789 = vld [vmem:[%s138 + $0x1c] sm:$0xf]
      %v1790 = vld [vmem:[%s138 + $0x20] sm:$0xf]
      %v1791 = vld [vmem:[%s138 + $0x24] sm:$0xf]
      %v1792 = vld [vmem:[%s138 + $0x28] sm:$0xf]
      %v1793 = vld [vmem:[%s138 + $0x2c] sm:$0xf]
      %v1794 = vld [vmem:[%s138 + $0x30] sm:$0xf]
      %v1795 = vld [vmem:[%s138 + $0x34] sm:$0xf]
      %v1796 = vld [vmem:[%s138 + $0x38] sm:$0xf]
      %v1797 = vld [vmem:[%s138 + $0x3c] sm:$0xf]
      %v1798 = vld [vmem:[%s138 + $0x40] sm:$0xf]
      %v1799 = vld [vmem:[%s138 + $0x44] sm:$0xf]
      %v1800 = vld [vmem:[%s138 + $0x48] sm:$0xf]
      %v1801 = vld [vmem:[%s138 + $0x4c] sm:$0xf]
      %v1802 = vld [vmem:[%s138 + $0x50] sm:$0xf]
      %v1803 = vld [vmem:[%s138 + $0x54] sm:$0xf]
      %v1804 = vld [vmem:[%s138 + $0x58] sm:$0xf]
      %v1805 = vld [vmem:[%s138 + $0x5c] sm:$0xf]
      %v1806 = vld [vmem:[%s138 + $0x60] sm:$0xf]
      %v1807 = vld [vmem:[%s138 + $0x64] sm:$0xf]
      %v1808 = vld [vmem:[%s138 + $0x68] sm:$0xf]
      %v1809 = vld [vmem:[%s138 + $0x6c] sm:$0xf]
      %v1810 = vld [vmem:[%s138 + $0x70] sm:$0xf]
      %v1811 = vld [vmem:[%s138 + $0x74] sm:$0xf]
      %v1812 = vld [vmem:[%s138 + $0x78] sm:$0xf]
      %v1813 = vld [vmem:[%s138 + $0x7c] sm:$0xf]
      %v1814 = vld [vmem:[%s138 + $0x80] sm:$0xf]
      %v1815 = vld [vmem:[%s138 + $0x84] sm:$0xf]
      %v1816 = vld [vmem:[%s138 + $0x88] sm:$0xf]
      %v1817 = vld [vmem:[%s138 + $0x8c] sm:$0xf]
      %v1818 = vld [vmem:[%s138 + $0x90] sm:$0xf]
      %v1819 = vld [vmem:[%s138 + $0x94] sm:$0xf]
      %v1820 = vld [vmem:[#allocation2] sm:$0xff]
      %v1821 = vld [vmem:[#allocation2 + $0x8] sm:$0xff]
      %v1822 = vld [vmem:[#allocation2 + $0x10] sm:$0xff]
      %v1823 = vld [vmem:[#allocation2 + $0x18] sm:$0xff]
      %v1824 = vld [vmem:[#allocation2 + $0x20] sm:$0xff]
      %v1825 = vld [vmem:[#allocation2 + $0x28] sm:$0xff]
      %v1826 = vld [vmem:[#allocation2 + $0x30] sm:$0xff]
      %v1827 = vld [vmem:[#allocation2 + $0x38] sm:$0xff]
      %v1828 = vld [vmem:[#allocation2 + $0x40] sm:$0xff]
      %v1829 = vld [vmem:[#allocation2 + $0x48] sm:$0xff]
      %v1830 = vld [vmem:[#allocation2 + $0x50] sm:$0xff]
      %v1831 = vld [vmem:[#allocation2 + $0x58] sm:$0xff]
      %v1832 = vld [vmem:[#allocation2 + $0x60] sm:$0xff]
      %v1833 = vld [vmem:[#allocation2 + $0x68] sm:$0xff]
      %v1834 = vld [vmem:[#allocation2 + $0x70] sm:$0xff]
      %v1835 = vld [vmem:[#allocation2 + $0x78] sm:$0xff]
      %v1836 = vld [vmem:[#allocation2 + $0x80] sm:$0xff]
      %v1837 = vld [vmem:[#allocation2 + $0x88] sm:$0xff]
      %v1838 = vld [vmem:[#allocation2 + $0x90] sm:$0xff]
      %v1839 = vld [vmem:[#allocation2 + $0x98] sm:$0xff]
      %v1840 = vld [vmem:[#allocation2 + $0xa0] sm:$0xff]
      %v1841 = vld [vmem:[#allocation2 + $0xa8] sm:$0xff]
      %v1842 = vld [vmem:[#allocation2 + $0xb0] sm:$0xff]
      %v1843 = vld [vmem:[#allocation2 + $0xb8] sm:$0xff]
      %v1844 = vld [vmem:[#allocation2 + $0xc0] sm:$0xff]
      %v1845 = vld [vmem:[#allocation2 + $0xc8] sm:$0xff]
      %v1846 = vld [vmem:[#allocation2 + $0xd0] sm:$0xff]
      %v1847 = vld [vmem:[#allocation2 + $0xd8] sm:$0xff]
      %v1848 = vld [vmem:[#allocation2 + $0xe0] sm:$0xff]
      %v1849 = vld [vmem:[#allocation2 + $0xe8] sm:$0xff]
      %v1850 = vld [vmem:[#allocation2 + $0xf0] sm:$0xff]
      %v1851 = vld [vmem:[#allocation2 + $0xf8] sm:$0xff]
      %v1852 = vld [vmem:[#allocation2 + $0x100] sm:$0xff]
      %v1853 = vld [vmem:[#allocation2 + $0x108] sm:$0xff]
      %v1854 = vld [vmem:[#allocation2 + $0x110] sm:$0xff]
      %v1855 = vld [vmem:[#allocation2 + $0x118] sm:$0x3f]
      %s1856 = scalar_lea.vmem %s1, 24
      %v1857 = vld [vmem:[%s1856] sm:$0xf]
      %v1858 = vld [vmem:[%s1856 + $0x4] sm:$0xf]
      %v1895 = vunpack.c.l.b16 %v1784
      %v1896 = vunpack.c.l.b16 %v1785
      %v1897 = vunpack.c.l.b16 %v1786
      %v1898 = vunpack.c.l.b16 %v1787
      %v1899 = vunpack.c.l.b16 %v1788
      %v1900 = vunpack.c.l.b16 %v1789
      %v1901 = vunpack.c.l.b16 %v1790
      %v1902 = vunpack.c.l.b16 %v1791
      %v1903 = vunpack.c.l.b16 %v1792
      %v1904 = vunpack.c.l.b16 %v1793
      %v1905 = vunpack.c.l.b16 %v1794
      %v1906 = vunpack.c.l.b16 %v1795
      %v1907 = vunpack.c.l.b16 %v1796
      %v1908 = vunpack.c.l.b16 %v1797
      %v1909 = vunpack.c.l.b16 %v1798
      %v1910 = vunpack.c.l.b16 %v1799
      %v1911 = vunpack.c.l.b16 %v1800
      %v1912 = vunpack.c.l.b16 %v1801
      %v1913 = vunpack.c.l.b16 %v1802
      %v1914 = vunpack.c.l.b16 %v1803
      %v1915 = vunpack.c.l.b16 %v1804
      %v1916 = vunpack.c.l.b16 %v1805
      %v1917 = vunpack.c.l.b16 %v1806
      %v1918 = vunpack.c.l.b16 %v1807
      %v1919 = vunpack.c.l.b16 %v1808
      %v1920 = vunpack.c.l.b16 %v1809
      %v1921 = vunpack.c.l.b16 %v1810
      %v1922 = vunpack.c.l.b16 %v1811
      %v1923 = vunpack.c.l.b16 %v1812
      %v1924 = vunpack.c.l.b16 %v1813
      %v1925 = vunpack.c.l.b16 %v1814
      %v1926 = vunpack.c.l.b16 %v1815
      %v1927 = vunpack.c.l.b16 %v1816
      %v1928 = vunpack.c.l.b16 %v1817
      %v1929 = vunpack.c.l.b16 %v1818
      %v1930 = vunpack.c.l.b16 %v1819
      %v1931 = vpack.c.b16 %v1896, %v1895
      %v1932 = vpack.c.b16 %v1898, %v1897
      %v1933 = vpack.c.b16 %v1900, %v1899
      %v1934 = vpack.c.b16 %v1902, %v1901
      %v1935 = vpack.c.b16 %v1904, %v1903
      %v1936 = vpack.c.b16 %v1906, %v1905
      %v1937 = vpack.c.b16 %v1908, %v1907
      %v1938 = vpack.c.b16 %v1910, %v1909
      %v1939 = vpack.c.b16 %v1912, %v1911
      %v1940 = vpack.c.b16 %v1914, %v1913
      %v1941 = vpack.c.b16 %v1916, %v1915
      %v1942 = vpack.c.b16 %v1918, %v1917
      %v1943 = vpack.c.b16 %v1920, %v1919
      %v1944 = vpack.c.b16 %v1922, %v1921
      %v1945 = vpack.c.b16 %v1924, %v1923
      %v1946 = vpack.c.b16 %v1926, %v1925
      %v1947 = vpack.c.b16 %v1928, %v1927
      %v1948 = vpack.c.b16 %v1930, %v1929
      %v1949 = vrot.slane %v1931, 1
      %v1950 = vrot.slane %v1932, 1
      %v1951 = vsel %vm1439, %v1949, %v1950
      %v1952 = vrot.slane %v1933, 1
      %v1953 = vsel %vm1439, %v1950, %v1952
      %v1954 = vrot.slane %v1934, 1
      %v1955 = vsel %vm1439, %v1952, %v1954
      %v1956 = vrot.slane %v1935, 1
      %v1957 = vsel %vm1439, %v1954, %v1956
      %v1958 = vrot.slane %v1936, 1
      %v1959 = vsel %vm1439, %v1956, %v1958
      %v1960 = vrot.slane %v1937, 1
      %v1961 = vsel %vm1439, %v1958, %v1960
      %v1962 = vrot.slane %v1938, 1
      %v1963 = vsel %vm1439, %v1960, %v1962
      %v1964 = vrot.slane %v1939, 1
      %v1965 = vsel %vm1439, %v1962, %v1964
      %v1966 = vrot.slane %v1940, 1
      %v1967 = vsel %vm1439, %v1964, %v1966
      %v1968 = vrot.slane %v1941, 1
      %v1969 = vsel %vm1439, %v1966, %v1968
      %v1970 = vrot.slane %v1942, 1
      %v1971 = vsel %vm1439, %v1968, %v1970
      %v1972 = vrot.slane %v1943, 1
      %v1973 = vsel %vm1439, %v1970, %v1972
      %v1974 = vrot.slane %v1944, 1
      %v1975 = vsel %vm1439, %v1972, %v1974
      %v1976 = vrot.slane %v1945, 1
      %v1977 = vsel %vm1439, %v1974, %v1976
      %v1978 = vrot.slane %v1946, 1
      %v1979 = vsel %vm1439, %v1976, %v1978
      %v1980 = vrot.slane %v1947, 1
      %v1981 = vsel %vm1439, %v1978, %v1980
      %v1982 = vrot.slane %v1948, 1
      %v1983 = vsel %vm1439, %v1980, %v1982
      %v1986 = vunpack.c.l.b16 %v1857
      %v1987 = vunpack.c.l.b16 %v1858
      %v1988 = vpack.c.b16 %v1987, %v1986
      %v1991 = vsel %vm145, %v1951, 0
      %v1994 = vsel %vm145, %v1953, 0
      %v1997 = vsel %vm145, %v1955, 0
      %v2000 = vsel %vm145, %v1957, 0
      %v2003 = vsel %vm145, %v1959, 0
      %v2006 = vsel %vm145, %v1961, 0
      %v2009 = vsel %vm145, %v1963, 0
      %v2012 = vsel %vm145, %v1965, 0
      %v2015 = vsel %vm145, %v1967, 0
      %v2018 = vsel %vm145, %v1969, 0
      %v2021 = vsel %vm145, %v1971, 0
      %v2024 = vsel %vm145, %v1973, 0
      %v2027 = vsel %vm145, %v1975, 0
      %v2030 = vsel %vm145, %v1977, 0
      %v2033 = vsel %vm145, %v1979, 0
      %v2036 = vsel %vm145, %v1981, 0
      %v2039 = vsel %vm145, %v1983, 0
      %v2042 = vsel %vm145, %v1982, 0
      %2044 = vmatprep.subr.bf16.mxu0 0
      %2045 = vmatpush1.bf16.msra.mxu0 %v1988
      %2046 = vmatprep.subr.bf16.mxu0 0
      %2047 = vmatpush1.bf16.msra.mxu0 0
      %2048 = vmatprep.subr.bf16.mxu0 0
      %2049 = vmatpush1.bf16.msra.mxu0 0
      %2050 = vmatprep.subr.bf16.mxu0 0
      %2051 = vmatpush1.bf16.msra.mxu0 0
      %2052 = vmatprep.subr.bf16.mxu0 0
      %2053 = vmatpush1.bf16.msra.mxu0 0
      %2054 = vmatprep.subr.bf16.mxu0 0
      %2055 = vmatpush1.bf16.msra.mxu0 0
      %2056 = vmatprep.subr.bf16.mxu0 0
      %2057 = vmatpush1.bf16.msra.mxu0 0
      %2058 = vmatprep.subr.bf16.mxu0 0
      %2059 = vmatpush1.bf16.msra.mxu0 0
      %2060 = vmatprep.subr.bf16.mxu0 0
      %2061 = vmatpush1.bf16.msra.mxu0 0
      %2062 = vmatprep.subr.bf16.mxu0 0
      %2063 = vmatpush1.bf16.msra.mxu0 0
      %2064 = vmatprep.subr.bf16.mxu0 0
      %2065 = vmatpush1.bf16.msra.mxu0 0
      %2066 = vmatprep.subr.bf16.mxu0 0
      %2067 = vmatpush1.bf16.msra.mxu0 0
      %2068 = vmatprep.subr.bf16.mxu0 0
      %2069 = vmatpush1.bf16.msra.mxu0 0
      %2070 = vmatprep.subr.bf16.mxu0 0
      %2071 = vmatpush1.bf16.msra.mxu0 0
      %2072 = vmatprep.subr.bf16.mxu0 0
      %2073 = vmatpush1.bf16.msra.mxu0 0
      %2074 = vmatprep.subr.bf16.mxu0 0
      %2075 = vmatpush1.bf16.msra.mxu0 0
      %2076 = vmatprep.mubr.bf16.mxu0 0
      %2077 = vmatmul.mubr.bf16.gmra.mrb[0].mxu0 %v1991
      %v2078 = vpop.f32.mrb[0].mxu0
      %v2079 = vadd.f32 0.0, %v2078
      %v2080 = vpop.f32.mrb[0].mxu0
      %v2081 = vpop.f32.mrb[0].mxu0
      %v2082 = vadd.f32 0.0, %v2081
      %v2083 = vpop.f32.mrb[0].mxu0
      %2084 = vmatprep.mubr.bf16.mxu0 0
      %2085 = vmatmul.mubr.bf16.gmra.mrb[0].mxu0 %v1994
      %v2086 = vpop.f32.mrb[0].mxu0
      %v2087 = vadd.f32 0.0, %v2086
      %v2088 = vpop.f32.mrb[0].mxu0
      %v2089 = vpop.f32.mrb[0].mxu0
      %v2090 = vadd.f32 0.0, %v2089
      %v2091 = vpop.f32.mrb[0].mxu0
      %2092 = vmatprep.mubr.bf16.mxu0 0
      %2093 = vmatmul.mubr.bf16.gmra.mrb[0].mxu0 %v1997
      %v2094 = vpop.f32.mrb[0].mxu0
      %v2095 = vadd.f32 0.0, %v2094
      %v2096 = vpop.f32.mrb[0].mxu0
      %v2097 = vpop.f32.mrb[0].mxu0
      %v2098 = vadd.f32 0.0, %v2097
      %v2099 = vpop.f32.mrb[0].mxu0
      %2100 = vmatprep.mubr.bf16.mxu0 0
      %2101 = vmatmul.mubr.bf16.gmra.mrb[0].mxu0 %v2000
      %v2102 = vpop.f32.mrb[0].mxu0
      %v2103 = vadd.f32 0.0, %v2102
      %v2104 = vpop.f32.mrb[0].mxu0
      %v2105 = vpop.f32.mrb[0].mxu0
      %v2106 = vadd.f32 0.0, %v2105
      %v2107 = vpop.f32.mrb[0].mxu0
      %2108 = vmatprep.mubr.bf16.mxu0 0
      %2109 = vmatmul.mubr.bf16.gmra.mrb[0].mxu0 %v2003
      %v2110 = vpop.f32.mrb[0].mxu0
      %v2111 = vadd.f32 0.0, %v2110
      %v2112 = vpop.f32.mrb[0].mxu0
      %v2113 = vpop.f32.mrb[0].mxu0
      %v2114 = vadd.f32 0.0, %v2113
      %v2115 = vpop.f32.mrb[0].mxu0
      %2116 = vmatprep.mubr.bf16.mxu0 0
      %2117 = vmatmul.mubr.bf16.gmra.mrb[0].mxu0 %v2006
      %v2118 = vpop.f32.mrb[0].mxu0
      %v2119 = vadd.f32 0.0, %v2118
      %v2120 = vpop.f32.mrb[0].mxu0
      %v2121 = vpop.f32.mrb[0].mxu0
      %v2122 = vadd.f32 0.0, %v2121
      %v2123 = vpop.f32.mrb[0].mxu0
      %2124 = vmatprep.mubr.bf16.mxu0 0
      %2125 = vmatmul.mubr.bf16.gmra.mrb[0].mxu0 %v2009
      %v2126 = vpop.f32.mrb[0].mxu0
      %v2127 = vadd.f32 0.0, %v2126
      %v2128 = vpop.f32.mrb[0].mxu0
      %v2129 = vpop.f32.mrb[0].mxu0
      %v2130 = vadd.f32 0.0, %v2129
      %v2131 = vpop.f32.mrb[0].mxu0
      %2132 = vmatprep.mubr.bf16.mxu0 0
      %2133 = vmatmul.mubr.bf16.gmra.mrb[0].mxu0 %v2012
      %v2134 = vpop.f32.mrb[0].mxu0
      %v2135 = vadd.f32 0.0, %v2134
      %v2136 = vpop.f32.mrb[0].mxu0
      %v2137 = vpop.f32.mrb[0].mxu0
      %v2138 = vadd.f32 0.0, %v2137
      %v2139 = vpop.f32.mrb[0].mxu0
      %2140 = vmatprep.mubr.bf16.mxu0 0
      %2141 = vmatmul.mubr.bf16.gmra.mrb[0].mxu0 %v2015
      %v2142 = vpop.f32.mrb[0].mxu0
      %v2143 = vadd.f32 0.0, %v2142
      %v2144 = vpop.f32.mrb[0].mxu0
      %v2145 = vpop.f32.mrb[0].mxu0
      %v2146 = vadd.f32 0.0, %v2145
      %v2147 = vpop.f32.mrb[0].mxu0
      %2148 = vmatprep.mubr.bf16.mxu0 0
      %2149 = vmatmul.mubr.bf16.gmra.mrb[0].mxu0 %v2018
      %v2150 = vpop.f32.mrb[0].mxu0
      %v2151 = vadd.f32 0.0, %v2150
      %v2152 = vpop.f32.mrb[0].mxu0
      %v2153 = vpop.f32.mrb[0].mxu0
      %v2154 = vadd.f32 0.0, %v2153
      %v2155 = vpop.f32.mrb[0].mxu0
      %2156 = vmatprep.mubr.bf16.mxu0 0
      %2157 = vmatmul.mubr.bf16.gmra.mrb[0].mxu0 %v2021
      %v2158 = vpop.f32.mrb[0].mxu0
      %v2159 = vadd.f32 0.0, %v2158
      %v2160 = vpop.f32.mrb[0].mxu0
      %v2161 = vpop.f32.mrb[0].mxu0
      %v2162 = vadd.f32 0.0, %v2161
      %v2163 = vpop.f32.mrb[0].mxu0
      %2164 = vmatprep.mubr.bf16.mxu0 0
      %2165 = vmatmul.mubr.bf16.gmra.mrb[0].mxu0 %v2024
      %v2166 = vpop.f32.mrb[0].mxu0
      %v2167 = vadd.f32 0.0, %v2166
      %v2168 = vpop.f32.mrb[0].mxu0
      %v2169 = vpop.f32.mrb[0].mxu0
      %v2170 = vadd.f32 0.0, %v2169
      %v2171 = vpop.f32.mrb[0].mxu0
      %2172 = vmatprep.mubr.bf16.mxu0 0
      %2173 = vmatmul.mubr.bf16.gmra.mrb[0].mxu0 %v2027
      %v2174 = vpop.f32.mrb[0].mxu0
      %v2175 = vadd.f32 0.0, %v2174
      %v2176 = vpop.f32.mrb[0].mxu0
      %v2177 = vpop.f32.mrb[0].mxu0
      %v2178 = vadd.f32 0.0, %v2177
      %v2179 = vpop.f32.mrb[0].mxu0
      %2180 = vmatprep.mubr.bf16.mxu0 0
      %2181 = vmatmul.mubr.bf16.gmra.mrb[0].mxu0 %v2030
      %v2182 = vpop.f32.mrb[0].mxu0
      %v2183 = vadd.f32 0.0, %v2182
      %v2184 = vpop.f32.mrb[0].mxu0
      %v2185 = vpop.f32.mrb[0].mxu0
      %v2186 = vadd.f32 0.0, %v2185
      %v2187 = vpop.f32.mrb[0].mxu0
      %2188 = vmatprep.mubr.bf16.mxu0 0
      %2189 = vmatmul.mubr.bf16.gmra.mrb[0].mxu0 %v2033
      %v2190 = vpop.f32.mrb[0].mxu0
      %v2191 = vadd.f32 0.0, %v2190
      %v2192 = vpop.f32.mrb[0].mxu0
      %v2193 = vpop.f32.mrb[0].mxu0
      %v2194 = vadd.f32 0.0, %v2193
      %v2195 = vpop.f32.mrb[0].mxu0
      %2196 = vmatprep.mubr.bf16.mxu0 0
      %2197 = vmatmul.mubr.bf16.gmra.mrb[0].mxu0 %v2036
      %v2198 = vpop.f32.mrb[0].mxu0
      %v2199 = vadd.f32 0.0, %v2198
      %v2200 = vpop.f32.mrb[0].mxu0
      %v2201 = vpop.f32.mrb[0].mxu0
      %v2202 = vadd.f32 0.0, %v2201
      %v2203 = vpop.f32.mrb[0].mxu0
      %2204 = vmatprep.mubr.bf16.mxu0 0
      %2205 = vmatmul.mubr.bf16.gmra.mrb[0].mxu0 %v2039
      %v2206 = vpop.f32.mrb[0].mxu0
      %v2207 = vadd.f32 0.0, %v2206
      %v2208 = vpop.f32.mrb[0].mxu0
      %v2209 = vpop.f32.mrb[0].mxu0
      %v2210 = vadd.f32 0.0, %v2209
      %v2211 = vpop.f32.mrb[0].mxu0
      %2212 = vmatprep.mubr.bf16.mxu0 0
      %2213 = vmatmul.mubr.bf16.gmra.mrb[0].mxu0 %v2042
      %v2214 = vpop.f32.mrb[0].mxu0
      %v2215 = vadd.f32 0.0, %v2214
      %v2216 = vpop.f32.mrb[0].mxu0
      %v2217 = vpop.f32.mrb[0].mxu0
      %v2218 = vadd.f32 0.0, %v2217
      %v2219 = vpop.f32.mrb[0].mxu0
      %2220 = vdwg.mxu0
      %v2221 = vadd.f32 %v1820, %v2079
      %v2222 = vadd.f32 %v1821, %v2082
      %v2223 = vadd.f32 %v1822, %v2087
      %v2224 = vadd.f32 %v1823, %v2090
      %v2225 = vadd.f32 %v1824, %v2095
      %v2226 = vadd.f32 %v1825, %v2098
      %v2227 = vadd.f32 %v1826, %v2103
      %v2228 = vadd.f32 %v1827, %v2106
      %v2229 = vadd.f32 %v1828, %v2111
      %v2230 = vadd.f32 %v1829, %v2114
      %v2231 = vadd.f32 %v1830, %v2119
      %v2232 = vadd.f32 %v1831, %v2122
      %v2233 = vadd.f32 %v1832, %v2127
      %v2234 = vadd.f32 %v1833, %v2130
      %v2235 = vadd.f32 %v1834, %v2135
      %v2236 = vadd.f32 %v1835, %v2138
      %v2237 = vadd.f32 %v1836, %v2143
      %v2238 = vadd.f32 %v1837, %v2146
      %v2239 = vadd.f32 %v1838, %v2151
      %v2240 = vadd.f32 %v1839, %v2154
      %v2241 = vadd.f32 %v1840, %v2159
      %v2242 = vadd.f32 %v1841, %v2162
      %v2243 = vadd.f32 %v1842, %v2167
      %v2244 = vadd.f32 %v1843, %v2170
      %v2245 = vadd.f32 %v1844, %v2175
      %v2246 = vadd.f32 %v1845, %v2178
      %v2247 = vadd.f32 %v1846, %v2183
      %v2248 = vadd.f32 %v1847, %v2186
      %v2249 = vadd.f32 %v1848, %v2191
      %v2250 = vadd.f32 %v1849, %v2194
      %v2251 = vadd.f32 %v1850, %v2199
      %v2252 = vadd.f32 %v1851, %v2202
      %v2253 = vadd.f32 %v1852, %v2207
      %v2254 = vadd.f32 %v1853, %v2210
      %v2255 = vadd.f32 %v1854, %v2215
      %v2256 = vadd.f32 %v1855, %v2218
      %2257 = vst.msk [vmem:[#allocation2] sm:$0xff] %vm145, %v2221
      %2258 = vst.msk [vmem:[#allocation2 + $0x8] sm:$0xff] %vm145, %v2222
      %2259 = vst.msk [vmem:[#allocation2 + $0x10] sm:$0xff] %vm145, %v2223
      %2260 = vst.msk [vmem:[#allocation2 + $0x18] sm:$0xff] %vm145, %v2224
      %2261 = vst.msk [vmem:[#allocation2 + $0x20] sm:$0xff] %vm145, %v2225
      %2262 = vst.msk [vmem:[#allocation2 + $0x28] sm:$0xff] %vm145, %v2226
      %2263 = vst.msk [vmem:[#allocation2 + $0x30] sm:$0xff] %vm145, %v2227
      %2264 = vst.msk [vmem:[#allocation2 + $0x38] sm:$0xff] %vm145, %v2228
      %2265 = vst.msk [vmem:[#allocation2 + $0x40] sm:$0xff] %vm145, %v2229
      %2266 = vst.msk [vmem:[#allocation2 + $0x48] sm:$0xff] %vm145, %v2230
      %2267 = vst.msk [vmem:[#allocation2 + $0x50] sm:$0xff] %vm145, %v2231
      %2268 = vst.msk [vmem:[#allocation2 + $0x58] sm:$0xff] %vm145, %v2232
      %2269 = vst.msk [vmem:[#allocation2 + $0x60] sm:$0xff] %vm145, %v2233
      %2270 = vst.msk [vmem:[#allocation2 + $0x68] sm:$0xff] %vm145, %v2234
      %2271 = vst.msk [vmem:[#allocation2 + $0x70] sm:$0xff] %vm145, %v2235
      %2272 = vst.msk [vmem:[#allocation2 + $0x78] sm:$0xff] %vm145, %v2236
      %2273 = vst.msk [vmem:[#allocation2 + $0x80] sm:$0xff] %vm145, %v2237
      %2274 = vst.msk [vmem:[#allocation2 + $0x88] sm:$0xff] %vm145, %v2238
      %2275 = vst.msk [vmem:[#allocation2 + $0x90] sm:$0xff] %vm145, %v2239
      %2276 = vst.msk [vmem:[#allocation2 + $0x98] sm:$0xff] %vm145, %v2240
      %2277 = vst.msk [vmem:[#allocation2 + $0xa0] sm:$0xff] %vm145, %v2241
      %2278 = vst.msk [vmem:[#allocation2 + $0xa8] sm:$0xff] %vm145, %v2242
      %2279 = vst.msk [vmem:[#allocation2 + $0xb0] sm:$0xff] %vm145, %v2243
      %2280 = vst.msk [vmem:[#allocation2 + $0xb8] sm:$0xff] %vm145, %v2244
      %2281 = vst.msk [vmem:[#allocation2 + $0xc0] sm:$0xff] %vm145, %v2245
      %2282 = vst.msk [vmem:[#allocation2 + $0xc8] sm:$0xff] %vm145, %v2246
      %2283 = vst.msk [vmem:[#allocation2 + $0xd0] sm:$0xff] %vm145, %v2247
      %2284 = vst.msk [vmem:[#allocation2 + $0xd8] sm:$0xff] %vm145, %v2248
      %2285 = vst.msk [vmem:[#allocation2 + $0xe0] sm:$0xff] %vm145, %v2249
      %2286 = vst.msk [vmem:[#allocation2 + $0xe8] sm:$0xff] %vm145, %v2250
      %2287 = vst.msk [vmem:[#allocation2 + $0xf0] sm:$0xff] %vm145, %v2251
      %2288 = vst.msk [vmem:[#allocation2 + $0xf8] sm:$0xff] %vm145, %v2252
      %2289 = vst.msk [vmem:[#allocation2 + $0x100] sm:$0xff] %vm145, %v2253
      %2290 = vst.msk [vmem:[#allocation2 + $0x108] sm:$0xff] %vm145, %v2254
      %2291 = vst.msk [vmem:[#allocation2 + $0x110] sm:$0xff] %vm145, %v2255
      %2292 = vst.msk [vmem:[#allocation2 + $0x118] sm:$0x3f] %vm181, %v2256
      %v2293 = vld [vmem:[%s138 + $0x8] sm:$0xe]
      %v2294 = vld [vmem:[%s138 + $0xc] sm:$0xf]
      %v2295 = vld [vmem:[%s138 + $0x10] sm:$0xf]
      %v2296 = vld [vmem:[%s138 + $0x14] sm:$0xf]
      %v2297 = vld [vmem:[%s138 + $0x18] sm:$0xf]
      %v2298 = vld [vmem:[%s138 + $0x1c] sm:$0xf]
      %v2299 = vld [vmem:[%s138 + $0x20] sm:$0xf]
      %v2300 = vld [vmem:[%s138 + $0x24] sm:$0xf]
      %v2301 = vld [vmem:[%s138 + $0x28] sm:$0xf]
      %v2302 = vld [vmem:[%s138 + $0x2c] sm:$0xf]
      %v2303 = vld [vmem:[%s138 + $0x30] sm:$0xf]
      %v2304 = vld [vmem:[%s138 + $0x34] sm:$0xf]
      %v2305 = vld [vmem:[%s138 + $0x38] sm:$0xf]
      %v2306 = vld [vmem:[%s138 + $0x3c] sm:$0xf]
      %v2307 = vld [vmem:[%s138 + $0x40] sm:$0xf]
      %v2308 = vld [vmem:[%s138 + $0x44] sm:$0xf]
      %v2309 = vld [vmem:[%s138 + $0x48] sm:$0xf]
      %v2310 = vld [vmem:[%s138 + $0x4c] sm:$0xf]
      %v2311 = vld [vmem:[%s138 + $0x50] sm:$0xf]
      %v2312 = vld [vmem:[%s138 + $0x54] sm:$0xf]
      %v2313 = vld [vmem:[%s138 + $0x58] sm:$0xf]
      %v2314 = vld [vmem:[%s138 + $0x5c] sm:$0xf]
      %v2315 = vld [vmem:[%s138 + $0x60] sm:$0xf]
      %v2316 = vld [vmem:[%s138 + $0x64] sm:$0xf]
      %v2317 = vld [vmem:[%s138 + $0x68] sm:$0xf]
      %v2318 = vld [vmem:[%s138 + $0x6c] sm:$0xf]
      %v2319 = vld [vmem:[%s138 + $0x70] sm:$0xf]
      %v2320 = vld [vmem:[%s138 + $0x74] sm:$0xf]
      %v2321 = vld [vmem:[%s138 + $0x78] sm:$0xf]
      %v2322 = vld [vmem:[%s138 + $0x7c] sm:$0xf]
      %v2323 = vld [vmem:[%s138 + $0x80] sm:$0xf]
      %v2324 = vld [vmem:[%s138 + $0x84] sm:$0xf]
      %v2325 = vld [vmem:[%s138 + $0x88] sm:$0xf]
      %v2326 = vld [vmem:[%s138 + $0x8c] sm:$0xf]
      %v2327 = vld [vmem:[%s138 + $0x90] sm:$0xf]
      %v2328 = vld [vmem:[%s138 + $0x94] sm:$0xf]
      %v2329 = vld [vmem:[%s138 + $0x98] sm:$0x1]
      %v2330 = vld [vmem:[#allocation2] sm:$0xff]
      %v2331 = vld [vmem:[#allocation2 + $0x8] sm:$0xff]
      %v2332 = vld [vmem:[#allocation2 + $0x10] sm:$0xff]
      %v2333 = vld [vmem:[#allocation2 + $0x18] sm:$0xff]
      %v2334 = vld [vmem:[#allocation2 + $0x20] sm:$0xff]
      %v2335 = vld [vmem:[#allocation2 + $0x28] sm:$0xff]
      %v2336 = vld [vmem:[#allocation2 + $0x30] sm:$0xff]
      %v2337 = vld [vmem:[#allocation2 + $0x38] sm:$0xff]
      %v2338 = vld [vmem:[#allocation2 + $0x40] sm:$0xff]
      %v2339 = vld [vmem:[#allocation2 + $0x48] sm:$0xff]
      %v2340 = vld [vmem:[#allocation2 + $0x50] sm:$0xff]
      %v2341 = vld [vmem:[#allocation2 + $0x58] sm:$0xff]
      %v2342 = vld [vmem:[#allocation2 + $0x60] sm:$0xff]
      %v2343 = vld [vmem:[#allocation2 + $0x68] sm:$0xff]
      %v2344 = vld [vmem:[#allocation2 + $0x70] sm:$0xff]
      %v2345 = vld [vmem:[#allocation2 + $0x78] sm:$0xff]
      %v2346 = vld [vmem:[#allocation2 + $0x80] sm:$0xff]
      %v2347 = vld [vmem:[#allocation2 + $0x88] sm:$0xff]
      %v2348 = vld [vmem:[#allocation2 + $0x90] sm:$0xff]
      %v2349 = vld [vmem:[#allocation2 + $0x98] sm:$0xff]
      %v2350 = vld [vmem:[#allocation2 + $0xa0] sm:$0xff]
      %v2351 = vld [vmem:[#allocation2 + $0xa8] sm:$0xff]
      %v2352 = vld [vmem:[#allocation2 + $0xb0] sm:$0xff]
      %v2353 = vld [vmem:[#allocation2 + $0xb8] sm:$0xff]
      %v2354 = vld [vmem:[#allocation2 + $0xc0] sm:$0xff]
      %v2355 = vld [vmem:[#allocation2 + $0xc8] sm:$0xff]
      %v2356 = vld [vmem:[#allocation2 + $0xd0] sm:$0xff]
      %v2357 = vld [vmem:[#allocation2 + $0xd8] sm:$0xff]
      %v2358 = vld [vmem:[#allocation2 + $0xe0] sm:$0xff]
      %v2359 = vld [vmem:[#allocation2 + $0xe8] sm:$0xff]
      %v2360 = vld [vmem:[#allocation2 + $0xf0] sm:$0xff]
      %v2361 = vld [vmem:[#allocation2 + $0xf8] sm:$0xff]
      %v2362 = vld [vmem:[#allocation2 + $0x100] sm:$0xff]
      %v2363 = vld [vmem:[#allocation2 + $0x108] sm:$0xff]
      %v2364 = vld [vmem:[#allocation2 + $0x110] sm:$0xff]
      %v2365 = vld [vmem:[#allocation2 + $0x118] sm:$0x3f]
      %s2366 = scalar_lea.vmem %s1, 32
      %v2367 = vld [vmem:[%s2366] sm:$0xf]
      %v2368 = vld [vmem:[%s2366 + $0x4] sm:$0xf]
      %v2406 = vunpack.c.l.b16 %v2293
      %v2407 = vunpack.c.l.b16 %v2294
      %v2408 = vunpack.c.l.b16 %v2295
      %v2409 = vunpack.c.l.b16 %v2296
      %v2410 = vunpack.c.l.b16 %v2297
      %v2411 = vunpack.c.l.b16 %v2298
      %v2412 = vunpack.c.l.b16 %v2299
      %v2413 = vunpack.c.l.b16 %v2300
      %v2414 = vunpack.c.l.b16 %v2301
      %v2415 = vunpack.c.l.b16 %v2302
      %v2416 = vunpack.c.l.b16 %v2303
      %v2417 = vunpack.c.l.b16 %v2304
      %v2418 = vunpack.c.l.b16 %v2305
      %v2419 = vunpack.c.l.b16 %v2306
      %v2420 = vunpack.c.l.b16 %v2307
      %v2421 = vunpack.c.l.b16 %v2308
      %v2422 = vunpack.c.l.b16 %v2309
      %v2423 = vunpack.c.l.b16 %v2310
      %v2424 = vunpack.c.l.b16 %v2311
      %v2425 = vunpack.c.l.b16 %v2312
      %v2426 = vunpack.c.l.b16 %v2313
      %v2427 = vunpack.c.l.b16 %v2314
      %v2428 = vunpack.c.l.b16 %v2315
      %v2429 = vunpack.c.l.b16 %v2316
      %v2430 = vunpack.c.l.b16 %v2317
      %v2431 = vunpack.c.l.b16 %v2318
      %v2432 = vunpack.c.l.b16 %v2319
      %v2433 = vunpack.c.l.b16 %v2320
      %v2434 = vunpack.c.l.b16 %v2321
      %v2435 = vunpack.c.l.b16 %v2322
      %v2436 = vunpack.c.l.b16 %v2323
      %v2437 = vunpack.c.l.b16 %v2324
      %v2438 = vunpack.c.l.b16 %v2325
      %v2439 = vunpack.c.l.b16 %v2326
      %v2440 = vunpack.c.l.b16 %v2327
      %v2441 = vunpack.c.l.b16 %v2328
      %v2442 = vunpack.c.l.b16 %v2329
      %v2443 = vpack.c.b16 %v2407, %v2406
      %v2444 = vpack.c.b16 %v2409, %v2408
      %v2445 = vpack.c.b16 %v2411, %v2410
      %v2446 = vpack.c.b16 %v2413, %v2412
      %v2447 = vpack.c.b16 %v2415, %v2414
      %v2448 = vpack.c.b16 %v2417, %v2416
      %v2449 = vpack.c.b16 %v2419, %v2418
      %v2450 = vpack.c.b16 %v2421, %v2420
      %v2451 = vpack.c.b16 %v2423, %v2422
      %v2452 = vpack.c.b16 %v2425, %v2424
      %v2453 = vpack.c.b16 %v2427, %v2426
      %v2454 = vpack.c.b16 %v2429, %v2428
      %v2455 = vpack.c.b16 %v2431, %v2430
      %v2456 = vpack.c.b16 %v2433, %v2432
      %v2457 = vpack.c.b16 %v2435, %v2434
      %v2458 = vpack.c.b16 %v2437, %v2436
      %v2459 = vpack.c.b16 %v2439, %v2438
      %v2460 = vpack.c.b16 %v2441, %v2440
      %v2461 = vpack.c.b16 %v2442, %v2442
      %vm2462 = vsmask.f32 6400
      %v2464 = vshrl.u32 %v2443, 16
      %v2466 = vrot.slane %v2464, 1
      %v2467 = vshll.u32 %v2443, 16
      %v2469 = vrot.slane %v2467, 2
      %v2470 = vor.u32 %v2466, %v2469
      %v2472 = vshrl.u32 %v2444, 16
      %v2474 = vrot.slane %v2472, 1
      %v2475 = vshll.u32 %v2444, 16
      %v2477 = vrot.slane %v2475, 2
      %v2478 = vor.u32 %v2474, %v2477
      %v2479 = vsel %vm2462, %v2470, %v2478
      %v2481 = vshrl.u32 %v2445, 16
      %v2483 = vrot.slane %v2481, 1
      %v2484 = vshll.u32 %v2445, 16
      %v2486 = vrot.slane %v2484, 2
      %v2487 = vor.u32 %v2483, %v2486
      %v2488 = vsel %vm2462, %v2478, %v2487
      %v2490 = vshrl.u32 %v2446, 16
      %v2492 = vrot.slane %v2490, 1
      %v2493 = vshll.u32 %v2446, 16
      %v2495 = vrot.slane %v2493, 2
      %v2496 = vor.u32 %v2492, %v2495
      %v2497 = vsel %vm2462, %v2487, %v2496
      %v2499 = vshrl.u32 %v2447, 16
      %v2501 = vrot.slane %v2499, 1
      %v2502 = vshll.u32 %v2447, 16
      %v2504 = vrot.slane %v2502, 2
      %v2505 = vor.u32 %v2501, %v2504
      %v2506 = vsel %vm2462, %v2496, %v2505
      %v2508 = vshrl.u32 %v2448, 16
      %v2510 = vrot.slane %v2508, 1
      %v2511 = vshll.u32 %v2448, 16
      %v2513 = vrot.slane %v2511, 2
      %v2514 = vor.u32 %v2510, %v2513
      %v2515 = vsel %vm2462, %v2505, %v2514
      %v2517 = vshrl.u32 %v2449, 16
      %v2519 = vrot.slane %v2517, 1
      %v2520 = vshll.u32 %v2449, 16
      %v2522 = vrot.slane %v2520, 2
      %v2523 = vor.u32 %v2519, %v2522
      %v2524 = vsel %vm2462, %v2514, %v2523
      %v2526 = vshrl.u32 %v2450, 16
      %v2528 = vrot.slane %v2526, 1
      %v2529 = vshll.u32 %v2450, 16
      %v2531 = vrot.slane %v2529, 2
      %v2532 = vor.u32 %v2528, %v2531
      %v2533 = vsel %vm2462, %v2523, %v2532
      %v2535 = vshrl.u32 %v2451, 16
      %v2537 = vrot.slane %v2535, 1
      %v2538 = vshll.u32 %v2451, 16
      %v2540 = vrot.slane %v2538, 2
      %v2541 = vor.u32 %v2537, %v2540
      %v2542 = vsel %vm2462, %v2532, %v2541
      %v2544 = vshrl.u32 %v2452, 16
      %v2546 = vrot.slane %v2544, 1
      %v2547 = vshll.u32 %v2452, 16
      %v2549 = vrot.slane %v2547, 2
      %v2550 = vor.u32 %v2546, %v2549
      %v2551 = vsel %vm2462, %v2541, %v2550
      %v2553 = vshrl.u32 %v2453, 16
      %v2555 = vrot.slane %v2553, 1
      %v2556 = vshll.u32 %v2453, 16
      %v2558 = vrot.slane %v2556, 2
      %v2559 = vor.u32 %v2555, %v2558
      %v2560 = vsel %vm2462, %v2550, %v2559
      %v2562 = vshrl.u32 %v2454, 16
      %v2564 = vrot.slane %v2562, 1
      %v2565 = vshll.u32 %v2454, 16
      %v2567 = vrot.slane %v2565, 2
      %v2568 = vor.u32 %v2564, %v2567
      %v2569 = vsel %vm2462, %v2559, %v2568
      %v2571 = vshrl.u32 %v2455, 16
      %v2573 = vrot.slane %v2571, 1
      %v2574 = vshll.u32 %v2455, 16
      %v2576 = vrot.slane %v2574, 2
      %v2577 = vor.u32 %v2573, %v2576
      %v2578 = vsel %vm2462, %v2568, %v2577
      %v2580 = vshrl.u32 %v2456, 16
      %v2582 = vrot.slane %v2580, 1
      %v2583 = vshll.u32 %v2456, 16
      %v2585 = vrot.slane %v2583, 2
      %v2586 = vor.u32 %v2582, %v2585
      %v2587 = vsel %vm2462, %v2577, %v2586
      %v2589 = vshrl.u32 %v2457, 16
      %v2591 = vrot.slane %v2589, 1
      %v2592 = vshll.u32 %v2457, 16
      %v2594 = vrot.slane %v2592, 2
      %v2595 = vor.u32 %v2591, %v2594
      %v2596 = vsel %vm2462, %v2586, %v2595
      %v2598 = vshrl.u32 %v2458, 16
      %v2600 = vrot.slane %v2598, 1
      %v2601 = vshll.u32 %v2458, 16
      %v2603 = vrot.slane %v2601, 2
      %v2604 = vor.u32 %v2600, %v2603
      %v2605 = vsel %vm2462, %v2595, %v2604
      %v2607 = vshrl.u32 %v2459, 16
      %v2609 = vrot.slane %v2607, 1
      %v2610 = vshll.u32 %v2459, 16
      %v2612 = vrot.slane %v2610, 2
      %v2613 = vor.u32 %v2609, %v2612
      %v2614 = vsel %vm2462, %v2604, %v2613
      %v2616 = vshrl.u32 %v2460, 16
      %v2618 = vrot.slane %v2616, 1
      %v2619 = vshll.u32 %v2460, 16
      %v2621 = vrot.slane %v2619, 2
      %v2622 = vor.u32 %v2618, %v2621
      %v2623 = vsel %vm2462, %v2613, %v2622
      %v2625 = vshll.u32 %v2461, 16
      %v2627 = vrot.slane %v2625, 2
      %v2628 = vsel %vm2462, %v2622, %v2627
      %v2631 = vunpack.c.l.b16 %v2367
      %v2632 = vunpack.c.l.b16 %v2368
      %v2633 = vpack.c.b16 %v2632, %v2631
      %v2636 = vsel %vm145, %v2479, 0
      %v2639 = vsel %vm145, %v2488, 0
      %v2642 = vsel %vm145, %v2497, 0
      %v2645 = vsel %vm145, %v2506, 0
      %v2648 = vsel %vm145, %v2515, 0
      %v2651 = vsel %vm145, %v2524, 0
      %v2654 = vsel %vm145, %v2533, 0
      %v2657 = vsel %vm145, %v2542, 0
      %v2660 = vsel %vm145, %v2551, 0
      %v2663 = vsel %vm145, %v2560, 0
      %v2666 = vsel %vm145, %v2569, 0
      %v2669 = vsel %vm145, %v2578, 0
      %v2672 = vsel %vm145, %v2587, 0
      %v2675 = vsel %vm145, %v2596, 0
      %v2678 = vsel %vm145, %v2605, 0
      %v2681 = vsel %vm145, %v2614, 0
      %v2684 = vsel %vm145, %v2623, 0
      %v2687 = vsel %vm145, %v2628, 0
      %2689 = vmatprep.subr.bf16.mxu0 0
      %2690 = vmatpush1.bf16.msra.mxu0 %v2633
      %2691 = vmatprep.subr.bf16.mxu0 0
      %2692 = vmatpush1.bf16.msra.mxu0 0
      %2693 = vmatprep.subr.bf16.mxu0 0
      %2694 = vmatpush1.bf16.msra.mxu0 0
      %2695 = vmatprep.subr.bf16.mxu0 0
      %2696 = vmatpush1.bf16.msra.mxu0 0
      %2697 = vmatprep.subr.bf16.mxu0 0
      %2698 = vmatpush1.bf16.msra.mxu0 0
      %2699 = vmatprep.subr.bf16.mxu0 0
      %2700 = vmatpush1.bf16.msra.mxu0 0
      %2701 = vmatprep.subr.bf16.mxu0 0
      %2702 = vmatpush1.bf16.msra.mxu0 0
      %2703 = vmatprep.subr.bf16.mxu0 0
      %2704 = vmatpush1.bf16.msra.mxu0 0
      %2705 = vmatprep.subr.bf16.mxu0 0
      %2706 = vmatpush1.bf16.msra.mxu0 0
      %2707 = vmatprep.subr.bf16.mxu0 0
      %2708 = vmatpush1.bf16.msra.mxu0 0
      %2709 = vmatprep.subr.bf16.mxu0 0
      %2710 = vmatpush1.bf16.msra.mxu0 0
      %2711 = vmatprep.subr.bf16.mxu0 0
      %2712 = vmatpush1.bf16.msra.mxu0 0
      %2713 = vmatprep.subr.bf16.mxu0 0
      %2714 = vmatpush1.bf16.msra.mxu0 0
      %2715 = vmatprep.subr.bf16.mxu0 0
      %2716 = vmatpush1.bf16.msra.mxu0 0
      %2717 = vmatprep.subr.bf16.mxu0 0
      %2718 = vmatpush1.bf16.msra.mxu0 0
      %2719 = vmatprep.subr.bf16.mxu0 0
      %2720 = vmatpush1.bf16.msra.mxu0 0
      %2721 = vmatprep.mubr.bf16.mxu0 0
      %2722 = vmatmul.mubr.bf16.gmra.mrb[0].mxu0 %v2636
      %v2723 = vpop.f32.mrb[0].mxu0
      %v2724 = vadd.f32 0.0, %v2723
      %v2725 = vpop.f32.mrb[0].mxu0
      %v2726 = vpop.f32.mrb[0].mxu0
      %v2727 = vadd.f32 0.0, %v2726
      %v2728 = vpop.f32.mrb[0].mxu0
      %2729 = vmatprep.mubr.bf16.mxu0 0
      %2730 = vmatmul.mubr.bf16.gmra.mrb[0].mxu0 %v2639
      %v2731 = vpop.f32.mrb[0].mxu0
      %v2732 = vadd.f32 0.0, %v2731
      %v2733 = vpop.f32.mrb[0].mxu0
      %v2734 = vpop.f32.mrb[0].mxu0
      %v2735 = vadd.f32 0.0, %v2734
      %v2736 = vpop.f32.mrb[0].mxu0
      %2737 = vmatprep.mubr.bf16.mxu0 0
      %2738 = vmatmul.mubr.bf16.gmra.mrb[0].mxu0 %v2642
      %v2739 = vpop.f32.mrb[0].mxu0
      %v2740 = vadd.f32 0.0, %v2739
      %v2741 = vpop.f32.mrb[0].mxu0
      %v2742 = vpop.f32.mrb[0].mxu0
      %v2743 = vadd.f32 0.0, %v2742
      %v2744 = vpop.f32.mrb[0].mxu0
      %2745 = vmatprep.mubr.bf16.mxu0 0
      %2746 = vmatmul.mubr.bf16.gmra.mrb[0].mxu0 %v2645
      %v2747 = vpop.f32.mrb[0].mxu0
      %v2748 = vadd.f32 0.0, %v2747
      %v2749 = vpop.f32.mrb[0].mxu0
      %v2750 = vpop.f32.mrb[0].mxu0
      %v2751 = vadd.f32 0.0, %v2750
      %v2752 = vpop.f32.mrb[0].mxu0
      %2753 = vmatprep.mubr.bf16.mxu0 0
      %2754 = vmatmul.mubr.bf16.gmra.mrb[0].mxu0 %v2648
      %v2755 = vpop.f32.mrb[0].mxu0
      %v2756 = vadd.f32 0.0, %v2755
      %v2757 = vpop.f32.mrb[0].mxu0
      %v2758 = vpop.f32.mrb[0].mxu0
      %v2759 = vadd.f32 0.0, %v2758
      %v2760 = vpop.f32.mrb[0].mxu0
      %2761 = vmatprep.mubr.bf16.mxu0 0
      %2762 = vmatmul.mubr.bf16.gmra.mrb[0].mxu0 %v2651
      %v2763 = vpop.f32.mrb[0].mxu0
      %v2764 = vadd.f32 0.0, %v2763
      %v2765 = vpop.f32.mrb[0].mxu0
      %v2766 = vpop.f32.mrb[0].mxu0
      %v2767 = vadd.f32 0.0, %v2766
      %v2768 = vpop.f32.mrb[0].mxu0
      %2769 = vmatprep.mubr.bf16.mxu0 0
      %2770 = vmatmul.mubr.bf16.gmra.mrb[0].mxu0 %v2654
      %v2771 = vpop.f32.mrb[0].mxu0
      %v2772 = vadd.f32 0.0, %v2771
      %v2773 = vpop.f32.mrb[0].mxu0
      %v2774 = vpop.f32.mrb[0].mxu0
      %v2775 = vadd.f32 0.0, %v2774
      %v2776 = vpop.f32.mrb[0].mxu0
      %2777 = vmatprep.mubr.bf16.mxu0 0
      %2778 = vmatmul.mubr.bf16.gmra.mrb[0].mxu0 %v2657
      %v2779 = vpop.f32.mrb[0].mxu0
      %v2780 = vadd.f32 0.0, %v2779
      %v2781 = vpop.f32.mrb[0].mxu0
      %v2782 = vpop.f32.mrb[0].mxu0
      %v2783 = vadd.f32 0.0, %v2782
      %v2784 = vpop.f32.mrb[0].mxu0
      %2785 = vmatprep.mubr.bf16.mxu0 0
      %2786 = vmatmul.mubr.bf16.gmra.mrb[0].mxu0 %v2660
      %v2787 = vpop.f32.mrb[0].mxu0
      %v2788 = vadd.f32 0.0, %v2787
      %v2789 = vpop.f32.mrb[0].mxu0
      %v2790 = vpop.f32.mrb[0].mxu0
      %v2791 = vadd.f32 0.0, %v2790
      %v2792 = vpop.f32.mrb[0].mxu0
      %2793 = vmatprep.mubr.bf16.mxu0 0
      %2794 = vmatmul.mubr.bf16.gmra.mrb[0].mxu0 %v2663
      %v2795 = vpop.f32.mrb[0].mxu0
      %v2796 = vadd.f32 0.0, %v2795
      %v2797 = vpop.f32.mrb[0].mxu0
      %v2798 = vpop.f32.mrb[0].mxu0
      %v2799 = vadd.f32 0.0, %v2798
      %v2800 = vpop.f32.mrb[0].mxu0
      %2801 = vmatprep.mubr.bf16.mxu0 0
      %2802 = vmatmul.mubr.bf16.gmra.mrb[0].mxu0 %v2666
      %v2803 = vpop.f32.mrb[0].mxu0
      %v2804 = vadd.f32 0.0, %v2803
      %v2805 = vpop.f32.mrb[0].mxu0
      %v2806 = vpop.f32.mrb[0].mxu0
      %v2807 = vadd.f32 0.0, %v2806
      %v2808 = vpop.f32.mrb[0].mxu0
      %2809 = vmatprep.mubr.bf16.mxu0 0
      %2810 = vmatmul.mubr.bf16.gmra.mrb[0].mxu0 %v2669
      %v2811 = vpop.f32.mrb[0].mxu0
      %v2812 = vadd.f32 0.0, %v2811
      %v2813 = vpop.f32.mrb[0].mxu0
      %v2814 = vpop.f32.mrb[0].mxu0
      %v2815 = vadd.f32 0.0, %v2814
      %v2816 = vpop.f32.mrb[0].mxu0
      %2817 = vmatprep.mubr.bf16.mxu0 0
      %2818 = vmatmul.mubr.bf16.gmra.mrb[0].mxu0 %v2672
      %v2819 = vpop.f32.mrb[0].mxu0
      %v2820 = vadd.f32 0.0, %v2819
      %v2821 = vpop.f32.mrb[0].mxu0
      %v2822 = vpop.f32.mrb[0].mxu0
      %v2823 = vadd.f32 0.0, %v2822
      %v2824 = vpop.f32.mrb[0].mxu0
      %2825 = vmatprep.mubr.bf16.mxu0 0
      %2826 = vmatmul.mubr.bf16.gmra.mrb[0].mxu0 %v2675
      %v2827 = vpop.f32.mrb[0].mxu0
      %v2828 = vadd.f32 0.0, %v2827
      %v2829 = vpop.f32.mrb[0].mxu0
      %v2830 = vpop.f32.mrb[0].mxu0
      %v2831 = vadd.f32 0.0, %v2830
      %v2832 = vpop.f32.mrb[0].mxu0
      %2833 = vmatprep.mubr.bf16.mxu0 0
      %2834 = vmatmul.mubr.bf16.gmra.mrb[0].mxu0 %v2678
      %v2835 = vpop.f32.mrb[0].mxu0
      %v2836 = vadd.f32 0.0, %v2835
      %v2837 = vpop.f32.mrb[0].mxu0
      %v2838 = vpop.f32.mrb[0].mxu0
      %v2839 = vadd.f32 0.0, %v2838
      %v2840 = vpop.f32.mrb[0].mxu0
      %2841 = vmatprep.mubr.bf16.mxu0 0
      %2842 = vmatmul.mubr.bf16.gmra.mrb[0].mxu0 %v2681
      %v2843 = vpop.f32.mrb[0].mxu0
      %v2844 = vadd.f32 0.0, %v2843
      %v2845 = vpop.f32.mrb[0].mxu0
      %v2846 = vpop.f32.mrb[0].mxu0
      %v2847 = vadd.f32 0.0, %v2846
      %v2848 = vpop.f32.mrb[0].mxu0
      %2849 = vmatprep.mubr.bf16.mxu0 0
      %2850 = vmatmul.mubr.bf16.gmra.mrb[0].mxu0 %v2684
      %v2851 = vpop.f32.mrb[0].mxu0
      %v2852 = vadd.f32 0.0, %v2851
      %v2853 = vpop.f32.mrb[0].mxu0
      %v2854 = vpop.f32.mrb[0].mxu0
      %v2855 = vadd.f32 0.0, %v2854
      %v2856 = vpop.f32.mrb[0].mxu0
      %2857 = vmatprep.mubr.bf16.mxu0 0
      %2858 = vmatmul.mubr.bf16.gmra.mrb[0].mxu0 %v2687
      %v2859 = vpop.f32.mrb[0].mxu0
      %v2860 = vadd.f32 0.0, %v2859
      %v2861 = vpop.f32.mrb[0].mxu0
      %v2862 = vpop.f32.mrb[0].mxu0
      %v2863 = vadd.f32 0.0, %v2862
      %v2864 = vpop.f32.mrb[0].mxu0
      %2865 = vdwg.mxu0
      %v2866 = vadd.f32 %v2330, %v2724
      %v2867 = vadd.f32 %v2331, %v2727
      %v2868 = vadd.f32 %v2332, %v2732
      %v2869 = vadd.f32 %v2333, %v2735
      %v2870 = vadd.f32 %v2334, %v2740
      %v2871 = vadd.f32 %v2335, %v2743
      %v2872 = vadd.f32 %v2336, %v2748
      %v2873 = vadd.f32 %v2337, %v2751
      %v2874 = vadd.f32 %v2338, %v2756
      %v2875 = vadd.f32 %v2339, %v2759
      %v2876 = vadd.f32 %v2340, %v2764
      %v2877 = vadd.f32 %v2341, %v2767
      %v2878 = vadd.f32 %v2342, %v2772
      %v2879 = vadd.f32 %v2343, %v2775
      %v2880 = vadd.f32 %v2344, %v2780
      %v2881 = vadd.f32 %v2345, %v2783
      %v2882 = vadd.f32 %v2346, %v2788
      %v2883 = vadd.f32 %v2347, %v2791
      %v2884 = vadd.f32 %v2348, %v2796
      %v2885 = vadd.f32 %v2349, %v2799
      %v2886 = vadd.f32 %v2350, %v2804
      %v2887 = vadd.f32 %v2351, %v2807
      %v2888 = vadd.f32 %v2352, %v2812
      %v2889 = vadd.f32 %v2353, %v2815
      %v2890 = vadd.f32 %v2354, %v2820
      %v2891 = vadd.f32 %v2355, %v2823
      %v2892 = vadd.f32 %v2356, %v2828
      %v2893 = vadd.f32 %v2357, %v2831
      %v2894 = vadd.f32 %v2358, %v2836
      %v2895 = vadd.f32 %v2359, %v2839
      %v2896 = vadd.f32 %v2360, %v2844
      %v2897 = vadd.f32 %v2361, %v2847
      %v2898 = vadd.f32 %v2362, %v2852
      %v2899 = vadd.f32 %v2363, %v2855
      %v2900 = vadd.f32 %v2364, %v2860
      %v2901 = vadd.f32 %v2365, %v2863
      %2902 = vst.msk [vmem:[#allocation2] sm:$0xff] %vm145, %v2866
      %2903 = vst.msk [vmem:[#allocation2 + $0x8] sm:$0xff] %vm145, %v2867
      %2904 = vst.msk [vmem:[#allocation2 + $0x10] sm:$0xff] %vm145, %v2868
      %2905 = vst.msk [vmem:[#allocation2 + $0x18] sm:$0xff] %vm145, %v2869
      %2906 = vst.msk [vmem:[#allocation2 + $0x20] sm:$0xff] %vm145, %v2870
      %2907 = vst.msk [vmem:[#allocation2 + $0x28] sm:$0xff] %vm145, %v2871
      %2908 = vst.msk [vmem:[#allocation2 + $0x30] sm:$0xff] %vm145, %v2872
      %2909 = vst.msk [vmem:[#allocation2 + $0x38] sm:$0xff] %vm145, %v2873
      %2910 = vst.msk [vmem:[#allocation2 + $0x40] sm:$0xff] %vm145, %v2874
      %2911 = vst.msk [vmem:[#allocation2 + $0x48] sm:$0xff] %vm145, %v2875
      %2912 = vst.msk [vmem:[#allocation2 + $0x50] sm:$0xff] %vm145, %v2876
      %2913 = vst.msk [vmem:[#allocation2 + $0x58] sm:$0xff] %vm145, %v2877
      %2914 = vst.msk [vmem:[#allocation2 + $0x60] sm:$0xff] %vm145, %v2878
      %2915 = vst.msk [vmem:[#allocation2 + $0x68] sm:$0xff] %vm145, %v2879
      %2916 = vst.msk [vmem:[#allocation2 + $0x70] sm:$0xff] %vm145, %v2880
      %2917 = vst.msk [vmem:[#allocation2 + $0x78] sm:$0xff] %vm145, %v2881
      %2918 = vst.msk [vmem:[#allocation2 + $0x80] sm:$0xff] %vm145, %v2882
      %2919 = vst.msk [vmem:[#allocation2 + $0x88] sm:$0xff] %vm145, %v2883
      %2920 = vst.msk [vmem:[#allocation2 + $0x90] sm:$0xff] %vm145, %v2884
      %2921 = vst.msk [vmem:[#allocation2 + $0x98] sm:$0xff] %vm145, %v2885
      %2922 = vst.msk [vmem:[#allocation2 + $0xa0] sm:$0xff] %vm145, %v2886
      %2923 = vst.msk [vmem:[#allocation2 + $0xa8] sm:$0xff] %vm145, %v2887
      %2924 = vst.msk [vmem:[#allocation2 + $0xb0] sm:$0xff] %vm145, %v2888
      %2925 = vst.msk [vmem:[#allocation2 + $0xb8] sm:$0xff] %vm145, %v2889
      %2926 = vst.msk [vmem:[#allocation2 + $0xc0] sm:$0xff] %vm145, %v2890
      %2927 = vst.msk [vmem:[#allocation2 + $0xc8] sm:$0xff] %vm145, %v2891
      %2928 = vst.msk [vmem:[#allocation2 + $0xd0] sm:$0xff] %vm145, %v2892
      %2929 = vst.msk [vmem:[#allocation2 + $0xd8] sm:$0xff] %vm145, %v2893
      %2930 = vst.msk [vmem:[#allocation2 + $0xe0] sm:$0xff] %vm145, %v2894
      %2931 = vst.msk [vmem:[#allocation2 + $0xe8] sm:$0xff] %vm145, %v2895
      %2932 = vst.msk [vmem:[#allocation2 + $0xf0] sm:$0xff] %vm145, %v2896
      %2933 = vst.msk [vmem:[#allocation2 + $0xf8] sm:$0xff] %vm145, %v2897
      %2934 = vst.msk [vmem:[#allocation2 + $0x100] sm:$0xff] %vm145, %v2898
      %2935 = vst.msk [vmem:[#allocation2 + $0x108] sm:$0xff] %vm145, %v2899
      %2936 = vst.msk [vmem:[#allocation2 + $0x110] sm:$0xff] %vm145, %v2900
      %2937 = vst.msk [vmem:[#allocation2 + $0x118] sm:$0x3f] %vm181, %v2901
      %v2938 = vld [vmem:[%s138 + $0x8] sm:$0xc]
      %v2939 = vld [vmem:[%s138 + $0xc] sm:$0xf]
      %v2940 = vld [vmem:[%s138 + $0x10] sm:$0xf]
      %v2941 = vld [vmem:[%s138 + $0x14] sm:$0xf]
      %v2942 = vld [vmem:[%s138 + $0x18] sm:$0xf]
      %v2943 = vld [vmem:[%s138 + $0x1c] sm:$0xf]
      %v2944 = vld [vmem:[%s138 + $0x20] sm:$0xf]
      %v2945 = vld [vmem:[%s138 + $0x24] sm:$0xf]
      %v2946 = vld [vmem:[%s138 + $0x28] sm:$0xf]
      %v2947 = vld [vmem:[%s138 + $0x2c] sm:$0xf]
      %v2948 = vld [vmem:[%s138 + $0x30] sm:$0xf]
      %v2949 = vld [vmem:[%s138 + $0x34] sm:$0xf]
      %v2950 = vld [vmem:[%s138 + $0x38] sm:$0xf]
      %v2951 = vld [vmem:[%s138 + $0x3c] sm:$0xf]
      %v2952 = vld [vmem:[%s138 + $0x40] sm:$0xf]
      %v2953 = vld [vmem:[%s138 + $0x44] sm:$0xf]
      %v2954 = vld [vmem:[%s138 + $0x48] sm:$0xf]
      %v2955 = vld [vmem:[%s138 + $0x4c] sm:$0xf]
      %v2956 = vld [vmem:[%s138 + $0x50] sm:$0xf]
      %v2957 = vld [vmem:[%s138 + $0x54] sm:$0xf]
      %v2958 = vld [vmem:[%s138 + $0x58] sm:$0xf]
      %v2959 = vld [vmem:[%s138 + $0x5c] sm:$0xf]
      %v2960 = vld [vmem:[%s138 + $0x60] sm:$0xf]
      %v2961 = vld [vmem:[%s138 + $0x64] sm:$0xf]
      %v2962 = vld [vmem:[%s138 + $0x68] sm:$0xf]
      %v2963 = vld [vmem:[%s138 + $0x6c] sm:$0xf]
      %v2964 = vld [vmem:[%s138 + $0x70] sm:$0xf]
      %v2965 = vld [vmem:[%s138 + $0x74] sm:$0xf]
      %v2966 = vld [vmem:[%s138 + $0x78] sm:$0xf]
      %v2967 = vld [vmem:[%s138 + $0x7c] sm:$0xf]
      %v2968 = vld [vmem:[%s138 + $0x80] sm:$0xf]
      %v2969 = vld [vmem:[%s138 + $0x84] sm:$0xf]
      %v2970 = vld [vmem:[%s138 + $0x88] sm:$0xf]
      %v2971 = vld [vmem:[%s138 + $0x8c] sm:$0xf]
      %v2972 = vld [vmem:[%s138 + $0x90] sm:$0xf]
      %v2973 = vld [vmem:[%s138 + $0x94] sm:$0xf]
      %v2974 = vld [vmem:[%s138 + $0x98] sm:$0x1]
      %v2975 = vld [vmem:[#allocation2] sm:$0xff]
      %v2976 = vld [vmem:[#allocation2 + $0x8] sm:$0xff]
      %v2977 = vld [vmem:[#allocation2 + $0x10] sm:$0xff]
      %v2978 = vld [vmem:[#allocation2 + $0x18] sm:$0xff]
      %v2979 = vld [vmem:[#allocation2 + $0x20] sm:$0xff]
      %v2980 = vld [vmem:[#allocation2 + $0x28] sm:$0xff]
      %v2981 = vld [vmem:[#allocation2 + $0x30] sm:$0xff]
      %v2982 = vld [vmem:[#allocation2 + $0x38] sm:$0xff]
      %v2983 = vld [vmem:[#allocation2 + $0x40] sm:$0xff]
      %v2984 = vld [vmem:[#allocation2 + $0x48] sm:$0xff]
      %v2985 = vld [vmem:[#allocation2 + $0x50] sm:$0xff]
      %v2986 = vld [vmem:[#allocation2 + $0x58] sm:$0xff]
      %v2987 = vld [vmem:[#allocation2 + $0x60] sm:$0xff]
      %v2988 = vld [vmem:[#allocation2 + $0x68] sm:$0xff]
      %v2989 = vld [vmem:[#allocation2 + $0x70] sm:$0xff]
      %v2990 = vld [vmem:[#allocation2 + $0x78] sm:$0xff]
      %v2991 = vld [vmem:[#allocation2 + $0x80] sm:$0xff]
      %v2992 = vld [vmem:[#allocation2 + $0x88] sm:$0xff]
      %v2993 = vld [vmem:[#allocation2 + $0x90] sm:$0xff]
      %v2994 = vld [vmem:[#allocation2 + $0x98] sm:$0xff]
      %v2995 = vld [vmem:[#allocation2 + $0xa0] sm:$0xff]
      %v2996 = vld [vmem:[#allocation2 + $0xa8] sm:$0xff]
      %v2997 = vld [vmem:[#allocation2 + $0xb0] sm:$0xff]
      %v2998 = vld [vmem:[#allocation2 + $0xb8] sm:$0xff]
      %v2999 = vld [vmem:[#allocation2 + $0xc0] sm:$0xff]
      %v3000 = vld [vmem:[#allocation2 + $0xc8] sm:$0xff]
      %v3001 = vld [vmem:[#allocation2 + $0xd0] sm:$0xff]
      %v3002 = vld [vmem:[#allocation2 + $0xd8] sm:$0xff]
      %v3003 = vld [vmem:[#allocation2 + $0xe0] sm:$0xff]
      %v3004 = vld [vmem:[#allocation2 + $0xe8] sm:$0xff]
      %v3005 = vld [vmem:[#allocation2 + $0xf0] sm:$0xff]
      %v3006 = vld [vmem:[#allocation2 + $0xf8] sm:$0xff]
      %v3007 = vld [vmem:[#allocation2 + $0x100] sm:$0xff]
      %v3008 = vld [vmem:[#allocation2 + $0x108] sm:$0xff]
      %v3009 = vld [vmem:[#allocation2 + $0x110] sm:$0xff]
      %v3010 = vld [vmem:[#allocation2 + $0x118] sm:$0x3f]
      %s3011 = scalar_lea.vmem %s1, 40
      %v3012 = vld [vmem:[%s3011] sm:$0xf]
      %v3013 = vld [vmem:[%s3011 + $0x4] sm:$0xf]
      %v3051 = vunpack.c.l.b16 %v2938
      %v3052 = vunpack.c.l.b16 %v2939
      %v3053 = vunpack.c.l.b16 %v2940
      %v3054 = vunpack.c.l.b16 %v2941
      %v3055 = vunpack.c.l.b16 %v2942
      %v3056 = vunpack.c.l.b16 %v2943
      %v3057 = vunpack.c.l.b16 %v2944
      %v3058 = vunpack.c.l.b16 %v2945
      %v3059 = vunpack.c.l.b16 %v2946
      %v3060 = vunpack.c.l.b16 %v2947
      %v3061 = vunpack.c.l.b16 %v2948
      %v3062 = vunpack.c.l.b16 %v2949
      %v3063 = vunpack.c.l.b16 %v2950
      %v3064 = vunpack.c.l.b16 %v2951
      %v3065 = vunpack.c.l.b16 %v2952
      %v3066 = vunpack.c.l.b16 %v2953
      %v3067 = vunpack.c.l.b16 %v2954
      %v3068 = vunpack.c.l.b16 %v2955
      %v3069 = vunpack.c.l.b16 %v2956
      %v3070 = vunpack.c.l.b16 %v2957
      %v3071 = vunpack.c.l.b16 %v2958
      %v3072 = vunpack.c.l.b16 %v2959
      %v3073 = vunpack.c.l.b16 %v2960
      %v3074 = vunpack.c.l.b16 %v2961
      %v3075 = vunpack.c.l.b16 %v2962
      %v3076 = vunpack.c.l.b16 %v2963
      %v3077 = vunpack.c.l.b16 %v2964
      %v3078 = vunpack.c.l.b16 %v2965
      %v3079 = vunpack.c.l.b16 %v2966
      %v3080 = vunpack.c.l.b16 %v2967
      %v3081 = vunpack.c.l.b16 %v2968
      %v3082 = vunpack.c.l.b16 %v2969
      %v3083 = vunpack.c.l.b16 %v2970
      %v3084 = vunpack.c.l.b16 %v2971
      %v3085 = vunpack.c.l.b16 %v2972
      %v3086 = vunpack.c.l.b16 %v2973
      %v3087 = vunpack.c.l.b16 %v2974
      %v3088 = vpack.c.b16 %v3052, %v3051
      %v3089 = vpack.c.b16 %v3054, %v3053
      %v3090 = vpack.c.b16 %v3056, %v3055
      %v3091 = vpack.c.b16 %v3058, %v3057
      %v3092 = vpack.c.b16 %v3060, %v3059
      %v3093 = vpack.c.b16 %v3062, %v3061
      %v3094 = vpack.c.b16 %v3064, %v3063
      %v3095 = vpack.c.b16 %v3066, %v3065
      %v3096 = vpack.c.b16 %v3068, %v3067
      %v3097 = vpack.c.b16 %v3070, %v3069
      %v3098 = vpack.c.b16 %v3072, %v3071
      %v3099 = vpack.c.b16 %v3074, %v3073
      %v3100 = vpack.c.b16 %v3076, %v3075
      %v3101 = vpack.c.b16 %v3078, %v3077
      %v3102 = vpack.c.b16 %v3080, %v3079
      %v3103 = vpack.c.b16 %v3082, %v3081
      %v3104 = vpack.c.b16 %v3084, %v3083
      %v3105 = vpack.c.b16 %v3086, %v3085
      %v3106 = vpack.c.b16 %v3087, %v3087
      %vm3107 = vcmask 1045504
      %v3108 = vrot.slane %v3088, 2
      %v3109 = vrot.slane %v3089, 2
      %v3110 = vsel %vm3107, %v3108, %v3109
      %v3111 = vrot.slane %v3090, 2
      %v3112 = vsel %vm3107, %v3109, %v3111
      %v3113 = vrot.slane %v3091, 2
      %v3114 = vsel %vm3107, %v3111, %v3113
      %v3115 = vrot.slane %v3092, 2
      %v3116 = vsel %vm3107, %v3113, %v3115
      %v3117 = vrot.slane %v3093, 2
      %v3118 = vsel %vm3107, %v3115, %v3117
      %v3119 = vrot.slane %v3094, 2
      %v3120 = vsel %vm3107, %v3117, %v3119
      %v3121 = vrot.slane %v3095, 2
      %v3122 = vsel %vm3107, %v3119, %v3121
      %v3123 = vrot.slane %v3096, 2
      %v3124 = vsel %vm3107, %v3121, %v3123
      %v3125 = vrot.slane %v3097, 2
      %v3126 = vsel %vm3107, %v3123, %v3125
      %v3127 = vrot.slane %v3098, 2
      %v3128 = vsel %vm3107, %v3125, %v3127
      %v3129 = vrot.slane %v3099, 2
      %v3130 = vsel %vm3107, %v3127, %v3129
      %v3131 = vrot.slane %v3100, 2
      %v3132 = vsel %vm3107, %v3129, %v3131
      %v3133 = vrot.slane %v3101, 2
      %v3134 = vsel %vm3107, %v3131, %v3133
      %v3135 = vrot.slane %v3102, 2
      %v3136 = vsel %vm3107, %v3133, %v3135
      %v3137 = vrot.slane %v3103, 2
      %v3138 = vsel %vm3107, %v3135, %v3137
      %v3139 = vrot.slane %v3104, 2
      %v3140 = vsel %vm3107, %v3137, %v3139
      %v3141 = vrot.slane %v3105, 2
      %v3142 = vsel %vm3107, %v3139, %v3141
      %v3143 = vrot.slane %v3106, 2
      %v3144 = vsel %vm3107, %v3141, %v3143
      %v3147 = vunpack.c.l.b16 %v3012
      %v3148 = vunpack.c.l.b16 %v3013
      %v3149 = vpack.c.b16 %v3148, %v3147
      %v3152 = vsel %vm145, %v3110, 0
      %v3155 = vsel %vm145, %v3112, 0
      %v3158 = vsel %vm145, %v3114, 0
      %v3161 = vsel %vm145, %v3116, 0
      %v3164 = vsel %vm145, %v3118, 0
      %v3167 = vsel %vm145, %v3120, 0
      %v3170 = vsel %vm145, %v3122, 0
      %v3173 = vsel %vm145, %v3124, 0
      %v3176 = vsel %vm145, %v3126, 0
      %v3179 = vsel %vm145, %v3128, 0
      %v3182 = vsel %vm145, %v3130, 0
      %v3185 = vsel %vm145, %v3132, 0
      %v3188 = vsel %vm145, %v3134, 0
      %v3191 = vsel %vm145, %v3136, 0
      %v3194 = vsel %vm145, %v3138, 0
      %v3197 = vsel %vm145, %v3140, 0
      %v3200 = vsel %vm145, %v3142, 0
      %v3203 = vsel %vm145, %v3144, 0
      %3205 = vmatprep.subr.bf16.mxu0 0
      %3206 = vmatpush1.bf16.msra.mxu0 %v3149
      %3207 = vmatprep.subr.bf16.mxu0 0
      %3208 = vmatpush1.bf16.msra.mxu0 0
      %3209 = vmatprep.subr.bf16.mxu0 0
      %3210 = vmatpush1.bf16.msra.mxu0 0
      %3211 = vmatprep.subr.bf16.mxu0 0
      %3212 = vmatpush1.bf16.msra.mxu0 0
      %3213 = vmatprep.subr.bf16.mxu0 0
      %3214 = vmatpush1.bf16.msra.mxu0 0
      %3215 = vmatprep.subr.bf16.mxu0 0
      %3216 = vmatpush1.bf16.msra.mxu0 0
      %3217 = vmatprep.subr.bf16.mxu0 0
      %3218 = vmatpush1.bf16.msra.mxu0 0
      %3219 = vmatprep.subr.bf16.mxu0 0
      %3220 = vmatpush1.bf16.msra.mxu0 0
      %3221 = vmatprep.subr.bf16.mxu0 0
      %3222 = vmatpush1.bf16.msra.mxu0 0
      %3223 = vmatprep.subr.bf16.mxu0 0
      %3224 = vmatpush1.bf16.msra.mxu0 0
      %3225 = vmatprep.subr.bf16.mxu0 0
      %3226 = vmatpush1.bf16.msra.mxu0 0
      %3227 = vmatprep.subr.bf16.mxu0 0
      %3228 = vmatpush1.bf16.msra.mxu0 0
      %3229 = vmatprep.subr.bf16.mxu0 0
      %3230 = vmatpush1.bf16.msra.mxu0 0
      %3231 = vmatprep.subr.bf16.mxu0 0
      %3232 = vmatpush1.bf16.msra.mxu0 0
      %3233 = vmatprep.subr.bf16.mxu0 0
      %3234 = vmatpush1.bf16.msra.mxu0 0
      %3235 = vmatprep.subr.bf16.mxu0 0
      %3236 = vmatpush1.bf16.msra.mxu0 0
      %3237 = vmatprep.mubr.bf16.mxu0 0
      %3238 = vmatmul.mubr.bf16.gmra.mrb[0].mxu0 %v3152
      %v3239 = vpop.f32.mrb[0].mxu0
      %v3240 = vadd.f32 0.0, %v3239
      %v3241 = vpop.f32.mrb[0].mxu0
      %v3242 = vpop.f32.mrb[0].mxu0
      %v3243 = vadd.f32 0.0, %v3242
      %v3244 = vpop.f32.mrb[0].mxu0
      %3245 = vmatprep.mubr.bf16.mxu0 0
      %3246 = vmatmul.mubr.bf16.gmra.mrb[0].mxu0 %v3155
      %v3247 = vpop.f32.mrb[0].mxu0
      %v3248 = vadd.f32 0.0, %v3247
      %v3249 = vpop.f32.mrb[0].mxu0
      %v3250 = vpop.f32.mrb[0].mxu0
      %v3251 = vadd.f32 0.0, %v3250
      %v3252 = vpop.f32.mrb[0].mxu0
      %3253 = vmatprep.mubr.bf16.mxu0 0
      %3254 = vmatmul.mubr.bf16.gmra.mrb[0].mxu0 %v3158
      %v3255 = vpop.f32.mrb[0].mxu0
      %v3256 = vadd.f32 0.0, %v3255
      %v3257 = vpop.f32.mrb[0].mxu0
      %v3258 = vpop.f32.mrb[0].mxu0
      %v3259 = vadd.f32 0.0, %v3258
      %v3260 = vpop.f32.mrb[0].mxu0
      %3261 = vmatprep.mubr.bf16.mxu0 0
      %3262 = vmatmul.mubr.bf16.gmra.mrb[0].mxu0 %v3161
      %v3263 = vpop.f32.mrb[0].mxu0
      %v3264 = vadd.f32 0.0, %v3263
      %v3265 = vpop.f32.mrb[0].mxu0
      %v3266 = vpop.f32.mrb[0].mxu0
      %v3267 = vadd.f32 0.0, %v3266
      %v3268 = vpop.f32.mrb[0].mxu0
      %3269 = vmatprep.mubr.bf16.mxu0 0
      %3270 = vmatmul.mubr.bf16.gmra.mrb[0].mxu0 %v3164
      %v3271 = vpop.f32.mrb[0].mxu0
      %v3272 = vadd.f32 0.0, %v3271
      %v3273 = vpop.f32.mrb[0].mxu0
      %v3274 = vpop.f32.mrb[0].mxu0
      %v3275 = vadd.f32 0.0, %v3274
      %v3276 = vpop.f32.mrb[0].mxu0
      %3277 = vmatprep.mubr.bf16.mxu0 0
      %3278 = vmatmul.mubr.bf16.gmra.mrb[0].mxu0 %v3167
      %v3279 = vpop.f32.mrb[0].mxu0
      %v3280 = vadd.f32 0.0, %v3279
      %v3281 = vpop.f32.mrb[0].mxu0
      %v3282 = vpop.f32.mrb[0].mxu0
      %v3283 = vadd.f32 0.0, %v3282
      %v3284 = vpop.f32.mrb[0].mxu0
      %3285 = vmatprep.mubr.bf16.mxu0 0
      %3286 = vmatmul.mubr.bf16.gmra.mrb[0].mxu0 %v3170
      %v3287 = vpop.f32.mrb[0].mxu0
      %v3288 = vadd.f32 0.0, %v3287
      %v3289 = vpop.f32.mrb[0].mxu0
      %v3290 = vpop.f32.mrb[0].mxu0
      %v3291 = vadd.f32 0.0, %v3290
      %v3292 = vpop.f32.mrb[0].mxu0
      %3293 = vmatprep.mubr.bf16.mxu0 0
      %3294 = vmatmul.mubr.bf16.gmra.mrb[0].mxu0 %v3173
      %v3295 = vpop.f32.mrb[0].mxu0
      %v3296 = vadd.f32 0.0, %v3295
      %v3297 = vpop.f32.mrb[0].mxu0
      %v3298 = vpop.f32.mrb[0].mxu0
      %v3299 = vadd.f32 0.0, %v3298
      %v3300 = vpop.f32.mrb[0].mxu0
      %3301 = vmatprep.mubr.bf16.mxu0 0
      %3302 = vmatmul.mubr.bf16.gmra.mrb[0].mxu0 %v3176
      %v3303 = vpop.f32.mrb[0].mxu0
      %v3304 = vadd.f32 0.0, %v3303
      %v3305 = vpop.f32.mrb[0].mxu0
      %v3306 = vpop.f32.mrb[0].mxu0
      %v3307 = vadd.f32 0.0, %v3306
      %v3308 = vpop.f32.mrb[0].mxu0
      %3309 = vmatprep.mubr.bf16.mxu0 0
      %3310 = vmatmul.mubr.bf16.gmra.mrb[0].mxu0 %v3179
      %v3311 = vpop.f32.mrb[0].mxu0
      %v3312 = vadd.f32 0.0, %v3311
      %v3313 = vpop.f32.mrb[0].mxu0
      %v3314 = vpop.f32.mrb[0].mxu0
      %v3315 = vadd.f32 0.0, %v3314
      %v3316 = vpop.f32.mrb[0].mxu0
      %3317 = vmatprep.mubr.bf16.mxu0 0
      %3318 = vmatmul.mubr.bf16.gmra.mrb[0].mxu0 %v3182
      %v3319 = vpop.f32.mrb[0].mxu0
      %v3320 = vadd.f32 0.0, %v3319
      %v3321 = vpop.f32.mrb[0].mxu0
      %v3322 = vpop.f32.mrb[0].mxu0
      %v3323 = vadd.f32 0.0, %v3322
      %v3324 = vpop.f32.mrb[0].mxu0
      %3325 = vmatprep.mubr.bf16.mxu0 0
      %3326 = vmatmul.mubr.bf16.gmra.mrb[0].mxu0 %v3185
      %v3327 = vpop.f32.mrb[0].mxu0
      %v3328 = vadd.f32 0.0, %v3327
      %v3329 = vpop.f32.mrb[0].mxu0
      %v3330 = vpop.f32.mrb[0].mxu0
      %v3331 = vadd.f32 0.0, %v3330
      %v3332 = vpop.f32.mrb[0].mxu0
      %3333 = vmatprep.mubr.bf16.mxu0 0
      %3334 = vmatmul.mubr.bf16.gmra.mrb[0].mxu0 %v3188
      %v3335 = vpop.f32.mrb[0].mxu0
      %v3336 = vadd.f32 0.0, %v3335
      %v3337 = vpop.f32.mrb[0].mxu0
      %v3338 = vpop.f32.mrb[0].mxu0
      %v3339 = vadd.f32 0.0, %v3338
      %v3340 = vpop.f32.mrb[0].mxu0
      %3341 = vmatprep.mubr.bf16.mxu0 0
      %3342 = vmatmul.mubr.bf16.gmra.mrb[0].mxu0 %v3191
      %v3343 = vpop.f32.mrb[0].mxu0
      %v3344 = vadd.f32 0.0, %v3343
      %v3345 = vpop.f32.mrb[0].mxu0
      %v3346 = vpop.f32.mrb[0].mxu0
      %v3347 = vadd.f32 0.0, %v3346
      %v3348 = vpop.f32.mrb[0].mxu0
      %3349 = vmatprep.mubr.bf16.mxu0 0
      %3350 = vmatmul.mubr.bf16.gmra.mrb[0].mxu0 %v3194
      %v3351 = vpop.f32.mrb[0].mxu0
      %v3352 = vadd.f32 0.0, %v3351
      %v3353 = vpop.f32.mrb[0].mxu0
      %v3354 = vpop.f32.mrb[0].mxu0
      %v3355 = vadd.f32 0.0, %v3354
      %v3356 = vpop.f32.mrb[0].mxu0
      %3357 = vmatprep.mubr.bf16.mxu0 0
      %3358 = vmatmul.mubr.bf16.gmra.mrb[0].mxu0 %v3197
      %v3359 = vpop.f32.mrb[0].mxu0
      %v3360 = vadd.f32 0.0, %v3359
      %v3361 = vpop.f32.mrb[0].mxu0
      %v3362 = vpop.f32.mrb[0].mxu0
      %v3363 = vadd.f32 0.0, %v3362
      %v3364 = vpop.f32.mrb[0].mxu0
      %3365 = vmatprep.mubr.bf16.mxu0 0
      %3366 = vmatmul.mubr.bf16.gmra.mrb[0].mxu0 %v3200
      %v3367 = vpop.f32.mrb[0].mxu0
      %v3368 = vadd.f32 0.0, %v3367
      %v3369 = vpop.f32.mrb[0].mxu0
      %v3370 = vpop.f32.mrb[0].mxu0
      %v3371 = vadd.f32 0.0, %v3370
      %v3372 = vpop.f32.mrb[0].mxu0
      %3373 = vmatprep.mubr.bf16.mxu0 0
      %3374 = vmatmul.mubr.bf16.gmra.mrb[0].mxu0 %v3203
      %v3375 = vpop.f32.mrb[0].mxu0
      %v3376 = vadd.f32 0.0, %v3375
      %v3377 = vpop.f32.mrb[0].mxu0
      %v3378 = vpop.f32.mrb[0].mxu0
      %v3379 = vadd.f32 0.0, %v3378
      %v3380 = vpop.f32.mrb[0].mxu0
      %3381 = vdwg.mxu0
      %v3382 = vadd.f32 %v2975, %v3240
      %v3383 = vadd.f32 %v2976, %v3243
      %v3384 = vadd.f32 %v2977, %v3248
      %v3385 = vadd.f32 %v2978, %v3251
      %v3386 = vadd.f32 %v2979, %v3256
      %v3387 = vadd.f32 %v2980, %v3259
      %v3388 = vadd.f32 %v2981, %v3264
      %v3389 = vadd.f32 %v2982, %v3267
      %v3390 = vadd.f32 %v2983, %v3272
      %v3391 = vadd.f32 %v2984, %v3275
      %v3392 = vadd.f32 %v2985, %v3280
      %v3393 = vadd.f32 %v2986, %v3283
      %v3394 = vadd.f32 %v2987, %v3288
      %v3395 = vadd.f32 %v2988, %v3291
      %v3396 = vadd.f32 %v2989, %v3296
      %v3397 = vadd.f32 %v2990, %v3299
      %v3398 = vadd.f32 %v2991, %v3304
      %v3399 = vadd.f32 %v2992, %v3307
      %v3400 = vadd.f32 %v2993, %v3312
      %v3401 = vadd.f32 %v2994, %v3315
      %v3402 = vadd.f32 %v2995, %v3320
      %v3403 = vadd.f32 %v2996, %v3323
      %v3404 = vadd.f32 %v2997, %v3328
      %v3405 = vadd.f32 %v2998, %v3331
      %v3406 = vadd.f32 %v2999, %v3336
      %v3407 = vadd.f32 %v3000, %v3339
      %v3408 = vadd.f32 %v3001, %v3344
      %v3409 = vadd.f32 %v3002, %v3347
      %v3410 = vadd.f32 %v3003, %v3352
      %v3411 = vadd.f32 %v3004, %v3355
      %v3412 = vadd.f32 %v3005, %v3360
      %v3413 = vadd.f32 %v3006, %v3363
      %v3414 = vadd.f32 %v3007, %v3368
      %v3415 = vadd.f32 %v3008, %v3371
      %v3416 = vadd.f32 %v3009, %v3376
      %v3417 = vadd.f32 %v3010, %v3379
      %3418 = vst.msk [vmem:[#allocation2] sm:$0xff] %vm145, %v3382
      %3419 = vst.msk [vmem:[#allocation2 + $0x8] sm:$0xff] %vm145, %v3383
      %3420 = vst.msk [vmem:[#allocation2 + $0x10] sm:$0xff] %vm145, %v3384
      %3421 = vst.msk [vmem:[#allocation2 + $0x18] sm:$0xff] %vm145, %v3385
      %3422 = vst.msk [vmem:[#allocation2 + $0x20] sm:$0xff] %vm145, %v3386
      %3423 = vst.msk [vmem:[#allocation2 + $0x28] sm:$0xff] %vm145, %v3387
      %3424 = vst.msk [vmem:[#allocation2 + $0x30] sm:$0xff] %vm145, %v3388
      %3425 = vst.msk [vmem:[#allocation2 + $0x38] sm:$0xff] %vm145, %v3389
      %3426 = vst.msk [vmem:[#allocation2 + $0x40] sm:$0xff] %vm145, %v3390
      %3427 = vst.msk [vmem:[#allocation2 + $0x48] sm:$0xff] %vm145, %v3391
      %3428 = vst.msk [vmem:[#allocation2 + $0x50] sm:$0xff] %vm145, %v3392
      %3429 = vst.msk [vmem:[#allocation2 + $0x58] sm:$0xff] %vm145, %v3393
      %3430 = vst.msk [vmem:[#allocation2 + $0x60] sm:$0xff] %vm145, %v3394
      %3431 = vst.msk [vmem:[#allocation2 + $0x68] sm:$0xff] %vm145, %v3395
      %3432 = vst.msk [vmem:[#allocation2 + $0x70] sm:$0xff] %vm145, %v3396
      %3433 = vst.msk [vmem:[#allocation2 + $0x78] sm:$0xff] %vm145, %v3397
      %3434 = vst.msk [vmem:[#allocation2 + $0x80] sm:$0xff] %vm145, %v3398
      %3435 = vst.msk [vmem:[#allocation2 + $0x88] sm:$0xff] %vm145, %v3399
      %3436 = vst.msk [vmem:[#allocation2 + $0x90] sm:$0xff] %vm145, %v3400
      %3437 = vst.msk [vmem:[#allocation2 + $0x98] sm:$0xff] %vm145, %v3401
      %3438 = vst.msk [vmem:[#allocation2 + $0xa0] sm:$0xff] %vm145, %v3402
      %3439 = vst.msk [vmem:[#allocation2 + $0xa8] sm:$0xff] %vm145, %v3403
      %3440 = vst.msk [vmem:[#allocation2 + $0xb0] sm:$0xff] %vm145, %v3404
      %3441 = vst.msk [vmem:[#allocation2 + $0xb8] sm:$0xff] %vm145, %v3405
      %3442 = vst.msk [vmem:[#allocation2 + $0xc0] sm:$0xff] %vm145, %v3406
      %3443 = vst.msk [vmem:[#allocation2 + $0xc8] sm:$0xff] %vm145, %v3407
      %3444 = vst.msk [vmem:[#allocation2 + $0xd0] sm:$0xff] %vm145, %v3408
      %3445 = vst.msk [vmem:[#allocation2 + $0xd8] sm:$0xff] %vm145, %v3409
      %3446 = vst.msk [vmem:[#allocation2 + $0xe0] sm:$0xff] %vm145, %v3410
      %3447 = vst.msk [vmem:[#allocation2 + $0xe8] sm:$0xff] %vm145, %v3411
      %3448 = vst.msk [vmem:[#allocation2 + $0xf0] sm:$0xff] %vm145, %v3412
      %3449 = vst.msk [vmem:[#allocation2 + $0xf8] sm:$0xff] %vm145, %v3413
      %3450 = vst.msk [vmem:[#allocation2 + $0x100] sm:$0xff] %vm145, %v3414
      %3451 = vst.msk [vmem:[#allocation2 + $0x108] sm:$0xff] %vm145, %v3415
      %3452 = vst.msk [vmem:[#allocation2 + $0x110] sm:$0xff] %vm145, %v3416
      %3453 = vst.msk [vmem:[#allocation2 + $0x118] sm:$0x3f] %vm181, %v3417
      %v3454 = vld [vmem:[%s138 + $0x10] sm:$0xc]
      %v3455 = vld [vmem:[%s138 + $0x14] sm:$0xf]
      %v3456 = vld [vmem:[%s138 + $0x18] sm:$0xf]
      %v3457 = vld [vmem:[%s138 + $0x1c] sm:$0xf]
      %v3458 = vld [vmem:[%s138 + $0x20] sm:$0xf]
      %v3459 = vld [vmem:[%s138 + $0x24] sm:$0xf]
      %v3460 = vld [vmem:[%s138 + $0x28] sm:$0xf]
      %v3461 = vld [vmem:[%s138 + $0x2c] sm:$0xf]
      %v3462 = vld [vmem:[%s138 + $0x30] sm:$0xf]
      %v3463 = vld [vmem:[%s138 + $0x34] sm:$0xf]
      %v3464 = vld [vmem:[%s138 + $0x38] sm:$0xf]
      %v3465 = vld [vmem:[%s138 + $0x3c] sm:$0xf]
      %v3466 = vld [vmem:[%s138 + $0x40] sm:$0xf]
      %v3467 = vld [vmem:[%s138 + $0x44] sm:$0xf]
      %v3468 = vld [vmem:[%s138 + $0x48] sm:$0xf]
      %v3469 = vld [vmem:[%s138 + $0x4c] sm:$0xf]
      %v3470 = vld [vmem:[%s138 + $0x50] sm:$0xf]
      %v3471 = vld [vmem:[%s138 + $0x54] sm:$0xf]
      %v3472 = vld [vmem:[%s138 + $0x58] sm:$0xf]
      %v3473 = vld [vmem:[%s138 + $0x5c] sm:$0xf]
      %v3474 = vld [vmem:[%s138 + $0x60] sm:$0xf]
      %v3475 = vld [vmem:[%s138 + $0x64] sm:$0xf]
      %v3476 = vld [vmem:[%s138 + $0x68] sm:$0xf]
      %v3477 = vld [vmem:[%s138 + $0x6c] sm:$0xf]
      %v3478 = vld [vmem:[%s138 + $0x70] sm:$0xf]
      %v3479 = vld [vmem:[%s138 + $0x74] sm:$0xf]
      %v3480 = vld [vmem:[%s138 + $0x78] sm:$0xf]
      %v3481 = vld [vmem:[%s138 + $0x7c] sm:$0xf]
      %v3482 = vld [vmem:[%s138 + $0x80] sm:$0xf]
      %v3483 = vld [vmem:[%s138 + $0x84] sm:$0xf]
      %v3484 = vld [vmem:[%s138 + $0x88] sm:$0xf]
      %v3485 = vld [vmem:[%s138 + $0x8c] sm:$0xf]
      %v3486 = vld [vmem:[%s138 + $0x90] sm:$0xf]
      %v3487 = vld [vmem:[%s138 + $0x94] sm:$0xf]
      %v3488 = vld [vmem:[%s138 + $0x98] sm:$0xf]
      %v3489 = vld [vmem:[%s138 + $0x9c] sm:$0xf]
      %v3490 = vld [vmem:[%s138 + $0xa0] sm:$0x1]
      %v3491 = vld [vmem:[#allocation2] sm:$0xff]
      %v3492 = vld [vmem:[#allocation2 + $0x8] sm:$0xff]
      %v3493 = vld [vmem:[#allocation2 + $0x10] sm:$0xff]
      %v3494 = vld [vmem:[#allocation2 + $0x18] sm:$0xff]
      %v3495 = vld [vmem:[#allocation2 + $0x20] sm:$0xff]
      %v3496 = vld [vmem:[#allocation2 + $0x28] sm:$0xff]
      %v3497 = vld [vmem:[#allocation2 + $0x30] sm:$0xff]
      %v3498 = vld [vmem:[#allocation2 + $0x38] sm:$0xff]
      %v3499 = vld [vmem:[#allocation2 + $0x40] sm:$0xff]
      %v3500 = vld [vmem:[#allocation2 + $0x48] sm:$0xff]
      %v3501 = vld [vmem:[#allocation2 + $0x50] sm:$0xff]
      %v3502 = vld [vmem:[#allocation2 + $0x58] sm:$0xff]
      %v3503 = vld [vmem:[#allocation2 + $0x60] sm:$0xff]
      %v3504 = vld [vmem:[#allocation2 + $0x68] sm:$0xff]
      %v3505 = vld [vmem:[#allocation2 + $0x70] sm:$0xff]
      %v3506 = vld [vmem:[#allocation2 + $0x78] sm:$0xff]
      %v3507 = vld [vmem:[#allocation2 + $0x80] sm:$0xff]
      %v3508 = vld [vmem:[#allocation2 + $0x88] sm:$0xff]
      %v3509 = vld [vmem:[#allocation2 + $0x90] sm:$0xff]
      %v3510 = vld [vmem:[#allocation2 + $0x98] sm:$0xff]
      %v3511 = vld [vmem:[#allocation2 + $0xa0] sm:$0xff]
      %v3512 = vld [vmem:[#allocation2 + $0xa8] sm:$0xff]
      %v3513 = vld [vmem:[#allocation2 + $0xb0] sm:$0xff]
      %v3514 = vld [vmem:[#allocation2 + $0xb8] sm:$0xff]
      %v3515 = vld [vmem:[#allocation2 + $0xc0] sm:$0xff]
      %v3516 = vld [vmem:[#allocation2 + $0xc8] sm:$0xff]
      %v3517 = vld [vmem:[#allocation2 + $0xd0] sm:$0xff]
      %v3518 = vld [vmem:[#allocation2 + $0xd8] sm:$0xff]
      %v3519 = vld [vmem:[#allocation2 + $0xe0] sm:$0xff]
      %v3520 = vld [vmem:[#allocation2 + $0xe8] sm:$0xff]
      %v3521 = vld [vmem:[#allocation2 + $0xf0] sm:$0xff]
      %v3522 = vld [vmem:[#allocation2 + $0xf8] sm:$0xff]
      %v3523 = vld [vmem:[#allocation2 + $0x100] sm:$0xff]
      %v3524 = vld [vmem:[#allocation2 + $0x108] sm:$0xff]
      %v3525 = vld [vmem:[#allocation2 + $0x110] sm:$0xff]
      %v3526 = vld [vmem:[#allocation2 + $0x118] sm:$0x3f]
      %s3527 = scalar_lea.vmem %s1, 48
      %v3528 = vld [vmem:[%s3527] sm:$0xf]
      %v3529 = vld [vmem:[%s3527 + $0x4] sm:$0xf]
      %v3567 = vunpack.c.l.b16 %v3454
      %v3568 = vunpack.c.l.b16 %v3455
      %v3569 = vunpack.c.l.b16 %v3456
      %v3570 = vunpack.c.l.b16 %v3457
      %v3571 = vunpack.c.l.b16 %v3458
      %v3572 = vunpack.c.l.b16 %v3459
      %v3573 = vunpack.c.l.b16 %v3460
      %v3574 = vunpack.c.l.b16 %v3461
      %v3575 = vunpack.c.l.b16 %v3462
      %v3576 = vunpack.c.l.b16 %v3463
      %v3577 = vunpack.c.l.b16 %v3464
      %v3578 = vunpack.c.l.b16 %v3465
      %v3579 = vunpack.c.l.b16 %v3466
      %v3580 = vunpack.c.l.b16 %v3467
      %v3581 = vunpack.c.l.b16 %v3468
      %v3582 = vunpack.c.l.b16 %v3469
      %v3583 = vunpack.c.l.b16 %v3470
      %v3584 = vunpack.c.l.b16 %v3471
      %v3585 = vunpack.c.l.b16 %v3472
      %v3586 = vunpack.c.l.b16 %v3473
      %v3587 = vunpack.c.l.b16 %v3474
      %v3588 = vunpack.c.l.b16 %v3475
      %v3589 = vunpack.c.l.b16 %v3476
      %v3590 = vunpack.c.l.b16 %v3477
      %v3591 = vunpack.c.l.b16 %v3478
      %v3592 = vunpack.c.l.b16 %v3479
      %v3593 = vunpack.c.l.b16 %v3480
      %v3594 = vunpack.c.l.b16 %v3481
      %v3595 = vunpack.c.l.b16 %v3482
      %v3596 = vunpack.c.l.b16 %v3483
      %v3597 = vunpack.c.l.b16 %v3484
      %v3598 = vunpack.c.l.b16 %v3485
      %v3599 = vunpack.c.l.b16 %v3486
      %v3600 = vunpack.c.l.b16 %v3487
      %v3601 = vunpack.c.l.b16 %v3488
      %v3602 = vunpack.c.l.b16 %v3489
      %v3603 = vunpack.c.l.b16 %v3490
      %v3604 = vpack.c.b16 %v3568, %v3567
      %v3605 = vpack.c.b16 %v3570, %v3569
      %v3606 = vpack.c.b16 %v3572, %v3571
      %v3607 = vpack.c.b16 %v3574, %v3573
      %v3608 = vpack.c.b16 %v3576, %v3575
      %v3609 = vpack.c.b16 %v3578, %v3577
      %v3610 = vpack.c.b16 %v3580, %v3579
      %v3611 = vpack.c.b16 %v3582, %v3581
      %v3612 = vpack.c.b16 %v3584, %v3583
      %v3613 = vpack.c.b16 %v3586, %v3585
      %v3614 = vpack.c.b16 %v3588, %v3587
      %v3615 = vpack.c.b16 %v3590, %v3589
      %v3616 = vpack.c.b16 %v3592, %v3591
      %v3617 = vpack.c.b16 %v3594, %v3593
      %v3618 = vpack.c.b16 %v3596, %v3595
      %v3619 = vpack.c.b16 %v3598, %v3597
      %v3620 = vpack.c.b16 %v3600, %v3599
      %v3621 = vpack.c.b16 %v3602, %v3601
      %v3622 = vpack.c.b16 %v3603, %v3603
      %v3623 = vrot.slane %v3604, 2
      %v3624 = vrot.slane %v3605, 2
      %v3625 = vsel %vm3107, %v3623, %v3624
      %v3626 = vrot.slane %v3606, 2
      %v3627 = vsel %vm3107, %v3624, %v3626
      %v3628 = vrot.slane %v3607, 2
      %v3629 = vsel %vm3107, %v3626, %v3628
      %v3630 = vrot.slane %v3608, 2
      %v3631 = vsel %vm3107, %v3628, %v3630
      %v3632 = vrot.slane %v3609, 2
      %v3633 = vsel %vm3107, %v3630, %v3632
      %v3634 = vrot.slane %v3610, 2
      %v3635 = vsel %vm3107, %v3632, %v3634
      %v3636 = vrot.slane %v3611, 2
      %v3637 = vsel %vm3107, %v3634, %v3636
      %v3638 = vrot.slane %v3612, 2
      %v3639 = vsel %vm3107, %v3636, %v3638
      %v3640 = vrot.slane %v3613, 2
      %v3641 = vsel %vm3107, %v3638, %v3640
      %v3642 = vrot.slane %v3614, 2
      %v3643 = vsel %vm3107, %v3640, %v3642
      %v3644 = vrot.slane %v3615, 2
      %v3645 = vsel %vm3107, %v3642, %v3644
      %v3646 = vrot.slane %v3616, 2
      %v3647 = vsel %vm3107, %v3644, %v3646
      %v3648 = vrot.slane %v3617, 2
      %v3649 = vsel %vm3107, %v3646, %v3648
      %v3650 = vrot.slane %v3618, 2
      %v3651 = vsel %vm3107, %v3648, %v3650
      %v3652 = vrot.slane %v3619, 2
      %v3653 = vsel %vm3107, %v3650, %v3652
      %v3654 = vrot.slane %v3620, 2
      %v3655 = vsel %vm3107, %v3652, %v3654
      %v3656 = vrot.slane %v3621, 2
      %v3657 = vsel %vm3107, %v3654, %v3656
      %v3658 = vrot.slane %v3622, 2
      %v3659 = vsel %vm3107, %v3656, %v3658
      %v3662 = vunpack.c.l.b16 %v3528
      %v3663 = vunpack.c.l.b16 %v3529
      %v3664 = vpack.c.b16 %v3663, %v3662
      %v3667 = vsel %vm145, %v3625, 0
      %v3670 = vsel %vm145, %v3627, 0
      %v3673 = vsel %vm145, %v3629, 0
      %v3676 = vsel %vm145, %v3631, 0
      %v3679 = vsel %vm145, %v3633, 0
      %v3682 = vsel %vm145, %v3635, 0
      %v3685 = vsel %vm145, %v3637, 0
      %v3688 = vsel %vm145, %v3639, 0
      %v3691 = vsel %vm145, %v3641, 0
      %v3694 = vsel %vm145, %v3643, 0
      %v3697 = vsel %vm145, %v3645, 0
      %v3700 = vsel %vm145, %v3647, 0
      %v3703 = vsel %vm145, %v3649, 0
      %v3706 = vsel %vm145, %v3651, 0
      %v3709 = vsel %vm145, %v3653, 0
      %v3712 = vsel %vm145, %v3655, 0
      %v3715 = vsel %vm145, %v3657, 0
      %v3718 = vsel %vm145, %v3659, 0
      %3720 = vmatprep.subr.bf16.mxu0 0
      %3721 = vmatpush1.bf16.msra.mxu0 %v3664
      %3722 = vmatprep.subr.bf16.mxu0 0
      %3723 = vmatpush1.bf16.msra.mxu0 0
      %3724 = vmatprep.subr.bf16.mxu0 0
      %3725 = vmatpush1.bf16.msra.mxu0 0
      %3726 = vmatprep.subr.bf16.mxu0 0
      %3727 = vmatpush1.bf16.msra.mxu0 0
      %3728 = vmatprep.subr.bf16.mxu0 0
      %3729 = vmatpush1.bf16.msra.mxu0 0
      %3730 = vmatprep.subr.bf16.mxu0 0
      %3731 = vmatpush1.bf16.msra.mxu0 0
      %3732 = vmatprep.subr.bf16.mxu0 0
      %3733 = vmatpush1.bf16.msra.mxu0 0
      %3734 = vmatprep.subr.bf16.mxu0 0
      %3735 = vmatpush1.bf16.msra.mxu0 0
      %3736 = vmatprep.subr.bf16.mxu0 0
      %3737 = vmatpush1.bf16.msra.mxu0 0
      %3738 = vmatprep.subr.bf16.mxu0 0
      %3739 = vmatpush1.bf16.msra.mxu0 0
      %3740 = vmatprep.subr.bf16.mxu0 0
      %3741 = vmatpush1.bf16.msra.mxu0 0
      %3742 = vmatprep.subr.bf16.mxu0 0
      %3743 = vmatpush1.bf16.msra.mxu0 0
      %3744 = vmatprep.subr.bf16.mxu0 0
      %3745 = vmatpush1.bf16.msra.mxu0 0
      %3746 = vmatprep.subr.bf16.mxu0 0
      %3747 = vmatpush1.bf16.msra.mxu0 0
      %3748 = vmatprep.subr.bf16.mxu0 0
      %3749 = vmatpush1.bf16.msra.mxu0 0
      %3750 = vmatprep.subr.bf16.mxu0 0
      %3751 = vmatpush1.bf16.msra.mxu0 0
      %3752 = vmatprep.mubr.bf16.mxu0 0
      %3753 = vmatmul.mubr.bf16.gmra.mrb[0].mxu0 %v3667
      %v3754 = vpop.f32.mrb[0].mxu0
      %v3755 = vadd.f32 0.0, %v3754
      %v3756 = vpop.f32.mrb[0].mxu0
      %v3757 = vpop.f32.mrb[0].mxu0
      %v3758 = vadd.f32 0.0, %v3757
      %v3759 = vpop.f32.mrb[0].mxu0
      %3760 = vmatprep.mubr.bf16.mxu0 0
      %3761 = vmatmul.mubr.bf16.gmra.mrb[0].mxu0 %v3670
      %v3762 = vpop.f32.mrb[0].mxu0
      %v3763 = vadd.f32 0.0, %v3762
      %v3764 = vpop.f32.mrb[0].mxu0
      %v3765 = vpop.f32.mrb[0].mxu0
      %v3766 = vadd.f32 0.0, %v3765
      %v3767 = vpop.f32.mrb[0].mxu0
      %3768 = vmatprep.mubr.bf16.mxu0 0
      %3769 = vmatmul.mubr.bf16.gmra.mrb[0].mxu0 %v3673
      %v3770 = vpop.f32.mrb[0].mxu0
      %v3771 = vadd.f32 0.0, %v3770
      %v3772 = vpop.f32.mrb[0].mxu0
      %v3773 = vpop.f32.mrb[0].mxu0
      %v3774 = vadd.f32 0.0, %v3773
      %v3775 = vpop.f32.mrb[0].mxu0
      %3776 = vmatprep.mubr.bf16.mxu0 0
      %3777 = vmatmul.mubr.bf16.gmra.mrb[0].mxu0 %v3676
      %v3778 = vpop.f32.mrb[0].mxu0
      %v3779 = vadd.f32 0.0, %v3778
      %v3780 = vpop.f32.mrb[0].mxu0
      %v3781 = vpop.f32.mrb[0].mxu0
      %v3782 = vadd.f32 0.0, %v3781
      %v3783 = vpop.f32.mrb[0].mxu0
      %3784 = vmatprep.mubr.bf16.mxu0 0
      %3785 = vmatmul.mubr.bf16.gmra.mrb[0].mxu0 %v3679
      %v3786 = vpop.f32.mrb[0].mxu0
      %v3787 = vadd.f32 0.0, %v3786
      %v3788 = vpop.f32.mrb[0].mxu0
      %v3789 = vpop.f32.mrb[0].mxu0
      %v3790 = vadd.f32 0.0, %v3789
      %v3791 = vpop.f32.mrb[0].mxu0
      %3792 = vmatprep.mubr.bf16.mxu0 0
      %3793 = vmatmul.mubr.bf16.gmra.mrb[0].mxu0 %v3682
      %v3794 = vpop.f32.mrb[0].mxu0
      %v3795 = vadd.f32 0.0, %v3794
      %v3796 = vpop.f32.mrb[0].mxu0
      %v3797 = vpop.f32.mrb[0].mxu0
      %v3798 = vadd.f32 0.0, %v3797
      %v3799 = vpop.f32.mrb[0].mxu0
      %3800 = vmatprep.mubr.bf16.mxu0 0
      %3801 = vmatmul.mubr.bf16.gmra.mrb[0].mxu0 %v3685
      %v3802 = vpop.f32.mrb[0].mxu0
      %v3803 = vadd.f32 0.0, %v3802
      %v3804 = vpop.f32.mrb[0].mxu0
      %v3805 = vpop.f32.mrb[0].mxu0
      %v3806 = vadd.f32 0.0, %v3805
      %v3807 = vpop.f32.mrb[0].mxu0
      %3808 = vmatprep.mubr.bf16.mxu0 0
      %3809 = vmatmul.mubr.bf16.gmra.mrb[0].mxu0 %v3688
      %v3810 = vpop.f32.mrb[0].mxu0
      %v3811 = vadd.f32 0.0, %v3810
      %v3812 = vpop.f32.mrb[0].mxu0
      %v3813 = vpop.f32.mrb[0].mxu0
      %v3814 = vadd.f32 0.0, %v3813
      %v3815 = vpop.f32.mrb[0].mxu0
      %3816 = vmatprep.mubr.bf16.mxu0 0
      %3817 = vmatmul.mubr.bf16.gmra.mrb[0].mxu0 %v3691
      %v3818 = vpop.f32.mrb[0].mxu0
      %v3819 = vadd.f32 0.0, %v3818
      %v3820 = vpop.f32.mrb[0].mxu0
      %v3821 = vpop.f32.mrb[0].mxu0
      %v3822 = vadd.f32 0.0, %v3821
      %v3823 = vpop.f32.mrb[0].mxu0
      %3824 = vmatprep.mubr.bf16.mxu0 0
      %3825 = vmatmul.mubr.bf16.gmra.mrb[0].mxu0 %v3694
      %v3826 = vpop.f32.mrb[0].mxu0
      %v3827 = vadd.f32 0.0, %v3826
      %v3828 = vpop.f32.mrb[0].mxu0
      %v3829 = vpop.f32.mrb[0].mxu0
      %v3830 = vadd.f32 0.0, %v3829
      %v3831 = vpop.f32.mrb[0].mxu0
      %3832 = vmatprep.mubr.bf16.mxu0 0
      %3833 = vmatmul.mubr.bf16.gmra.mrb[0].mxu0 %v3697
      %v3834 = vpop.f32.mrb[0].mxu0
      %v3835 = vadd.f32 0.0, %v3834
      %v3836 = vpop.f32.mrb[0].mxu0
      %v3837 = vpop.f32.mrb[0].mxu0
      %v3838 = vadd.f32 0.0, %v3837
      %v3839 = vpop.f32.mrb[0].mxu0
      %3840 = vmatprep.mubr.bf16.mxu0 0
      %3841 = vmatmul.mubr.bf16.gmra.mrb[0].mxu0 %v3700
      %v3842 = vpop.f32.mrb[0].mxu0
      %v3843 = vadd.f32 0.0, %v3842
      %v3844 = vpop.f32.mrb[0].mxu0
      %v3845 = vpop.f32.mrb[0].mxu0
      %v3846 = vadd.f32 0.0, %v3845
      %v3847 = vpop.f32.mrb[0].mxu0
      %3848 = vmatprep.mubr.bf16.mxu0 0
      %3849 = vmatmul.mubr.bf16.gmra.mrb[0].mxu0 %v3703
      %v3850 = vpop.f32.mrb[0].mxu0
      %v3851 = vadd.f32 0.0, %v3850
      %v3852 = vpop.f32.mrb[0].mxu0
      %v3853 = vpop.f32.mrb[0].mxu0
      %v3854 = vadd.f32 0.0, %v3853
      %v3855 = vpop.f32.mrb[0].mxu0
      %3856 = vmatprep.mubr.bf16.mxu0 0
      %3857 = vmatmul.mubr.bf16.gmra.mrb[0].mxu0 %v3706
      %v3858 = vpop.f32.mrb[0].mxu0
      %v3859 = vadd.f32 0.0, %v3858
      %v3860 = vpop.f32.mrb[0].mxu0
      %v3861 = vpop.f32.mrb[0].mxu0
      %v3862 = vadd.f32 0.0, %v3861
      %v3863 = vpop.f32.mrb[0].mxu0
      %3864 = vmatprep.mubr.bf16.mxu0 0
      %3865 = vmatmul.mubr.bf16.gmra.mrb[0].mxu0 %v3709
      %v3866 = vpop.f32.mrb[0].mxu0
      %v3867 = vadd.f32 0.0, %v3866
      %v3868 = vpop.f32.mrb[0].mxu0
      %v3869 = vpop.f32.mrb[0].mxu0
      %v3870 = vadd.f32 0.0, %v3869
      %v3871 = vpop.f32.mrb[0].mxu0
      %3872 = vmatprep.mubr.bf16.mxu0 0
      %3873 = vmatmul.mubr.bf16.gmra.mrb[0].mxu0 %v3712
      %v3874 = vpop.f32.mrb[0].mxu0
      %v3875 = vadd.f32 0.0, %v3874
      %v3876 = vpop.f32.mrb[0].mxu0
      %v3877 = vpop.f32.mrb[0].mxu0
      %v3878 = vadd.f32 0.0, %v3877
      %v3879 = vpop.f32.mrb[0].mxu0
      %3880 = vmatprep.mubr.bf16.mxu0 0
      %3881 = vmatmul.mubr.bf16.gmra.mrb[0].mxu0 %v3715
      %v3882 = vpop.f32.mrb[0].mxu0
      %v3883 = vadd.f32 0.0, %v3882
      %v3884 = vpop.f32.mrb[0].mxu0
      %v3885 = vpop.f32.mrb[0].mxu0
      %v3886 = vadd.f32 0.0, %v3885
      %v3887 = vpop.f32.mrb[0].mxu0
      %3888 = vmatprep.mubr.bf16.mxu0 0
      %3889 = vmatmul.mubr.bf16.gmra.mrb[0].mxu0 %v3718
      %v3890 = vpop.f32.mrb[0].mxu0
      %v3891 = vadd.f32 0.0, %v3890
      %v3892 = vpop.f32.mrb[0].mxu0
      %v3893 = vpop.f32.mrb[0].mxu0
      %v3894 = vadd.f32 0.0, %v3893
      %v3895 = vpop.f32.mrb[0].mxu0
      %3896 = vdwg.mxu0
      %v3897 = vadd.f32 %v3491, %v3755
      %v3898 = vadd.f32 %v3492, %v3758
      %v3899 = vadd.f32 %v3493, %v3763
      %v3900 = vadd.f32 %v3494, %v3766
      %v3901 = vadd.f32 %v3495, %v3771
      %v3902 = vadd.f32 %v3496, %v3774
      %v3903 = vadd.f32 %v3497, %v3779
      %v3904 = vadd.f32 %v3498, %v3782
      %v3905 = vadd.f32 %v3499, %v3787
      %v3906 = vadd.f32 %v3500, %v3790
      %v3907 = vadd.f32 %v3501, %v3795
      %v3908 = vadd.f32 %v3502, %v3798
      %v3909 = vadd.f32 %v3503, %v3803
      %v3910 = vadd.f32 %v3504, %v3806
      %v3911 = vadd.f32 %v3505, %v3811
      %v3912 = vadd.f32 %v3506, %v3814
      %v3913 = vadd.f32 %v3507, %v3819
      %v3914 = vadd.f32 %v3508, %v3822
      %v3915 = vadd.f32 %v3509, %v3827
      %v3916 = vadd.f32 %v3510, %v3830
      %v3917 = vadd.f32 %v3511, %v3835
      %v3918 = vadd.f32 %v3512, %v3838
      %v3919 = vadd.f32 %v3513, %v3843
      %v3920 = vadd.f32 %v3514, %v3846
      %v3921 = vadd.f32 %v3515, %v3851
      %v3922 = vadd.f32 %v3516, %v3854
      %v3923 = vadd.f32 %v3517, %v3859
      %v3924 = vadd.f32 %v3518, %v3862
      %v3925 = vadd.f32 %v3519, %v3867
      %v3926 = vadd.f32 %v3520, %v3870
      %v3927 = vadd.f32 %v3521, %v3875
      %v3928 = vadd.f32 %v3522, %v3878
      %v3929 = vadd.f32 %v3523, %v3883
      %v3930 = vadd.f32 %v3524, %v3886
      %v3931 = vadd.f32 %v3525, %v3891
      %v3932 = vadd.f32 %v3526, %v3894
      %3933 = vst.msk [vmem:[#allocation2] sm:$0xff] %vm145, %v3897
      %3934 = vst.msk [vmem:[#allocation2 + $0x8] sm:$0xff] %vm145, %v3898
      %3935 = vst.msk [vmem:[#allocation2 + $0x10] sm:$0xff] %vm145, %v3899
      %3936 = vst.msk [vmem:[#allocation2 + $0x18] sm:$0xff] %vm145, %v3900
      %3937 = vst.msk [vmem:[#allocation2 + $0x20] sm:$0xff] %vm145, %v3901
      %3938 = vst.msk [vmem:[#allocation2 + $0x28] sm:$0xff] %vm145, %v3902
      %3939 = vst.msk [vmem:[#allocation2 + $0x30] sm:$0xff] %vm145, %v3903
      %3940 = vst.msk [vmem:[#allocation2 + $0x38] sm:$0xff] %vm145, %v3904
      %3941 = vst.msk [vmem:[#allocation2 + $0x40] sm:$0xff] %vm145, %v3905
      %3942 = vst.msk [vmem:[#allocation2 + $0x48] sm:$0xff] %vm145, %v3906
      %3943 = vst.msk [vmem:[#allocation2 + $0x50] sm:$0xff] %vm145, %v3907
      %3944 = vst.msk [vmem:[#allocation2 + $0x58] sm:$0xff] %vm145, %v3908
      %3945 = vst.msk [vmem:[#allocation2 + $0x60] sm:$0xff] %vm145, %v3909
      %3946 = vst.msk [vmem:[#allocation2 + $0x68] sm:$0xff] %vm145, %v3910
      %3947 = vst.msk [vmem:[#allocation2 + $0x70] sm:$0xff] %vm145, %v3911
      %3948 = vst.msk [vmem:[#allocation2 + $0x78] sm:$0xff] %vm145, %v3912
      %3949 = vst.msk [vmem:[#allocation2 + $0x80] sm:$0xff] %vm145, %v3913
      %3950 = vst.msk [vmem:[#allocation2 + $0x88] sm:$0xff] %vm145, %v3914
      %3951 = vst.msk [vmem:[#allocation2 + $0x90] sm:$0xff] %vm145, %v3915
      %3952 = vst.msk [vmem:[#allocation2 + $0x98] sm:$0xff] %vm145, %v3916
      %3953 = vst.msk [vmem:[#allocation2 + $0xa0] sm:$0xff] %vm145, %v3917
      %3954 = vst.msk [vmem:[#allocation2 + $0xa8] sm:$0xff] %vm145, %v3918
      %3955 = vst.msk [vmem:[#allocation2 + $0xb0] sm:$0xff] %vm145, %v3919
      %3956 = vst.msk [vmem:[#allocation2 + $0xb8] sm:$0xff] %vm145, %v3920
      %3957 = vst.msk [vmem:[#allocation2 + $0xc0] sm:$0xff] %vm145, %v3921
      %3958 = vst.msk [vmem:[#allocation2 + $0xc8] sm:$0xff] %vm145, %v3922
      %3959 = vst.msk [vmem:[#allocation2 + $0xd0] sm:$0xff] %vm145, %v3923
      %3960 = vst.msk [vmem:[#allocation2 + $0xd8] sm:$0xff] %vm145, %v3924
      %3961 = vst.msk [vmem:[#allocation2 + $0xe0] sm:$0xff] %vm145, %v3925
      %3962 = vst.msk [vmem:[#allocation2 + $0xe8] sm:$0xff] %vm145, %v3926
      %3963 = vst.msk [vmem:[#allocation2 + $0xf0] sm:$0xff] %vm145, %v3927
      %3964 = vst.msk [vmem:[#allocation2 + $0xf8] sm:$0xff] %vm145, %v3928
      %3965 = vst.msk [vmem:[#allocation2 + $0x100] sm:$0xff] %vm145, %v3929
      %3966 = vst.msk [vmem:[#allocation2 + $0x108] sm:$0xff] %vm145, %v3930
      %3967 = vst.msk [vmem:[#allocation2 + $0x110] sm:$0xff] %vm145, %v3931
      %3968 = vst.msk [vmem:[#allocation2 + $0x118] sm:$0x3f] %vm181, %v3932
      %v3969 = vld [vmem:[%s138 + $0x10] sm:$0xc]
      %v3970 = vld [vmem:[%s138 + $0x14] sm:$0xf]
      %v3971 = vld [vmem:[%s138 + $0x18] sm:$0xf]
      %v3972 = vld [vmem:[%s138 + $0x1c] sm:$0xf]
      %v3973 = vld [vmem:[%s138 + $0x20] sm:$0xf]
      %v3974 = vld [vmem:[%s138 + $0x24] sm:$0xf]
      %v3975 = vld [vmem:[%s138 + $0x28] sm:$0xf]
      %v3976 = vld [vmem:[%s138 + $0x2c] sm:$0xf]
      %v3977 = vld [vmem:[%s138 + $0x30] sm:$0xf]
      %v3978 = vld [vmem:[%s138 + $0x34] sm:$0xf]
      %v3979 = vld [vmem:[%s138 + $0x38] sm:$0xf]
      %v3980 = vld [vmem:[%s138 + $0x3c] sm:$0xf]
      %v3981 = vld [vmem:[%s138 + $0x40] sm:$0xf]
      %v3982 = vld [vmem:[%s138 + $0x44] sm:$0xf]
      %v3983 = vld [vmem:[%s138 + $0x48] sm:$0xf]
      %v3984 = vld [vmem:[%s138 + $0x4c] sm:$0xf]
      %v3985 = vld [vmem:[%s138 + $0x50] sm:$0xf]
      %v3986 = vld [vmem:[%s138 + $0x54] sm:$0xf]
      %v3987 = vld [vmem:[%s138 + $0x58] sm:$0xf]
      %v3988 = vld [vmem:[%s138 + $0x5c] sm:$0xf]
      %v3989 = vld [vmem:[%s138 + $0x60] sm:$0xf]
      %v3990 = vld [vmem:[%s138 + $0x64] sm:$0xf]
      %v3991 = vld [vmem:[%s138 + $0x68] sm:$0xf]
      %v3992 = vld [vmem:[%s138 + $0x6c] sm:$0xf]
      %v3993 = vld [vmem:[%s138 + $0x70] sm:$0xf]
      %v3994 = vld [vmem:[%s138 + $0x74] sm:$0xf]
      %v3995 = vld [vmem:[%s138 + $0x78] sm:$0xf]
      %v3996 = vld [vmem:[%s138 + $0x7c] sm:$0xf]
      %v3997 = vld [vmem:[%s138 + $0x80] sm:$0xf]
      %v3998 = vld [vmem:[%s138 + $0x84] sm:$0xf]
      %v3999 = vld [vmem:[%s138 + $0x88] sm:$0xf]
      %v4000 = vld [vmem:[%s138 + $0x8c] sm:$0xf]
      %v4001 = vld [vmem:[%s138 + $0x90] sm:$0xf]
      %v4002 = vld [vmem:[%s138 + $0x94] sm:$0xf]
      %v4003 = vld [vmem:[%s138 + $0x98] sm:$0xf]
      %v4004 = vld [vmem:[%s138 + $0x9c] sm:$0xf]
      %v4005 = vld [vmem:[%s138 + $0xa0] sm:$0x3]
      %v4006 = vld [vmem:[#allocation2] sm:$0xff]
      %v4007 = vld [vmem:[#allocation2 + $0x8] sm:$0xff]
      %v4008 = vld [vmem:[#allocation2 + $0x10] sm:$0xff]
      %v4009 = vld [vmem:[#allocation2 + $0x18] sm:$0xff]
      %v4010 = vld [vmem:[#allocation2 + $0x20] sm:$0xff]
      %v4011 = vld [vmem:[#allocation2 + $0x28] sm:$0xff]
      %v4012 = vld [vmem:[#allocation2 + $0x30] sm:$0xff]
      %v4013 = vld [vmem:[#allocation2 + $0x38] sm:$0xff]
      %v4014 = vld [vmem:[#allocation2 + $0x40] sm:$0xff]
      %v4015 = vld [vmem:[#allocation2 + $0x48] sm:$0xff]
      %v4016 = vld [vmem:[#allocation2 + $0x50] sm:$0xff]
      %v4017 = vld [vmem:[#allocation2 + $0x58] sm:$0xff]
      %v4018 = vld [vmem:[#allocation2 + $0x60] sm:$0xff]
      %v4019 = vld [vmem:[#allocation2 + $0x68] sm:$0xff]
      %v4020 = vld [vmem:[#allocation2 + $0x70] sm:$0xff]
      %v4021 = vld [vmem:[#allocation2 + $0x78] sm:$0xff]
      %v4022 = vld [vmem:[#allocation2 + $0x80] sm:$0xff]
      %v4023 = vld [vmem:[#allocation2 + $0x88] sm:$0xff]
      %v4024 = vld [vmem:[#allocation2 + $0x90] sm:$0xff]
      %v4025 = vld [vmem:[#allocation2 + $0x98] sm:$0xff]
      %v4026 = vld [vmem:[#allocation2 + $0xa0] sm:$0xff]
      %v4027 = vld [vmem:[#allocation2 + $0xa8] sm:$0xff]
      %v4028 = vld [vmem:[#allocation2 + $0xb0] sm:$0xff]
      %v4029 = vld [vmem:[#allocation2 + $0xb8] sm:$0xff]
      %v4030 = vld [vmem:[#allocation2 + $0xc0] sm:$0xff]
      %v4031 = vld [vmem:[#allocation2 + $0xc8] sm:$0xff]
      %v4032 = vld [vmem:[#allocation2 + $0xd0] sm:$0xff]
      %v4033 = vld [vmem:[#allocation2 + $0xd8] sm:$0xff]
      %v4034 = vld [vmem:[#allocation2 + $0xe0] sm:$0xff]
      %v4035 = vld [vmem:[#allocation2 + $0xe8] sm:$0xff]
      %v4036 = vld [vmem:[#allocation2 + $0xf0] sm:$0xff]
      %v4037 = vld [vmem:[#allocation2 + $0xf8] sm:$0xff]
      %v4038 = vld [vmem:[#allocation2 + $0x100] sm:$0xff]
      %v4039 = vld [vmem:[#allocation2 + $0x108] sm:$0xff]
      %v4040 = vld [vmem:[#allocation2 + $0x110] sm:$0xff]
      %v4041 = vld [vmem:[#allocation2 + $0x118] sm:$0x3f]
      %s4042 = scalar_lea.vmem %s1, 56
      %v4043 = vld [vmem:[%s4042] sm:$0xf]
      %v4044 = vld [vmem:[%s4042 + $0x4] sm:$0xf]
      %v4082 = vunpack.c.l.b16 %v3969
      %v4083 = vunpack.c.l.b16 %v3970
      %v4084 = vunpack.c.l.b16 %v3971
      %v4085 = vunpack.c.l.b16 %v3972
      %v4086 = vunpack.c.l.b16 %v3973
      %v4087 = vunpack.c.l.b16 %v3974
      %v4088 = vunpack.c.l.b16 %v3975
      %v4089 = vunpack.c.l.b16 %v3976
      %v4090 = vunpack.c.l.b16 %v3977
      %v4091 = vunpack.c.l.b16 %v3978
      %v4092 = vunpack.c.l.b16 %v3979
      %v4093 = vunpack.c.l.b16 %v3980
      %v4094 = vunpack.c.l.b16 %v3981
      %v4095 = vunpack.c.l.b16 %v3982
      %v4096 = vunpack.c.l.b16 %v3983
      %v4097 = vunpack.c.l.b16 %v3984
      %v4098 = vunpack.c.l.b16 %v3985
      %v4099 = vunpack.c.l.b16 %v3986
      %v4100 = vunpack.c.l.b16 %v3987
      %v4101 = vunpack.c.l.b16 %v3988
      %v4102 = vunpack.c.l.b16 %v3989
      %v4103 = vunpack.c.l.b16 %v3990
      %v4104 = vunpack.c.l.b16 %v3991
      %v4105 = vunpack.c.l.b16 %v3992
      %v4106 = vunpack.c.l.b16 %v3993
      %v4107 = vunpack.c.l.b16 %v3994
      %v4108 = vunpack.c.l.b16 %v3995
      %v4109 = vunpack.c.l.b16 %v3996
      %v4110 = vunpack.c.l.b16 %v3997
      %v4111 = vunpack.c.l.b16 %v3998
      %v4112 = vunpack.c.l.b16 %v3999
      %v4113 = vunpack.c.l.b16 %v4000
      %v4114 = vunpack.c.l.b16 %v4001
      %v4115 = vunpack.c.l.b16 %v4002
      %v4116 = vunpack.c.l.b16 %v4003
      %v4117 = vunpack.c.l.b16 %v4004
      %v4118 = vunpack.c.l.b16 %v4005
      %v4119 = vpack.c.b16 %v4083, %v4082
      %v4120 = vpack.c.b16 %v4085, %v4084
      %v4121 = vpack.c.b16 %v4087, %v4086
      %v4122 = vpack.c.b16 %v4089, %v4088
      %v4123 = vpack.c.b16 %v4091, %v4090
      %v4124 = vpack.c.b16 %v4093, %v4092
      %v4125 = vpack.c.b16 %v4095, %v4094
      %v4126 = vpack.c.b16 %v4097, %v4096
      %v4127 = vpack.c.b16 %v4099, %v4098
      %v4128 = vpack.c.b16 %v4101, %v4100
      %v4129 = vpack.c.b16 %v4103, %v4102
      %v4130 = vpack.c.b16 %v4105, %v4104
      %v4131 = vpack.c.b16 %v4107, %v4106
      %v4132 = vpack.c.b16 %v4109, %v4108
      %v4133 = vpack.c.b16 %v4111, %v4110
      %v4134 = vpack.c.b16 %v4113, %v4112
      %v4135 = vpack.c.b16 %v4115, %v4114
      %v4136 = vpack.c.b16 %v4117, %v4116
      %v4137 = vpack.c.b16 %v4118, %v4118
      %vm4138 = vsmask.f32 5376
      %v4140 = vshrl.u32 %v4119, 16
      %v4142 = vrot.slane %v4140, 2
      %v4143 = vshll.u32 %v4119, 16
      %v4145 = vrot.slane %v4143, 3
      %v4146 = vor.u32 %v4142, %v4145
      %v4148 = vshrl.u32 %v4120, 16
      %v4150 = vrot.slane %v4148, 2
      %v4151 = vshll.u32 %v4120, 16
      %v4153 = vrot.slane %v4151, 3
      %v4154 = vor.u32 %v4150, %v4153
      %v4155 = vsel %vm4138, %v4146, %v4154
      %v4157 = vshrl.u32 %v4121, 16
      %v4159 = vrot.slane %v4157, 2
      %v4160 = vshll.u32 %v4121, 16
      %v4162 = vrot.slane %v4160, 3
      %v4163 = vor.u32 %v4159, %v4162
      %v4164 = vsel %vm4138, %v4154, %v4163
      %v4166 = vshrl.u32 %v4122, 16
      %v4168 = vrot.slane %v4166, 2
      %v4169 = vshll.u32 %v4122, 16
      %v4171 = vrot.slane %v4169, 3
      %v4172 = vor.u32 %v4168, %v4171
      %v4173 = vsel %vm4138, %v4163, %v4172
      %v4175 = vshrl.u32 %v4123, 16
      %v4177 = vrot.slane %v4175, 2
      %v4178 = vshll.u32 %v4123, 16
      %v4180 = vrot.slane %v4178, 3
      %v4181 = vor.u32 %v4177, %v4180
      %v4182 = vsel %vm4138, %v4172, %v4181
      %v4184 = vshrl.u32 %v4124, 16
      %v4186 = vrot.slane %v4184, 2
      %v4187 = vshll.u32 %v4124, 16
      %v4189 = vrot.slane %v4187, 3
      %v4190 = vor.u32 %v4186, %v4189
      %v4191 = vsel %vm4138, %v4181, %v4190
      %v4193 = vshrl.u32 %v4125, 16
      %v4195 = vrot.slane %v4193, 2
      %v4196 = vshll.u32 %v4125, 16
      %v4198 = vrot.slane %v4196, 3
      %v4199 = vor.u32 %v4195, %v4198
      %v4200 = vsel %vm4138, %v4190, %v4199
      %v4202 = vshrl.u32 %v4126, 16
      %v4204 = vrot.slane %v4202, 2
      %v4205 = vshll.u32 %v4126, 16
      %v4207 = vrot.slane %v4205, 3
      %v4208 = vor.u32 %v4204, %v4207
      %v4209 = vsel %vm4138, %v4199, %v4208
      %v4211 = vshrl.u32 %v4127, 16
      %v4213 = vrot.slane %v4211, 2
      %v4214 = vshll.u32 %v4127, 16
      %v4216 = vrot.slane %v4214, 3
      %v4217 = vor.u32 %v4213, %v4216
      %v4218 = vsel %vm4138, %v4208, %v4217
      %v4220 = vshrl.u32 %v4128, 16
      %v4222 = vrot.slane %v4220, 2
      %v4223 = vshll.u32 %v4128, 16
      %v4225 = vrot.slane %v4223, 3
      %v4226 = vor.u32 %v4222, %v4225
      %v4227 = vsel %vm4138, %v4217, %v4226
      %v4229 = vshrl.u32 %v4129, 16
      %v4231 = vrot.slane %v4229, 2
      %v4232 = vshll.u32 %v4129, 16
      %v4234 = vrot.slane %v4232, 3
      %v4235 = vor.u32 %v4231, %v4234
      %v4236 = vsel %vm4138, %v4226, %v4235
      %v4238 = vshrl.u32 %v4130, 16
      %v4240 = vrot.slane %v4238, 2
      %v4241 = vshll.u32 %v4130, 16
      %v4243 = vrot.slane %v4241, 3
      %v4244 = vor.u32 %v4240, %v4243
      %v4245 = vsel %vm4138, %v4235, %v4244
      %v4247 = vshrl.u32 %v4131, 16
      %v4249 = vrot.slane %v4247, 2
      %v4250 = vshll.u32 %v4131, 16
      %v4252 = vrot.slane %v4250, 3
      %v4253 = vor.u32 %v4249, %v4252
      %v4254 = vsel %vm4138, %v4244, %v4253
      %v4256 = vshrl.u32 %v4132, 16
      %v4258 = vrot.slane %v4256, 2
      %v4259 = vshll.u32 %v4132, 16
      %v4261 = vrot.slane %v4259, 3
      %v4262 = vor.u32 %v4258, %v4261
      %v4263 = vsel %vm4138, %v4253, %v4262
      %v4265 = vshrl.u32 %v4133, 16
      %v4267 = vrot.slane %v4265, 2
      %v4268 = vshll.u32 %v4133, 16
      %v4270 = vrot.slane %v4268, 3
      %v4271 = vor.u32 %v4267, %v4270
      %v4272 = vsel %vm4138, %v4262, %v4271
      %v4274 = vshrl.u32 %v4134, 16
      %v4276 = vrot.slane %v4274, 2
      %v4277 = vshll.u32 %v4134, 16
      %v4279 = vrot.slane %v4277, 3
      %v4280 = vor.u32 %v4276, %v4279
      %v4281 = vsel %vm4138, %v4271, %v4280
      %v4283 = vshrl.u32 %v4135, 16
      %v4285 = vrot.slane %v4283, 2
      %v4286 = vshll.u32 %v4135, 16
      %v4288 = vrot.slane %v4286, 3
      %v4289 = vor.u32 %v4285, %v4288
      %v4290 = vsel %vm4138, %v4280, %v4289
      %v4292 = vshrl.u32 %v4136, 16
      %v4294 = vrot.slane %v4292, 2
      %v4295 = vshll.u32 %v4136, 16
      %v4297 = vrot.slane %v4295, 3
      %v4298 = vor.u32 %v4294, %v4297
      %v4299 = vsel %vm4138, %v4289, %v4298
      %v4301 = vshrl.u32 %v4137, 16
      %v4303 = vrot.slane %v4301, 2
      %v4304 = vshll.u32 %v4137, 16
      %v4306 = vrot.slane %v4304, 3
      %v4307 = vor.u32 %v4303, %v4306
      %v4308 = vsel %vm4138, %v4298, %v4307
      %v4311 = vunpack.c.l.b16 %v4043
      %v4312 = vunpack.c.l.b16 %v4044
      %v4313 = vpack.c.b16 %v4312, %v4311
      %v4316 = vsel %vm145, %v4155, 0
      %v4319 = vsel %vm145, %v4164, 0
      %v4322 = vsel %vm145, %v4173, 0
      %v4325 = vsel %vm145, %v4182, 0
      %v4328 = vsel %vm145, %v4191, 0
      %v4331 = vsel %vm145, %v4200, 0
      %v4334 = vsel %vm145, %v4209, 0
      %v4337 = vsel %vm145, %v4218, 0
      %v4340 = vsel %vm145, %v4227, 0
      %v4343 = vsel %vm145, %v4236, 0
      %v4346 = vsel %vm145, %v4245, 0
      %v4349 = vsel %vm145, %v4254, 0
      %v4352 = vsel %vm145, %v4263, 0
      %v4355 = vsel %vm145, %v4272, 0
      %v4358 = vsel %vm145, %v4281, 0
      %v4361 = vsel %vm145, %v4290, 0
      %v4364 = vsel %vm145, %v4299, 0
      %v4367 = vsel %vm145, %v4308, 0
      %4369 = vmatprep.subr.bf16.mxu0 0
      %4370 = vmatpush1.bf16.msra.mxu0 %v4313
      %4371 = vmatprep.subr.bf16.mxu0 0
      %4372 = vmatpush1.bf16.msra.mxu0 0
      %4373 = vmatprep.subr.bf16.mxu0 0
      %4374 = vmatpush1.bf16.msra.mxu0 0
      %4375 = vmatprep.subr.bf16.mxu0 0
      %4376 = vmatpush1.bf16.msra.mxu0 0
      %4377 = vmatprep.subr.bf16.mxu0 0
      %4378 = vmatpush1.bf16.msra.mxu0 0
      %4379 = vmatprep.subr.bf16.mxu0 0
      %4380 = vmatpush1.bf16.msra.mxu0 0
      %4381 = vmatprep.subr.bf16.mxu0 0
      %4382 = vmatpush1.bf16.msra.mxu0 0
      %4383 = vmatprep.subr.bf16.mxu0 0
      %4384 = vmatpush1.bf16.msra.mxu0 0
      %4385 = vmatprep.subr.bf16.mxu0 0
      %4386 = vmatpush1.bf16.msra.mxu0 0
      %4387 = vmatprep.subr.bf16.mxu0 0
      %4388 = vmatpush1.bf16.msra.mxu0 0
      %4389 = vmatprep.subr.bf16.mxu0 0
      %4390 = vmatpush1.bf16.msra.mxu0 0
      %4391 = vmatprep.subr.bf16.mxu0 0
      %4392 = vmatpush1.bf16.msra.mxu0 0
      %4393 = vmatprep.subr.bf16.mxu0 0
      %4394 = vmatpush1.bf16.msra.mxu0 0
      %4395 = vmatprep.subr.bf16.mxu0 0
      %4396 = vmatpush1.bf16.msra.mxu0 0
      %4397 = vmatprep.subr.bf16.mxu0 0
      %4398 = vmatpush1.bf16.msra.mxu0 0
      %4399 = vmatprep.subr.bf16.mxu0 0
      %4400 = vmatpush1.bf16.msra.mxu0 0
      %4401 = vmatprep.mubr.bf16.mxu0 0
      %4402 = vmatmul.mubr.bf16.gmra.mrb[0].mxu0 %v4316
      %v4403 = vpop.f32.mrb[0].mxu0
      %v4404 = vadd.f32 0.0, %v4403
      %v4405 = vpop.f32.mrb[0].mxu0
      %v4406 = vpop.f32.mrb[0].mxu0
      %v4407 = vadd.f32 0.0, %v4406
      %v4408 = vpop.f32.mrb[0].mxu0
      %4409 = vmatprep.mubr.bf16.mxu0 0
      %4410 = vmatmul.mubr.bf16.gmra.mrb[0].mxu0 %v4319
      %v4411 = vpop.f32.mrb[0].mxu0
      %v4412 = vadd.f32 0.0, %v4411
      %v4413 = vpop.f32.mrb[0].mxu0
      %v4414 = vpop.f32.mrb[0].mxu0
      %v4415 = vadd.f32 0.0, %v4414
      %v4416 = vpop.f32.mrb[0].mxu0
      %4417 = vmatprep.mubr.bf16.mxu0 0
      %4418 = vmatmul.mubr.bf16.gmra.mrb[0].mxu0 %v4322
      %v4419 = vpop.f32.mrb[0].mxu0
      %v4420 = vadd.f32 0.0, %v4419
      %v4421 = vpop.f32.mrb[0].mxu0
      %v4422 = vpop.f32.mrb[0].mxu0
      %v4423 = vadd.f32 0.0, %v4422
      %v4424 = vpop.f32.mrb[0].mxu0
      %4425 = vmatprep.mubr.bf16.mxu0 0
      %4426 = vmatmul.mubr.bf16.gmra.mrb[0].mxu0 %v4325
      %v4427 = vpop.f32.mrb[0].mxu0
      %v4428 = vadd.f32 0.0, %v4427
      %v4429 = vpop.f32.mrb[0].mxu0
      %v4430 = vpop.f32.mrb[0].mxu0
      %v4431 = vadd.f32 0.0, %v4430
      %v4432 = vpop.f32.mrb[0].mxu0
      %4433 = vmatprep.mubr.bf16.mxu0 0
      %4434 = vmatmul.mubr.bf16.gmra.mrb[0].mxu0 %v4328
      %v4435 = vpop.f32.mrb[0].mxu0
      %v4436 = vadd.f32 0.0, %v4435
      %v4437 = vpop.f32.mrb[0].mxu0
      %v4438 = vpop.f32.mrb[0].mxu0
      %v4439 = vadd.f32 0.0, %v4438
      %v4440 = vpop.f32.mrb[0].mxu0
      %4441 = vmatprep.mubr.bf16.mxu0 0
      %4442 = vmatmul.mubr.bf16.gmra.mrb[0].mxu0 %v4331
      %v4443 = vpop.f32.mrb[0].mxu0
      %v4444 = vadd.f32 0.0, %v4443
      %v4445 = vpop.f32.mrb[0].mxu0
      %v4446 = vpop.f32.mrb[0].mxu0
      %v4447 = vadd.f32 0.0, %v4446
      %v4448 = vpop.f32.mrb[0].mxu0
      %4449 = vmatprep.mubr.bf16.mxu0 0
      %4450 = vmatmul.mubr.bf16.gmra.mrb[0].mxu0 %v4334
      %v4451 = vpop.f32.mrb[0].mxu0
      %v4452 = vadd.f32 0.0, %v4451
      %v4453 = vpop.f32.mrb[0].mxu0
      %v4454 = vpop.f32.mrb[0].mxu0
      %v4455 = vadd.f32 0.0, %v4454
      %v4456 = vpop.f32.mrb[0].mxu0
      %4457 = vmatprep.mubr.bf16.mxu0 0
      %4458 = vmatmul.mubr.bf16.gmra.mrb[0].mxu0 %v4337
      %v4459 = vpop.f32.mrb[0].mxu0
      %v4460 = vadd.f32 0.0, %v4459
      %v4461 = vpop.f32.mrb[0].mxu0
      %v4462 = vpop.f32.mrb[0].mxu0
      %v4463 = vadd.f32 0.0, %v4462
      %v4464 = vpop.f32.mrb[0].mxu0
      %4465 = vmatprep.mubr.bf16.mxu0 0
      %4466 = vmatmul.mubr.bf16.gmra.mrb[0].mxu0 %v4340
      %v4467 = vpop.f32.mrb[0].mxu0
      %v4468 = vadd.f32 0.0, %v4467
      %v4469 = vpop.f32.mrb[0].mxu0
      %v4470 = vpop.f32.mrb[0].mxu0
      %v4471 = vadd.f32 0.0, %v4470
      %v4472 = vpop.f32.mrb[0].mxu0
      %4473 = vmatprep.mubr.bf16.mxu0 0
      %4474 = vmatmul.mubr.bf16.gmra.mrb[0].mxu0 %v4343
      %v4475 = vpop.f32.mrb[0].mxu0
      %v4476 = vadd.f32 0.0, %v4475
      %v4477 = vpop.f32.mrb[0].mxu0
      %v4478 = vpop.f32.mrb[0].mxu0
      %v4479 = vadd.f32 0.0, %v4478
      %v4480 = vpop.f32.mrb[0].mxu0
      %4481 = vmatprep.mubr.bf16.mxu0 0
      %4482 = vmatmul.mubr.bf16.gmra.mrb[0].mxu0 %v4346
      %v4483 = vpop.f32.mrb[0].mxu0
      %v4484 = vadd.f32 0.0, %v4483
      %v4485 = vpop.f32.mrb[0].mxu0
      %v4486 = vpop.f32.mrb[0].mxu0
      %v4487 = vadd.f32 0.0, %v4486
      %v4488 = vpop.f32.mrb[0].mxu0
      %4489 = vmatprep.mubr.bf16.mxu0 0
      %4490 = vmatmul.mubr.bf16.gmra.mrb[0].mxu0 %v4349
      %v4491 = vpop.f32.mrb[0].mxu0
      %v4492 = vadd.f32 0.0, %v4491
      %v4493 = vpop.f32.mrb[0].mxu0
      %v4494 = vpop.f32.mrb[0].mxu0
      %v4495 = vadd.f32 0.0, %v4494
      %v4496 = vpop.f32.mrb[0].mxu0
      %4497 = vmatprep.mubr.bf16.mxu0 0
      %4498 = vmatmul.mubr.bf16.gmra.mrb[0].mxu0 %v4352
      %v4499 = vpop.f32.mrb[0].mxu0
      %v4500 = vadd.f32 0.0, %v4499
      %v4501 = vpop.f32.mrb[0].mxu0
      %v4502 = vpop.f32.mrb[0].mxu0
      %v4503 = vadd.f32 0.0, %v4502
      %v4504 = vpop.f32.mrb[0].mxu0
      %4505 = vmatprep.mubr.bf16.mxu0 0
      %4506 = vmatmul.mubr.bf16.gmra.mrb[0].mxu0 %v4355
      %v4507 = vpop.f32.mrb[0].mxu0
      %v4508 = vadd.f32 0.0, %v4507
      %v4509 = vpop.f32.mrb[0].mxu0
      %v4510 = vpop.f32.mrb[0].mxu0
      %v4511 = vadd.f32 0.0, %v4510
      %v4512 = vpop.f32.mrb[0].mxu0
      %4513 = vmatprep.mubr.bf16.mxu0 0
      %4514 = vmatmul.mubr.bf16.gmra.mrb[0].mxu0 %v4358
      %v4515 = vpop.f32.mrb[0].mxu0
      %v4516 = vadd.f32 0.0, %v4515
      %v4517 = vpop.f32.mrb[0].mxu0
      %v4518 = vpop.f32.mrb[0].mxu0
      %v4519 = vadd.f32 0.0, %v4518
      %v4520 = vpop.f32.mrb[0].mxu0
      %4521 = vmatprep.mubr.bf16.mxu0 0
      %4522 = vmatmul.mubr.bf16.gmra.mrb[0].mxu0 %v4361
      %v4523 = vpop.f32.mrb[0].mxu0
      %v4524 = vadd.f32 0.0, %v4523
      %v4525 = vpop.f32.mrb[0].mxu0
      %v4526 = vpop.f32.mrb[0].mxu0
      %v4527 = vadd.f32 0.0, %v4526
      %v4528 = vpop.f32.mrb[0].mxu0
      %4529 = vmatprep.mubr.bf16.mxu0 0
      %4530 = vmatmul.mubr.bf16.gmra.mrb[0].mxu0 %v4364
      %v4531 = vpop.f32.mrb[0].mxu0
      %v4532 = vadd.f32 0.0, %v4531
      %v4533 = vpop.f32.mrb[0].mxu0
      %v4534 = vpop.f32.mrb[0].mxu0
      %v4535 = vadd.f32 0.0, %v4534
      %v4536 = vpop.f32.mrb[0].mxu0
      %4537 = vmatprep.mubr.bf16.mxu0 0
      %4538 = vmatmul.mubr.bf16.gmra.mrb[0].mxu0 %v4367
      %v4539 = vpop.f32.mrb[0].mxu0
      %v4540 = vadd.f32 0.0, %v4539
      %v4541 = vpop.f32.mrb[0].mxu0
      %v4542 = vpop.f32.mrb[0].mxu0
      %v4543 = vadd.f32 0.0, %v4542
      %v4544 = vpop.f32.mrb[0].mxu0
      %4545 = vdwg.mxu0
      %v4546 = vadd.f32 %v4006, %v4404
      %v4547 = vadd.f32 %v4007, %v4407
      %v4548 = vadd.f32 %v4008, %v4412
      %v4549 = vadd.f32 %v4009, %v4415
      %v4550 = vadd.f32 %v4010, %v4420
      %v4551 = vadd.f32 %v4011, %v4423
      %v4552 = vadd.f32 %v4012, %v4428
      %v4553 = vadd.f32 %v4013, %v4431
      %v4554 = vadd.f32 %v4014, %v4436
      %v4555 = vadd.f32 %v4015, %v4439
      %v4556 = vadd.f32 %v4016, %v4444
      %v4557 = vadd.f32 %v4017, %v4447
      %v4558 = vadd.f32 %v4018, %v4452
      %v4559 = vadd.f32 %v4019, %v4455
      %v4560 = vadd.f32 %v4020, %v4460
      %v4561 = vadd.f32 %v4021, %v4463
      %v4562 = vadd.f32 %v4022, %v4468
      %v4563 = vadd.f32 %v4023, %v4471
      %v4564 = vadd.f32 %v4024, %v4476
      %v4565 = vadd.f32 %v4025, %v4479
      %v4566 = vadd.f32 %v4026, %v4484
      %v4567 = vadd.f32 %v4027, %v4487
      %v4568 = vadd.f32 %v4028, %v4492
      %v4569 = vadd.f32 %v4029, %v4495
      %v4570 = vadd.f32 %v4030, %v4500
      %v4571 = vadd.f32 %v4031, %v4503
      %v4572 = vadd.f32 %v4032, %v4508
      %v4573 = vadd.f32 %v4033, %v4511
      %v4574 = vadd.f32 %v4034, %v4516
      %v4575 = vadd.f32 %v4035, %v4519
      %v4576 = vadd.f32 %v4036, %v4524
      %v4577 = vadd.f32 %v4037, %v4527
      %v4578 = vadd.f32 %v4038, %v4532
      %v4579 = vadd.f32 %v4039, %v4535
      %v4580 = vadd.f32 %v4040, %v4540
      %v4581 = vadd.f32 %v4041, %v4543
      %4582 = vst.msk [vmem:[#allocation2] sm:$0xff] %vm145, %v4546
      %4583 = vst.msk [vmem:[#allocation2 + $0x8] sm:$0xff] %vm145, %v4547
      %4584 = vst.msk [vmem:[#allocation2 + $0x10] sm:$0xff] %vm145, %v4548
      %4585 = vst.msk [vmem:[#allocation2 + $0x18] sm:$0xff] %vm145, %v4549
      %4586 = vst.msk [vmem:[#allocation2 + $0x20] sm:$0xff] %vm145, %v4550
      %4587 = vst.msk [vmem:[#allocation2 + $0x28] sm:$0xff] %vm145, %v4551
      %4588 = vst.msk [vmem:[#allocation2 + $0x30] sm:$0xff] %vm145, %v4552
      %4589 = vst.msk [vmem:[#allocation2 + $0x38] sm:$0xff] %vm145, %v4553
      %4590 = vst.msk [vmem:[#allocation2 + $0x40] sm:$0xff] %vm145, %v4554
      %4591 = vst.msk [vmem:[#allocation2 + $0x48] sm:$0xff] %vm145, %v4555
      %4592 = vst.msk [vmem:[#allocation2 + $0x50] sm:$0xff] %vm145, %v4556
      %4593 = vst.msk [vmem:[#allocation2 + $0x58] sm:$0xff] %vm145, %v4557
      %4594 = vst.msk [vmem:[#allocation2 + $0x60] sm:$0xff] %vm145, %v4558
      %4595 = vst.msk [vmem:[#allocation2 + $0x68] sm:$0xff] %vm145, %v4559
      %4596 = vst.msk [vmem:[#allocation2 + $0x70] sm:$0xff] %vm145, %v4560
      %4597 = vst.msk [vmem:[#allocation2 + $0x78] sm:$0xff] %vm145, %v4561
      %4598 = vst.msk [vmem:[#allocation2 + $0x80] sm:$0xff] %vm145, %v4562
      %4599 = vst.msk [vmem:[#allocation2 + $0x88] sm:$0xff] %vm145, %v4563
      %4600 = vst.msk [vmem:[#allocation2 + $0x90] sm:$0xff] %vm145, %v4564
      %4601 = vst.msk [vmem:[#allocation2 + $0x98] sm:$0xff] %vm145, %v4565
      %4602 = vst.msk [vmem:[#allocation2 + $0xa0] sm:$0xff] %vm145, %v4566
      %4603 = vst.msk [vmem:[#allocation2 + $0xa8] sm:$0xff] %vm145, %v4567
      %4604 = vst.msk [vmem:[#allocation2 + $0xb0] sm:$0xff] %vm145, %v4568
      %4605 = vst.msk [vmem:[#allocation2 + $0xb8] sm:$0xff] %vm145, %v4569
      %4606 = vst.msk [vmem:[#allocation2 + $0xc0] sm:$0xff] %vm145, %v4570
      %4607 = vst.msk [vmem:[#allocation2 + $0xc8] sm:$0xff] %vm145, %v4571
      %4608 = vst.msk [vmem:[#allocation2 + $0xd0] sm:$0xff] %vm145, %v4572
      %4609 = vst.msk [vmem:[#allocation2 + $0xd8] sm:$0xff] %vm145, %v4573
      %4610 = vst.msk [vmem:[#allocation2 + $0xe0] sm:$0xff] %vm145, %v4574
      %4611 = vst.msk [vmem:[#allocation2 + $0xe8] sm:$0xff] %vm145, %v4575
      %4612 = vst.msk [vmem:[#allocation2 + $0xf0] sm:$0xff] %vm145, %v4576
      %4613 = vst.msk [vmem:[#allocation2 + $0xf8] sm:$0xff] %vm145, %v4577
      %4614 = vst.msk [vmem:[#allocation2 + $0x100] sm:$0xff] %vm145, %v4578
      %4615 = vst.msk [vmem:[#allocation2 + $0x108] sm:$0xff] %vm145, %v4579
      %4616 = vst.msk [vmem:[#allocation2 + $0x110] sm:$0xff] %vm145, %v4580
      %4617 = vst.msk [vmem:[#allocation2 + $0x118] sm:$0x3f] %vm181, %v4581
      %v4618 = vld [vmem:[%s138 + $0x10] sm:$0x8]
      %v4619 = vld [vmem:[%s138 + $0x14] sm:$0xf]
      %v4620 = vld [vmem:[%s138 + $0x18] sm:$0xf]
      %v4621 = vld [vmem:[%s138 + $0x1c] sm:$0xf]
      %v4622 = vld [vmem:[%s138 + $0x20] sm:$0xf]
      %v4623 = vld [vmem:[%s138 + $0x24] sm:$0xf]
      %v4624 = vld [vmem:[%s138 + $0x28] sm:$0xf]
      %v4625 = vld [vmem:[%s138 + $0x2c] sm:$0xf]
      %v4626 = vld [vmem:[%s138 + $0x30] sm:$0xf]
      %v4627 = vld [vmem:[%s138 + $0x34] sm:$0xf]
      %v4628 = vld [vmem:[%s138 + $0x38] sm:$0xf]
      %v4629 = vld [vmem:[%s138 + $0x3c] sm:$0xf]
      %v4630 = vld [vmem:[%s138 + $0x40] sm:$0xf]
      %v4631 = vld [vmem:[%s138 + $0x44] sm:$0xf]
      %v4632 = vld [vmem:[%s138 + $0x48] sm:$0xf]
      %v4633 = vld [vmem:[%s138 + $0x4c] sm:$0xf]
      %v4634 = vld [vmem:[%s138 + $0x50] sm:$0xf]
      %v4635 = vld [vmem:[%s138 + $0x54] sm:$0xf]
      %v4636 = vld [vmem:[%s138 + $0x58] sm:$0xf]
      %v4637 = vld [vmem:[%s138 + $0x5c] sm:$0xf]
      %v4638 = vld [vmem:[%s138 + $0x60] sm:$0xf]
      %v4639 = vld [vmem:[%s138 + $0x64] sm:$0xf]
      %v4640 = vld [vmem:[%s138 + $0x68] sm:$0xf]
      %v4641 = vld [vmem:[%s138 + $0x6c] sm:$0xf]
      %v4642 = vld [vmem:[%s138 + $0x70] sm:$0xf]
      %v4643 = vld [vmem:[%s138 + $0x74] sm:$0xf]
      %v4644 = vld [vmem:[%s138 + $0x78] sm:$0xf]
      %v4645 = vld [vmem:[%s138 + $0x7c] sm:$0xf]
      %v4646 = vld [vmem:[%s138 + $0x80] sm:$0xf]
      %v4647 = vld [vmem:[%s138 + $0x84] sm:$0xf]
      %v4648 = vld [vmem:[%s138 + $0x88] sm:$0xf]
      %v4649 = vld [vmem:[%s138 + $0x8c] sm:$0xf]
      %v4650 = vld [vmem:[%s138 + $0x90] sm:$0xf]
      %v4651 = vld [vmem:[%s138 + $0x94] sm:$0xf]
      %v4652 = vld [vmem:[%s138 + $0x98] sm:$0xf]
      %v4653 = vld [vmem:[%s138 + $0x9c] sm:$0xf]
      %v4654 = vld [vmem:[%s138 + $0xa0] sm:$0x3]
      %v4655 = vld [vmem:[#allocation2] sm:$0xff]
      %v4656 = vld [vmem:[#allocation2 + $0x8] sm:$0xff]
      %v4657 = vld [vmem:[#allocation2 + $0x10] sm:$0xff]
      %v4658 = vld [vmem:[#allocation2 + $0x18] sm:$0xff]
      %v4659 = vld [vmem:[#allocation2 + $0x20] sm:$0xff]
      %v4660 = vld [vmem:[#allocation2 + $0x28] sm:$0xff]
      %v4661 = vld [vmem:[#allocation2 + $0x30] sm:$0xff]
      %v4662 = vld [vmem:[#allocation2 + $0x38] sm:$0xff]
      %v4663 = vld [vmem:[#allocation2 + $0x40] sm:$0xff]
      %v4664 = vld [vmem:[#allocation2 + $0x48] sm:$0xff]
      %v4665 = vld [vmem:[#allocation2 + $0x50] sm:$0xff]
      %v4666 = vld [vmem:[#allocation2 + $0x58] sm:$0xff]
      %v4667 = vld [vmem:[#allocation2 + $0x60] sm:$0xff]
      %v4668 = vld [vmem:[#allocation2 + $0x68] sm:$0xff]
      %v4669 = vld [vmem:[#allocation2 + $0x70] sm:$0xff]
      %v4670 = vld [vmem:[#allocation2 + $0x78] sm:$0xff]
      %v4671 = vld [vmem:[#allocation2 + $0x80] sm:$0xff]
      %v4672 = vld [vmem:[#allocation2 + $0x88] sm:$0xff]
      %v4673 = vld [vmem:[#allocation2 + $0x90] sm:$0xff]
      %v4674 = vld [vmem:[#allocation2 + $0x98] sm:$0xff]
      %v4675 = vld [vmem:[#allocation2 + $0xa0] sm:$0xff]
      %v4676 = vld [vmem:[#allocation2 + $0xa8] sm:$0xff]
      %v4677 = vld [vmem:[#allocation2 + $0xb0] sm:$0xff]
      %v4678 = vld [vmem:[#allocation2 + $0xb8] sm:$0xff]
      %v4679 = vld [vmem:[#allocation2 + $0xc0] sm:$0xff]
      %v4680 = vld [vmem:[#allocation2 + $0xc8] sm:$0xff]
      %v4681 = vld [vmem:[#allocation2 + $0xd0] sm:$0xff]
      %v4682 = vld [vmem:[#allocation2 + $0xd8] sm:$0xff]
      %v4683 = vld [vmem:[#allocation2 + $0xe0] sm:$0xff]
      %v4684 = vld [vmem:[#allocation2 + $0xe8] sm:$0xff]
      %v4685 = vld [vmem:[#allocation2 + $0xf0] sm:$0xff]
      %v4686 = vld [vmem:[#allocation2 + $0xf8] sm:$0xff]
      %v4687 = vld [vmem:[#allocation2 + $0x100] sm:$0xff]
      %v4688 = vld [vmem:[#allocation2 + $0x108] sm:$0xff]
      %v4689 = vld [vmem:[#allocation2 + $0x110] sm:$0xff]
      %v4690 = vld [vmem:[#allocation2 + $0x118] sm:$0x3f]
      %s4691 = scalar_lea.vmem %s1, 64
      %v4692 = vld [vmem:[%s4691] sm:$0xf]
      %v4693 = vld [vmem:[%s4691 + $0x4] sm:$0xf]
      %v4731 = vunpack.c.l.b16 %v4618
      %v4732 = vunpack.c.l.b16 %v4619
      %v4733 = vunpack.c.l.b16 %v4620
      %v4734 = vunpack.c.l.b16 %v4621
      %v4735 = vunpack.c.l.b16 %v4622
      %v4736 = vunpack.c.l.b16 %v4623
      %v4737 = vunpack.c.l.b16 %v4624
      %v4738 = vunpack.c.l.b16 %v4625
      %v4739 = vunpack.c.l.b16 %v4626
      %v4740 = vunpack.c.l.b16 %v4627
      %v4741 = vunpack.c.l.b16 %v4628
      %v4742 = vunpack.c.l.b16 %v4629
      %v4743 = vunpack.c.l.b16 %v4630
      %v4744 = vunpack.c.l.b16 %v4631
      %v4745 = vunpack.c.l.b16 %v4632
      %v4746 = vunpack.c.l.b16 %v4633
      %v4747 = vunpack.c.l.b16 %v4634
      %v4748 = vunpack.c.l.b16 %v4635
      %v4749 = vunpack.c.l.b16 %v4636
      %v4750 = vunpack.c.l.b16 %v4637
      %v4751 = vunpack.c.l.b16 %v4638
      %v4752 = vunpack.c.l.b16 %v4639
      %v4753 = vunpack.c.l.b16 %v4640
      %v4754 = vunpack.c.l.b16 %v4641
      %v4755 = vunpack.c.l.b16 %v4642
      %v4756 = vunpack.c.l.b16 %v4643
      %v4757 = vunpack.c.l.b16 %v4644
      %v4758 = vunpack.c.l.b16 %v4645
      %v4759 = vunpack.c.l.b16 %v4646
      %v4760 = vunpack.c.l.b16 %v4647
      %v4761 = vunpack.c.l.b16 %v4648
      %v4762 = vunpack.c.l.b16 %v4649
      %v4763 = vunpack.c.l.b16 %v4650
      %v4764 = vunpack.c.l.b16 %v4651
      %v4765 = vunpack.c.l.b16 %v4652
      %v4766 = vunpack.c.l.b16 %v4653
      %v4767 = vunpack.c.l.b16 %v4654
      %v4768 = vpack.c.b16 %v4732, %v4731
      %v4769 = vpack.c.b16 %v4734, %v4733
      %v4770 = vpack.c.b16 %v4736, %v4735
      %v4771 = vpack.c.b16 %v4738, %v4737
      %v4772 = vpack.c.b16 %v4740, %v4739
      %v4773 = vpack.c.b16 %v4742, %v4741
      %v4774 = vpack.c.b16 %v4744, %v4743
      %v4775 = vpack.c.b16 %v4746, %v4745
      %v4776 = vpack.c.b16 %v4748, %v4747
      %v4777 = vpack.c.b16 %v4750, %v4749
      %v4778 = vpack.c.b16 %v4752, %v4751
      %v4779 = vpack.c.b16 %v4754, %v4753
      %v4780 = vpack.c.b16 %v4756, %v4755
      %v4781 = vpack.c.b16 %v4758, %v4757
      %v4782 = vpack.c.b16 %v4760, %v4759
      %v4783 = vpack.c.b16 %v4762, %v4761
      %v4784 = vpack.c.b16 %v4764, %v4763
      %v4785 = vpack.c.b16 %v4766, %v4765
      %v4786 = vpack.c.b16 %v4767, %v4767
      %vm4787 = vcmask 1044480
      %v4788 = vrot.slane %v4768, 3
      %v4789 = vrot.slane %v4769, 3
      %v4790 = vsel %vm4787, %v4788, %v4789
      %v4791 = vrot.slane %v4770, 3
      %v4792 = vsel %vm4787, %v4789, %v4791
      %v4793 = vrot.slane %v4771, 3
      %v4794 = vsel %vm4787, %v4791, %v4793
      %v4795 = vrot.slane %v4772, 3
      %v4796 = vsel %vm4787, %v4793, %v4795
      %v4797 = vrot.slane %v4773, 3
      %v4798 = vsel %vm4787, %v4795, %v4797
      %v4799 = vrot.slane %v4774, 3
      %v4800 = vsel %vm4787, %v4797, %v4799
      %v4801 = vrot.slane %v4775, 3
      %v4802 = vsel %vm4787, %v4799, %v4801
      %v4803 = vrot.slane %v4776, 3
      %v4804 = vsel %vm4787, %v4801, %v4803
      %v4805 = vrot.slane %v4777, 3
      %v4806 = vsel %vm4787, %v4803, %v4805
      %v4807 = vrot.slane %v4778, 3
      %v4808 = vsel %vm4787, %v4805, %v4807
      %v4809 = vrot.slane %v4779, 3
      %v4810 = vsel %vm4787, %v4807, %v4809
      %v4811 = vrot.slane %v4780, 3
      %v4812 = vsel %vm4787, %v4809, %v4811
      %v4813 = vrot.slane %v4781, 3
      %v4814 = vsel %vm4787, %v4811, %v4813
      %v4815 = vrot.slane %v4782, 3
      %v4816 = vsel %vm4787, %v4813, %v4815
      %v4817 = vrot.slane %v4783, 3
      %v4818 = vsel %vm4787, %v4815, %v4817
      %v4819 = vrot.slane %v4784, 3
      %v4820 = vsel %vm4787, %v4817, %v4819
      %v4821 = vrot.slane %v4785, 3
      %v4822 = vsel %vm4787, %v4819, %v4821
      %v4823 = vrot.slane %v4786, 3
      %v4824 = vsel %vm4787, %v4821, %v4823
      %v4827 = vunpack.c.l.b16 %v4692
      %v4828 = vunpack.c.l.b16 %v4693
      %v4829 = vpack.c.b16 %v4828, %v4827
      %v4832 = vsel %vm145, %v4790, 0
      %v4835 = vsel %vm145, %v4792, 0
      %v4838 = vsel %vm145, %v4794, 0
      %v4841 = vsel %vm145, %v4796, 0
      %v4844 = vsel %vm145, %v4798, 0
      %v4847 = vsel %vm145, %v4800, 0
      %v4850 = vsel %vm145, %v4802, 0
      %v4853 = vsel %vm145, %v4804, 0
      %v4856 = vsel %vm145, %v4806, 0
      %v4859 = vsel %vm145, %v4808, 0
      %v4862 = vsel %vm145, %v4810, 0
      %v4865 = vsel %vm145, %v4812, 0
      %v4868 = vsel %vm145, %v4814, 0
      %v4871 = vsel %vm145, %v4816, 0
      %v4874 = vsel %vm145, %v4818, 0
      %v4877 = vsel %vm145, %v4820, 0
      %v4880 = vsel %vm145, %v4822, 0
      %v4883 = vsel %vm145, %v4824, 0
      %4885 = vmatprep.subr.bf16.mxu0 0
      %4886 = vmatpush1.bf16.msra.mxu0 %v4829
      %4887 = vmatprep.subr.bf16.mxu0 0
      %4888 = vmatpush1.bf16.msra.mxu0 0
      %4889 = vmatprep.subr.bf16.mxu0 0
      %4890 = vmatpush1.bf16.msra.mxu0 0
      %4891 = vmatprep.subr.bf16.mxu0 0
      %4892 = vmatpush1.bf16.msra.mxu0 0
      %4893 = vmatprep.subr.bf16.mxu0 0
      %4894 = vmatpush1.bf16.msra.mxu0 0
      %4895 = vmatprep.subr.bf16.mxu0 0
      %4896 = vmatpush1.bf16.msra.mxu0 0
      %4897 = vmatprep.subr.bf16.mxu0 0
      %4898 = vmatpush1.bf16.msra.mxu0 0
      %4899 = vmatprep.subr.bf16.mxu0 0
      %4900 = vmatpush1.bf16.msra.mxu0 0
      %4901 = vmatprep.subr.bf16.mxu0 0
      %4902 = vmatpush1.bf16.msra.mxu0 0
      %4903 = vmatprep.subr.bf16.mxu0 0
      %4904 = vmatpush1.bf16.msra.mxu0 0
      %4905 = vmatprep.subr.bf16.mxu0 0
      %4906 = vmatpush1.bf16.msra.mxu0 0
      %4907 = vmatprep.subr.bf16.mxu0 0
      %4908 = vmatpush1.bf16.msra.mxu0 0
      %4909 = vmatprep.subr.bf16.mxu0 0
      %4910 = vmatpush1.bf16.msra.mxu0 0
      %4911 = vmatprep.subr.bf16.mxu0 0
      %4912 = vmatpush1.bf16.msra.mxu0 0
      %4913 = vmatprep.subr.bf16.mxu0 0
      %4914 = vmatpush1.bf16.msra.mxu0 0
      %4915 = vmatprep.subr.bf16.mxu0 0
      %4916 = vmatpush1.bf16.msra.mxu0 0
      %4917 = vmatprep.mubr.bf16.mxu0 0
      %4918 = vmatmul.mubr.bf16.gmra.mrb[0].mxu0 %v4832
      %v4919 = vpop.f32.mrb[0].mxu0
      %v4920 = vadd.f32 0.0, %v4919
      %v4921 = vpop.f32.mrb[0].mxu0
      %v4922 = vpop.f32.mrb[0].mxu0
      %v4923 = vadd.f32 0.0, %v4922
      %v4924 = vpop.f32.mrb[0].mxu0
      %4925 = vmatprep.mubr.bf16.mxu0 0
      %4926 = vmatmul.mubr.bf16.gmra.mrb[0].mxu0 %v4835
      %v4927 = vpop.f32.mrb[0].mxu0
      %v4928 = vadd.f32 0.0, %v4927
      %v4929 = vpop.f32.mrb[0].mxu0
      %v4930 = vpop.f32.mrb[0].mxu0
      %v4931 = vadd.f32 0.0, %v4930
      %v4932 = vpop.f32.mrb[0].mxu0
      %4933 = vmatprep.mubr.bf16.mxu0 0
      %4934 = vmatmul.mubr.bf16.gmra.mrb[0].mxu0 %v4838
      %v4935 = vpop.f32.mrb[0].mxu0
      %v4936 = vadd.f32 0.0, %v4935
      %v4937 = vpop.f32.mrb[0].mxu0
      %v4938 = vpop.f32.mrb[0].mxu0
      %v4939 = vadd.f32 0.0, %v4938
      %v4940 = vpop.f32.mrb[0].mxu0
      %4941 = vmatprep.mubr.bf16.mxu0 0
      %4942 = vmatmul.mubr.bf16.gmra.mrb[0].mxu0 %v4841
      %v4943 = vpop.f32.mrb[0].mxu0
      %v4944 = vadd.f32 0.0, %v4943
      %v4945 = vpop.f32.mrb[0].mxu0
      %v4946 = vpop.f32.mrb[0].mxu0
      %v4947 = vadd.f32 0.0, %v4946
      %v4948 = vpop.f32.mrb[0].mxu0
      %4949 = vmatprep.mubr.bf16.mxu0 0
      %4950 = vmatmul.mubr.bf16.gmra.mrb[0].mxu0 %v4844
      %v4951 = vpop.f32.mrb[0].mxu0
      %v4952 = vadd.f32 0.0, %v4951
      %v4953 = vpop.f32.mrb[0].mxu0
      %v4954 = vpop.f32.mrb[0].mxu0
      %v4955 = vadd.f32 0.0, %v4954
      %v4956 = vpop.f32.mrb[0].mxu0
      %4957 = vmatprep.mubr.bf16.mxu0 0
      %4958 = vmatmul.mubr.bf16.gmra.mrb[0].mxu0 %v4847
      %v4959 = vpop.f32.mrb[0].mxu0
      %v4960 = vadd.f32 0.0, %v4959
      %v4961 = vpop.f32.mrb[0].mxu0
      %v4962 = vpop.f32.mrb[0].mxu0
      %v4963 = vadd.f32 0.0, %v4962
      %v4964 = vpop.f32.mrb[0].mxu0
      %4965 = vmatprep.mubr.bf16.mxu0 0
      %4966 = vmatmul.mubr.bf16.gmra.mrb[0].mxu0 %v4850
      %v4967 = vpop.f32.mrb[0].mxu0
      %v4968 = vadd.f32 0.0, %v4967
      %v4969 = vpop.f32.mrb[0].mxu0
      %v4970 = vpop.f32.mrb[0].mxu0
      %v4971 = vadd.f32 0.0, %v4970
      %v4972 = vpop.f32.mrb[0].mxu0
      %4973 = vmatprep.mubr.bf16.mxu0 0
      %4974 = vmatmul.mubr.bf16.gmra.mrb[0].mxu0 %v4853
      %v4975 = vpop.f32.mrb[0].mxu0
      %v4976 = vadd.f32 0.0, %v4975
      %v4977 = vpop.f32.mrb[0].mxu0
      %v4978 = vpop.f32.mrb[0].mxu0
      %v4979 = vadd.f32 0.0, %v4978
      %v4980 = vpop.f32.mrb[0].mxu0
      %4981 = vmatprep.mubr.bf16.mxu0 0
      %4982 = vmatmul.mubr.bf16.gmra.mrb[0].mxu0 %v4856
      %v4983 = vpop.f32.mrb[0].mxu0
      %v4984 = vadd.f32 0.0, %v4983
      %v4985 = vpop.f32.mrb[0].mxu0
      %v4986 = vpop.f32.mrb[0].mxu0
      %v4987 = vadd.f32 0.0, %v4986
      %v4988 = vpop.f32.mrb[0].mxu0
      %4989 = vmatprep.mubr.bf16.mxu0 0
      %4990 = vmatmul.mubr.bf16.gmra.mrb[0].mxu0 %v4859
      %v4991 = vpop.f32.mrb[0].mxu0
      %v4992 = vadd.f32 0.0, %v4991
      %v4993 = vpop.f32.mrb[0].mxu0
      %v4994 = vpop.f32.mrb[0].mxu0
      %v4995 = vadd.f32 0.0, %v4994
      %v4996 = vpop.f32.mrb[0].mxu0
      %4997 = vmatprep.mubr.bf16.mxu0 0
      %4998 = vmatmul.mubr.bf16.gmra.mrb[0].mxu0 %v4862
      %v4999 = vpop.f32.mrb[0].mxu0
      %v5000 = vadd.f32 0.0, %v4999
      %v5001 = vpop.f32.mrb[0].mxu0
      %v5002 = vpop.f32.mrb[0].mxu0
      %v5003 = vadd.f32 0.0, %v5002
      %v5004 = vpop.f32.mrb[0].mxu0
      %5005 = vmatprep.mubr.bf16.mxu0 0
      %5006 = vmatmul.mubr.bf16.gmra.mrb[0].mxu0 %v4865
      %v5007 = vpop.f32.mrb[0].mxu0
      %v5008 = vadd.f32 0.0, %v5007
      %v5009 = vpop.f32.mrb[0].mxu0
      %v5010 = vpop.f32.mrb[0].mxu0
      %v5011 = vadd.f32 0.0, %v5010
      %v5012 = vpop.f32.mrb[0].mxu0
      %5013 = vmatprep.mubr.bf16.mxu0 0
      %5014 = vmatmul.mubr.bf16.gmra.mrb[0].mxu0 %v4868
      %v5015 = vpop.f32.mrb[0].mxu0
      %v5016 = vadd.f32 0.0, %v5015
      %v5017 = vpop.f32.mrb[0].mxu0
      %v5018 = vpop.f32.mrb[0].mxu0
      %v5019 = vadd.f32 0.0, %v5018
      %v5020 = vpop.f32.mrb[0].mxu0
      %5021 = vmatprep.mubr.bf16.mxu0 0
      %5022 = vmatmul.mubr.bf16.gmra.mrb[0].mxu0 %v4871
      %v5023 = vpop.f32.mrb[0].mxu0
      %v5024 = vadd.f32 0.0, %v5023
      %v5025 = vpop.f32.mrb[0].mxu0
      %v5026 = vpop.f32.mrb[0].mxu0
      %v5027 = vadd.f32 0.0, %v5026
      %v5028 = vpop.f32.mrb[0].mxu0
      %5029 = vmatprep.mubr.bf16.mxu0 0
      %5030 = vmatmul.mubr.bf16.gmra.mrb[0].mxu0 %v4874
      %v5031 = vpop.f32.mrb[0].mxu0
      %v5032 = vadd.f32 0.0, %v5031
      %v5033 = vpop.f32.mrb[0].mxu0
      %v5034 = vpop.f32.mrb[0].mxu0
      %v5035 = vadd.f32 0.0, %v5034
      %v5036 = vpop.f32.mrb[0].mxu0
      %5037 = vmatprep.mubr.bf16.mxu0 0
      %5038 = vmatmul.mubr.bf16.gmra.mrb[0].mxu0 %v4877
      %v5039 = vpop.f32.mrb[0].mxu0
      %v5040 = vadd.f32 0.0, %v5039
      %v5041 = vpop.f32.mrb[0].mxu0
      %v5042 = vpop.f32.mrb[0].mxu0
      %v5043 = vadd.f32 0.0, %v5042
      %v5044 = vpop.f32.mrb[0].mxu0
      %5045 = vmatprep.mubr.bf16.mxu0 0
      %5046 = vmatmul.mubr.bf16.gmra.mrb[0].mxu0 %v4880
      %v5047 = vpop.f32.mrb[0].mxu0
      %v5048 = vadd.f32 0.0, %v5047
      %v5049 = vpop.f32.mrb[0].mxu0
      %v5050 = vpop.f32.mrb[0].mxu0
      %v5051 = vadd.f32 0.0, %v5050
      %v5052 = vpop.f32.mrb[0].mxu0
      %5053 = vmatprep.mubr.bf16.mxu0 0
      %5054 = vmatmul.mubr.bf16.gmra.mrb[0].mxu0 %v4883
      %v5055 = vpop.f32.mrb[0].mxu0
      %v5056 = vadd.f32 0.0, %v5055
      %v5057 = vpop.f32.mrb[0].mxu0
      %v5058 = vpop.f32.mrb[0].mxu0
      %v5059 = vadd.f32 0.0, %v5058
      %v5060 = vpop.f32.mrb[0].mxu0
      %5061 = vdwg.mxu0
      %v5062 = vadd.f32 %v4655, %v4920
      %v5063 = vadd.f32 %v4656, %v4923
      %v5064 = vadd.f32 %v4657, %v4928
      %v5065 = vadd.f32 %v4658, %v4931
      %v5066 = vadd.f32 %v4659, %v4936
      %v5067 = vadd.f32 %v4660, %v4939
      %v5068 = vadd.f32 %v4661, %v4944
      %v5069 = vadd.f32 %v4662, %v4947
      %v5070 = vadd.f32 %v4663, %v4952
      %v5071 = vadd.f32 %v4664, %v4955
      %v5072 = vadd.f32 %v4665, %v4960
      %v5073 = vadd.f32 %v4666, %v4963
      %v5074 = vadd.f32 %v4667, %v4968
      %v5075 = vadd.f32 %v4668, %v4971
      %v5076 = vadd.f32 %v4669, %v4976
      %v5077 = vadd.f32 %v4670, %v4979
      %v5078 = vadd.f32 %v4671, %v4984
      %v5079 = vadd.f32 %v4672, %v4987
      %v5080 = vadd.f32 %v4673, %v4992
      %v5081 = vadd.f32 %v4674, %v4995
      %v5082 = vadd.f32 %v4675, %v5000
      %v5083 = vadd.f32 %v4676, %v5003
      %v5084 = vadd.f32 %v4677, %v5008
      %v5085 = vadd.f32 %v4678, %v5011
      %v5086 = vadd.f32 %v4679, %v5016
      %v5087 = vadd.f32 %v4680, %v5019
      %v5088 = vadd.f32 %v4681, %v5024
      %v5089 = vadd.f32 %v4682, %v5027
      %v5090 = vadd.f32 %v4683, %v5032
      %v5091 = vadd.f32 %v4684, %v5035
      %v5092 = vadd.f32 %v4685, %v5040
      %v5093 = vadd.f32 %v4686, %v5043
      %v5094 = vadd.f32 %v4687, %v5048
      %v5095 = vadd.f32 %v4688, %v5051
      %v5096 = vadd.f32 %v4689, %v5056
      %v5097 = vadd.f32 %v4690, %v5059
      %5098 = vst.msk [vmem:[#allocation2] sm:$0xff] %vm145, %v5062
      %5099 = vst.msk [vmem:[#allocation2 + $0x8] sm:$0xff] %vm145, %v5063
      %5100 = vst.msk [vmem:[#allocation2 + $0x10] sm:$0xff] %vm145, %v5064
      %5101 = vst.msk [vmem:[#allocation2 + $0x18] sm:$0xff] %vm145, %v5065
      %5102 = vst.msk [vmem:[#allocation2 + $0x20] sm:$0xff] %vm145, %v5066
      %5103 = vst.msk [vmem:[#allocation2 + $0x28] sm:$0xff] %vm145, %v5067
      %5104 = vst.msk [vmem:[#allocation2 + $0x30] sm:$0xff] %vm145, %v5068
      %5105 = vst.msk [vmem:[#allocation2 + $0x38] sm:$0xff] %vm145, %v5069
      %5106 = vst.msk [vmem:[#allocation2 + $0x40] sm:$0xff] %vm145, %v5070
      %5107 = vst.msk [vmem:[#allocation2 + $0x48] sm:$0xff] %vm145, %v5071
      %5108 = vst.msk [vmem:[#allocation2 + $0x50] sm:$0xff] %vm145, %v5072
      %5109 = vst.msk [vmem:[#allocation2 + $0x58] sm:$0xff] %vm145, %v5073
      %5110 = vst.msk [vmem:[#allocation2 + $0x60] sm:$0xff] %vm145, %v5074
      %5111 = vst.msk [vmem:[#allocation2 + $0x68] sm:$0xff] %vm145, %v5075
      %5112 = vst.msk [vmem:[#allocation2 + $0x70] sm:$0xff] %vm145, %v5076
      %5113 = vst.msk [vmem:[#allocation2 + $0x78] sm:$0xff] %vm145, %v5077
      %5114 = vst.msk [vmem:[#allocation2 + $0x80] sm:$0xff] %vm145, %v5078
      %5115 = vst.msk [vmem:[#allocation2 + $0x88] sm:$0xff] %vm145, %v5079
      %5116 = vst.msk [vmem:[#allocation2 + $0x90] sm:$0xff] %vm145, %v5080
      %5117 = vst.msk [vmem:[#allocation2 + $0x98] sm:$0xff] %vm145, %v5081
      %5118 = vst.msk [vmem:[#allocation2 + $0xa0] sm:$0xff] %vm145, %v5082
      %5119 = vst.msk [vmem:[#allocation2 + $0xa8] sm:$0xff] %vm145, %v5083
      %5120 = vst.msk [vmem:[#allocation2 + $0xb0] sm:$0xff] %vm145, %v5084
      %5121 = vst.msk [vmem:[#allocation2 + $0xb8] sm:$0xff] %vm145, %v5085
      %5122 = vst.msk [vmem:[#allocation2 + $0xc0] sm:$0xff] %vm145, %v5086
      %5123 = vst.msk [vmem:[#allocation2 + $0xc8] sm:$0xff] %vm145, %v5087
      %5124 = vst.msk [vmem:[#allocation2 + $0xd0] sm:$0xff] %vm145, %v5088
      %5125 = vst.msk [vmem:[#allocation2 + $0xd8] sm:$0xff] %vm145, %v5089
      %5126 = vst.msk [vmem:[#allocation2 + $0xe0] sm:$0xff] %vm145, %v5090
      %5127 = vst.msk [vmem:[#allocation2 + $0xe8] sm:$0xff] %vm145, %v5091
      %5128 = vst.msk [vmem:[#allocation2 + $0xf0] sm:$0xff] %vm145, %v5092
      %5129 = vst.msk [vmem:[#allocation2 + $0xf8] sm:$0xff] %vm145, %v5093
      %5130 = vst.msk [vmem:[#allocation2 + $0x100] sm:$0xff] %vm145, %v5094
      %5131 = vst.msk [vmem:[#allocation2 + $0x108] sm:$0xff] %vm145, %v5095
      %5132 = vst.msk [vmem:[#allocation2 + $0x110] sm:$0xff] %vm145, %v5096
      %5133 = vst.msk [vmem:[#allocation2 + $0x118] sm:$0x3f] %vm181, %v5097
      %v5134 = vld [vmem:[#allocation2] sm:$0xff]
      %v5135 = vld [vmem:[#allocation2 + $0x8] sm:$0xff]
      %v5136 = vld [vmem:[#allocation2 + $0x10] sm:$0xff]
      %v5137 = vld [vmem:[#allocation2 + $0x18] sm:$0xff]
      %v5138 = vld [vmem:[#allocation2 + $0x20] sm:$0xff]
      %v5139 = vld [vmem:[#allocation2 + $0x28] sm:$0xff]
      %v5140 = vld [vmem:[#allocation2 + $0x30] sm:$0xff]
      %v5141 = vld [vmem:[#allocation2 + $0x38] sm:$0xff]
      %v5142 = vld [vmem:[#allocation2 + $0x40] sm:$0xff]
      %v5143 = vld [vmem:[#allocation2 + $0x48] sm:$0xff]
      %v5144 = vld [vmem:[#allocation2 + $0x50] sm:$0xff]
      %v5145 = vld [vmem:[#allocation2 + $0x58] sm:$0xff]
      %v5146 = vld [vmem:[#allocation2 + $0x60] sm:$0xff]
      %v5147 = vld [vmem:[#allocation2 + $0x68] sm:$0xff]
      %v5148 = vld [vmem:[#allocation2 + $0x70] sm:$0xff]
      %v5149 = vld [vmem:[#allocation2 + $0x78] sm:$0xff]
      %v5150 = vld [vmem:[#allocation2 + $0x80] sm:$0xff]
      %v5151 = vld [vmem:[#allocation2 + $0x88] sm:$0xff]
      %v5152 = vld [vmem:[#allocation2 + $0x90] sm:$0xff]
      %v5153 = vld [vmem:[#allocation2 + $0x98] sm:$0xff]
      %v5154 = vld [vmem:[#allocation2 + $0xa0] sm:$0xff]
      %v5155 = vld [vmem:[#allocation2 + $0xa8] sm:$0xff]
      %v5156 = vld [vmem:[#allocation2 + $0xb0] sm:$0xff]
      %v5157 = vld [vmem:[#allocation2 + $0xb8] sm:$0xff]
      %v5158 = vld [vmem:[#allocation2 + $0xc0] sm:$0xff]
      %v5159 = vld [vmem:[#allocation2 + $0xc8] sm:$0xff]
      %v5160 = vld [vmem:[#allocation2 + $0xd0] sm:$0xff]
      %v5161 = vld [vmem:[#allocation2 + $0xd8] sm:$0xff]
      %v5162 = vld [vmem:[#allocation2 + $0xe0] sm:$0xff]
      %v5163 = vld [vmem:[#allocation2 + $0xe8] sm:$0xff]
      %v5164 = vld [vmem:[#allocation2 + $0xf0] sm:$0xff]
      %v5165 = vld [vmem:[#allocation2 + $0xf8] sm:$0xff]
      %v5166 = vld [vmem:[#allocation2 + $0x100] sm:$0xff]
      %v5167 = vld [vmem:[#allocation2 + $0x108] sm:$0xff]
      %v5168 = vld [vmem:[#allocation2 + $0x110] sm:$0xff]
      %v5169 = vld [vmem:[#allocation2 + $0x118] sm:$0x3f]
      %5170 = vst.msk [vmem:[%s143] sm:$0xff] %vm145, %v5134
      %5171 = vst.msk [vmem:[%s143 + $0x8] sm:$0xff] %vm145, %v5135
      %5172 = vst.msk [vmem:[%s143 + $0x10] sm:$0xff] %vm145, %v5136
      %5173 = vst.msk [vmem:[%s143 + $0x18] sm:$0xff] %vm145, %v5137
      %5174 = vst.msk [vmem:[%s143 + $0x20] sm:$0xff] %vm145, %v5138
      %5175 = vst.msk [vmem:[%s143 + $0x28] sm:$0xff] %vm145, %v5139
      %5176 = vst.msk [vmem:[%s143 + $0x30] sm:$0xff] %vm145, %v5140
      %5177 = vst.msk [vmem:[%s143 + $0x38] sm:$0xff] %vm145, %v5141
      %5178 = vst.msk [vmem:[%s143 + $0x40] sm:$0xff] %vm145, %v5142
      %5179 = vst.msk [vmem:[%s143 + $0x48] sm:$0xff] %vm145, %v5143
      %5180 = vst.msk [vmem:[%s143 + $0x50] sm:$0xff] %vm145, %v5144
      %5181 = vst.msk [vmem:[%s143 + $0x58] sm:$0xff] %vm145, %v5145
      %5182 = vst.msk [vmem:[%s143 + $0x60] sm:$0xff] %vm145, %v5146
      %5183 = vst.msk [vmem:[%s143 + $0x68] sm:$0xff] %vm145, %v5147
      %5184 = vst.msk [vmem:[%s143 + $0x70] sm:$0xff] %vm145, %v5148
      %5185 = vst.msk [vmem:[%s143 + $0x78] sm:$0xff] %vm145, %v5149
      %5186 = vst.msk [vmem:[%s143 + $0x80] sm:$0xff] %vm145, %v5150
      %5187 = vst.msk [vmem:[%s143 + $0x88] sm:$0xff] %vm145, %v5151
      %5188 = vst.msk [vmem:[%s143 + $0x90] sm:$0xff] %vm145, %v5152
      %5189 = vst.msk [vmem:[%s143 + $0x98] sm:$0xff] %vm145, %v5153
      %5190 = vst.msk [vmem:[%s143 + $0xa0] sm:$0xff] %vm145, %v5154
      %5191 = vst.msk [vmem:[%s143 + $0xa8] sm:$0xff] %vm145, %v5155
      %5192 = vst.msk [vmem:[%s143 + $0xb0] sm:$0xff] %vm145, %v5156
      %5193 = vst.msk [vmem:[%s143 + $0xb8] sm:$0xff] %vm145, %v5157
      %5194 = vst.msk [vmem:[%s143 + $0xc0] sm:$0xff] %vm145, %v5158
      %5195 = vst.msk [vmem:[%s143 + $0xc8] sm:$0xff] %vm145, %v5159
      %5196 = vst.msk [vmem:[%s143 + $0xd0] sm:$0xff] %vm145, %v5160
      %5197 = vst.msk [vmem:[%s143 + $0xd8] sm:$0xff] %vm145, %v5161
      %5198 = vst.msk [vmem:[%s143 + $0xe0] sm:$0xff] %vm145, %v5162
      %5199 = vst.msk [vmem:[%s143 + $0xe8] sm:$0xff] %vm145, %v5163
      %5200 = vst.msk [vmem:[%s143 + $0xf0] sm:$0xff] %vm145, %v5164
      %5201 = vst.msk [vmem:[%s143 + $0xf8] sm:$0xff] %vm145, %v5165
      %5202 = vst.msk [vmem:[%s143 + $0x100] sm:$0xff] %vm145, %v5166
      %5203 = vst.msk [vmem:[%s143 + $0x108] sm:$0xff] %vm145, %v5167
      %5204 = vst.msk [vmem:[%s143 + $0x110] sm:$0xff] %vm145, %v5168
      %5205 = vst.msk [vmem:[%s143 + $0x118] sm:$0x3f] %vm181, %v5169
      %p5206 = scmp.lt.s32.totalorder %s13, 1
      %s5207 = scalar_select %p5206, %s13, 1
      %s5208 = smul.addr %s5207, 36
      %s5209 = smul.addr %s5208, 8
      %s5210 = scalar_lea.vmem %s2, %s5209
      // Predicated region
      $region29: #{preact_bottleneck_forward.13} parent=27 // pred_check
        %p5211 = pneg %p78
      $region30: #{preact_bottleneck_forward.13} parent=27 // pred_check_branch
        %5213 = sbr.rel (%p5211) target = $region32
      $region31: #{preact_bottleneck_forward.13} parent=27 // pred_region
        _
      $region32: #{preact_bottleneck_forward.13} parent=27 // pred_fallthru
        _
    $region28: #{preact_bottleneck_forward.13} parent=5 // pred_fallthru
      _
    %p5214 = scmp.le.s32.totalorder 2, %s8
    // Predicated region
    $region33: #{preact_bottleneck_forward.13} parent=5 // pred_check
      %p5215 = pneg %p5214
    $region34: #{preact_bottleneck_forward.13} parent=5 // pred_check_branch
      %5217 = sbr.rel (%p5215) target = $region36
    $region35: #{preact_bottleneck_forward.13} parent=5 // pred_region
      %s5218 = ssub.s32 %s8, 2
      // Predicated region
      $region37: #{preact_bottleneck_forward.13} parent=35 // pred_check
        %p5219 = pneg %p84
      $region38: #{preact_bottleneck_forward.13} parent=35 // pred_check_branch
        %5221 = sbr.rel (%p5219) target = $region40
      $region39: #{preact_bottleneck_forward.13} parent=35 // pred_region
        %p5222 = scmp.lt.s32.totalorder %s14, 1
        %s5223 = scalar_select %p5222, %s14, 1
        %s5224 = smul.addr %s5223, 36
        %s5225 = smul.addr %s5224, 8
        %s5226 = scalar_lea.vmem %s2, %s5225
      $region40: #{preact_bottleneck_forward.13} parent=35 // pred_fallthru
        _
    $region36: #{preact_bottleneck_forward.13} parent=5 // pred_fallthru
      _
  $region6: #{preact_bottleneck_forward.13} parent=0 // loop_footer
    %s12 = sadd.s32 1, %s8
  $region7: #{preact_bottleneck_forward.13} parent=0 // loop_footer_branch
    %7 = sbr.rel target = $region3
  $region8: #{preact_bottleneck_forward.13} parent=0 // loop_exit
    _

</llo_original>
